<compile_context>
chip_gen: v7x
topology: tpu7x:2x2x1
jax: 0.10.0
libtpu: 0.0.40
codegen_flags: <defaults>
</compile_context>

<pallas_src>
import functools
import numpy as np
import jax
import jax.numpy as jnp
from jax.experimental import pallas as pl
from jax.experimental.pallas import tpu as pltpu


# ------------------------- small config (synthetic) -------------------------
CFG = dict(
    seq_len=128, patch_size=16, in_chans=1,
    embed_dim=32, depth=2, num_heads=4,
    decoder_embed_dim=16, decoder_depth=1, decoder_num_heads=4,
    mlp_ratio=4.0,
)


# --------------------------- sincos position embed ---------------------------
def get_1d_sincos_pos_embed(embed_dim, length, cls_token=False):
    pos = np.arange(length, dtype=np.float32)
    omega = np.arange(embed_dim // 2, dtype=np.float32)
    omega /= embed_dim / 2.0
    omega = 1.0 / 10000 ** omega
    pos = np.outer(pos.reshape(-1), omega)
    emb = np.concatenate([np.sin(pos), np.cos(pos)], axis=1)
    if cls_token:
        emb = np.concatenate([np.zeros([1, embed_dim]), emb], axis=0)
    return emb.astype(np.float32)


# --------------------------- in-kernel math helpers ---------------------------
def _mdot(a, w):
    """MXU matmul: activation cast to bf16 here, weight already bf16, f32 acc."""
    return jnp.dot(a.astype(jnp.bfloat16), w, preferred_element_type=jnp.float32)


def _ln(x, g, b, eps=1e-5):
    """LayerNorm with biased variance (torch-compatible). x:(T,D), g/b:(1,D)."""
    mu = jnp.mean(x, axis=-1, keepdims=True)
    var = jnp.mean(jnp.square(x - mu), axis=-1, keepdims=True)
    return (x - mu) * jax.lax.rsqrt(var + eps) * g + b


_SQRT_HALF = 0.7071067811865476


def _erf(x):
    # TODO(synk): lax.erf lowering inside Mosaic is uncertain; use A&S 7.1.26
    # polynomial (|err| <= 1.5e-7), matching torch exact-GELU erf to f32 level.
    a1, a2, a3, a4, a5 = 0.254829592, -0.284496736, 1.421413741, -1.453152027, 1.061405429
    p = 0.3275911
    sgn = jnp.where(x >= 0.0, 1.0, -1.0)
    ax = jnp.abs(x)
    t = 1.0 / (1.0 + p * ax)
    poly = ((((a5 * t + a4) * t + a3) * t + a2) * t + a1) * t
    return sgn * (1.0 - poly * jnp.exp(-ax * ax))


def _gelu(x):
    """Exact (erf-based) GELU, matching torch nn.GELU default."""
    return 0.5 * x * (1.0 + _erf(x * _SQRT_HALF))


def _vit_block(x, p, *, B, T, H):
    """Pre-LN ViT block on a flattened (B*T, D) slab.

    Attention scale is pre-folded into the q columns of qkv_w/qkv_b; head
    outputs are accumulated through row-slices of proj_w (no lane concat).
    """
    D = x.shape[-1]
    Dh = D // H

    h = _ln(x, p["n1w"], p["n1b"])
    qkv = _mdot(h, p["qkvw"]) + p["qkvb"]                     # (B*T, 3D)

    attn_rows = []
    for b in range(B):                                        # static unroll, B=2
        qb = qkv[b * T:(b + 1) * T, :]
        acc = jnp.zeros((T, D), jnp.float32)
        for hd in range(H):                                   # static unroll, H=4
            q = qb[:, hd * Dh:(hd + 1) * Dh]
            k = qb[:, D + hd * Dh:D + (hd + 1) * Dh]
            v = qb[:, 2 * D + hd * Dh:2 * D + (hd + 1) * Dh]
            s = jax.lax.dot_general(q, k, (((1,), (1,)), ((), ())),
                                    preferred_element_type=jnp.float32)
            s = s - jnp.max(s, axis=-1, keepdims=True)
            e = jnp.exp(s)
            pr = e * pl.reciprocal(jnp.sum(e, axis=-1, keepdims=True), approx=True)
            ho = jnp.dot(pr, v, preferred_element_type=jnp.float32)     # (T, Dh)
            acc = acc + _mdot(ho, p["projw"][hd * Dh:(hd + 1) * Dh, :])
        attn_rows.append(acc)
    x = x + jnp.concatenate(attn_rows, axis=0) + p["projb"]

    h = _ln(x, p["n2w"], p["n2b"])
    h = _gelu(_mdot(h, p["f1w"]) + p["f1b"])
    return x + _mdot(h, p["f2w"]) + p["f2b"]


def _block_weights(refs, blk):
    (n1w, n1b, qkvw, qkvb, projw, projb, n2w, n2b, f1w, f1b, f2w, f2b) = refs
    return dict(n1w=n1w[blk], n1b=n1b[blk], qkvw=qkvw[blk], qkvb=qkvb[blk],
                projw=projw[blk], projb=projb[blk], n2w=n2w[blk], n2b=n2b[blk],
                f1w=f1w[blk], f1b=f1b[blk], f2w=f2w[blk], f2b=f2b[blk])


# ------------------------------ Pallas kernels -------------------------------
def _encoder_kernel(ids_keep_ref, patches_ref, pw_ref, pb_ref, pos_ref, cls_ref,
                    n1w_ref, n1b_ref, qkvw_ref, qkvb_ref, projw_ref, projb_ref,
                    n2w_ref, n2b_ref, f1w_ref, f1b_ref, f2w_ref, f2b_ref,
                    normw_ref, normb_ref, dew_ref, deb_ref,
                    lat_ref, *, B, P, len_keep, depth, num_heads):
    """Fused encoder: patch-embed + pos + keep-gather + cls + blocks + LN + dec_embed."""
    T = 1 + len_keep
    pw = pw_ref[...]
    pb = pb_ref[...]
    pos = pos_ref[...]
    cls_row = cls_ref[...]
    row_iota = jax.lax.broadcasted_iota(jnp.int32, (P, 1), 0)

    toks = []
    for b in range(B):
        emb = _mdot(patches_ref[b], pw) + pb + pos            # (P, D)
        rows = [cls_row]
        for j in range(len_keep):                             # masked-sum gather
            sel = (row_iota == ids_keep_ref[b, j]).astype(jnp.float32)
            rows.append(jnp.sum(emb * sel, axis=0, keepdims=True))
        toks.append(jnp.concatenate(rows, axis=0))            # (T, D)
    x = jnp.concatenate(toks, axis=0)                         # (B*T, D)

    blk_refs = (n1w_ref, n1b_ref, qkvw_ref, qkvb_ref, projw_ref, projb_ref,
                n2w_ref, n2b_ref, f1w_ref, f1b_ref, f2w_ref, f2b_ref)
    for blk in range(depth):
        x = _vit_block(x, _block_weights(blk_refs, blk), B=B, T=T, H=num_heads)

    h = _ln(x, normw_ref[...], normb_ref[...])
    out = _mdot(h, dew_ref[...]) + deb_ref[...]               # (B*T, Dd)
    for b in range(B):
        lat_ref[b] = out[b * T:(b + 1) * T, :]


def _decoder_kernel(ids_restore_ref, lat_ref, mtok_ref, dpos_ref,
                    n1w_ref, n1b_ref, qkvw_ref, qkvb_ref, projw_ref, projb_ref,
                    n2w_ref, n2b_ref, f1w_ref, f1b_ref, f2w_ref, f2b_ref,
                    dnw_ref, dnb_ref, dpw_ref, dpb_ref, tgt_ref, mask_ref,
                    pred_ref, loss_ref, *, B, P, len_keep, depth, num_heads):
    """Fused decoder: restore-gather + pos + block + norm + pred + masked-MSE loss."""
    Td = P + 1
    Dd = lat_ref.shape[-1]
    mtok = mtok_ref[...]                                      # (1, Dd)
    dpos = dpos_ref[...]                                      # (Td, Dd)
    row_iota = jax.lax.broadcasted_iota(jnp.int32, (P, 1), 0)

    toks = []
    for b in range(B):
        lat = lat_ref[b]                                      # (1+len_keep, Dd)
        cls_row = lat[0:1, :]
        kept = lat[1:, :]                                     # (len_keep, Dd)
        src = jnp.concatenate(
            [kept, jnp.broadcast_to(mtok, (P - len_keep, Dd))], axis=0)  # (P, Dd)
        rows = [cls_row]
        for p in range(P):                                    # masked-sum gather
            sel = (row_iota == ids_restore_ref[b, p]).astype(jnp.float32)
            rows.append(jnp.sum(src * sel, axis=0, keepdims=True))
        toks.append(jnp.concatenate(rows, axis=0) + dpos)     # (Td, Dd)
    x = jnp.concatenate(toks, axis=0)                         # (B*Td, Dd)

    blk_refs = (n1w_ref, n1b_ref, qkvw_ref, qkvb_ref, projw_ref, projb_ref,
                n2w_ref, n2b_ref, f1w_ref, f1b_ref, f2w_ref, f2b_ref)
    for blk in range(depth):
        x = _vit_block(x, _block_weights(blk_refs, blk), B=B, T=Td, H=num_heads)

    h = _ln(x, dnw_ref[...], dnb_ref[...])
    y = _mdot(h, dpw_ref[...]) + dpb_ref[...]                 # (B*Td, ps*C)

    num = 0.0
    den = 0.0
    for b in range(B):
        pred_b = y[b * Td + 1:(b + 1) * Td, :]                # drop cls row
        pred_ref[b] = pred_b
        d = pred_b - tgt_ref[b]
        per = jnp.mean(d * d, axis=-1, keepdims=True)         # (P, 1)
        m = mask_ref[b]                                       # (P, 1)
        num = num + jnp.sum(per * m)
        den = den + jnp.sum(m)
    loss_ref[0, 0] = num / den


# ------------------------------ kernel wrappers -------------------------------
def _vmem():
    return pl.BlockSpec(memory_space=pltpu.MemorySpace.VMEM)


def _smem():
    return pl.BlockSpec(memory_space=pltpu.MemorySpace.SMEM)


def encoder_forward(patches, ids_keep, kp, len_keep):
    B, P, _ = patches.shape
    Dd = CFG["decoder_embed_dim"]
    e = kp["enc"]
    kern = functools.partial(_encoder_kernel, B=B, P=P, len_keep=len_keep,
                             depth=CFG["depth"], num_heads=CFG["num_heads"])
    return pl.pallas_call(
        kern,
        out_shape=jax.ShapeDtypeStruct((B, 1 + len_keep, Dd), jnp.float32),
        in_specs=[_smem()] + [_vmem()] * 21,
        out_specs=_vmem(),
    )(ids_keep, patches, kp["patch_w"], kp["patch_b"], kp["pos_patch"], kp["cls_pos"],
      e["n1w"], e["n1b"], e["qkvw"], e["qkvb"], e["projw"], e["projb"],
      e["n2w"], e["n2b"], e["f1w"], e["f1b"], e["f2w"], e["f2b"],
      kp["norm_w"], kp["norm_b"], kp["dec_embed_w"], kp["dec_embed_b"])


def decoder_forward(latent, ids_restore, target, mask, kp, len_keep):
    B, P, PC = target.shape
    d = kp["dec"]
    kern = functools.partial(_decoder_kernel, B=B, P=P, len_keep=len_keep,
                             depth=CFG["decoder_depth"],
                             num_heads=CFG["decoder_num_heads"])
    pred, loss = pl.pallas_call(
        kern,
        out_shape=(jax.ShapeDtypeStruct((B, P, PC), jnp.float32),
                   jax.ShapeDtypeStruct((1, 1), jnp.float32)),
        in_specs=[_smem()] + [_vmem()] * 21,
        out_specs=(_vmem(), _smem()),
    )(ids_restore, latent, kp["mask_token"], kp["dec_pos"],
      d["n1w"], d["n1b"], d["qkvw"], d["qkvb"], d["projw"], d["projb"],
      d["n2w"], d["n2b"], d["f1w"], d["f1b"], d["f2w"], d["f2b"],
      kp["dec_norm_w"], kp["dec_norm_b"], kp["dec_pred_w"], kp["dec_pred_b"],
      target, mask[..., None])
    return pred, loss[0, 0]


# ------------------------------ parameter init -------------------------------
def xavier(key, shape):
    fan_in, fan_out = shape
    lim = float(np.sqrt(6.0 / (fan_in + fan_out)))
    return jax.random.uniform(key, shape, jnp.float32, -lim, lim)


def init_block_params(key, dim, mlp_ratio):
    hidden = int(dim * mlp_ratio)
    ks = jax.random.split(key, 4)
    return dict(
        norm1_w=jnp.ones((1, dim), jnp.float32), norm1_b=jnp.zeros((1, dim), jnp.float32),
        qkv_w=xavier(ks[0], (dim, 3 * dim)),   qkv_b=jnp.zeros((1, 3 * dim), jnp.float32),
        proj_w=xavier(ks[1], (dim, dim)),      proj_b=jnp.zeros((1, dim), jnp.float32),
        norm2_w=jnp.ones((1, dim), jnp.float32), norm2_b=jnp.zeros((1, dim), jnp.float32),
        fc1_w=xavier(ks[2], (dim, hidden)),    fc1_b=jnp.zeros((1, hidden), jnp.float32),
        fc2_w=xavier(ks[3], (hidden, dim)),    fc2_b=jnp.zeros((1, dim), jnp.float32),
    )


def init_params(key):
    ps, C = CFG["patch_size"], CFG["in_chans"]
    D, Dd = CFG["embed_dim"], CFG["decoder_embed_dim"]
    P = CFG["seq_len"] // ps
    keys = jax.random.split(key, 5 + CFG["depth"] + CFG["decoder_depth"])
    ki = iter(keys)
    return dict(
        patch_proj_w=xavier(next(ki), (ps * C, D)),
        patch_proj_b=jnp.zeros((1, D), jnp.float32),
        cls_token=0.02 * jax.random.normal(next(ki), (1, 1, D), jnp.float32),
        pos_embed=jnp.asarray(get_1d_sincos_pos_embed(D, P, cls_token=True))[None],
        blocks=[init_block_params(next(ki), D, CFG["mlp_ratio"])
                for _ in range(CFG["depth"])],
        norm_w=jnp.ones((1, D), jnp.float32), norm_b=jnp.zeros((1, D), jnp.float32),
        dec_embed_w=xavier(next(ki), (D, Dd)),
        dec_embed_b=jnp.zeros((1, Dd), jnp.float32),
        mask_token=0.02 * jax.random.normal(next(ki), (1, 1, Dd), jnp.float32),
        dec_pos_embed=jnp.asarray(get_1d_sincos_pos_embed(Dd, P, cls_token=True))[None],
        dec_blocks=[init_block_params(next(ki), Dd, CFG["mlp_ratio"])
                    for _ in range(CFG["decoder_depth"])],
        dec_norm_w=jnp.ones((1, Dd), jnp.float32), dec_norm_b=jnp.zeros((1, Dd), jnp.float32),
        dec_pred_w=xavier(next(ki), (Dd, ps * C)),
        dec_pred_b=jnp.zeros((1, ps * C), jnp.float32),
    )


def _prep_block_stack(blocks, dim, num_heads):
    """Stack per-block weights, pre-cast matmul weights to bf16, fold attn scale."""
    dh = dim // num_heads
    scale = dh ** -0.5
    qkvw, qkvb = [], []
    for bp in blocks:
        w = jnp.concatenate([bp["qkv_w"][:, :dim] * scale, bp["qkv_w"][:, dim:]], axis=1)
        bb = jnp.concatenate([bp["qkv_b"][:, :dim] * scale, bp["qkv_b"][:, dim:]], axis=1)
        qkvw.append(w.astype(jnp.bfloat16))
        qkvb.append(bb)
    return dict(
        n1w=jnp.stack([b["norm1_w"] for b in blocks]),
        n1b=jnp.stack([b["norm1_b"] for b in blocks]),
        qkvw=jnp.stack(qkvw), qkvb=jnp.stack(qkvb),
        projw=jnp.stack([b["proj_w"].astype(jnp.bfloat16) for b in blocks]),
        projb=jnp.stack([b["proj_b"] for b in blocks]),
        n2w=jnp.stack([b["norm2_w"] for b in blocks]),
        n2b=jnp.stack([b["norm2_b"] for b in blocks]),
        f1w=jnp.stack([b["fc1_w"].astype(jnp.bfloat16) for b in blocks]),
        f1b=jnp.stack([b["fc1_b"] for b in blocks]),
        f2w=jnp.stack([b["fc2_w"].astype(jnp.bfloat16) for b in blocks]),
        f2b=jnp.stack([b["fc2_b"] for b in blocks]),
    )


def prepare_kernel_params(params):
    """One-time (outside jit) weight prep: bf16 cast, scale fold, pos-embed split."""
    return dict(
        patch_w=params["patch_proj_w"].astype(jnp.bfloat16),
        patch_b=params["patch_proj_b"],
        pos_patch=params["pos_embed"][0, 1:, :],
        cls_pos=params["cls_token"][0] + params["pos_embed"][0, :1, :],
        enc=_prep_block_stack(params["blocks"], CFG["embed_dim"], CFG["num_heads"]),
        norm_w=params["norm_w"], norm_b=params["norm_b"],
        dec_embed_w=params["dec_embed_w"].astype(jnp.bfloat16),
        dec_embed_b=params["dec_embed_b"],
        mask_token=params["mask_token"][0],
        dec_pos=params["dec_pos_embed"][0],
        dec=_prep_block_stack(params["dec_blocks"], CFG["decoder_embed_dim"],
                              CFG["decoder_num_heads"]),
        dec_norm_w=params["dec_norm_w"], dec_norm_b=params["dec_norm_b"],
        dec_pred_w=params["dec_pred_w"].astype(jnp.bfloat16),
        dec_pred_b=params["dec_pred_b"],
    )


# ------------------------------- forward pass --------------------------------
def patchify(x, patch_size):
    B, C, L = x.shape
    P = L // patch_size
    x = x.reshape(B, C, P, patch_size).transpose(0, 2, 3, 1)
    return x.reshape(B, P, patch_size * C)


def forward(kp, sequences, noise, mask_ratio=0.75):
    B, C, L = sequences.shape
    ps = CFG["patch_size"]
    P = L // ps
    len_keep = int(P * (1 - mask_ratio))

    # patchify + random-masking index computation (argsort) stay in XLA.
    patches = patchify(sequences, ps)                               # (B, P, ps*C)
    ids_shuffle = jnp.argsort(noise, axis=1)
    ids_restore = jnp.argsort(ids_shuffle, axis=1).astype(jnp.int32)
    ids_keep = ids_shuffle[:, :len_keep].astype(jnp.int32)
    mask = (ids_restore >= len_keep).astype(jnp.float32)            # 0=keep, 1=remove

    # fused encoder: patch-embed -> gather -> blocks -> norm -> decoder_embed
    latent = encoder_forward(patches, ids_keep, kp, len_keep)       # (B, 1+keep, Dd)

    # fused decoder: restore-gather -> block -> norm -> pred -> masked MSE loss
    pred, loss = decoder_forward(latent, ids_restore, patches, mask, kp, len_keep)
    return loss, pred, mask


# ------------------------------------ main ------------------------------------
if __name__ == "__main__":
    key = jax.random.PRNGKey(0)
    k_x, k_noise = jax.random.split(key)
    P = CFG["seq_len"] // CFG["patch_size"]
    sequences = jax.random.normal(
        k_x, (2, CFG["in_chans"], CFG["seq_len"]), jnp.float32)
    # noise drives the per-sample random masking (torch.rand equivalent)
    noise = jax.random.uniform(k_noise, (2, P), jnp.float32)

    params = init_params(jax.random.PRNGKey(1))
    kparams = jax.tree_util.tree_map(lambda a: a, prepare_kernel_params(params))

    fwd = jax.jit(forward)
    loss, pred, mask = fwd(kparams, sequences, noise)
    (loss, pred, mask) = jax.block_until_ready((loss, pred, mask))

    assert pred.shape == (2, P, CFG["patch_size"] * CFG["in_chans"])
    assert mask.shape == (2, P)
    assert bool(jnp.isfinite(loss))
    print("KERNEL_OK")
</pallas_src>

<mosaic_0001>
module attributes {stable_mosaic.version = 11 : i64} {
  func.func @_encoder_kernel(%arg0: memref<2x2xi32, #tpu.memory_space<smem>>, %arg1: memref<2x8x16xf32, #tpu.memory_space<vmem>>, %arg2: memref<16x32xbf16, #tpu.memory_space<vmem>>, %arg3: memref<1x32xf32, #tpu.memory_space<vmem>>, %arg4: memref<8x32xf32, #tpu.memory_space<vmem>>, %arg5: memref<1x32xf32, #tpu.memory_space<vmem>>, %arg6: memref<2x1x32xf32, #tpu.memory_space<vmem>>, %arg7: memref<2x1x32xf32, #tpu.memory_space<vmem>>, %arg8: memref<2x32x96xbf16, #tpu.memory_space<vmem>>, %arg9: memref<2x1x96xf32, #tpu.memory_space<vmem>>, %arg10: memref<2x32x32xbf16, #tpu.memory_space<vmem>>, %arg11: memref<2x1x32xf32, #tpu.memory_space<vmem>>, %arg12: memref<2x1x32xf32, #tpu.memory_space<vmem>>, %arg13: memref<2x1x32xf32, #tpu.memory_space<vmem>>, %arg14: memref<2x32x128xbf16, #tpu.memory_space<vmem>>, %arg15: memref<2x1x128xf32, #tpu.memory_space<vmem>>, %arg16: memref<2x128x32xbf16, #tpu.memory_space<vmem>>, %arg17: memref<2x1x32xf32, #tpu.memory_space<vmem>>, %arg18: memref<1x32xf32, #tpu.memory_space<vmem>>, %arg19: memref<1x32xf32, #tpu.memory_space<vmem>>, %arg20: memref<32x16xbf16, #tpu.memory_space<vmem>>, %arg21: memref<1x16xf32, #tpu.memory_space<vmem>>, %arg22: memref<2x3x16xf32, #tpu.memory_space<vmem>>) attributes {dimension_semantics = [], scalar_prefetch = 0 : i64, scratch_operands = 0 : i64, tpu.core_type = #tpu.core_type<tc>} {
    %c0 = arith.constant 0 : index
    %c0_0 = arith.constant 0 : index
    %0 = vector.load %arg2[%c0, %c0_0] : memref<16x32xbf16, #tpu.memory_space<vmem>>, vector<16x32xbf16>
    %c0_1 = arith.constant 0 : index
    %c0_2 = arith.constant 0 : index
    %1 = vector.load %arg3[%c0_1, %c0_2] : memref<1x32xf32, #tpu.memory_space<vmem>>, vector<1x32xf32>
    %c0_3 = arith.constant 0 : index
    %c0_4 = arith.constant 0 : index
    %2 = vector.load %arg4[%c0_3, %c0_4] : memref<8x32xf32, #tpu.memory_space<vmem>>, vector<8x32xf32>
    %c0_5 = arith.constant 0 : index
    %c0_6 = arith.constant 0 : index
    %3 = vector.load %arg5[%c0_5, %c0_6] : memref<1x32xf32, #tpu.memory_space<vmem>>, vector<1x32xf32>
    %4 = tpu.iota {dimensions = array<i32: 0>} : vector<8x1xi32>
    %c0_7 = arith.constant 0 : index
    %c0_8 = arith.constant 0 : index
    %c0_9 = arith.constant 0 : index
    %5 = vector.load %arg1[%c0_7, %c0_8, %c0_9] : memref<2x8x16xf32, #tpu.memory_space<vmem>>, vector<1x8x16xf32>
    %6 = vector.shape_cast %5 : vector<1x8x16xf32> to vector<8x16xf32>
    %7 = arith.truncf %6 : vector<8x16xf32> to vector<8x16xbf16>
    %cst = arith.constant dense<0.000000e+00> : vector<8x32xf32>
    %8 = tpu.matmul %7, %0, %cst {dimension_numbers = #tpu.dot_dimension_numbers<[1], [0], [0], [1], [0, 0, 1, 1], [], []>} : vector<8x16xbf16>, vector<16x32xbf16>, vector<8x32xf32> -> vector<8x32xf32>
    %9 = vector.broadcast %1 : vector<1x32xf32> to vector<8x32xf32>
    %10 = arith.addf %8, %9 : vector<8x32xf32>
    %11 = arith.addf %10, %2 : vector<8x32xf32>
    %c0_10 = arith.constant 0 : index
    %c0_11 = arith.constant 0 : index
    %12 = memref.load %arg0[%c0_10, %c0_11] : memref<2x2xi32, #tpu.memory_space<smem>>
    %13 = vector.broadcast %12 : i32 to vector<8x1xi32>
    %14 = arith.cmpi eq, %4, %13 : vector<8x1xi32>
    %15 = arith.extui %14 : vector<8x1xi1> to vector<8x1xi32>
    %16 = arith.sitofp %15 : vector<8x1xi32> to vector<8x1xf32>
    %17 = vector.broadcast %16 : vector<8x1xf32> to vector<8x32xf32>
    %18 = arith.mulf %11, %17 : vector<8x32xf32>
    %cst_12 = arith.constant dense<0.000000e+00> : vector<32xf32>
    %19 = vector.multi_reduction <add>, %18, %cst_12 [0] : vector<8x32xf32> to vector<32xf32>
    %20 = vector.shape_cast %19 : vector<32xf32> to vector<1x32xf32>
    %c0_13 = arith.constant 0 : index
    %c1 = arith.constant 1 : index
    %21 = memref.load %arg0[%c0_13, %c1] : memref<2x2xi32, #tpu.memory_space<smem>>
    %22 = vector.broadcast %21 : i32 to vector<8x1xi32>
    %23 = arith.cmpi eq, %4, %22 : vector<8x1xi32>
    %24 = arith.extui %23 : vector<8x1xi1> to vector<8x1xi32>
    %25 = arith.sitofp %24 : vector<8x1xi32> to vector<8x1xf32>
    %26 = vector.broadcast %25 : vector<8x1xf32> to vector<8x32xf32>
    %27 = arith.mulf %11, %26 : vector<8x32xf32>
    %cst_14 = arith.constant dense<0.000000e+00> : vector<32xf32>
    %28 = vector.multi_reduction <add>, %27, %cst_14 [0] : vector<8x32xf32> to vector<32xf32>
    %29 = vector.shape_cast %28 : vector<32xf32> to vector<1x32xf32>
    %30 = tpu.concatenate %3, %20, %29 in 0 : vector<1x32xf32>, vector<1x32xf32>, vector<1x32xf32> -> vector<3x32xf32>
    %c1_15 = arith.constant 1 : index
    %c0_16 = arith.constant 0 : index
    %c0_17 = arith.constant 0 : index
    %31 = vector.load %arg1[%c1_15, %c0_16, %c0_17] : memref<2x8x16xf32, #tpu.memory_space<vmem>>, vector<1x8x16xf32>
    %32 = vector.shape_cast %31 : vector<1x8x16xf32> to vector<8x16xf32>
    %33 = arith.truncf %32 : vector<8x16xf32> to vector<8x16xbf16>
    %cst_18 = arith.constant dense<0.000000e+00> : vector<8x32xf32>
    %34 = tpu.matmul %33, %0, %cst_18 {dimension_numbers = #tpu.dot_dimension_numbers<[1], [0], [0], [1], [0, 0, 1, 1], [], []>} : vector<8x16xbf16>, vector<16x32xbf16>, vector<8x32xf32> -> vector<8x32xf32>
    %35 = vector.broadcast %1 : vector<1x32xf32> to vector<8x32xf32>
    %36 = arith.addf %34, %35 : vector<8x32xf32>
    %37 = arith.addf %36, %2 : vector<8x32xf32>
    %c1_19 = arith.constant 1 : index
    %c0_20 = arith.constant 0 : index
    %38 = memref.load %arg0[%c1_19, %c0_20] : memref<2x2xi32, #tpu.memory_space<smem>>
    %39 = vector.broadcast %38 : i32 to vector<8x1xi32>
    %40 = arith.cmpi eq, %4, %39 : vector<8x1xi32>
    %41 = arith.extui %40 : vector<8x1xi1> to vector<8x1xi32>
    %42 = arith.sitofp %41 : vector<8x1xi32> to vector<8x1xf32>
    %43 = vector.broadcast %42 : vector<8x1xf32> to vector<8x32xf32>
    %44 = arith.mulf %37, %43 : vector<8x32xf32>
    %cst_21 = arith.constant dense<0.000000e+00> : vector<32xf32>
    %45 = vector.multi_reduction <add>, %44, %cst_21 [0] : vector<8x32xf32> to vector<32xf32>
    %46 = vector.shape_cast %45 : vector<32xf32> to vector<1x32xf32>
    %c1_22 = arith.constant 1 : index
    %c1_23 = arith.constant 1 : index
    %47 = memref.load %arg0[%c1_22, %c1_23] : memref<2x2xi32, #tpu.memory_space<smem>>
    %48 = vector.broadcast %47 : i32 to vector<8x1xi32>
    %49 = arith.cmpi eq, %4, %48 : vector<8x1xi32>
    %50 = arith.extui %49 : vector<8x1xi1> to vector<8x1xi32>
    %51 = arith.sitofp %50 : vector<8x1xi32> to vector<8x1xf32>
    %52 = vector.broadcast %51 : vector<8x1xf32> to vector<8x32xf32>
    %53 = arith.mulf %37, %52 : vector<8x32xf32>
    %cst_24 = arith.constant dense<0.000000e+00> : vector<32xf32>
    %54 = vector.multi_reduction <add>, %53, %cst_24 [0] : vector<8x32xf32> to vector<32xf32>
    %55 = vector.shape_cast %54 : vector<32xf32> to vector<1x32xf32>
    %56 = tpu.concatenate %3, %46, %55 in 0 : vector<1x32xf32>, vector<1x32xf32>, vector<1x32xf32> -> vector<3x32xf32>
    %57 = tpu.concatenate %30, %56 in 0 : vector<3x32xf32>, vector<3x32xf32> -> vector<6x32xf32>
    %c0_25 = arith.constant 0 : index
    %c0_26 = arith.constant 0 : index
    %c0_27 = arith.constant 0 : index
    %58 = vector.load %arg6[%c0_25, %c0_26, %c0_27] : memref<2x1x32xf32, #tpu.memory_space<vmem>>, vector<1x1x32xf32>
    %59 = vector.shape_cast %58 : vector<1x1x32xf32> to vector<1x32xf32>
    %c0_28 = arith.constant 0 : index
    %c0_29 = arith.constant 0 : index
    %c0_30 = arith.constant 0 : index
    %60 = vector.load %arg7[%c0_28, %c0_29, %c0_30] : memref<2x1x32xf32, #tpu.memory_space<vmem>>, vector<1x1x32xf32>
    %61 = vector.shape_cast %60 : vector<1x1x32xf32> to vector<1x32xf32>
    %c0_31 = arith.constant 0 : index
    %c0_32 = arith.constant 0 : index
    %c0_33 = arith.constant 0 : index
    %62 = vector.load %arg8[%c0_31, %c0_32, %c0_33] : memref<2x32x96xbf16, #tpu.memory_space<vmem>>, vector<1x32x96xbf16>
    %63 = vector.shape_cast %62 : vector<1x32x96xbf16> to vector<32x96xbf16>
    %c0_34 = arith.constant 0 : index
    %c0_35 = arith.constant 0 : index
    %c0_36 = arith.constant 0 : index
    %64 = vector.load %arg9[%c0_34, %c0_35, %c0_36] : memref<2x1x96xf32, #tpu.memory_space<vmem>>, vector<1x1x96xf32>
    %65 = vector.shape_cast %64 : vector<1x1x96xf32> to vector<1x96xf32>
    %c0_37 = arith.constant 0 : index
    %c0_38 = arith.constant 0 : index
    %c0_39 = arith.constant 0 : index
    %66 = vector.load %arg10[%c0_37, %c0_38, %c0_39] : memref<2x32x32xbf16, #tpu.memory_space<vmem>>, vector<1x32x32xbf16>
    %67 = vector.shape_cast %66 : vector<1x32x32xbf16> to vector<32x32xbf16>
    %c0_40 = arith.constant 0 : index
    %c0_41 = arith.constant 0 : index
    %c0_42 = arith.constant 0 : index
    %68 = vector.load %arg11[%c0_40, %c0_41, %c0_42] : memref<2x1x32xf32, #tpu.memory_space<vmem>>, vector<1x1x32xf32>
    %69 = vector.shape_cast %68 : vector<1x1x32xf32> to vector<1x32xf32>
    %c0_43 = arith.constant 0 : index
    %c0_44 = arith.constant 0 : index
    %c0_45 = arith.constant 0 : index
    %70 = vector.load %arg12[%c0_43, %c0_44, %c0_45] : memref<2x1x32xf32, #tpu.memory_space<vmem>>, vector<1x1x32xf32>
    %71 = vector.shape_cast %70 : vector<1x1x32xf32> to vector<1x32xf32>
    %c0_46 = arith.constant 0 : index
    %c0_47 = arith.constant 0 : index
    %c0_48 = arith.constant 0 : index
    %72 = vector.load %arg13[%c0_46, %c0_47, %c0_48] : memref<2x1x32xf32, #tpu.memory_space<vmem>>, vector<1x1x32xf32>
    %73 = vector.shape_cast %72 : vector<1x1x32xf32> to vector<1x32xf32>
    %c0_49 = arith.constant 0 : index
    %c0_50 = arith.constant 0 : index
    %c0_51 = arith.constant 0 : index
    %74 = vector.load %arg14[%c0_49, %c0_50, %c0_51] : memref<2x32x128xbf16, #tpu.memory_space<vmem>>, vector<1x32x128xbf16>
    %75 = vector.shape_cast %74 : vector<1x32x128xbf16> to vector<32x128xbf16>
    %c0_52 = arith.constant 0 : index
    %c0_53 = arith.constant 0 : index
    %c0_54 = arith.constant 0 : index
    %76 = vector.load %arg15[%c0_52, %c0_53, %c0_54] : memref<2x1x128xf32, #tpu.memory_space<vmem>>, vector<1x1x128xf32>
    %77 = vector.shape_cast %76 : vector<1x1x128xf32> to vector<1x128xf32>
    %c0_55 = arith.constant 0 : index
    %c0_56 = arith.constant 0 : index
    %c0_57 = arith.constant 0 : index
    %78 = vector.load %arg16[%c0_55, %c0_56, %c0_57] : memref<2x128x32xbf16, #tpu.memory_space<vmem>>, vector<1x128x32xbf16>
    %79 = vector.shape_cast %78 : vector<1x128x32xbf16> to vector<128x32xbf16>
    %c0_58 = arith.constant 0 : index
    %c0_59 = arith.constant 0 : index
    %c0_60 = arith.constant 0 : index
    %80 = vector.load %arg17[%c0_58, %c0_59, %c0_60] : memref<2x1x32xf32, #tpu.memory_space<vmem>>, vector<1x1x32xf32>
    %81 = vector.shape_cast %80 : vector<1x1x32xf32> to vector<1x32xf32>
    %cst_61 = arith.constant dense<0.000000e+00> : vector<6xf32>
    %82 = vector.multi_reduction <add>, %57, %cst_61 [1] : vector<6x32xf32> to vector<6xf32>
    %83 = vector.shape_cast %82 : vector<6xf32> to vector<6x1xf32>
    %cst_62 = arith.constant 3.200000e+01 : f32
    %84 = vector.broadcast %cst_62 : f32 to vector<6x1xf32>
    %85 = arith.divf %83, %84 : vector<6x1xf32>
    %86 = vector.broadcast %85 : vector<6x1xf32> to vector<6x32xf32>
    %87 = arith.subf %57, %86 : vector<6x32xf32>
    %88 = arith.mulf %87, %87 : vector<6x32xf32>
    %cst_63 = arith.constant dense<0.000000e+00> : vector<6xf32>
    %89 = vector.multi_reduction <add>, %88, %cst_63 [1] : vector<6x32xf32> to vector<6xf32>
    %90 = vector.shape_cast %89 : vector<6xf32> to vector<6x1xf32>
    %cst_64 = arith.constant 3.200000e+01 : f32
    %91 = vector.broadcast %cst_64 : f32 to vector<6x1xf32>
    %92 = arith.divf %90, %91 : vector<6x1xf32>
    %93 = vector.broadcast %85 : vector<6x1xf32> to vector<6x32xf32>
    %94 = arith.subf %57, %93 : vector<6x32xf32>
    %cst_65 = arith.constant 9.99999974E-6 : f32
    %95 = vector.broadcast %cst_65 : f32 to vector<6x1xf32>
    %96 = arith.addf %92, %95 : vector<6x1xf32>
    %97 = math.rsqrt %96 : vector<6x1xf32>
    %98 = vector.broadcast %97 : vector<6x1xf32> to vector<6x32xf32>
    %99 = arith.mulf %94, %98 : vector<6x32xf32>
    %100 = vector.broadcast %59 : vector<1x32xf32> to vector<6x32xf32>
    %101 = arith.mulf %99, %100 : vector<6x32xf32>
    %102 = vector.broadcast %61 : vector<1x32xf32> to vector<6x32xf32>
    %103 = arith.addf %101, %102 : vector<6x32xf32>
    %104 = arith.truncf %103 : vector<6x32xf32> to vector<6x32xbf16>
    %cst_66 = arith.constant dense<0.000000e+00> : vector<6x96xf32>
    %105 = tpu.matmul %104, %63, %cst_66 {dimension_numbers = #tpu.dot_dimension_numbers<[1], [0], [0], [1], [0, 0, 1, 1], [], []>} : vector<6x32xbf16>, vector<32x96xbf16>, vector<6x96xf32> -> vector<6x96xf32>
    %106 = vector.broadcast %65 : vector<1x96xf32> to vector<6x96xf32>
    %107 = arith.addf %105, %106 : vector<6x96xf32>
    %108 = vector.extract_strided_slice %107 {offsets = [0, 0], sizes = [3, 96], strides = [1, 1]} : vector<6x96xf32> to vector<3x96xf32>
    %cst_67 = arith.constant 0.000000e+00 : f32
    %109 = vector.broadcast %cst_67 : f32 to vector<3x32xf32>
    %110 = vector.extract_strided_slice %108 {offsets = [0, 0], sizes = [3, 8], strides = [1, 1]} : vector<3x96xf32> to vector<3x8xf32>
    %111 = vector.extract_strided_slice %108 {offsets = [0, 32], sizes = [3, 8], strides = [1, 1]} : vector<3x96xf32> to vector<3x8xf32>
    %112 = vector.extract_strided_slice %108 {offsets = [0, 64], sizes = [3, 8], strides = [1, 1]} : vector<3x96xf32> to vector<3x8xf32>
    %cst_68 = arith.constant dense<0.000000e+00> : vector<3x3xf32>
    %113 = tpu.matmul %110, %111, %cst_68 {dimension_numbers = #tpu.dot_dimension_numbers<[1], [1], [0], [0], [0, 0, 1, 0], [], []>} : vector<3x8xf32>, vector<3x8xf32>, vector<3x3xf32> -> vector<3x3xf32>
    %cst_69 = arith.constant dense<0xFF800000> : vector<3xf32>
    %114 = vector.multi_reduction <maximumf>, %113, %cst_69 [1] : vector<3x3xf32> to vector<3xf32>
    %115 = vector.shape_cast %114 : vector<3xf32> to vector<3x1xf32>
    %116 = vector.broadcast %115 : vector<3x1xf32> to vector<3x3xf32>
    %117 = arith.subf %113, %116 : vector<3x3xf32>
    %118 = math.exp %117 : vector<3x3xf32>
    %cst_70 = arith.constant dense<0.000000e+00> : vector<3xf32>
    %119 = vector.multi_reduction <add>, %118, %cst_70 [1] : vector<3x3xf32> to vector<3xf32>
    %120 = vector.shape_cast %119 : vector<3xf32> to vector<3x1xf32>
    %121 = tpu.reciprocal %120 {approx = true} : vector<3x1xf32> -> vector<3x1xf32>
    %122 = vector.broadcast %121 : vector<3x1xf32> to vector<3x3xf32>
    %123 = arith.mulf %118, %122 : vector<3x3xf32>
    %cst_71 = arith.constant dense<0.000000e+00> : vector<3x8xf32>
    %124 = tpu.matmul %123, %112, %cst_71 {dimension_numbers = #tpu.dot_dimension_numbers<[1], [0], [0], [1], [0, 0, 1, 1], [], []>} : vector<3x3xf32>, vector<3x8xf32>, vector<3x8xf32> -> vector<3x8xf32>
    %125 = vector.extract_strided_slice %67 {offsets = [0, 0], sizes = [8, 32], strides = [1, 1]} : vector<32x32xbf16> to vector<8x32xbf16>
    %126 = arith.truncf %124 : vector<3x8xf32> to vector<3x8xbf16>
    %cst_72 = arith.constant dense<0.000000e+00> : vector<3x32xf32>
    %127 = tpu.matmul %126, %125, %cst_72 {dimension_numbers = #tpu.dot_dimension_numbers<[1], [0], [0], [1], [0, 0, 1, 1], [], []>} : vector<3x8xbf16>, vector<8x32xbf16>, vector<3x32xf32> -> vector<3x32xf32>
    %128 = arith.addf %109, %127 : vector<3x32xf32>
    %129 = vector.extract_strided_slice %108 {offsets = [0, 8], sizes = [3, 8], strides = [1, 1]} : vector<3x96xf32> to vector<3x8xf32>
    %130 = vector.extract_strided_slice %108 {offsets = [0, 40], sizes = [3, 8], strides = [1, 1]} : vector<3x96xf32> to vector<3x8xf32>
    %131 = vector.extract_strided_slice %108 {offsets = [0, 72], sizes = [3, 8], strides = [1, 1]} : vector<3x96xf32> to vector<3x8xf32>
    %cst_73 = arith.constant dense<0.000000e+00> : vector<3x3xf32>
    %132 = tpu.matmul %129, %130, %cst_73 {dimension_numbers = #tpu.dot_dimension_numbers<[1], [1], [0], [0], [0, 0, 1, 0], [], []>} : vector<3x8xf32>, vector<3x8xf32>, vector<3x3xf32> -> vector<3x3xf32>
    %cst_74 = arith.constant dense<0xFF800000> : vector<3xf32>
    %133 = vector.multi_reduction <maximumf>, %132, %cst_74 [1] : vector<3x3xf32> to vector<3xf32>
    %134 = vector.shape_cast %133 : vector<3xf32> to vector<3x1xf32>
    %135 = vector.broadcast %134 : vector<3x1xf32> to vector<3x3xf32>
    %136 = arith.subf %132, %135 : vector<3x3xf32>
    %137 = math.exp %136 : vector<3x3xf32>
    %cst_75 = arith.constant dense<0.000000e+00> : vector<3xf32>
    %138 = vector.multi_reduction <add>, %137, %cst_75 [1] : vector<3x3xf32> to vector<3xf32>
    %139 = vector.shape_cast %138 : vector<3xf32> to vector<3x1xf32>
    %140 = tpu.reciprocal %139 {approx = true} : vector<3x1xf32> -> vector<3x1xf32>
    %141 = vector.broadcast %140 : vector<3x1xf32> to vector<3x3xf32>
    %142 = arith.mulf %137, %141 : vector<3x3xf32>
    %cst_76 = arith.constant dense<0.000000e+00> : vector<3x8xf32>
    %143 = tpu.matmul %142, %131, %cst_76 {dimension_numbers = #tpu.dot_dimension_numbers<[1], [0], [0], [1], [0, 0, 1, 1], [], []>} : vector<3x3xf32>, vector<3x8xf32>, vector<3x8xf32> -> vector<3x8xf32>
    %144 = vector.extract_strided_slice %67 {offsets = [8, 0], sizes = [8, 32], strides = [1, 1]} : vector<32x32xbf16> to vector<8x32xbf16>
    %145 = arith.truncf %143 : vector<3x8xf32> to vector<3x8xbf16>
    %cst_77 = arith.constant dense<0.000000e+00> : vector<3x32xf32>
    %146 = tpu.matmul %145, %144, %cst_77 {dimension_numbers = #tpu.dot_dimension_numbers<[1], [0], [0], [1], [0, 0, 1, 1], [], []>} : vector<3x8xbf16>, vector<8x32xbf16>, vector<3x32xf32> -> vector<3x32xf32>
    %147 = arith.addf %128, %146 : vector<3x32xf32>
    %148 = vector.extract_strided_slice %108 {offsets = [0, 16], sizes = [3, 8], strides = [1, 1]} : vector<3x96xf32> to vector<3x8xf32>
    %149 = vector.extract_strided_slice %108 {offsets = [0, 48], sizes = [3, 8], strides = [1, 1]} : vector<3x96xf32> to vector<3x8xf32>
    %150 = vector.extract_strided_slice %108 {offsets = [0, 80], sizes = [3, 8], strides = [1, 1]} : vector<3x96xf32> to vector<3x8xf32>
    %cst_78 = arith.constant dense<0.000000e+00> : vector<3x3xf32>
    %151 = tpu.matmul %148, %149, %cst_78 {dimension_numbers = #tpu.dot_dimension_numbers<[1], [1], [0], [0], [0, 0, 1, 0], [], []>} : vector<3x8xf32>, vector<3x8xf32>, vector<3x3xf32> -> vector<3x3xf32>
    %cst_79 = arith.constant dense<0xFF800000> : vector<3xf32>
    %152 = vector.multi_reduction <maximumf>, %151, %cst_79 [1] : vector<3x3xf32> to vector<3xf32>
    %153 = vector.shape_cast %152 : vector<3xf32> to vector<3x1xf32>
    %154 = vector.broadcast %153 : vector<3x1xf32> to vector<3x3xf32>
    %155 = arith.subf %151, %154 : vector<3x3xf32>
    %156 = math.exp %155 : vector<3x3xf32>
    %cst_80 = arith.constant dense<0.000000e+00> : vector<3xf32>
    %157 = vector.multi_reduction <add>, %156, %cst_80 [1] : vector<3x3xf32> to vector<3xf32>
    %158 = vector.shape_cast %157 : vector<3xf32> to vector<3x1xf32>
    %159 = tpu.reciprocal %158 {approx = true} : vector<3x1xf32> -> vector<3x1xf32>
    %160 = vector.broadcast %159 : vector<3x1xf32> to vector<3x3xf32>
    %161 = arith.mulf %156, %160 : vector<3x3xf32>
    %cst_81 = arith.constant dense<0.000000e+00> : vector<3x8xf32>
    %162 = tpu.matmul %161, %150, %cst_81 {dimension_numbers = #tpu.dot_dimension_numbers<[1], [0], [0], [1], [0, 0, 1, 1], [], []>} : vector<3x3xf32>, vector<3x8xf32>, vector<3x8xf32> -> vector<3x8xf32>
    %163 = vector.extract_strided_slice %67 {offsets = [16, 0], sizes = [8, 32], strides = [1, 1]} : vector<32x32xbf16> to vector<8x32xbf16>
    %164 = arith.truncf %162 : vector<3x8xf32> to vector<3x8xbf16>
    %cst_82 = arith.constant dense<0.000000e+00> : vector<3x32xf32>
    %165 = tpu.matmul %164, %163, %cst_82 {dimension_numbers = #tpu.dot_dimension_numbers<[1], [0], [0], [1], [0, 0, 1, 1], [], []>} : vector<3x8xbf16>, vector<8x32xbf16>, vector<3x32xf32> -> vector<3x32xf32>
    %166 = arith.addf %147, %165 : vector<3x32xf32>
    %167 = vector.extract_strided_slice %108 {offsets = [0, 24], sizes = [3, 8], strides = [1, 1]} : vector<3x96xf32> to vector<3x8xf32>
    %168 = vector.extract_strided_slice %108 {offsets = [0, 56], sizes = [3, 8], strides = [1, 1]} : vector<3x96xf32> to vector<3x8xf32>
    %169 = vector.extract_strided_slice %108 {offsets = [0, 88], sizes = [3, 8], strides = [1, 1]} : vector<3x96xf32> to vector<3x8xf32>
    %cst_83 = arith.constant dense<0.000000e+00> : vector<3x3xf32>
    %170 = tpu.matmul %167, %168, %cst_83 {dimension_numbers = #tpu.dot_dimension_numbers<[1], [1], [0], [0], [0, 0, 1, 0], [], []>} : vector<3x8xf32>, vector<3x8xf32>, vector<3x3xf32> -> vector<3x3xf32>
    %cst_84 = arith.constant dense<0xFF800000> : vector<3xf32>
    %171 = vector.multi_reduction <maximumf>, %170, %cst_84 [1] : vector<3x3xf32> to vector<3xf32>
    %172 = vector.shape_cast %171 : vector<3xf32> to vector<3x1xf32>
    %173 = vector.broadcast %172 : vector<3x1xf32> to vector<3x3xf32>
    %174 = arith.subf %170, %173 : vector<3x3xf32>
    %175 = math.exp %174 : vector<3x3xf32>
    %cst_85 = arith.constant dense<0.000000e+00> : vector<3xf32>
    %176 = vector.multi_reduction <add>, %175, %cst_85 [1] : vector<3x3xf32> to vector<3xf32>
    %177 = vector.shape_cast %176 : vector<3xf32> to vector<3x1xf32>
    %178 = tpu.reciprocal %177 {approx = true} : vector<3x1xf32> -> vector<3x1xf32>
    %179 = vector.broadcast %178 : vector<3x1xf32> to vector<3x3xf32>
    %180 = arith.mulf %175, %179 : vector<3x3xf32>
    %cst_86 = arith.constant dense<0.000000e+00> : vector<3x8xf32>
    %181 = tpu.matmul %180, %169, %cst_86 {dimension_numbers = #tpu.dot_dimension_numbers<[1], [0], [0], [1], [0, 0, 1, 1], [], []>} : vector<3x3xf32>, vector<3x8xf32>, vector<3x8xf32> -> vector<3x8xf32>
    %182 = vector.extract_strided_slice %67 {offsets = [24, 0], sizes = [8, 32], strides = [1, 1]} : vector<32x32xbf16> to vector<8x32xbf16>
    %183 = arith.truncf %181 : vector<3x8xf32> to vector<3x8xbf16>
    %cst_87 = arith.constant dense<0.000000e+00> : vector<3x32xf32>
    %184 = tpu.matmul %183, %182, %cst_87 {dimension_numbers = #tpu.dot_dimension_numbers<[1], [0], [0], [1], [0, 0, 1, 1], [], []>} : vector<3x8xbf16>, vector<8x32xbf16>, vector<3x32xf32> -> vector<3x32xf32>
    %185 = arith.addf %166, %184 : vector<3x32xf32>
    %186 = vector.extract_strided_slice %107 {offsets = [3, 0], sizes = [3, 96], strides = [1, 1]} : vector<6x96xf32> to vector<3x96xf32>
    %cst_88 = arith.constant 0.000000e+00 : f32
    %187 = vector.broadcast %cst_88 : f32 to vector<3x32xf32>
    %188 = vector.extract_strided_slice %186 {offsets = [0, 0], sizes = [3, 8], strides = [1, 1]} : vector<3x96xf32> to vector<3x8xf32>
    %189 = vector.extract_strided_slice %186 {offsets = [0, 32], sizes = [3, 8], strides = [1, 1]} : vector<3x96xf32> to vector<3x8xf32>
    %190 = vector.extract_strided_slice %186 {offsets = [0, 64], sizes = [3, 8], strides = [1, 1]} : vector<3x96xf32> to vector<3x8xf32>
    %cst_89 = arith.constant dense<0.000000e+00> : vector<3x3xf32>
    %191 = tpu.matmul %188, %189, %cst_89 {dimension_numbers = #tpu.dot_dimension_numbers<[1], [1], [0], [0], [0, 0, 1, 0], [], []>} : vector<3x8xf32>, vector<3x8xf32>, vector<3x3xf32> -> vector<3x3xf32>
    %cst_90 = arith.constant dense<0xFF800000> : vector<3xf32>
    %192 = vector.multi_reduction <maximumf>, %191, %cst_90 [1] : vector<3x3xf32> to vector<3xf32>
    %193 = vector.shape_cast %192 : vector<3xf32> to vector<3x1xf32>
    %194 = vector.broadcast %193 : vector<3x1xf32> to vector<3x3xf32>
    %195 = arith.subf %191, %194 : vector<3x3xf32>
    %196 = math.exp %195 : vector<3x3xf32>
    %cst_91 = arith.constant dense<0.000000e+00> : vector<3xf32>
    %197 = vector.multi_reduction <add>, %196, %cst_91 [1] : vector<3x3xf32> to vector<3xf32>
    %198 = vector.shape_cast %197 : vector<3xf32> to vector<3x1xf32>
    %199 = tpu.reciprocal %198 {approx = true} : vector<3x1xf32> -> vector<3x1xf32>
    %200 = vector.broadcast %199 : vector<3x1xf32> to vector<3x3xf32>
    %201 = arith.mulf %196, %200 : vector<3x3xf32>
    %cst_92 = arith.constant dense<0.000000e+00> : vector<3x8xf32>
    %202 = tpu.matmul %201, %190, %cst_92 {dimension_numbers = #tpu.dot_dimension_numbers<[1], [0], [0], [1], [0, 0, 1, 1], [], []>} : vector<3x3xf32>, vector<3x8xf32>, vector<3x8xf32> -> vector<3x8xf32>
    %203 = vector.extract_strided_slice %67 {offsets = [0, 0], sizes = [8, 32], strides = [1, 1]} : vector<32x32xbf16> to vector<8x32xbf16>
    %204 = arith.truncf %202 : vector<3x8xf32> to vector<3x8xbf16>
    %cst_93 = arith.constant dense<0.000000e+00> : vector<3x32xf32>
    %205 = tpu.matmul %204, %203, %cst_93 {dimension_numbers = #tpu.dot_dimension_numbers<[1], [0], [0], [1], [0, 0, 1, 1], [], []>} : vector<3x8xbf16>, vector<8x32xbf16>, vector<3x32xf32> -> vector<3x32xf32>
    %206 = arith.addf %187, %205 : vector<3x32xf32>
    %207 = vector.extract_strided_slice %186 {offsets = [0, 8], sizes = [3, 8], strides = [1, 1]} : vector<3x96xf32> to vector<3x8xf32>
    %208 = vector.extract_strided_slice %186 {offsets = [0, 40], sizes = [3, 8], strides = [1, 1]} : vector<3x96xf32> to vector<3x8xf32>
    %209 = vector.extract_strided_slice %186 {offsets = [0, 72], sizes = [3, 8], strides = [1, 1]} : vector<3x96xf32> to vector<3x8xf32>
    %cst_94 = arith.constant dense<0.000000e+00> : vector<3x3xf32>
    %210 = tpu.matmul %207, %208, %cst_94 {dimension_numbers = #tpu.dot_dimension_numbers<[1], [1], [0], [0], [0, 0, 1, 0], [], []>} : vector<3x8xf32>, vector<3x8xf32>, vector<3x3xf32> -> vector<3x3xf32>
    %cst_95 = arith.constant dense<0xFF800000> : vector<3xf32>
    %211 = vector.multi_reduction <maximumf>, %210, %cst_95 [1] : vector<3x3xf32> to vector<3xf32>
    %212 = vector.shape_cast %211 : vector<3xf32> to vector<3x1xf32>
    %213 = vector.broadcast %212 : vector<3x1xf32> to vector<3x3xf32>
    %214 = arith.subf %210, %213 : vector<3x3xf32>
    %215 = math.exp %214 : vector<3x3xf32>
    %cst_96 = arith.constant dense<0.000000e+00> : vector<3xf32>
    %216 = vector.multi_reduction <add>, %215, %cst_96 [1] : vector<3x3xf32> to vector<3xf32>
    %217 = vector.shape_cast %216 : vector<3xf32> to vector<3x1xf32>
    %218 = tpu.reciprocal %217 {approx = true} : vector<3x1xf32> -> vector<3x1xf32>
    %219 = vector.broadcast %218 : vector<3x1xf32> to vector<3x3xf32>
    %220 = arith.mulf %215, %219 : vector<3x3xf32>
    %cst_97 = arith.constant dense<0.000000e+00> : vector<3x8xf32>
    %221 = tpu.matmul %220, %209, %cst_97 {dimension_numbers = #tpu.dot_dimension_numbers<[1], [0], [0], [1], [0, 0, 1, 1], [], []>} : vector<3x3xf32>, vector<3x8xf32>, vector<3x8xf32> -> vector<3x8xf32>
    %222 = vector.extract_strided_slice %67 {offsets = [8, 0], sizes = [8, 32], strides = [1, 1]} : vector<32x32xbf16> to vector<8x32xbf16>
    %223 = arith.truncf %221 : vector<3x8xf32> to vector<3x8xbf16>
    %cst_98 = arith.constant dense<0.000000e+00> : vector<3x32xf32>
    %224 = tpu.matmul %223, %222, %cst_98 {dimension_numbers = #tpu.dot_dimension_numbers<[1], [0], [0], [1], [0, 0, 1, 1], [], []>} : vector<3x8xbf16>, vector<8x32xbf16>, vector<3x32xf32> -> vector<3x32xf32>
    %225 = arith.addf %206, %224 : vector<3x32xf32>
    %226 = vector.extract_strided_slice %186 {offsets = [0, 16], sizes = [3, 8], strides = [1, 1]} : vector<3x96xf32> to vector<3x8xf32>
    %227 = vector.extract_strided_slice %186 {offsets = [0, 48], sizes = [3, 8], strides = [1, 1]} : vector<3x96xf32> to vector<3x8xf32>
    %228 = vector.extract_strided_slice %186 {offsets = [0, 80], sizes = [3, 8], strides = [1, 1]} : vector<3x96xf32> to vector<3x8xf32>
    %cst_99 = arith.constant dense<0.000000e+00> : vector<3x3xf32>
    %229 = tpu.matmul %226, %227, %cst_99 {dimension_numbers = #tpu.dot_dimension_numbers<[1], [1], [0], [0], [0, 0, 1, 0], [], []>} : vector<3x8xf32>, vector<3x8xf32>, vector<3x3xf32> -> vector<3x3xf32>
    %cst_100 = arith.constant dense<0xFF800000> : vector<3xf32>
    %230 = vector.multi_reduction <maximumf>, %229, %cst_100 [1] : vector<3x3xf32> to vector<3xf32>
    %231 = vector.shape_cast %230 : vector<3xf32> to vector<3x1xf32>
    %232 = vector.broadcast %231 : vector<3x1xf32> to vector<3x3xf32>
    %233 = arith.subf %229, %232 : vector<3x3xf32>
    %234 = math.exp %233 : vector<3x3xf32>
    %cst_101 = arith.constant dense<0.000000e+00> : vector<3xf32>
    %235 = vector.multi_reduction <add>, %234, %cst_101 [1] : vector<3x3xf32> to vector<3xf32>
    %236 = vector.shape_cast %235 : vector<3xf32> to vector<3x1xf32>
    %237 = tpu.reciprocal %236 {approx = true} : vector<3x1xf32> -> vector<3x1xf32>
    %238 = vector.broadcast %237 : vector<3x1xf32> to vector<3x3xf32>
    %239 = arith.mulf %234, %238 : vector<3x3xf32>
    %cst_102 = arith.constant dense<0.000000e+00> : vector<3x8xf32>
    %240 = tpu.matmul %239, %228, %cst_102 {dimension_numbers = #tpu.dot_dimension_numbers<[1], [0], [0], [1], [0, 0, 1, 1], [], []>} : vector<3x3xf32>, vector<3x8xf32>, vector<3x8xf32> -> vector<3x8xf32>
    %241 = vector.extract_strided_slice %67 {offsets = [16, 0], sizes = [8, 32], strides = [1, 1]} : vector<32x32xbf16> to vector<8x32xbf16>
    %242 = arith.truncf %240 : vector<3x8xf32> to vector<3x8xbf16>
    %cst_103 = arith.constant dense<0.000000e+00> : vector<3x32xf32>
    %243 = tpu.matmul %242, %241, %cst_103 {dimension_numbers = #tpu.dot_dimension_numbers<[1], [0], [0], [1], [0, 0, 1, 1], [], []>} : vector<3x8xbf16>, vector<8x32xbf16>, vector<3x32xf32> -> vector<3x32xf32>
    %244 = arith.addf %225, %243 : vector<3x32xf32>
    %245 = vector.extract_strided_slice %186 {offsets = [0, 24], sizes = [3, 8], strides = [1, 1]} : vector<3x96xf32> to vector<3x8xf32>
    %246 = vector.extract_strided_slice %186 {offsets = [0, 56], sizes = [3, 8], strides = [1, 1]} : vector<3x96xf32> to vector<3x8xf32>
    %247 = vector.extract_strided_slice %186 {offsets = [0, 88], sizes = [3, 8], strides = [1, 1]} : vector<3x96xf32> to vector<3x8xf32>
    %cst_104 = arith.constant dense<0.000000e+00> : vector<3x3xf32>
    %248 = tpu.matmul %245, %246, %cst_104 {dimension_numbers = #tpu.dot_dimension_numbers<[1], [1], [0], [0], [0, 0, 1, 0], [], []>} : vector<3x8xf32>, vector<3x8xf32>, vector<3x3xf32> -> vector<3x3xf32>
    %cst_105 = arith.constant dense<0xFF800000> : vector<3xf32>
    %249 = vector.multi_reduction <maximumf>, %248, %cst_105 [1] : vector<3x3xf32> to vector<3xf32>
    %250 = vector.shape_cast %249 : vector<3xf32> to vector<3x1xf32>
    %251 = vector.broadcast %250 : vector<3x1xf32> to vector<3x3xf32>
    %252 = arith.subf %248, %251 : vector<3x3xf32>
    %253 = math.exp %252 : vector<3x3xf32>
    %cst_106 = arith.constant dense<0.000000e+00> : vector<3xf32>
    %254 = vector.multi_reduction <add>, %253, %cst_106 [1] : vector<3x3xf32> to vector<3xf32>
    %255 = vector.shape_cast %254 : vector<3xf32> to vector<3x1xf32>
    %256 = tpu.reciprocal %255 {approx = true} : vector<3x1xf32> -> vector<3x1xf32>
    %257 = vector.broadcast %256 : vector<3x1xf32> to vector<3x3xf32>
    %258 = arith.mulf %253, %257 : vector<3x3xf32>
    %cst_107 = arith.constant dense<0.000000e+00> : vector<3x8xf32>
    %259 = tpu.matmul %258, %247, %cst_107 {dimension_numbers = #tpu.dot_dimension_numbers<[1], [0], [0], [1], [0, 0, 1, 1], [], []>} : vector<3x3xf32>, vector<3x8xf32>, vector<3x8xf32> -> vector<3x8xf32>
    %260 = vector.extract_strided_slice %67 {offsets = [24, 0], sizes = [8, 32], strides = [1, 1]} : vector<32x32xbf16> to vector<8x32xbf16>
    %261 = arith.truncf %259 : vector<3x8xf32> to vector<3x8xbf16>
    %cst_108 = arith.constant dense<0.000000e+00> : vector<3x32xf32>
    %262 = tpu.matmul %261, %260, %cst_108 {dimension_numbers = #tpu.dot_dimension_numbers<[1], [0], [0], [1], [0, 0, 1, 1], [], []>} : vector<3x8xbf16>, vector<8x32xbf16>, vector<3x32xf32> -> vector<3x32xf32>
    %263 = arith.addf %244, %262 : vector<3x32xf32>
    %264 = tpu.concatenate %185, %263 in 0 : vector<3x32xf32>, vector<3x32xf32> -> vector<6x32xf32>
    %265 = arith.addf %57, %264 : vector<6x32xf32>
    %266 = vector.broadcast %69 : vector<1x32xf32> to vector<6x32xf32>
    %267 = arith.addf %265, %266 : vector<6x32xf32>
    %cst_109 = arith.constant dense<0.000000e+00> : vector<6xf32>
    %268 = vector.multi_reduction <add>, %267, %cst_109 [1] : vector<6x32xf32> to vector<6xf32>
    %269 = vector.shape_cast %268 : vector<6xf32> to vector<6x1xf32>
    %cst_110 = arith.constant 3.200000e+01 : f32
    %270 = vector.broadcast %cst_110 : f32 to vector<6x1xf32>
    %271 = arith.divf %269, %270 : vector<6x1xf32>
    %272 = vector.broadcast %271 : vector<6x1xf32> to vector<6x32xf32>
    %273 = arith.subf %267, %272 : vector<6x32xf32>
    %274 = arith.mulf %273, %273 : vector<6x32xf32>
    %cst_111 = arith.constant dense<0.000000e+00> : vector<6xf32>
    %275 = vector.multi_reduction <add>, %274, %cst_111 [1] : vector<6x32xf32> to vector<6xf32>
    %276 = vector.shape_cast %275 : vector<6xf32> to vector<6x1xf32>
    %cst_112 = arith.constant 3.200000e+01 : f32
    %277 = vector.broadcast %cst_112 : f32 to vector<6x1xf32>
    %278 = arith.divf %276, %277 : vector<6x1xf32>
    %279 = vector.broadcast %271 : vector<6x1xf32> to vector<6x32xf32>
    %280 = arith.subf %267, %279 : vector<6x32xf32>
    %cst_113 = arith.constant 9.99999974E-6 : f32
    %281 = vector.broadcast %cst_113 : f32 to vector<6x1xf32>
    %282 = arith.addf %278, %281 : vector<6x1xf32>
    %283 = math.rsqrt %282 : vector<6x1xf32>
    %284 = vector.broadcast %283 : vector<6x1xf32> to vector<6x32xf32>
    %285 = arith.mulf %280, %284 : vector<6x32xf32>
    %286 = vector.broadcast %71 : vector<1x32xf32> to vector<6x32xf32>
    %287 = arith.mulf %285, %286 : vector<6x32xf32>
    %288 = vector.broadcast %73 : vector<1x32xf32> to vector<6x32xf32>
    %289 = arith.addf %287, %288 : vector<6x32xf32>
    %290 = arith.truncf %289 : vector<6x32xf32> to vector<6x32xbf16>
    %cst_114 = arith.constant dense<0.000000e+00> : vector<6x128xf32>
    %291 = tpu.matmul %290, %75, %cst_114 {dimension_numbers = #tpu.dot_dimension_numbers<[1], [0], [0], [1], [0, 0, 1, 1], [], []>} : vector<6x32xbf16>, vector<32x128xbf16>, vector<6x128xf32> -> vector<6x128xf32>
    %292 = vector.broadcast %77 : vector<1x128xf32> to vector<6x128xf32>
    %293 = arith.addf %291, %292 : vector<6x128xf32>
    %cst_115 = arith.constant 5.000000e-01 : f32
    %294 = vector.broadcast %cst_115 : f32 to vector<6x128xf32>
    %295 = arith.mulf %294, %293 : vector<6x128xf32>
    %cst_116 = arith.constant 0.707106769 : f32
    %296 = vector.broadcast %cst_116 : f32 to vector<6x128xf32>
    %297 = arith.mulf %293, %296 : vector<6x128xf32>
    %cst_117 = arith.constant 0.000000e+00 : f32
    %298 = vector.broadcast %cst_117 : f32 to vector<6x128xf32>
    %299 = arith.cmpf oge, %297, %298 : vector<6x128xf32>
    %cst_118 = arith.constant 1.000000e+00 : f32
    %cst_119 = arith.constant -1.000000e+00 : f32
    %300 = vector.broadcast %cst_118 : f32 to vector<6x128xf32>
    %301 = vector.broadcast %cst_119 : f32 to vector<6x128xf32>
    %302 = arith.select %299, %300, %301 : vector<6x128xi1>, vector<6x128xf32>
    %303 = math.absf %297 : vector<6x128xf32>
    %cst_120 = arith.constant 0.327591091 : f32
    %304 = vector.broadcast %cst_120 : f32 to vector<6x128xf32>
    %305 = arith.mulf %304, %303 : vector<6x128xf32>
    %cst_121 = arith.constant 1.000000e+00 : f32
    %306 = vector.broadcast %cst_121 : f32 to vector<6x128xf32>
    %307 = arith.addf %306, %305 : vector<6x128xf32>
    %cst_122 = arith.constant 1.000000e+00 : f32
    %308 = vector.broadcast %cst_122 : f32 to vector<6x128xf32>
    %309 = arith.divf %308, %307 : vector<6x128xf32>
    %cst_123 = arith.constant 1.06140542 : f32
    %310 = vector.broadcast %cst_123 : f32 to vector<6x128xf32>
    %311 = arith.mulf %310, %309 : vector<6x128xf32>
    %cst_124 = arith.constant -1.45315206 : f32
    %312 = vector.broadcast %cst_124 : f32 to vector<6x128xf32>
    %313 = arith.addf %311, %312 : vector<6x128xf32>
    %314 = arith.mulf %313, %309 : vector<6x128xf32>
    %cst_125 = arith.constant 1.42141378 : f32
    %315 = vector.broadcast %cst_125 : f32 to vector<6x128xf32>
    %316 = arith.addf %314, %315 : vector<6x128xf32>
    %317 = arith.mulf %316, %309 : vector<6x128xf32>
    %cst_126 = arith.constant -0.284496725 : f32
    %318 = vector.broadcast %cst_126 : f32 to vector<6x128xf32>
    %319 = arith.addf %317, %318 : vector<6x128xf32>
    %320 = arith.mulf %319, %309 : vector<6x128xf32>
    %cst_127 = arith.constant 0.254829586 : f32
    %321 = vector.broadcast %cst_127 : f32 to vector<6x128xf32>
    %322 = arith.addf %320, %321 : vector<6x128xf32>
    %323 = arith.mulf %322, %309 : vector<6x128xf32>
    %cst_128 = arith.constant 0.000000e+00 : f32
    %324 = vector.broadcast %cst_128 : f32 to vector<6x128xf32>
    %325 = arith.subf %324, %303 : vector<6x128xf32>
    %326 = arith.mulf %325, %303 : vector<6x128xf32>
    %327 = math.exp %326 : vector<6x128xf32>
    %328 = arith.mulf %323, %327 : vector<6x128xf32>
    %cst_129 = arith.constant 1.000000e+00 : f32
    %329 = vector.broadcast %cst_129 : f32 to vector<6x128xf32>
    %330 = arith.subf %329, %328 : vector<6x128xf32>
    %331 = arith.mulf %302, %330 : vector<6x128xf32>
    %cst_130 = arith.constant 1.000000e+00 : f32
    %332 = vector.broadcast %cst_130 : f32 to vector<6x128xf32>
    %333 = arith.addf %332, %331 : vector<6x128xf32>
    %334 = arith.mulf %295, %333 : vector<6x128xf32>
    %335 = arith.truncf %334 : vector<6x128xf32> to vector<6x128xbf16>
    %cst_131 = arith.constant dense<0.000000e+00> : vector<6x32xf32>
    %336 = tpu.matmul %335, %79, %cst_131 {dimension_numbers = #tpu.dot_dimension_numbers<[1], [0], [0], [1], [0, 0, 1, 1], [], []>} : vector<6x128xbf16>, vector<128x32xbf16>, vector<6x32xf32> -> vector<6x32xf32>
    %337 = arith.addf %267, %336 : vector<6x32xf32>
    %338 = vector.broadcast %81 : vector<1x32xf32> to vector<6x32xf32>
    %339 = arith.addf %337, %338 : vector<6x32xf32>
    %c1_132 = arith.constant 1 : index
    %c0_133 = arith.constant 0 : index
    %c0_134 = arith.constant 0 : index
    %340 = vector.load %arg6[%c1_132, %c0_133, %c0_134] : memref<2x1x32xf32, #tpu.memory_space<vmem>>, vector<1x1x32xf32>
    %341 = vector.shape_cast %340 : vector<1x1x32xf32> to vector<1x32xf32>
    %c1_135 = arith.constant 1 : index
    %c0_136 = arith.constant 0 : index
    %c0_137 = arith.constant 0 : index
    %342 = vector.load %arg7[%c1_135, %c0_136, %c0_137] : memref<2x1x32xf32, #tpu.memory_space<vmem>>, vector<1x1x32xf32>
    %343 = vector.shape_cast %342 : vector<1x1x32xf32> to vector<1x32xf32>
    %c1_138 = arith.constant 1 : index
    %c0_139 = arith.constant 0 : index
    %c0_140 = arith.constant 0 : index
    %344 = vector.load %arg8[%c1_138, %c0_139, %c0_140] : memref<2x32x96xbf16, #tpu.memory_space<vmem>>, vector<1x32x96xbf16>
    %345 = vector.shape_cast %344 : vector<1x32x96xbf16> to vector<32x96xbf16>
    %c1_141 = arith.constant 1 : index
    %c0_142 = arith.constant 0 : index
    %c0_143 = arith.constant 0 : index
    %346 = vector.load %arg9[%c1_141, %c0_142, %c0_143] : memref<2x1x96xf32, #tpu.memory_space<vmem>>, vector<1x1x96xf32>
    %347 = vector.shape_cast %346 : vector<1x1x96xf32> to vector<1x96xf32>
    %c1_144 = arith.constant 1 : index
    %c0_145 = arith.constant 0 : index
    %c0_146 = arith.constant 0 : index
    %348 = vector.load %arg10[%c1_144, %c0_145, %c0_146] : memref<2x32x32xbf16, #tpu.memory_space<vmem>>, vector<1x32x32xbf16>
    %349 = vector.shape_cast %348 : vector<1x32x32xbf16> to vector<32x32xbf16>
    %c1_147 = arith.constant 1 : index
    %c0_148 = arith.constant 0 : index
    %c0_149 = arith.constant 0 : index
    %350 = vector.load %arg11[%c1_147, %c0_148, %c0_149] : memref<2x1x32xf32, #tpu.memory_space<vmem>>, vector<1x1x32xf32>
    %351 = vector.shape_cast %350 : vector<1x1x32xf32> to vector<1x32xf32>
    %c1_150 = arith.constant 1 : index
    %c0_151 = arith.constant 0 : index
    %c0_152 = arith.constant 0 : index
    %352 = vector.load %arg12[%c1_150, %c0_151, %c0_152] : memref<2x1x32xf32, #tpu.memory_space<vmem>>, vector<1x1x32xf32>
    %353 = vector.shape_cast %352 : vector<1x1x32xf32> to vector<1x32xf32>
    %c1_153 = arith.constant 1 : index
    %c0_154 = arith.constant 0 : index
    %c0_155 = arith.constant 0 : index
    %354 = vector.load %arg13[%c1_153, %c0_154, %c0_155] : memref<2x1x32xf32, #tpu.memory_space<vmem>>, vector<1x1x32xf32>
    %355 = vector.shape_cast %354 : vector<1x1x32xf32> to vector<1x32xf32>
    %c1_156 = arith.constant 1 : index
    %c0_157 = arith.constant 0 : index
    %c0_158 = arith.constant 0 : index
    %356 = vector.load %arg14[%c1_156, %c0_157, %c0_158] : memref<2x32x128xbf16, #tpu.memory_space<vmem>>, vector<1x32x128xbf16>
    %357 = vector.shape_cast %356 : vector<1x32x128xbf16> to vector<32x128xbf16>
    %c1_159 = arith.constant 1 : index
    %c0_160 = arith.constant 0 : index
    %c0_161 = arith.constant 0 : index
    %358 = vector.load %arg15[%c1_159, %c0_160, %c0_161] : memref<2x1x128xf32, #tpu.memory_space<vmem>>, vector<1x1x128xf32>
    %359 = vector.shape_cast %358 : vector<1x1x128xf32> to vector<1x128xf32>
    %c1_162 = arith.constant 1 : index
    %c0_163 = arith.constant 0 : index
    %c0_164 = arith.constant 0 : index
    %360 = vector.load %arg16[%c1_162, %c0_163, %c0_164] : memref<2x128x32xbf16, #tpu.memory_space<vmem>>, vector<1x128x32xbf16>
    %361 = vector.shape_cast %360 : vector<1x128x32xbf16> to vector<128x32xbf16>
    %c1_165 = arith.constant 1 : index
    %c0_166 = arith.constant 0 : index
    %c0_167 = arith.constant 0 : index
    %362 = vector.load %arg17[%c1_165, %c0_166, %c0_167] : memref<2x1x32xf32, #tpu.memory_space<vmem>>, vector<1x1x32xf32>
    %363 = vector.shape_cast %362 : vector<1x1x32xf32> to vector<1x32xf32>
    %cst_168 = arith.constant dense<0.000000e+00> : vector<6xf32>
    %364 = vector.multi_reduction <add>, %339, %cst_168 [1] : vector<6x32xf32> to vector<6xf32>
    %365 = vector.shape_cast %364 : vector<6xf32> to vector<6x1xf32>
    %cst_169 = arith.constant 3.200000e+01 : f32
    %366 = vector.broadcast %cst_169 : f32 to vector<6x1xf32>
    %367 = arith.divf %365, %366 : vector<6x1xf32>
    %368 = vector.broadcast %367 : vector<6x1xf32> to vector<6x32xf32>
    %369 = arith.subf %339, %368 : vector<6x32xf32>
    %370 = arith.mulf %369, %369 : vector<6x32xf32>
    %cst_170 = arith.constant dense<0.000000e+00> : vector<6xf32>
    %371 = vector.multi_reduction <add>, %370, %cst_170 [1] : vector<6x32xf32> to vector<6xf32>
    %372 = vector.shape_cast %371 : vector<6xf32> to vector<6x1xf32>
    %cst_171 = arith.constant 3.200000e+01 : f32
    %373 = vector.broadcast %cst_171 : f32 to vector<6x1xf32>
    %374 = arith.divf %372, %373 : vector<6x1xf32>
    %375 = vector.broadcast %367 : vector<6x1xf32> to vector<6x32xf32>
    %376 = arith.subf %339, %375 : vector<6x32xf32>
    %cst_172 = arith.constant 9.99999974E-6 : f32
    %377 = vector.broadcast %cst_172 : f32 to vector<6x1xf32>
    %378 = arith.addf %374, %377 : vector<6x1xf32>
    %379 = math.rsqrt %378 : vector<6x1xf32>
    %380 = vector.broadcast %379 : vector<6x1xf32> to vector<6x32xf32>
    %381 = arith.mulf %376, %380 : vector<6x32xf32>
    %382 = vector.broadcast %341 : vector<1x32xf32> to vector<6x32xf32>
    %383 = arith.mulf %381, %382 : vector<6x32xf32>
    %384 = vector.broadcast %343 : vector<1x32xf32> to vector<6x32xf32>
    %385 = arith.addf %383, %384 : vector<6x32xf32>
    %386 = arith.truncf %385 : vector<6x32xf32> to vector<6x32xbf16>
    %cst_173 = arith.constant dense<0.000000e+00> : vector<6x96xf32>
    %387 = tpu.matmul %386, %345, %cst_173 {dimension_numbers = #tpu.dot_dimension_numbers<[1], [0], [0], [1], [0, 0, 1, 1], [], []>} : vector<6x32xbf16>, vector<32x96xbf16>, vector<6x96xf32> -> vector<6x96xf32>
    %388 = vector.broadcast %347 : vector<1x96xf32> to vector<6x96xf32>
    %389 = arith.addf %387, %388 : vector<6x96xf32>
    %390 = vector.extract_strided_slice %389 {offsets = [0, 0], sizes = [3, 96], strides = [1, 1]} : vector<6x96xf32> to vector<3x96xf32>
    %cst_174 = arith.constant 0.000000e+00 : f32
    %391 = vector.broadcast %cst_174 : f32 to vector<3x32xf32>
    %392 = vector.extract_strided_slice %390 {offsets = [0, 0], sizes = [3, 8], strides = [1, 1]} : vector<3x96xf32> to vector<3x8xf32>
    %393 = vector.extract_strided_slice %390 {offsets = [0, 32], sizes = [3, 8], strides = [1, 1]} : vector<3x96xf32> to vector<3x8xf32>
    %394 = vector.extract_strided_slice %390 {offsets = [0, 64], sizes = [3, 8], strides = [1, 1]} : vector<3x96xf32> to vector<3x8xf32>
    %cst_175 = arith.constant dense<0.000000e+00> : vector<3x3xf32>
    %395 = tpu.matmul %392, %393, %cst_175 {dimension_numbers = #tpu.dot_dimension_numbers<[1], [1], [0], [0], [0, 0, 1, 0], [], []>} : vector<3x8xf32>, vector<3x8xf32>, vector<3x3xf32> -> vector<3x3xf32>
    %cst_176 = arith.constant dense<0xFF800000> : vector<3xf32>
    %396 = vector.multi_reduction <maximumf>, %395, %cst_176 [1] : vector<3x3xf32> to vector<3xf32>
    %397 = vector.shape_cast %396 : vector<3xf32> to vector<3x1xf32>
    %398 = vector.broadcast %397 : vector<3x1xf32> to vector<3x3xf32>
    %399 = arith.subf %395, %398 : vector<3x3xf32>
    %400 = math.exp %399 : vector<3x3xf32>
    %cst_177 = arith.constant dense<0.000000e+00> : vector<3xf32>
    %401 = vector.multi_reduction <add>, %400, %cst_177 [1] : vector<3x3xf32> to vector<3xf32>
    %402 = vector.shape_cast %401 : vector<3xf32> to vector<3x1xf32>
    %403 = tpu.reciprocal %402 {approx = true} : vector<3x1xf32> -> vector<3x1xf32>
    %404 = vector.broadcast %403 : vector<3x1xf32> to vector<3x3xf32>
    %405 = arith.mulf %400, %404 : vector<3x3xf32>
    %cst_178 = arith.constant dense<0.000000e+00> : vector<3x8xf32>
    %406 = tpu.matmul %405, %394, %cst_178 {dimension_numbers = #tpu.dot_dimension_numbers<[1], [0], [0], [1], [0, 0, 1, 1], [], []>} : vector<3x3xf32>, vector<3x8xf32>, vector<3x8xf32> -> vector<3x8xf32>
    %407 = vector.extract_strided_slice %349 {offsets = [0, 0], sizes = [8, 32], strides = [1, 1]} : vector<32x32xbf16> to vector<8x32xbf16>
    %408 = arith.truncf %406 : vector<3x8xf32> to vector<3x8xbf16>
    %cst_179 = arith.constant dense<0.000000e+00> : vector<3x32xf32>
    %409 = tpu.matmul %408, %407, %cst_179 {dimension_numbers = #tpu.dot_dimension_numbers<[1], [0], [0], [1], [0, 0, 1, 1], [], []>} : vector<3x8xbf16>, vector<8x32xbf16>, vector<3x32xf32> -> vector<3x32xf32>
    %410 = arith.addf %391, %409 : vector<3x32xf32>
    %411 = vector.extract_strided_slice %390 {offsets = [0, 8], sizes = [3, 8], strides = [1, 1]} : vector<3x96xf32> to vector<3x8xf32>
    %412 = vector.extract_strided_slice %390 {offsets = [0, 40], sizes = [3, 8], strides = [1, 1]} : vector<3x96xf32> to vector<3x8xf32>
    %413 = vector.extract_strided_slice %390 {offsets = [0, 72], sizes = [3, 8], strides = [1, 1]} : vector<3x96xf32> to vector<3x8xf32>
    %cst_180 = arith.constant dense<0.000000e+00> : vector<3x3xf32>
    %414 = tpu.matmul %411, %412, %cst_180 {dimension_numbers = #tpu.dot_dimension_numbers<[1], [1], [0], [0], [0, 0, 1, 0], [], []>} : vector<3x8xf32>, vector<3x8xf32>, vector<3x3xf32> -> vector<3x3xf32>
    %cst_181 = arith.constant dense<0xFF800000> : vector<3xf32>
    %415 = vector.multi_reduction <maximumf>, %414, %cst_181 [1] : vector<3x3xf32> to vector<3xf32>
    %416 = vector.shape_cast %415 : vector<3xf32> to vector<3x1xf32>
    %417 = vector.broadcast %416 : vector<3x1xf32> to vector<3x3xf32>
    %418 = arith.subf %414, %417 : vector<3x3xf32>
    %419 = math.exp %418 : vector<3x3xf32>
    %cst_182 = arith.constant dense<0.000000e+00> : vector<3xf32>
    %420 = vector.multi_reduction <add>, %419, %cst_182 [1] : vector<3x3xf32> to vector<3xf32>
    %421 = vector.shape_cast %420 : vector<3xf32> to vector<3x1xf32>
    %422 = tpu.reciprocal %421 {approx = true} : vector<3x1xf32> -> vector<3x1xf32>
    %423 = vector.broadcast %422 : vector<3x1xf32> to vector<3x3xf32>
    %424 = arith.mulf %419, %423 : vector<3x3xf32>
    %cst_183 = arith.constant dense<0.000000e+00> : vector<3x8xf32>
    %425 = tpu.matmul %424, %413, %cst_183 {dimension_numbers = #tpu.dot_dimension_numbers<[1], [0], [0], [1], [0, 0, 1, 1], [], []>} : vector<3x3xf32>, vector<3x8xf32>, vector<3x8xf32> -> vector<3x8xf32>
    %426 = vector.extract_strided_slice %349 {offsets = [8, 0], sizes = [8, 32], strides = [1, 1]} : vector<32x32xbf16> to vector<8x32xbf16>
    %427 = arith.truncf %425 : vector<3x8xf32> to vector<3x8xbf16>
    %cst_184 = arith.constant dense<0.000000e+00> : vector<3x32xf32>
    %428 = tpu.matmul %427, %426, %cst_184 {dimension_numbers = #tpu.dot_dimension_numbers<[1], [0], [0], [1], [0, 0, 1, 1], [], []>} : vector<3x8xbf16>, vector<8x32xbf16>, vector<3x32xf32> -> vector<3x32xf32>
    %429 = arith.addf %410, %428 : vector<3x32xf32>
    %430 = vector.extract_strided_slice %390 {offsets = [0, 16], sizes = [3, 8], strides = [1, 1]} : vector<3x96xf32> to vector<3x8xf32>
    %431 = vector.extract_strided_slice %390 {offsets = [0, 48], sizes = [3, 8], strides = [1, 1]} : vector<3x96xf32> to vector<3x8xf32>
    %432 = vector.extract_strided_slice %390 {offsets = [0, 80], sizes = [3, 8], strides = [1, 1]} : vector<3x96xf32> to vector<3x8xf32>
    %cst_185 = arith.constant dense<0.000000e+00> : vector<3x3xf32>
    %433 = tpu.matmul %430, %431, %cst_185 {dimension_numbers = #tpu.dot_dimension_numbers<[1], [1], [0], [0], [0, 0, 1, 0], [], []>} : vector<3x8xf32>, vector<3x8xf32>, vector<3x3xf32> -> vector<3x3xf32>
    %cst_186 = arith.constant dense<0xFF800000> : vector<3xf32>
    %434 = vector.multi_reduction <maximumf>, %433, %cst_186 [1] : vector<3x3xf32> to vector<3xf32>
    %435 = vector.shape_cast %434 : vector<3xf32> to vector<3x1xf32>
    %436 = vector.broadcast %435 : vector<3x1xf32> to vector<3x3xf32>
    %437 = arith.subf %433, %436 : vector<3x3xf32>
    %438 = math.exp %437 : vector<3x3xf32>
    %cst_187 = arith.constant dense<0.000000e+00> : vector<3xf32>
    %439 = vector.multi_reduction <add>, %438, %cst_187 [1] : vector<3x3xf32> to vector<3xf32>
    %440 = vector.shape_cast %439 : vector<3xf32> to vector<3x1xf32>
    %441 = tpu.reciprocal %440 {approx = true} : vector<3x1xf32> -> vector<3x1xf32>
    %442 = vector.broadcast %441 : vector<3x1xf32> to vector<3x3xf32>
    %443 = arith.mulf %438, %442 : vector<3x3xf32>
    %cst_188 = arith.constant dense<0.000000e+00> : vector<3x8xf32>
    %444 = tpu.matmul %443, %432, %cst_188 {dimension_numbers = #tpu.dot_dimension_numbers<[1], [0], [0], [1], [0, 0, 1, 1], [], []>} : vector<3x3xf32>, vector<3x8xf32>, vector<3x8xf32> -> vector<3x8xf32>
    %445 = vector.extract_strided_slice %349 {offsets = [16, 0], sizes = [8, 32], strides = [1, 1]} : vector<32x32xbf16> to vector<8x32xbf16>
    %446 = arith.truncf %444 : vector<3x8xf32> to vector<3x8xbf16>
    %cst_189 = arith.constant dense<0.000000e+00> : vector<3x32xf32>
    %447 = tpu.matmul %446, %445, %cst_189 {dimension_numbers = #tpu.dot_dimension_numbers<[1], [0], [0], [1], [0, 0, 1, 1], [], []>} : vector<3x8xbf16>, vector<8x32xbf16>, vector<3x32xf32> -> vector<3x32xf32>
    %448 = arith.addf %429, %447 : vector<3x32xf32>
    %449 = vector.extract_strided_slice %390 {offsets = [0, 24], sizes = [3, 8], strides = [1, 1]} : vector<3x96xf32> to vector<3x8xf32>
    %450 = vector.extract_strided_slice %390 {offsets = [0, 56], sizes = [3, 8], strides = [1, 1]} : vector<3x96xf32> to vector<3x8xf32>
    %451 = vector.extract_strided_slice %390 {offsets = [0, 88], sizes = [3, 8], strides = [1, 1]} : vector<3x96xf32> to vector<3x8xf32>
    %cst_190 = arith.constant dense<0.000000e+00> : vector<3x3xf32>
    %452 = tpu.matmul %449, %450, %cst_190 {dimension_numbers = #tpu.dot_dimension_numbers<[1], [1], [0], [0], [0, 0, 1, 0], [], []>} : vector<3x8xf32>, vector<3x8xf32>, vector<3x3xf32> -> vector<3x3xf32>
    %cst_191 = arith.constant dense<0xFF800000> : vector<3xf32>
    %453 = vector.multi_reduction <maximumf>, %452, %cst_191 [1] : vector<3x3xf32> to vector<3xf32>
    %454 = vector.shape_cast %453 : vector<3xf32> to vector<3x1xf32>
    %455 = vector.broadcast %454 : vector<3x1xf32> to vector<3x3xf32>
    %456 = arith.subf %452, %455 : vector<3x3xf32>
    %457 = math.exp %456 : vector<3x3xf32>
    %cst_192 = arith.constant dense<0.000000e+00> : vector<3xf32>
    %458 = vector.multi_reduction <add>, %457, %cst_192 [1] : vector<3x3xf32> to vector<3xf32>
    %459 = vector.shape_cast %458 : vector<3xf32> to vector<3x1xf32>
    %460 = tpu.reciprocal %459 {approx = true} : vector<3x1xf32> -> vector<3x1xf32>
    %461 = vector.broadcast %460 : vector<3x1xf32> to vector<3x3xf32>
    %462 = arith.mulf %457, %461 : vector<3x3xf32>
    %cst_193 = arith.constant dense<0.000000e+00> : vector<3x8xf32>
    %463 = tpu.matmul %462, %451, %cst_193 {dimension_numbers = #tpu.dot_dimension_numbers<[1], [0], [0], [1], [0, 0, 1, 1], [], []>} : vector<3x3xf32>, vector<3x8xf32>, vector<3x8xf32> -> vector<3x8xf32>
    %464 = vector.extract_strided_slice %349 {offsets = [24, 0], sizes = [8, 32], strides = [1, 1]} : vector<32x32xbf16> to vector<8x32xbf16>
    %465 = arith.truncf %463 : vector<3x8xf32> to vector<3x8xbf16>
    %cst_194 = arith.constant dense<0.000000e+00> : vector<3x32xf32>
    %466 = tpu.matmul %465, %464, %cst_194 {dimension_numbers = #tpu.dot_dimension_numbers<[1], [0], [0], [1], [0, 0, 1, 1], [], []>} : vector<3x8xbf16>, vector<8x32xbf16>, vector<3x32xf32> -> vector<3x32xf32>
    %467 = arith.addf %448, %466 : vector<3x32xf32>
    %468 = vector.extract_strided_slice %389 {offsets = [3, 0], sizes = [3, 96], strides = [1, 1]} : vector<6x96xf32> to vector<3x96xf32>
    %cst_195 = arith.constant 0.000000e+00 : f32
    %469 = vector.broadcast %cst_195 : f32 to vector<3x32xf32>
    %470 = vector.extract_strided_slice %468 {offsets = [0, 0], sizes = [3, 8], strides = [1, 1]} : vector<3x96xf32> to vector<3x8xf32>
    %471 = vector.extract_strided_slice %468 {offsets = [0, 32], sizes = [3, 8], strides = [1, 1]} : vector<3x96xf32> to vector<3x8xf32>
    %472 = vector.extract_strided_slice %468 {offsets = [0, 64], sizes = [3, 8], strides = [1, 1]} : vector<3x96xf32> to vector<3x8xf32>
    %cst_196 = arith.constant dense<0.000000e+00> : vector<3x3xf32>
    %473 = tpu.matmul %470, %471, %cst_196 {dimension_numbers = #tpu.dot_dimension_numbers<[1], [1], [0], [0], [0, 0, 1, 0], [], []>} : vector<3x8xf32>, vector<3x8xf32>, vector<3x3xf32> -> vector<3x3xf32>
    %cst_197 = arith.constant dense<0xFF800000> : vector<3xf32>
    %474 = vector.multi_reduction <maximumf>, %473, %cst_197 [1] : vector<3x3xf32> to vector<3xf32>
    %475 = vector.shape_cast %474 : vector<3xf32> to vector<3x1xf32>
    %476 = vector.broadcast %475 : vector<3x1xf32> to vector<3x3xf32>
    %477 = arith.subf %473, %476 : vector<3x3xf32>
    %478 = math.exp %477 : vector<3x3xf32>
    %cst_198 = arith.constant dense<0.000000e+00> : vector<3xf32>
    %479 = vector.multi_reduction <add>, %478, %cst_198 [1] : vector<3x3xf32> to vector<3xf32>
    %480 = vector.shape_cast %479 : vector<3xf32> to vector<3x1xf32>
    %481 = tpu.reciprocal %480 {approx = true} : vector<3x1xf32> -> vector<3x1xf32>
    %482 = vector.broadcast %481 : vector<3x1xf32> to vector<3x3xf32>
    %483 = arith.mulf %478, %482 : vector<3x3xf32>
    %cst_199 = arith.constant dense<0.000000e+00> : vector<3x8xf32>
    %484 = tpu.matmul %483, %472, %cst_199 {dimension_numbers = #tpu.dot_dimension_numbers<[1], [0], [0], [1], [0, 0, 1, 1], [], []>} : vector<3x3xf32>, vector<3x8xf32>, vector<3x8xf32> -> vector<3x8xf32>
    %485 = vector.extract_strided_slice %349 {offsets = [0, 0], sizes = [8, 32], strides = [1, 1]} : vector<32x32xbf16> to vector<8x32xbf16>
    %486 = arith.truncf %484 : vector<3x8xf32> to vector<3x8xbf16>
    %cst_200 = arith.constant dense<0.000000e+00> : vector<3x32xf32>
    %487 = tpu.matmul %486, %485, %cst_200 {dimension_numbers = #tpu.dot_dimension_numbers<[1], [0], [0], [1], [0, 0, 1, 1], [], []>} : vector<3x8xbf16>, vector<8x32xbf16>, vector<3x32xf32> -> vector<3x32xf32>
    %488 = arith.addf %469, %487 : vector<3x32xf32>
    %489 = vector.extract_strided_slice %468 {offsets = [0, 8], sizes = [3, 8], strides = [1, 1]} : vector<3x96xf32> to vector<3x8xf32>
    %490 = vector.extract_strided_slice %468 {offsets = [0, 40], sizes = [3, 8], strides = [1, 1]} : vector<3x96xf32> to vector<3x8xf32>
    %491 = vector.extract_strided_slice %468 {offsets = [0, 72], sizes = [3, 8], strides = [1, 1]} : vector<3x96xf32> to vector<3x8xf32>
    %cst_201 = arith.constant dense<0.000000e+00> : vector<3x3xf32>
    %492 = tpu.matmul %489, %490, %cst_201 {dimension_numbers = #tpu.dot_dimension_numbers<[1], [1], [0], [0], [0, 0, 1, 0], [], []>} : vector<3x8xf32>, vector<3x8xf32>, vector<3x3xf32> -> vector<3x3xf32>
    %cst_202 = arith.constant dense<0xFF800000> : vector<3xf32>
    %493 = vector.multi_reduction <maximumf>, %492, %cst_202 [1] : vector<3x3xf32> to vector<3xf32>
    %494 = vector.shape_cast %493 : vector<3xf32> to vector<3x1xf32>
    %495 = vector.broadcast %494 : vector<3x1xf32> to vector<3x3xf32>
    %496 = arith.subf %492, %495 : vector<3x3xf32>
    %497 = math.exp %496 : vector<3x3xf32>
    %cst_203 = arith.constant dense<0.000000e+00> : vector<3xf32>
    %498 = vector.multi_reduction <add>, %497, %cst_203 [1] : vector<3x3xf32> to vector<3xf32>
    %499 = vector.shape_cast %498 : vector<3xf32> to vector<3x1xf32>
    %500 = tpu.reciprocal %499 {approx = true} : vector<3x1xf32> -> vector<3x1xf32>
    %501 = vector.broadcast %500 : vector<3x1xf32> to vector<3x3xf32>
    %502 = arith.mulf %497, %501 : vector<3x3xf32>
    %cst_204 = arith.constant dense<0.000000e+00> : vector<3x8xf32>
    %503 = tpu.matmul %502, %491, %cst_204 {dimension_numbers = #tpu.dot_dimension_numbers<[1], [0], [0], [1], [0, 0, 1, 1], [], []>} : vector<3x3xf32>, vector<3x8xf32>, vector<3x8xf32> -> vector<3x8xf32>
    %504 = vector.extract_strided_slice %349 {offsets = [8, 0], sizes = [8, 32], strides = [1, 1]} : vector<32x32xbf16> to vector<8x32xbf16>
    %505 = arith.truncf %503 : vector<3x8xf32> to vector<3x8xbf16>
    %cst_205 = arith.constant dense<0.000000e+00> : vector<3x32xf32>
    %506 = tpu.matmul %505, %504, %cst_205 {dimension_numbers = #tpu.dot_dimension_numbers<[1], [0], [0], [1], [0, 0, 1, 1], [], []>} : vector<3x8xbf16>, vector<8x32xbf16>, vector<3x32xf32> -> vector<3x32xf32>
    %507 = arith.addf %488, %506 : vector<3x32xf32>
    %508 = vector.extract_strided_slice %468 {offsets = [0, 16], sizes = [3, 8], strides = [1, 1]} : vector<3x96xf32> to vector<3x8xf32>
    %509 = vector.extract_strided_slice %468 {offsets = [0, 48], sizes = [3, 8], strides = [1, 1]} : vector<3x96xf32> to vector<3x8xf32>
    %510 = vector.extract_strided_slice %468 {offsets = [0, 80], sizes = [3, 8], strides = [1, 1]} : vector<3x96xf32> to vector<3x8xf32>
    %cst_206 = arith.constant dense<0.000000e+00> : vector<3x3xf32>
    %511 = tpu.matmul %508, %509, %cst_206 {dimension_numbers = #tpu.dot_dimension_numbers<[1], [1], [0], [0], [0, 0, 1, 0], [], []>} : vector<3x8xf32>, vector<3x8xf32>, vector<3x3xf32> -> vector<3x3xf32>
    %cst_207 = arith.constant dense<0xFF800000> : vector<3xf32>
    %512 = vector.multi_reduction <maximumf>, %511, %cst_207 [1] : vector<3x3xf32> to vector<3xf32>
    %513 = vector.shape_cast %512 : vector<3xf32> to vector<3x1xf32>
    %514 = vector.broadcast %513 : vector<3x1xf32> to vector<3x3xf32>
    %515 = arith.subf %511, %514 : vector<3x3xf32>
    %516 = math.exp %515 : vector<3x3xf32>
    %cst_208 = arith.constant dense<0.000000e+00> : vector<3xf32>
    %517 = vector.multi_reduction <add>, %516, %cst_208 [1] : vector<3x3xf32> to vector<3xf32>
    %518 = vector.shape_cast %517 : vector<3xf32> to vector<3x1xf32>
    %519 = tpu.reciprocal %518 {approx = true} : vector<3x1xf32> -> vector<3x1xf32>
    %520 = vector.broadcast %519 : vector<3x1xf32> to vector<3x3xf32>
    %521 = arith.mulf %516, %520 : vector<3x3xf32>
    %cst_209 = arith.constant dense<0.000000e+00> : vector<3x8xf32>
    %522 = tpu.matmul %521, %510, %cst_209 {dimension_numbers = #tpu.dot_dimension_numbers<[1], [0], [0], [1], [0, 0, 1, 1], [], []>} : vector<3x3xf32>, vector<3x8xf32>, vector<3x8xf32> -> vector<3x8xf32>
    %523 = vector.extract_strided_slice %349 {offsets = [16, 0], sizes = [8, 32], strides = [1, 1]} : vector<32x32xbf16> to vector<8x32xbf16>
    %524 = arith.truncf %522 : vector<3x8xf32> to vector<3x8xbf16>
    %cst_210 = arith.constant dense<0.000000e+00> : vector<3x32xf32>
    %525 = tpu.matmul %524, %523, %cst_210 {dimension_numbers = #tpu.dot_dimension_numbers<[1], [0], [0], [1], [0, 0, 1, 1], [], []>} : vector<3x8xbf16>, vector<8x32xbf16>, vector<3x32xf32> -> vector<3x32xf32>
    %526 = arith.addf %507, %525 : vector<3x32xf32>
    %527 = vector.extract_strided_slice %468 {offsets = [0, 24], sizes = [3, 8], strides = [1, 1]} : vector<3x96xf32> to vector<3x8xf32>
    %528 = vector.extract_strided_slice %468 {offsets = [0, 56], sizes = [3, 8], strides = [1, 1]} : vector<3x96xf32> to vector<3x8xf32>
    %529 = vector.extract_strided_slice %468 {offsets = [0, 88], sizes = [3, 8], strides = [1, 1]} : vector<3x96xf32> to vector<3x8xf32>
    %cst_211 = arith.constant dense<0.000000e+00> : vector<3x3xf32>
    %530 = tpu.matmul %527, %528, %cst_211 {dimension_numbers = #tpu.dot_dimension_numbers<[1], [1], [0], [0], [0, 0, 1, 0], [], []>} : vector<3x8xf32>, vector<3x8xf32>, vector<3x3xf32> -> vector<3x3xf32>
    %cst_212 = arith.constant dense<0xFF800000> : vector<3xf32>
    %531 = vector.multi_reduction <maximumf>, %530, %cst_212 [1] : vector<3x3xf32> to vector<3xf32>
    %532 = vector.shape_cast %531 : vector<3xf32> to vector<3x1xf32>
    %533 = vector.broadcast %532 : vector<3x1xf32> to vector<3x3xf32>
    %534 = arith.subf %530, %533 : vector<3x3xf32>
    %535 = math.exp %534 : vector<3x3xf32>
    %cst_213 = arith.constant dense<0.000000e+00> : vector<3xf32>
    %536 = vector.multi_reduction <add>, %535, %cst_213 [1] : vector<3x3xf32> to vector<3xf32>
    %537 = vector.shape_cast %536 : vector<3xf32> to vector<3x1xf32>
    %538 = tpu.reciprocal %537 {approx = true} : vector<3x1xf32> -> vector<3x1xf32>
    %539 = vector.broadcast %538 : vector<3x1xf32> to vector<3x3xf32>
    %540 = arith.mulf %535, %539 : vector<3x3xf32>
    %cst_214 = arith.constant dense<0.000000e+00> : vector<3x8xf32>
    %541 = tpu.matmul %540, %529, %cst_214 {dimension_numbers = #tpu.dot_dimension_numbers<[1], [0], [0], [1], [0, 0, 1, 1], [], []>} : vector<3x3xf32>, vector<3x8xf32>, vector<3x8xf32> -> vector<3x8xf32>
    %542 = vector.extract_strided_slice %349 {offsets = [24, 0], sizes = [8, 32], strides = [1, 1]} : vector<32x32xbf16> to vector<8x32xbf16>
    %543 = arith.truncf %541 : vector<3x8xf32> to vector<3x8xbf16>
    %cst_215 = arith.constant dense<0.000000e+00> : vector<3x32xf32>
    %544 = tpu.matmul %543, %542, %cst_215 {dimension_numbers = #tpu.dot_dimension_numbers<[1], [0], [0], [1], [0, 0, 1, 1], [], []>} : vector<3x8xbf16>, vector<8x32xbf16>, vector<3x32xf32> -> vector<3x32xf32>
    %545 = arith.addf %526, %544 : vector<3x32xf32>
    %546 = tpu.concatenate %467, %545 in 0 : vector<3x32xf32>, vector<3x32xf32> -> vector<6x32xf32>
    %547 = arith.addf %339, %546 : vector<6x32xf32>
    %548 = vector.broadcast %351 : vector<1x32xf32> to vector<6x32xf32>
    %549 = arith.addf %547, %548 : vector<6x32xf32>
    %cst_216 = arith.constant dense<0.000000e+00> : vector<6xf32>
    %550 = vector.multi_reduction <add>, %549, %cst_216 [1] : vector<6x32xf32> to vector<6xf32>
    %551 = vector.shape_cast %550 : vector<6xf32> to vector<6x1xf32>
    %cst_217 = arith.constant 3.200000e+01 : f32
    %552 = vector.broadcast %cst_217 : f32 to vector<6x1xf32>
    %553 = arith.divf %551, %552 : vector<6x1xf32>
    %554 = vector.broadcast %553 : vector<6x1xf32> to vector<6x32xf32>
    %555 = arith.subf %549, %554 : vector<6x32xf32>
    %556 = arith.mulf %555, %555 : vector<6x32xf32>
    %cst_218 = arith.constant dense<0.000000e+00> : vector<6xf32>
    %557 = vector.multi_reduction <add>, %556, %cst_218 [1] : vector<6x32xf32> to vector<6xf32>
    %558 = vector.shape_cast %557 : vector<6xf32> to vector<6x1xf32>
    %cst_219 = arith.constant 3.200000e+01 : f32
    %559 = vector.broadcast %cst_219 : f32 to vector<6x1xf32>
    %560 = arith.divf %558, %559 : vector<6x1xf32>
    %561 = vector.broadcast %553 : vector<6x1xf32> to vector<6x32xf32>
    %562 = arith.subf %549, %561 : vector<6x32xf32>
    %cst_220 = arith.constant 9.99999974E-6 : f32
    %563 = vector.broadcast %cst_220 : f32 to vector<6x1xf32>
    %564 = arith.addf %560, %563 : vector<6x1xf32>
    %565 = math.rsqrt %564 : vector<6x1xf32>
    %566 = vector.broadcast %565 : vector<6x1xf32> to vector<6x32xf32>
    %567 = arith.mulf %562, %566 : vector<6x32xf32>
    %568 = vector.broadcast %353 : vector<1x32xf32> to vector<6x32xf32>
    %569 = arith.mulf %567, %568 : vector<6x32xf32>
    %570 = vector.broadcast %355 : vector<1x32xf32> to vector<6x32xf32>
    %571 = arith.addf %569, %570 : vector<6x32xf32>
    %572 = arith.truncf %571 : vector<6x32xf32> to vector<6x32xbf16>
    %cst_221 = arith.constant dense<0.000000e+00> : vector<6x128xf32>
    %573 = tpu.matmul %572, %357, %cst_221 {dimension_numbers = #tpu.dot_dimension_numbers<[1], [0], [0], [1], [0, 0, 1, 1], [], []>} : vector<6x32xbf16>, vector<32x128xbf16>, vector<6x128xf32> -> vector<6x128xf32>
    %574 = vector.broadcast %359 : vector<1x128xf32> to vector<6x128xf32>
    %575 = arith.addf %573, %574 : vector<6x128xf32>
    %cst_222 = arith.constant 5.000000e-01 : f32
    %576 = vector.broadcast %cst_222 : f32 to vector<6x128xf32>
    %577 = arith.mulf %576, %575 : vector<6x128xf32>
    %cst_223 = arith.constant 0.707106769 : f32
    %578 = vector.broadcast %cst_223 : f32 to vector<6x128xf32>
    %579 = arith.mulf %575, %578 : vector<6x128xf32>
    %cst_224 = arith.constant 0.000000e+00 : f32
    %580 = vector.broadcast %cst_224 : f32 to vector<6x128xf32>
    %581 = arith.cmpf oge, %579, %580 : vector<6x128xf32>
    %cst_225 = arith.constant 1.000000e+00 : f32
    %cst_226 = arith.constant -1.000000e+00 : f32
    %582 = vector.broadcast %cst_225 : f32 to vector<6x128xf32>
    %583 = vector.broadcast %cst_226 : f32 to vector<6x128xf32>
    %584 = arith.select %581, %582, %583 : vector<6x128xi1>, vector<6x128xf32>
    %585 = math.absf %579 : vector<6x128xf32>
    %cst_227 = arith.constant 0.327591091 : f32
    %586 = vector.broadcast %cst_227 : f32 to vector<6x128xf32>
    %587 = arith.mulf %586, %585 : vector<6x128xf32>
    %cst_228 = arith.constant 1.000000e+00 : f32
    %588 = vector.broadcast %cst_228 : f32 to vector<6x128xf32>
    %589 = arith.addf %588, %587 : vector<6x128xf32>
    %cst_229 = arith.constant 1.000000e+00 : f32
    %590 = vector.broadcast %cst_229 : f32 to vector<6x128xf32>
    %591 = arith.divf %590, %589 : vector<6x128xf32>
    %cst_230 = arith.constant 1.06140542 : f32
    %592 = vector.broadcast %cst_230 : f32 to vector<6x128xf32>
    %593 = arith.mulf %592, %591 : vector<6x128xf32>
    %cst_231 = arith.constant -1.45315206 : f32
    %594 = vector.broadcast %cst_231 : f32 to vector<6x128xf32>
    %595 = arith.addf %593, %594 : vector<6x128xf32>
    %596 = arith.mulf %595, %591 : vector<6x128xf32>
    %cst_232 = arith.constant 1.42141378 : f32
    %597 = vector.broadcast %cst_232 : f32 to vector<6x128xf32>
    %598 = arith.addf %596, %597 : vector<6x128xf32>
    %599 = arith.mulf %598, %591 : vector<6x128xf32>
    %cst_233 = arith.constant -0.284496725 : f32
    %600 = vector.broadcast %cst_233 : f32 to vector<6x128xf32>
    %601 = arith.addf %599, %600 : vector<6x128xf32>
    %602 = arith.mulf %601, %591 : vector<6x128xf32>
    %cst_234 = arith.constant 0.254829586 : f32
    %603 = vector.broadcast %cst_234 : f32 to vector<6x128xf32>
    %604 = arith.addf %602, %603 : vector<6x128xf32>
    %605 = arith.mulf %604, %591 : vector<6x128xf32>
    %cst_235 = arith.constant 0.000000e+00 : f32
    %606 = vector.broadcast %cst_235 : f32 to vector<6x128xf32>
    %607 = arith.subf %606, %585 : vector<6x128xf32>
    %608 = arith.mulf %607, %585 : vector<6x128xf32>
    %609 = math.exp %608 : vector<6x128xf32>
    %610 = arith.mulf %605, %609 : vector<6x128xf32>
    %cst_236 = arith.constant 1.000000e+00 : f32
    %611 = vector.broadcast %cst_236 : f32 to vector<6x128xf32>
    %612 = arith.subf %611, %610 : vector<6x128xf32>
    %613 = arith.mulf %584, %612 : vector<6x128xf32>
    %cst_237 = arith.constant 1.000000e+00 : f32
    %614 = vector.broadcast %cst_237 : f32 to vector<6x128xf32>
    %615 = arith.addf %614, %613 : vector<6x128xf32>
    %616 = arith.mulf %577, %615 : vector<6x128xf32>
    %617 = arith.truncf %616 : vector<6x128xf32> to vector<6x128xbf16>
    %cst_238 = arith.constant dense<0.000000e+00> : vector<6x32xf32>
    %618 = tpu.matmul %617, %361, %cst_238 {dimension_numbers = #tpu.dot_dimension_numbers<[1], [0], [0], [1], [0, 0, 1, 1], [], []>} : vector<6x128xbf16>, vector<128x32xbf16>, vector<6x32xf32> -> vector<6x32xf32>
    %619 = arith.addf %549, %618 : vector<6x32xf32>
    %620 = vector.broadcast %363 : vector<1x32xf32> to vector<6x32xf32>
    %621 = arith.addf %619, %620 : vector<6x32xf32>
    %c0_239 = arith.constant 0 : index
    %c0_240 = arith.constant 0 : index
    %622 = vector.load %arg18[%c0_239, %c0_240] : memref<1x32xf32, #tpu.memory_space<vmem>>, vector<1x32xf32>
    %c0_241 = arith.constant 0 : index
    %c0_242 = arith.constant 0 : index
    %623 = vector.load %arg19[%c0_241, %c0_242] : memref<1x32xf32, #tpu.memory_space<vmem>>, vector<1x32xf32>
    %cst_243 = arith.constant dense<0.000000e+00> : vector<6xf32>
    %624 = vector.multi_reduction <add>, %621, %cst_243 [1] : vector<6x32xf32> to vector<6xf32>
    %625 = vector.shape_cast %624 : vector<6xf32> to vector<6x1xf32>
    %cst_244 = arith.constant 3.200000e+01 : f32
    %626 = vector.broadcast %cst_244 : f32 to vector<6x1xf32>
    %627 = arith.divf %625, %626 : vector<6x1xf32>
    %628 = vector.broadcast %627 : vector<6x1xf32> to vector<6x32xf32>
    %629 = arith.subf %621, %628 : vector<6x32xf32>
    %630 = arith.mulf %629, %629 : vector<6x32xf32>
    %cst_245 = arith.constant dense<0.000000e+00> : vector<6xf32>
    %631 = vector.multi_reduction <add>, %630, %cst_245 [1] : vector<6x32xf32> to vector<6xf32>
    %632 = vector.shape_cast %631 : vector<6xf32> to vector<6x1xf32>
    %cst_246 = arith.constant 3.200000e+01 : f32
    %633 = vector.broadcast %cst_246 : f32 to vector<6x1xf32>
    %634 = arith.divf %632, %633 : vector<6x1xf32>
    %635 = vector.broadcast %627 : vector<6x1xf32> to vector<6x32xf32>
    %636 = arith.subf %621, %635 : vector<6x32xf32>
    %cst_247 = arith.constant 9.99999974E-6 : f32
    %637 = vector.broadcast %cst_247 : f32 to vector<6x1xf32>
    %638 = arith.addf %634, %637 : vector<6x1xf32>
    %639 = math.rsqrt %638 : vector<6x1xf32>
    %640 = vector.broadcast %639 : vector<6x1xf32> to vector<6x32xf32>
    %641 = arith.mulf %636, %640 : vector<6x32xf32>
    %642 = vector.broadcast %622 : vector<1x32xf32> to vector<6x32xf32>
    %643 = arith.mulf %641, %642 : vector<6x32xf32>
    %644 = vector.broadcast %623 : vector<1x32xf32> to vector<6x32xf32>
    %645 = arith.addf %643, %644 : vector<6x32xf32>
    %c0_248 = arith.constant 0 : index
    %c0_249 = arith.constant 0 : index
    %646 = vector.load %arg20[%c0_248, %c0_249] : memref<32x16xbf16, #tpu.memory_space<vmem>>, vector<32x16xbf16>
    %647 = arith.truncf %645 : vector<6x32xf32> to vector<6x32xbf16>
    %cst_250 = arith.constant dense<0.000000e+00> : vector<6x16xf32>
    %648 = tpu.matmul %647, %646, %cst_250 {dimension_numbers = #tpu.dot_dimension_numbers<[1], [0], [0], [1], [0, 0, 1, 1], [], []>} : vector<6x32xbf16>, vector<32x16xbf16>, vector<6x16xf32> -> vector<6x16xf32>
    %c0_251 = arith.constant 0 : index
    %c0_252 = arith.constant 0 : index
    %649 = vector.load %arg21[%c0_251, %c0_252] : memref<1x16xf32, #tpu.memory_space<vmem>>, vector<1x16xf32>
    %650 = vector.broadcast %649 : vector<1x16xf32> to vector<6x16xf32>
    %651 = arith.addf %648, %650 : vector<6x16xf32>
    %652 = vector.extract_strided_slice %651 {offsets = [0, 0], sizes = [3, 16], strides = [1, 1]} : vector<6x16xf32> to vector<3x16xf32>
    %c0_253 = arith.constant 0 : index
    %c0_254 = arith.constant 0 : index
    %c0_255 = arith.constant 0 : index
    %653 = vector.load %arg22[%c0_253, %c0_254, %c0_255] : memref<2x3x16xf32, #tpu.memory_space<vmem>>, vector<1x3x16xf32>
    %654 = vector.shape_cast %653 : vector<1x3x16xf32> to vector<3x16xf32>
    %655 = vector.shape_cast %652 : vector<3x16xf32> to vector<1x3x16xf32>
    tpu.vector_store %arg22[%c0_253, %c0_254, %c0_255], %655 {strides = array<i32>} : memref<2x3x16xf32, #tpu.memory_space<vmem>>, vector<1x3x16xf32>,
    %656 = vector.extract_strided_slice %651 {offsets = [3, 0], sizes = [3, 16], strides = [1, 1]} : vector<6x16xf32> to vector<3x16xf32>
    %c1_256 = arith.constant 1 : index
    %c0_257 = arith.constant 0 : index
    %c0_258 = arith.constant 0 : index
    %657 = vector.load %arg22[%c1_256, %c0_257, %c0_258] : memref<2x3x16xf32, #tpu.memory_space<vmem>>, vector<1x3x16xf32>
    %658 = vector.shape_cast %657 : vector<1x3x16xf32> to vector<3x16xf32>
    %659 = vector.shape_cast %656 : vector<3x16xf32> to vector<1x3x16xf32>
    tpu.vector_store %arg22[%c1_256, %c0_257, %c0_258], %659 {strides = array<i32>} : memref<2x3x16xf32, #tpu.memory_space<vmem>>, vector<1x3x16xf32>,
    return
  }
}

module attributes {stable_mosaic.version = 11 : i64} {
  func.func @_decoder_kernel(%arg0: memref<2x8xi32, #tpu.memory_space<smem>>, %arg1: memref<2x3x16xf32, #tpu.memory_space<vmem>>, %arg2: memref<1x16xf32, #tpu.memory_space<vmem>>, %arg3: memref<9x16xf32, #tpu.memory_space<vmem>>, %arg4: memref<1x1x16xf32, #tpu.memory_space<vmem>>, %arg5: memref<1x1x16xf32, #tpu.memory_space<vmem>>, %arg6: memref<1x16x48xbf16, #tpu.memory_space<vmem>>, %arg7: memref<1x1x48xf32, #tpu.memory_space<vmem>>, %arg8: memref<1x16x16xbf16, #tpu.memory_space<vmem>>, %arg9: memref<1x1x16xf32, #tpu.memory_space<vmem>>, %arg10: memref<1x1x16xf32, #tpu.memory_space<vmem>>, %arg11: memref<1x1x16xf32, #tpu.memory_space<vmem>>, %arg12: memref<1x16x64xbf16, #tpu.memory_space<vmem>>, %arg13: memref<1x1x64xf32, #tpu.memory_space<vmem>>, %arg14: memref<1x64x16xbf16, #tpu.memory_space<vmem>>, %arg15: memref<1x1x16xf32, #tpu.memory_space<vmem>>, %arg16: memref<1x16xf32, #tpu.memory_space<vmem>>, %arg17: memref<1x16xf32, #tpu.memory_space<vmem>>, %arg18: memref<16x16xbf16, #tpu.memory_space<vmem>>, %arg19: memref<1x16xf32, #tpu.memory_space<vmem>>, %arg20: memref<2x8x16xf32, #tpu.memory_space<vmem>>, %arg21: memref<2x8x1xf32, #tpu.memory_space<vmem>>, %arg22: memref<2x8x16xf32, #tpu.memory_space<vmem>>, %arg23: memref<1x1xf32, #tpu.memory_space<smem>>) attributes {dimension_semantics = [], scalar_prefetch = 0 : i64, scratch_operands = 0 : i64, tpu.core_type = #tpu.core_type<tc>} {
    %c0 = arith.constant 0 : index
    %c0_0 = arith.constant 0 : index
    %0 = vector.load %arg2[%c0, %c0_0] : memref<1x16xf32, #tpu.memory_space<vmem>>, vector<1x16xf32>
    %c0_1 = arith.constant 0 : index
    %c0_2 = arith.constant 0 : index
    %1 = vector.load %arg3[%c0_1, %c0_2] : memref<9x16xf32, #tpu.memory_space<vmem>>, vector<9x16xf32>
    %2 = tpu.iota {dimensions = array<i32: 0>} : vector<8x1xi32>
    %c0_3 = arith.constant 0 : index
    %c0_4 = arith.constant 0 : index
    %c0_5 = arith.constant 0 : index
    %3 = vector.load %arg1[%c0_3, %c0_4, %c0_5] : memref<2x3x16xf32, #tpu.memory_space<vmem>>, vector<1x3x16xf32>
    %4 = vector.shape_cast %3 : vector<1x3x16xf32> to vector<3x16xf32>
    %5 = vector.extract_strided_slice %4 {offsets = [0, 0], sizes = [1, 16], strides = [1, 1]} : vector<3x16xf32> to vector<1x16xf32>
    %6 = vector.extract_strided_slice %4 {offsets = [1, 0], sizes = [2, 16], strides = [1, 1]} : vector<3x16xf32> to vector<2x16xf32>
    %7 = vector.shape_cast %0 : vector<1x16xf32> to vector<1x16xf32>
    %8 = vector.broadcast %7 : vector<1x16xf32> to vector<6x16xf32>
    %9 = tpu.concatenate %6, %8 in 0 : vector<2x16xf32>, vector<6x16xf32> -> vector<8x16xf32>
    %c0_6 = arith.constant 0 : index
    %c0_7 = arith.constant 0 : index
    %10 = memref.load %arg0[%c0_6, %c0_7] : memref<2x8xi32, #tpu.memory_space<smem>>
    %11 = vector.broadcast %10 : i32 to vector<8x1xi32>
    %12 = arith.cmpi eq, %2, %11 : vector<8x1xi32>
    %13 = arith.extui %12 : vector<8x1xi1> to vector<8x1xi32>
    %14 = arith.sitofp %13 : vector<8x1xi32> to vector<8x1xf32>
    %15 = vector.broadcast %14 : vector<8x1xf32> to vector<8x16xf32>
    %16 = arith.mulf %9, %15 : vector<8x16xf32>
    %cst = arith.constant dense<0.000000e+00> : vector<16xf32>
    %17 = vector.multi_reduction <add>, %16, %cst [0] : vector<8x16xf32> to vector<16xf32>
    %18 = vector.shape_cast %17 : vector<16xf32> to vector<1x16xf32>
    %c0_8 = arith.constant 0 : index
    %c1 = arith.constant 1 : index
    %19 = memref.load %arg0[%c0_8, %c1] : memref<2x8xi32, #tpu.memory_space<smem>>
    %20 = vector.broadcast %19 : i32 to vector<8x1xi32>
    %21 = arith.cmpi eq, %2, %20 : vector<8x1xi32>
    %22 = arith.extui %21 : vector<8x1xi1> to vector<8x1xi32>
    %23 = arith.sitofp %22 : vector<8x1xi32> to vector<8x1xf32>
    %24 = vector.broadcast %23 : vector<8x1xf32> to vector<8x16xf32>
    %25 = arith.mulf %9, %24 : vector<8x16xf32>
    %cst_9 = arith.constant dense<0.000000e+00> : vector<16xf32>
    %26 = vector.multi_reduction <add>, %25, %cst_9 [0] : vector<8x16xf32> to vector<16xf32>
    %27 = vector.shape_cast %26 : vector<16xf32> to vector<1x16xf32>
    %c0_10 = arith.constant 0 : index
    %c2 = arith.constant 2 : index
    %28 = memref.load %arg0[%c0_10, %c2] : memref<2x8xi32, #tpu.memory_space<smem>>
    %29 = vector.broadcast %28 : i32 to vector<8x1xi32>
    %30 = arith.cmpi eq, %2, %29 : vector<8x1xi32>
    %31 = arith.extui %30 : vector<8x1xi1> to vector<8x1xi32>
    %32 = arith.sitofp %31 : vector<8x1xi32> to vector<8x1xf32>
    %33 = vector.broadcast %32 : vector<8x1xf32> to vector<8x16xf32>
    %34 = arith.mulf %9, %33 : vector<8x16xf32>
    %cst_11 = arith.constant dense<0.000000e+00> : vector<16xf32>
    %35 = vector.multi_reduction <add>, %34, %cst_11 [0] : vector<8x16xf32> to vector<16xf32>
    %36 = vector.shape_cast %35 : vector<16xf32> to vector<1x16xf32>
    %c0_12 = arith.constant 0 : index
    %c3 = arith.constant 3 : index
    %37 = memref.load %arg0[%c0_12, %c3] : memref<2x8xi32, #tpu.memory_space<smem>>
    %38 = vector.broadcast %37 : i32 to vector<8x1xi32>
    %39 = arith.cmpi eq, %2, %38 : vector<8x1xi32>
    %40 = arith.extui %39 : vector<8x1xi1> to vector<8x1xi32>
    %41 = arith.sitofp %40 : vector<8x1xi32> to vector<8x1xf32>
    %42 = vector.broadcast %41 : vector<8x1xf32> to vector<8x16xf32>
    %43 = arith.mulf %9, %42 : vector<8x16xf32>
    %cst_13 = arith.constant dense<0.000000e+00> : vector<16xf32>
    %44 = vector.multi_reduction <add>, %43, %cst_13 [0] : vector<8x16xf32> to vector<16xf32>
    %45 = vector.shape_cast %44 : vector<16xf32> to vector<1x16xf32>
    %c0_14 = arith.constant 0 : index
    %c4 = arith.constant 4 : index
    %46 = memref.load %arg0[%c0_14, %c4] : memref<2x8xi32, #tpu.memory_space<smem>>
    %47 = vector.broadcast %46 : i32 to vector<8x1xi32>
    %48 = arith.cmpi eq, %2, %47 : vector<8x1xi32>
    %49 = arith.extui %48 : vector<8x1xi1> to vector<8x1xi32>
    %50 = arith.sitofp %49 : vector<8x1xi32> to vector<8x1xf32>
    %51 = vector.broadcast %50 : vector<8x1xf32> to vector<8x16xf32>
    %52 = arith.mulf %9, %51 : vector<8x16xf32>
    %cst_15 = arith.constant dense<0.000000e+00> : vector<16xf32>
    %53 = vector.multi_reduction <add>, %52, %cst_15 [0] : vector<8x16xf32> to vector<16xf32>
    %54 = vector.shape_cast %53 : vector<16xf32> to vector<1x16xf32>
    %c0_16 = arith.constant 0 : index
    %c5 = arith.constant 5 : index
    %55 = memref.load %arg0[%c0_16, %c5] : memref<2x8xi32, #tpu.memory_space<smem>>
    %56 = vector.broadcast %55 : i32 to vector<8x1xi32>
    %57 = arith.cmpi eq, %2, %56 : vector<8x1xi32>
    %58 = arith.extui %57 : vector<8x1xi1> to vector<8x1xi32>
    %59 = arith.sitofp %58 : vector<8x1xi32> to vector<8x1xf32>
    %60 = vector.broadcast %59 : vector<8x1xf32> to vector<8x16xf32>
    %61 = arith.mulf %9, %60 : vector<8x16xf32>
    %cst_17 = arith.constant dense<0.000000e+00> : vector<16xf32>
    %62 = vector.multi_reduction <add>, %61, %cst_17 [0] : vector<8x16xf32> to vector<16xf32>
    %63 = vector.shape_cast %62 : vector<16xf32> to vector<1x16xf32>
    %c0_18 = arith.constant 0 : index
    %c6 = arith.constant 6 : index
    %64 = memref.load %arg0[%c0_18, %c6] : memref<2x8xi32, #tpu.memory_space<smem>>
    %65 = vector.broadcast %64 : i32 to vector<8x1xi32>
    %66 = arith.cmpi eq, %2, %65 : vector<8x1xi32>
    %67 = arith.extui %66 : vector<8x1xi1> to vector<8x1xi32>
    %68 = arith.sitofp %67 : vector<8x1xi32> to vector<8x1xf32>
    %69 = vector.broadcast %68 : vector<8x1xf32> to vector<8x16xf32>
    %70 = arith.mulf %9, %69 : vector<8x16xf32>
    %cst_19 = arith.constant dense<0.000000e+00> : vector<16xf32>
    %71 = vector.multi_reduction <add>, %70, %cst_19 [0] : vector<8x16xf32> to vector<16xf32>
    %72 = vector.shape_cast %71 : vector<16xf32> to vector<1x16xf32>
    %c0_20 = arith.constant 0 : index
    %c7 = arith.constant 7 : index
    %73 = memref.load %arg0[%c0_20, %c7] : memref<2x8xi32, #tpu.memory_space<smem>>
    %74 = vector.broadcast %73 : i32 to vector<8x1xi32>
    %75 = arith.cmpi eq, %2, %74 : vector<8x1xi32>
    %76 = arith.extui %75 : vector<8x1xi1> to vector<8x1xi32>
    %77 = arith.sitofp %76 : vector<8x1xi32> to vector<8x1xf32>
    %78 = vector.broadcast %77 : vector<8x1xf32> to vector<8x16xf32>
    %79 = arith.mulf %9, %78 : vector<8x16xf32>
    %cst_21 = arith.constant dense<0.000000e+00> : vector<16xf32>
    %80 = vector.multi_reduction <add>, %79, %cst_21 [0] : vector<8x16xf32> to vector<16xf32>
    %81 = vector.shape_cast %80 : vector<16xf32> to vector<1x16xf32>
    %82 = tpu.concatenate %5, %18, %27, %36, %45, %54, %63, %72, %81 in 0 : vector<1x16xf32>, vector<1x16xf32>, vector<1x16xf32>, vector<1x16xf32>, vector<1x16xf32>, vector<1x16xf32>, vector<1x16xf32>, vector<1x16xf32>, vector<1x16xf32> -> vector<9x16xf32>
    %83 = arith.addf %82, %1 : vector<9x16xf32>
    %c1_22 = arith.constant 1 : index
    %c0_23 = arith.constant 0 : index
    %c0_24 = arith.constant 0 : index
    %84 = vector.load %arg1[%c1_22, %c0_23, %c0_24] : memref<2x3x16xf32, #tpu.memory_space<vmem>>, vector<1x3x16xf32>
    %85 = vector.shape_cast %84 : vector<1x3x16xf32> to vector<3x16xf32>
    %86 = vector.extract_strided_slice %85 {offsets = [0, 0], sizes = [1, 16], strides = [1, 1]} : vector<3x16xf32> to vector<1x16xf32>
    %87 = vector.extract_strided_slice %85 {offsets = [1, 0], sizes = [2, 16], strides = [1, 1]} : vector<3x16xf32> to vector<2x16xf32>
    %88 = vector.shape_cast %0 : vector<1x16xf32> to vector<1x16xf32>
    %89 = vector.broadcast %88 : vector<1x16xf32> to vector<6x16xf32>
    %90 = tpu.concatenate %87, %89 in 0 : vector<2x16xf32>, vector<6x16xf32> -> vector<8x16xf32>
    %c1_25 = arith.constant 1 : index
    %c0_26 = arith.constant 0 : index
    %91 = memref.load %arg0[%c1_25, %c0_26] : memref<2x8xi32, #tpu.memory_space<smem>>
    %92 = vector.broadcast %91 : i32 to vector<8x1xi32>
    %93 = arith.cmpi eq, %2, %92 : vector<8x1xi32>
    %94 = arith.extui %93 : vector<8x1xi1> to vector<8x1xi32>
    %95 = arith.sitofp %94 : vector<8x1xi32> to vector<8x1xf32>
    %96 = vector.broadcast %95 : vector<8x1xf32> to vector<8x16xf32>
    %97 = arith.mulf %90, %96 : vector<8x16xf32>
    %cst_27 = arith.constant dense<0.000000e+00> : vector<16xf32>
    %98 = vector.multi_reduction <add>, %97, %cst_27 [0] : vector<8x16xf32> to vector<16xf32>
    %99 = vector.shape_cast %98 : vector<16xf32> to vector<1x16xf32>
    %c1_28 = arith.constant 1 : index
    %c1_29 = arith.constant 1 : index
    %100 = memref.load %arg0[%c1_28, %c1_29] : memref<2x8xi32, #tpu.memory_space<smem>>
    %101 = vector.broadcast %100 : i32 to vector<8x1xi32>
    %102 = arith.cmpi eq, %2, %101 : vector<8x1xi32>
    %103 = arith.extui %102 : vector<8x1xi1> to vector<8x1xi32>
    %104 = arith.sitofp %103 : vector<8x1xi32> to vector<8x1xf32>
    %105 = vector.broadcast %104 : vector<8x1xf32> to vector<8x16xf32>
    %106 = arith.mulf %90, %105 : vector<8x16xf32>
    %cst_30 = arith.constant dense<0.000000e+00> : vector<16xf32>
    %107 = vector.multi_reduction <add>, %106, %cst_30 [0] : vector<8x16xf32> to vector<16xf32>
    %108 = vector.shape_cast %107 : vector<16xf32> to vector<1x16xf32>
    %c1_31 = arith.constant 1 : index
    %c2_32 = arith.constant 2 : index
    %109 = memref.load %arg0[%c1_31, %c2_32] : memref<2x8xi32, #tpu.memory_space<smem>>
    %110 = vector.broadcast %109 : i32 to vector<8x1xi32>
    %111 = arith.cmpi eq, %2, %110 : vector<8x1xi32>
    %112 = arith.extui %111 : vector<8x1xi1> to vector<8x1xi32>
    %113 = arith.sitofp %112 : vector<8x1xi32> to vector<8x1xf32>
    %114 = vector.broadcast %113 : vector<8x1xf32> to vector<8x16xf32>
    %115 = arith.mulf %90, %114 : vector<8x16xf32>
    %cst_33 = arith.constant dense<0.000000e+00> : vector<16xf32>
    %116 = vector.multi_reduction <add>, %115, %cst_33 [0] : vector<8x16xf32> to vector<16xf32>
    %117 = vector.shape_cast %116 : vector<16xf32> to vector<1x16xf32>
    %c1_34 = arith.constant 1 : index
    %c3_35 = arith.constant 3 : index
    %118 = memref.load %arg0[%c1_34, %c3_35] : memref<2x8xi32, #tpu.memory_space<smem>>
    %119 = vector.broadcast %118 : i32 to vector<8x1xi32>
    %120 = arith.cmpi eq, %2, %119 : vector<8x1xi32>
    %121 = arith.extui %120 : vector<8x1xi1> to vector<8x1xi32>
    %122 = arith.sitofp %121 : vector<8x1xi32> to vector<8x1xf32>
    %123 = vector.broadcast %122 : vector<8x1xf32> to vector<8x16xf32>
    %124 = arith.mulf %90, %123 : vector<8x16xf32>
    %cst_36 = arith.constant dense<0.000000e+00> : vector<16xf32>
    %125 = vector.multi_reduction <add>, %124, %cst_36 [0] : vector<8x16xf32> to vector<16xf32>
    %126 = vector.shape_cast %125 : vector<16xf32> to vector<1x16xf32>
    %c1_37 = arith.constant 1 : index
    %c4_38 = arith.constant 4 : index
    %127 = memref.load %arg0[%c1_37, %c4_38] : memref<2x8xi32, #tpu.memory_space<smem>>
    %128 = vector.broadcast %127 : i32 to vector<8x1xi32>
    %129 = arith.cmpi eq, %2, %128 : vector<8x1xi32>
    %130 = arith.extui %129 : vector<8x1xi1> to vector<8x1xi32>
    %131 = arith.sitofp %130 : vector<8x1xi32> to vector<8x1xf32>
    %132 = vector.broadcast %131 : vector<8x1xf32> to vector<8x16xf32>
    %133 = arith.mulf %90, %132 : vector<8x16xf32>
    %cst_39 = arith.constant dense<0.000000e+00> : vector<16xf32>
    %134 = vector.multi_reduction <add>, %133, %cst_39 [0] : vector<8x16xf32> to vector<16xf32>
    %135 = vector.shape_cast %134 : vector<16xf32> to vector<1x16xf32>
    %c1_40 = arith.constant 1 : index
    %c5_41 = arith.constant 5 : index
    %136 = memref.load %arg0[%c1_40, %c5_41] : memref<2x8xi32, #tpu.memory_space<smem>>
    %137 = vector.broadcast %136 : i32 to vector<8x1xi32>
    %138 = arith.cmpi eq, %2, %137 : vector<8x1xi32>
    %139 = arith.extui %138 : vector<8x1xi1> to vector<8x1xi32>
    %140 = arith.sitofp %139 : vector<8x1xi32> to vector<8x1xf32>
    %141 = vector.broadcast %140 : vector<8x1xf32> to vector<8x16xf32>
    %142 = arith.mulf %90, %141 : vector<8x16xf32>
    %cst_42 = arith.constant dense<0.000000e+00> : vector<16xf32>
    %143 = vector.multi_reduction <add>, %142, %cst_42 [0] : vector<8x16xf32> to vector<16xf32>
    %144 = vector.shape_cast %143 : vector<16xf32> to vector<1x16xf32>
    %c1_43 = arith.constant 1 : index
    %c6_44 = arith.constant 6 : index
    %145 = memref.load %arg0[%c1_43, %c6_44] : memref<2x8xi32, #tpu.memory_space<smem>>
    %146 = vector.broadcast %145 : i32 to vector<8x1xi32>
    %147 = arith.cmpi eq, %2, %146 : vector<8x1xi32>
    %148 = arith.extui %147 : vector<8x1xi1> to vector<8x1xi32>
    %149 = arith.sitofp %148 : vector<8x1xi32> to vector<8x1xf32>
    %150 = vector.broadcast %149 : vector<8x1xf32> to vector<8x16xf32>
    %151 = arith.mulf %90, %150 : vector<8x16xf32>
    %cst_45 = arith.constant dense<0.000000e+00> : vector<16xf32>
    %152 = vector.multi_reduction <add>, %151, %cst_45 [0] : vector<8x16xf32> to vector<16xf32>
    %153 = vector.shape_cast %152 : vector<16xf32> to vector<1x16xf32>
    %c1_46 = arith.constant 1 : index
    %c7_47 = arith.constant 7 : index
    %154 = memref.load %arg0[%c1_46, %c7_47] : memref<2x8xi32, #tpu.memory_space<smem>>
    %155 = vector.broadcast %154 : i32 to vector<8x1xi32>
    %156 = arith.cmpi eq, %2, %155 : vector<8x1xi32>
    %157 = arith.extui %156 : vector<8x1xi1> to vector<8x1xi32>
    %158 = arith.sitofp %157 : vector<8x1xi32> to vector<8x1xf32>
    %159 = vector.broadcast %158 : vector<8x1xf32> to vector<8x16xf32>
    %160 = arith.mulf %90, %159 : vector<8x16xf32>
    %cst_48 = arith.constant dense<0.000000e+00> : vector<16xf32>
    %161 = vector.multi_reduction <add>, %160, %cst_48 [0] : vector<8x16xf32> to vector<16xf32>
    %162 = vector.shape_cast %161 : vector<16xf32> to vector<1x16xf32>
    %163 = tpu.concatenate %86, %99, %108, %117, %126, %135, %144, %153, %162 in 0 : vector<1x16xf32>, vector<1x16xf32>, vector<1x16xf32>, vector<1x16xf32>, vector<1x16xf32>, vector<1x16xf32>, vector<1x16xf32>, vector<1x16xf32>, vector<1x16xf32> -> vector<9x16xf32>
    %164 = arith.addf %163, %1 : vector<9x16xf32>
    %165 = tpu.concatenate %83, %164 in 0 : vector<9x16xf32>, vector<9x16xf32> -> vector<18x16xf32>
    %c0_49 = arith.constant 0 : index
    %c0_50 = arith.constant 0 : index
    %c0_51 = arith.constant 0 : index
    %166 = vector.load %arg4[%c0_49, %c0_50, %c0_51] : memref<1x1x16xf32, #tpu.memory_space<vmem>>, vector<1x1x16xf32>
    %167 = vector.shape_cast %166 : vector<1x1x16xf32> to vector<1x16xf32>
    %c0_52 = arith.constant 0 : index
    %c0_53 = arith.constant 0 : index
    %c0_54 = arith.constant 0 : index
    %168 = vector.load %arg5[%c0_52, %c0_53, %c0_54] : memref<1x1x16xf32, #tpu.memory_space<vmem>>, vector<1x1x16xf32>
    %169 = vector.shape_cast %168 : vector<1x1x16xf32> to vector<1x16xf32>
    %c0_55 = arith.constant 0 : index
    %c0_56 = arith.constant 0 : index
    %c0_57 = arith.constant 0 : index
    %170 = vector.load %arg6[%c0_55, %c0_56, %c0_57] : memref<1x16x48xbf16, #tpu.memory_space<vmem>>, vector<1x16x48xbf16>
    %171 = vector.shape_cast %170 : vector<1x16x48xbf16> to vector<16x48xbf16>
    %c0_58 = arith.constant 0 : index
    %c0_59 = arith.constant 0 : index
    %c0_60 = arith.constant 0 : index
    %172 = vector.load %arg7[%c0_58, %c0_59, %c0_60] : memref<1x1x48xf32, #tpu.memory_space<vmem>>, vector<1x1x48xf32>
    %173 = vector.shape_cast %172 : vector<1x1x48xf32> to vector<1x48xf32>
    %c0_61 = arith.constant 0 : index
    %c0_62 = arith.constant 0 : index
    %c0_63 = arith.constant 0 : index
    %174 = vector.load %arg8[%c0_61, %c0_62, %c0_63] : memref<1x16x16xbf16, #tpu.memory_space<vmem>>, vector<1x16x16xbf16>
    %175 = vector.shape_cast %174 : vector<1x16x16xbf16> to vector<16x16xbf16>
    %c0_64 = arith.constant 0 : index
    %c0_65 = arith.constant 0 : index
    %c0_66 = arith.constant 0 : index
    %176 = vector.load %arg9[%c0_64, %c0_65, %c0_66] : memref<1x1x16xf32, #tpu.memory_space<vmem>>, vector<1x1x16xf32>
    %177 = vector.shape_cast %176 : vector<1x1x16xf32> to vector<1x16xf32>
    %c0_67 = arith.constant 0 : index
    %c0_68 = arith.constant 0 : index
    %c0_69 = arith.constant 0 : index
    %178 = vector.load %arg10[%c0_67, %c0_68, %c0_69] : memref<1x1x16xf32, #tpu.memory_space<vmem>>, vector<1x1x16xf32>
    %179 = vector.shape_cast %178 : vector<1x1x16xf32> to vector<1x16xf32>
    %c0_70 = arith.constant 0 : index
    %c0_71 = arith.constant 0 : index
    %c0_72 = arith.constant 0 : index
    %180 = vector.load %arg11[%c0_70, %c0_71, %c0_72] : memref<1x1x16xf32, #tpu.memory_space<vmem>>, vector<1x1x16xf32>
    %181 = vector.shape_cast %180 : vector<1x1x16xf32> to vector<1x16xf32>
    %c0_73 = arith.constant 0 : index
    %c0_74 = arith.constant 0 : index
    %c0_75 = arith.constant 0 : index
    %182 = vector.load %arg12[%c0_73, %c0_74, %c0_75] : memref<1x16x64xbf16, #tpu.memory_space<vmem>>, vector<1x16x64xbf16>
    %183 = vector.shape_cast %182 : vector<1x16x64xbf16> to vector<16x64xbf16>
    %c0_76 = arith.constant 0 : index
    %c0_77 = arith.constant 0 : index
    %c0_78 = arith.constant 0 : index
    %184 = vector.load %arg13[%c0_76, %c0_77, %c0_78] : memref<1x1x64xf32, #tpu.memory_space<vmem>>, vector<1x1x64xf32>
    %185 = vector.shape_cast %184 : vector<1x1x64xf32> to vector<1x64xf32>
    %c0_79 = arith.constant 0 : index
    %c0_80 = arith.constant 0 : index
    %c0_81 = arith.constant 0 : index
    %186 = vector.load %arg14[%c0_79, %c0_80, %c0_81] : memref<1x64x16xbf16, #tpu.memory_space<vmem>>, vector<1x64x16xbf16>
    %187 = vector.shape_cast %186 : vector<1x64x16xbf16> to vector<64x16xbf16>
    %c0_82 = arith.constant 0 : index
    %c0_83 = arith.constant 0 : index
    %c0_84 = arith.constant 0 : index
    %188 = vector.load %arg15[%c0_82, %c0_83, %c0_84] : memref<1x1x16xf32, #tpu.memory_space<vmem>>, vector<1x1x16xf32>
    %189 = vector.shape_cast %188 : vector<1x1x16xf32> to vector<1x16xf32>
    %cst_85 = arith.constant dense<0.000000e+00> : vector<18xf32>
    %190 = vector.multi_reduction <add>, %165, %cst_85 [1] : vector<18x16xf32> to vector<18xf32>
    %191 = vector.shape_cast %190 : vector<18xf32> to vector<18x1xf32>
    %cst_86 = arith.constant 1.600000e+01 : f32
    %192 = vector.broadcast %cst_86 : f32 to vector<18x1xf32>
    %193 = arith.divf %191, %192 : vector<18x1xf32>
    %194 = vector.broadcast %193 : vector<18x1xf32> to vector<18x16xf32>
    %195 = arith.subf %165, %194 : vector<18x16xf32>
    %196 = arith.mulf %195, %195 : vector<18x16xf32>
    %cst_87 = arith.constant dense<0.000000e+00> : vector<18xf32>
    %197 = vector.multi_reduction <add>, %196, %cst_87 [1] : vector<18x16xf32> to vector<18xf32>
    %198 = vector.shape_cast %197 : vector<18xf32> to vector<18x1xf32>
    %cst_88 = arith.constant 1.600000e+01 : f32
    %199 = vector.broadcast %cst_88 : f32 to vector<18x1xf32>
    %200 = arith.divf %198, %199 : vector<18x1xf32>
    %201 = vector.broadcast %193 : vector<18x1xf32> to vector<18x16xf32>
    %202 = arith.subf %165, %201 : vector<18x16xf32>
    %cst_89 = arith.constant 9.99999974E-6 : f32
    %203 = vector.broadcast %cst_89 : f32 to vector<18x1xf32>
    %204 = arith.addf %200, %203 : vector<18x1xf32>
    %205 = math.rsqrt %204 : vector<18x1xf32>
    %206 = vector.broadcast %205 : vector<18x1xf32> to vector<18x16xf32>
    %207 = arith.mulf %202, %206 : vector<18x16xf32>
    %208 = vector.broadcast %167 : vector<1x16xf32> to vector<18x16xf32>
    %209 = arith.mulf %207, %208 : vector<18x16xf32>
    %210 = vector.broadcast %169 : vector<1x16xf32> to vector<18x16xf32>
    %211 = arith.addf %209, %210 : vector<18x16xf32>
    %212 = arith.truncf %211 : vector<18x16xf32> to vector<18x16xbf16>
    %cst_90 = arith.constant dense<0.000000e+00> : vector<18x48xf32>
    %213 = tpu.matmul %212, %171, %cst_90 {dimension_numbers = #tpu.dot_dimension_numbers<[1], [0], [0], [1], [0, 0, 1, 1], [], []>} : vector<18x16xbf16>, vector<16x48xbf16>, vector<18x48xf32> -> vector<18x48xf32>
    %214 = vector.broadcast %173 : vector<1x48xf32> to vector<18x48xf32>
    %215 = arith.addf %213, %214 : vector<18x48xf32>
    %216 = vector.extract_strided_slice %215 {offsets = [0, 0], sizes = [9, 48], strides = [1, 1]} : vector<18x48xf32> to vector<9x48xf32>
    %cst_91 = arith.constant 0.000000e+00 : f32
    %217 = vector.broadcast %cst_91 : f32 to vector<9x16xf32>
    %218 = vector.extract_strided_slice %216 {offsets = [0, 0], sizes = [9, 4], strides = [1, 1]} : vector<9x48xf32> to vector<9x4xf32>
    %219 = vector.extract_strided_slice %216 {offsets = [0, 16], sizes = [9, 4], strides = [1, 1]} : vector<9x48xf32> to vector<9x4xf32>
    %220 = vector.extract_strided_slice %216 {offsets = [0, 32], sizes = [9, 4], strides = [1, 1]} : vector<9x48xf32> to vector<9x4xf32>
    %cst_92 = arith.constant dense<0.000000e+00> : vector<9x9xf32>
    %221 = tpu.matmul %218, %219, %cst_92 {dimension_numbers = #tpu.dot_dimension_numbers<[1], [1], [0], [0], [0, 0, 1, 0], [], []>} : vector<9x4xf32>, vector<9x4xf32>, vector<9x9xf32> -> vector<9x9xf32>
    %cst_93 = arith.constant dense<0xFF800000> : vector<9xf32>
    %222 = vector.multi_reduction <maximumf>, %221, %cst_93 [1] : vector<9x9xf32> to vector<9xf32>
    %223 = vector.shape_cast %222 : vector<9xf32> to vector<9x1xf32>
    %224 = vector.broadcast %223 : vector<9x1xf32> to vector<9x9xf32>
    %225 = arith.subf %221, %224 : vector<9x9xf32>
    %226 = math.exp %225 : vector<9x9xf32>
    %cst_94 = arith.constant dense<0.000000e+00> : vector<9xf32>
    %227 = vector.multi_reduction <add>, %226, %cst_94 [1] : vector<9x9xf32> to vector<9xf32>
    %228 = vector.shape_cast %227 : vector<9xf32> to vector<9x1xf32>
    %229 = tpu.reciprocal %228 {approx = true} : vector<9x1xf32> -> vector<9x1xf32>
    %230 = vector.broadcast %229 : vector<9x1xf32> to vector<9x9xf32>
    %231 = arith.mulf %226, %230 : vector<9x9xf32>
    %cst_95 = arith.constant dense<0.000000e+00> : vector<9x4xf32>
    %232 = tpu.matmul %231, %220, %cst_95 {dimension_numbers = #tpu.dot_dimension_numbers<[1], [0], [0], [1], [0, 0, 1, 1], [], []>} : vector<9x9xf32>, vector<9x4xf32>, vector<9x4xf32> -> vector<9x4xf32>
    %233 = vector.extract_strided_slice %175 {offsets = [0, 0], sizes = [4, 16], strides = [1, 1]} : vector<16x16xbf16> to vector<4x16xbf16>
    %234 = arith.truncf %232 : vector<9x4xf32> to vector<9x4xbf16>
    %cst_96 = arith.constant dense<0.000000e+00> : vector<9x16xf32>
    %235 = tpu.matmul %234, %233, %cst_96 {dimension_numbers = #tpu.dot_dimension_numbers<[1], [0], [0], [1], [0, 0, 1, 1], [], []>} : vector<9x4xbf16>, vector<4x16xbf16>, vector<9x16xf32> -> vector<9x16xf32>
    %236 = arith.addf %217, %235 : vector<9x16xf32>
    %237 = vector.extract_strided_slice %216 {offsets = [0, 4], sizes = [9, 4], strides = [1, 1]} : vector<9x48xf32> to vector<9x4xf32>
    %238 = vector.extract_strided_slice %216 {offsets = [0, 20], sizes = [9, 4], strides = [1, 1]} : vector<9x48xf32> to vector<9x4xf32>
    %239 = vector.extract_strided_slice %216 {offsets = [0, 36], sizes = [9, 4], strides = [1, 1]} : vector<9x48xf32> to vector<9x4xf32>
    %cst_97 = arith.constant dense<0.000000e+00> : vector<9x9xf32>
    %240 = tpu.matmul %237, %238, %cst_97 {dimension_numbers = #tpu.dot_dimension_numbers<[1], [1], [0], [0], [0, 0, 1, 0], [], []>} : vector<9x4xf32>, vector<9x4xf32>, vector<9x9xf32> -> vector<9x9xf32>
    %cst_98 = arith.constant dense<0xFF800000> : vector<9xf32>
    %241 = vector.multi_reduction <maximumf>, %240, %cst_98 [1] : vector<9x9xf32> to vector<9xf32>
    %242 = vector.shape_cast %241 : vector<9xf32> to vector<9x1xf32>
    %243 = vector.broadcast %242 : vector<9x1xf32> to vector<9x9xf32>
    %244 = arith.subf %240, %243 : vector<9x9xf32>
    %245 = math.exp %244 : vector<9x9xf32>
    %cst_99 = arith.constant dense<0.000000e+00> : vector<9xf32>
    %246 = vector.multi_reduction <add>, %245, %cst_99 [1] : vector<9x9xf32> to vector<9xf32>
    %247 = vector.shape_cast %246 : vector<9xf32> to vector<9x1xf32>
    %248 = tpu.reciprocal %247 {approx = true} : vector<9x1xf32> -> vector<9x1xf32>
    %249 = vector.broadcast %248 : vector<9x1xf32> to vector<9x9xf32>
    %250 = arith.mulf %245, %249 : vector<9x9xf32>
    %cst_100 = arith.constant dense<0.000000e+00> : vector<9x4xf32>
    %251 = tpu.matmul %250, %239, %cst_100 {dimension_numbers = #tpu.dot_dimension_numbers<[1], [0], [0], [1], [0, 0, 1, 1], [], []>} : vector<9x9xf32>, vector<9x4xf32>, vector<9x4xf32> -> vector<9x4xf32>
    %252 = vector.extract_strided_slice %175 {offsets = [4, 0], sizes = [4, 16], strides = [1, 1]} : vector<16x16xbf16> to vector<4x16xbf16>
    %253 = arith.truncf %251 : vector<9x4xf32> to vector<9x4xbf16>
    %cst_101 = arith.constant dense<0.000000e+00> : vector<9x16xf32>
    %254 = tpu.matmul %253, %252, %cst_101 {dimension_numbers = #tpu.dot_dimension_numbers<[1], [0], [0], [1], [0, 0, 1, 1], [], []>} : vector<9x4xbf16>, vector<4x16xbf16>, vector<9x16xf32> -> vector<9x16xf32>
    %255 = arith.addf %236, %254 : vector<9x16xf32>
    %256 = vector.extract_strided_slice %216 {offsets = [0, 8], sizes = [9, 4], strides = [1, 1]} : vector<9x48xf32> to vector<9x4xf32>
    %257 = vector.extract_strided_slice %216 {offsets = [0, 24], sizes = [9, 4], strides = [1, 1]} : vector<9x48xf32> to vector<9x4xf32>
    %258 = vector.extract_strided_slice %216 {offsets = [0, 40], sizes = [9, 4], strides = [1, 1]} : vector<9x48xf32> to vector<9x4xf32>
    %cst_102 = arith.constant dense<0.000000e+00> : vector<9x9xf32>
    %259 = tpu.matmul %256, %257, %cst_102 {dimension_numbers = #tpu.dot_dimension_numbers<[1], [1], [0], [0], [0, 0, 1, 0], [], []>} : vector<9x4xf32>, vector<9x4xf32>, vector<9x9xf32> -> vector<9x9xf32>
    %cst_103 = arith.constant dense<0xFF800000> : vector<9xf32>
    %260 = vector.multi_reduction <maximumf>, %259, %cst_103 [1] : vector<9x9xf32> to vector<9xf32>
    %261 = vector.shape_cast %260 : vector<9xf32> to vector<9x1xf32>
    %262 = vector.broadcast %261 : vector<9x1xf32> to vector<9x9xf32>
    %263 = arith.subf %259, %262 : vector<9x9xf32>
    %264 = math.exp %263 : vector<9x9xf32>
    %cst_104 = arith.constant dense<0.000000e+00> : vector<9xf32>
    %265 = vector.multi_reduction <add>, %264, %cst_104 [1] : vector<9x9xf32> to vector<9xf32>
    %266 = vector.shape_cast %265 : vector<9xf32> to vector<9x1xf32>
    %267 = tpu.reciprocal %266 {approx = true} : vector<9x1xf32> -> vector<9x1xf32>
    %268 = vector.broadcast %267 : vector<9x1xf32> to vector<9x9xf32>
    %269 = arith.mulf %264, %268 : vector<9x9xf32>
    %cst_105 = arith.constant dense<0.000000e+00> : vector<9x4xf32>
    %270 = tpu.matmul %269, %258, %cst_105 {dimension_numbers = #tpu.dot_dimension_numbers<[1], [0], [0], [1], [0, 0, 1, 1], [], []>} : vector<9x9xf32>, vector<9x4xf32>, vector<9x4xf32> -> vector<9x4xf32>
    %271 = vector.extract_strided_slice %175 {offsets = [8, 0], sizes = [4, 16], strides = [1, 1]} : vector<16x16xbf16> to vector<4x16xbf16>
    %272 = arith.truncf %270 : vector<9x4xf32> to vector<9x4xbf16>
    %cst_106 = arith.constant dense<0.000000e+00> : vector<9x16xf32>
    %273 = tpu.matmul %272, %271, %cst_106 {dimension_numbers = #tpu.dot_dimension_numbers<[1], [0], [0], [1], [0, 0, 1, 1], [], []>} : vector<9x4xbf16>, vector<4x16xbf16>, vector<9x16xf32> -> vector<9x16xf32>
    %274 = arith.addf %255, %273 : vector<9x16xf32>
    %275 = vector.extract_strided_slice %216 {offsets = [0, 12], sizes = [9, 4], strides = [1, 1]} : vector<9x48xf32> to vector<9x4xf32>
    %276 = vector.extract_strided_slice %216 {offsets = [0, 28], sizes = [9, 4], strides = [1, 1]} : vector<9x48xf32> to vector<9x4xf32>
    %277 = vector.extract_strided_slice %216 {offsets = [0, 44], sizes = [9, 4], strides = [1, 1]} : vector<9x48xf32> to vector<9x4xf32>
    %cst_107 = arith.constant dense<0.000000e+00> : vector<9x9xf32>
    %278 = tpu.matmul %275, %276, %cst_107 {dimension_numbers = #tpu.dot_dimension_numbers<[1], [1], [0], [0], [0, 0, 1, 0], [], []>} : vector<9x4xf32>, vector<9x4xf32>, vector<9x9xf32> -> vector<9x9xf32>
    %cst_108 = arith.constant dense<0xFF800000> : vector<9xf32>
    %279 = vector.multi_reduction <maximumf>, %278, %cst_108 [1] : vector<9x9xf32> to vector<9xf32>
    %280 = vector.shape_cast %279 : vector<9xf32> to vector<9x1xf32>
    %281 = vector.broadcast %280 : vector<9x1xf32> to vector<9x9xf32>
    %282 = arith.subf %278, %281 : vector<9x9xf32>
    %283 = math.exp %282 : vector<9x9xf32>
    %cst_109 = arith.constant dense<0.000000e+00> : vector<9xf32>
    %284 = vector.multi_reduction <add>, %283, %cst_109 [1] : vector<9x9xf32> to vector<9xf32>
    %285 = vector.shape_cast %284 : vector<9xf32> to vector<9x1xf32>
    %286 = tpu.reciprocal %285 {approx = true} : vector<9x1xf32> -> vector<9x1xf32>
    %287 = vector.broadcast %286 : vector<9x1xf32> to vector<9x9xf32>
    %288 = arith.mulf %283, %287 : vector<9x9xf32>
    %cst_110 = arith.constant dense<0.000000e+00> : vector<9x4xf32>
    %289 = tpu.matmul %288, %277, %cst_110 {dimension_numbers = #tpu.dot_dimension_numbers<[1], [0], [0], [1], [0, 0, 1, 1], [], []>} : vector<9x9xf32>, vector<9x4xf32>, vector<9x4xf32> -> vector<9x4xf32>
    %290 = vector.extract_strided_slice %175 {offsets = [12, 0], sizes = [4, 16], strides = [1, 1]} : vector<16x16xbf16> to vector<4x16xbf16>
    %291 = arith.truncf %289 : vector<9x4xf32> to vector<9x4xbf16>
    %cst_111 = arith.constant dense<0.000000e+00> : vector<9x16xf32>
    %292 = tpu.matmul %291, %290, %cst_111 {dimension_numbers = #tpu.dot_dimension_numbers<[1], [0], [0], [1], [0, 0, 1, 1], [], []>} : vector<9x4xbf16>, vector<4x16xbf16>, vector<9x16xf32> -> vector<9x16xf32>
    %293 = arith.addf %274, %292 : vector<9x16xf32>
    %294 = vector.extract_strided_slice %215 {offsets = [9, 0], sizes = [9, 48], strides = [1, 1]} : vector<18x48xf32> to vector<9x48xf32>
    %cst_112 = arith.constant 0.000000e+00 : f32
    %295 = vector.broadcast %cst_112 : f32 to vector<9x16xf32>
    %296 = vector.extract_strided_slice %294 {offsets = [0, 0], sizes = [9, 4], strides = [1, 1]} : vector<9x48xf32> to vector<9x4xf32>
    %297 = vector.extract_strided_slice %294 {offsets = [0, 16], sizes = [9, 4], strides = [1, 1]} : vector<9x48xf32> to vector<9x4xf32>
    %298 = vector.extract_strided_slice %294 {offsets = [0, 32], sizes = [9, 4], strides = [1, 1]} : vector<9x48xf32> to vector<9x4xf32>
    %cst_113 = arith.constant dense<0.000000e+00> : vector<9x9xf32>
    %299 = tpu.matmul %296, %297, %cst_113 {dimension_numbers = #tpu.dot_dimension_numbers<[1], [1], [0], [0], [0, 0, 1, 0], [], []>} : vector<9x4xf32>, vector<9x4xf32>, vector<9x9xf32> -> vector<9x9xf32>
    %cst_114 = arith.constant dense<0xFF800000> : vector<9xf32>
    %300 = vector.multi_reduction <maximumf>, %299, %cst_114 [1] : vector<9x9xf32> to vector<9xf32>
    %301 = vector.shape_cast %300 : vector<9xf32> to vector<9x1xf32>
    %302 = vector.broadcast %301 : vector<9x1xf32> to vector<9x9xf32>
    %303 = arith.subf %299, %302 : vector<9x9xf32>
    %304 = math.exp %303 : vector<9x9xf32>
    %cst_115 = arith.constant dense<0.000000e+00> : vector<9xf32>
    %305 = vector.multi_reduction <add>, %304, %cst_115 [1] : vector<9x9xf32> to vector<9xf32>
    %306 = vector.shape_cast %305 : vector<9xf32> to vector<9x1xf32>
    %307 = tpu.reciprocal %306 {approx = true} : vector<9x1xf32> -> vector<9x1xf32>
    %308 = vector.broadcast %307 : vector<9x1xf32> to vector<9x9xf32>
    %309 = arith.mulf %304, %308 : vector<9x9xf32>
    %cst_116 = arith.constant dense<0.000000e+00> : vector<9x4xf32>
    %310 = tpu.matmul %309, %298, %cst_116 {dimension_numbers = #tpu.dot_dimension_numbers<[1], [0], [0], [1], [0, 0, 1, 1], [], []>} : vector<9x9xf32>, vector<9x4xf32>, vector<9x4xf32> -> vector<9x4xf32>
    %311 = vector.extract_strided_slice %175 {offsets = [0, 0], sizes = [4, 16], strides = [1, 1]} : vector<16x16xbf16> to vector<4x16xbf16>
    %312 = arith.truncf %310 : vector<9x4xf32> to vector<9x4xbf16>
    %cst_117 = arith.constant dense<0.000000e+00> : vector<9x16xf32>
    %313 = tpu.matmul %312, %311, %cst_117 {dimension_numbers = #tpu.dot_dimension_numbers<[1], [0], [0], [1], [0, 0, 1, 1], [], []>} : vector<9x4xbf16>, vector<4x16xbf16>, vector<9x16xf32> -> vector<9x16xf32>
    %314 = arith.addf %295, %313 : vector<9x16xf32>
    %315 = vector.extract_strided_slice %294 {offsets = [0, 4], sizes = [9, 4], strides = [1, 1]} : vector<9x48xf32> to vector<9x4xf32>
    %316 = vector.extract_strided_slice %294 {offsets = [0, 20], sizes = [9, 4], strides = [1, 1]} : vector<9x48xf32> to vector<9x4xf32>
    %317 = vector.extract_strided_slice %294 {offsets = [0, 36], sizes = [9, 4], strides = [1, 1]} : vector<9x48xf32> to vector<9x4xf32>
    %cst_118 = arith.constant dense<0.000000e+00> : vector<9x9xf32>
    %318 = tpu.matmul %315, %316, %cst_118 {dimension_numbers = #tpu.dot_dimension_numbers<[1], [1], [0], [0], [0, 0, 1, 0], [], []>} : vector<9x4xf32>, vector<9x4xf32>, vector<9x9xf32> -> vector<9x9xf32>
    %cst_119 = arith.constant dense<0xFF800000> : vector<9xf32>
    %319 = vector.multi_reduction <maximumf>, %318, %cst_119 [1] : vector<9x9xf32> to vector<9xf32>
    %320 = vector.shape_cast %319 : vector<9xf32> to vector<9x1xf32>
    %321 = vector.broadcast %320 : vector<9x1xf32> to vector<9x9xf32>
    %322 = arith.subf %318, %321 : vector<9x9xf32>
    %323 = math.exp %322 : vector<9x9xf32>
    %cst_120 = arith.constant dense<0.000000e+00> : vector<9xf32>
    %324 = vector.multi_reduction <add>, %323, %cst_120 [1] : vector<9x9xf32> to vector<9xf32>
    %325 = vector.shape_cast %324 : vector<9xf32> to vector<9x1xf32>
    %326 = tpu.reciprocal %325 {approx = true} : vector<9x1xf32> -> vector<9x1xf32>
    %327 = vector.broadcast %326 : vector<9x1xf32> to vector<9x9xf32>
    %328 = arith.mulf %323, %327 : vector<9x9xf32>
    %cst_121 = arith.constant dense<0.000000e+00> : vector<9x4xf32>
    %329 = tpu.matmul %328, %317, %cst_121 {dimension_numbers = #tpu.dot_dimension_numbers<[1], [0], [0], [1], [0, 0, 1, 1], [], []>} : vector<9x9xf32>, vector<9x4xf32>, vector<9x4xf32> -> vector<9x4xf32>
    %330 = vector.extract_strided_slice %175 {offsets = [4, 0], sizes = [4, 16], strides = [1, 1]} : vector<16x16xbf16> to vector<4x16xbf16>
    %331 = arith.truncf %329 : vector<9x4xf32> to vector<9x4xbf16>
    %cst_122 = arith.constant dense<0.000000e+00> : vector<9x16xf32>
    %332 = tpu.matmul %331, %330, %cst_122 {dimension_numbers = #tpu.dot_dimension_numbers<[1], [0], [0], [1], [0, 0, 1, 1], [], []>} : vector<9x4xbf16>, vector<4x16xbf16>, vector<9x16xf32> -> vector<9x16xf32>
    %333 = arith.addf %314, %332 : vector<9x16xf32>
    %334 = vector.extract_strided_slice %294 {offsets = [0, 8], sizes = [9, 4], strides = [1, 1]} : vector<9x48xf32> to vector<9x4xf32>
    %335 = vector.extract_strided_slice %294 {offsets = [0, 24], sizes = [9, 4], strides = [1, 1]} : vector<9x48xf32> to vector<9x4xf32>
    %336 = vector.extract_strided_slice %294 {offsets = [0, 40], sizes = [9, 4], strides = [1, 1]} : vector<9x48xf32> to vector<9x4xf32>
    %cst_123 = arith.constant dense<0.000000e+00> : vector<9x9xf32>
    %337 = tpu.matmul %334, %335, %cst_123 {dimension_numbers = #tpu.dot_dimension_numbers<[1], [1], [0], [0], [0, 0, 1, 0], [], []>} : vector<9x4xf32>, vector<9x4xf32>, vector<9x9xf32> -> vector<9x9xf32>
    %cst_124 = arith.constant dense<0xFF800000> : vector<9xf32>
    %338 = vector.multi_reduction <maximumf>, %337, %cst_124 [1] : vector<9x9xf32> to vector<9xf32>
    %339 = vector.shape_cast %338 : vector<9xf32> to vector<9x1xf32>
    %340 = vector.broadcast %339 : vector<9x1xf32> to vector<9x9xf32>
    %341 = arith.subf %337, %340 : vector<9x9xf32>
    %342 = math.exp %341 : vector<9x9xf32>
    %cst_125 = arith.constant dense<0.000000e+00> : vector<9xf32>
    %343 = vector.multi_reduction <add>, %342, %cst_125 [1] : vector<9x9xf32> to vector<9xf32>
    %344 = vector.shape_cast %343 : vector<9xf32> to vector<9x1xf32>
    %345 = tpu.reciprocal %344 {approx = true} : vector<9x1xf32> -> vector<9x1xf32>
    %346 = vector.broadcast %345 : vector<9x1xf32> to vector<9x9xf32>
    %347 = arith.mulf %342, %346 : vector<9x9xf32>
    %cst_126 = arith.constant dense<0.000000e+00> : vector<9x4xf32>
    %348 = tpu.matmul %347, %336, %cst_126 {dimension_numbers = #tpu.dot_dimension_numbers<[1], [0], [0], [1], [0, 0, 1, 1], [], []>} : vector<9x9xf32>, vector<9x4xf32>, vector<9x4xf32> -> vector<9x4xf32>
    %349 = vector.extract_strided_slice %175 {offsets = [8, 0], sizes = [4, 16], strides = [1, 1]} : vector<16x16xbf16> to vector<4x16xbf16>
    %350 = arith.truncf %348 : vector<9x4xf32> to vector<9x4xbf16>
    %cst_127 = arith.constant dense<0.000000e+00> : vector<9x16xf32>
    %351 = tpu.matmul %350, %349, %cst_127 {dimension_numbers = #tpu.dot_dimension_numbers<[1], [0], [0], [1], [0, 0, 1, 1], [], []>} : vector<9x4xbf16>, vector<4x16xbf16>, vector<9x16xf32> -> vector<9x16xf32>
    %352 = arith.addf %333, %351 : vector<9x16xf32>
    %353 = vector.extract_strided_slice %294 {offsets = [0, 12], sizes = [9, 4], strides = [1, 1]} : vector<9x48xf32> to vector<9x4xf32>
    %354 = vector.extract_strided_slice %294 {offsets = [0, 28], sizes = [9, 4], strides = [1, 1]} : vector<9x48xf32> to vector<9x4xf32>
    %355 = vector.extract_strided_slice %294 {offsets = [0, 44], sizes = [9, 4], strides = [1, 1]} : vector<9x48xf32> to vector<9x4xf32>
    %cst_128 = arith.constant dense<0.000000e+00> : vector<9x9xf32>
    %356 = tpu.matmul %353, %354, %cst_128 {dimension_numbers = #tpu.dot_dimension_numbers<[1], [1], [0], [0], [0, 0, 1, 0], [], []>} : vector<9x4xf32>, vector<9x4xf32>, vector<9x9xf32> -> vector<9x9xf32>
    %cst_129 = arith.constant dense<0xFF800000> : vector<9xf32>
    %357 = vector.multi_reduction <maximumf>, %356, %cst_129 [1] : vector<9x9xf32> to vector<9xf32>
    %358 = vector.shape_cast %357 : vector<9xf32> to vector<9x1xf32>
    %359 = vector.broadcast %358 : vector<9x1xf32> to vector<9x9xf32>
    %360 = arith.subf %356, %359 : vector<9x9xf32>
    %361 = math.exp %360 : vector<9x9xf32>
    %cst_130 = arith.constant dense<0.000000e+00> : vector<9xf32>
    %362 = vector.multi_reduction <add>, %361, %cst_130 [1] : vector<9x9xf32> to vector<9xf32>
    %363 = vector.shape_cast %362 : vector<9xf32> to vector<9x1xf32>
    %364 = tpu.reciprocal %363 {approx = true} : vector<9x1xf32> -> vector<9x1xf32>
    %365 = vector.broadcast %364 : vector<9x1xf32> to vector<9x9xf32>
    %366 = arith.mulf %361, %365 : vector<9x9xf32>
    %cst_131 = arith.constant dense<0.000000e+00> : vector<9x4xf32>
    %367 = tpu.matmul %366, %355, %cst_131 {dimension_numbers = #tpu.dot_dimension_numbers<[1], [0], [0], [1], [0, 0, 1, 1], [], []>} : vector<9x9xf32>, vector<9x4xf32>, vector<9x4xf32> -> vector<9x4xf32>
    %368 = vector.extract_strided_slice %175 {offsets = [12, 0], sizes = [4, 16], strides = [1, 1]} : vector<16x16xbf16> to vector<4x16xbf16>
    %369 = arith.truncf %367 : vector<9x4xf32> to vector<9x4xbf16>
    %cst_132 = arith.constant dense<0.000000e+00> : vector<9x16xf32>
    %370 = tpu.matmul %369, %368, %cst_132 {dimension_numbers = #tpu.dot_dimension_numbers<[1], [0], [0], [1], [0, 0, 1, 1], [], []>} : vector<9x4xbf16>, vector<4x16xbf16>, vector<9x16xf32> -> vector<9x16xf32>
    %371 = arith.addf %352, %370 : vector<9x16xf32>
    %372 = tpu.concatenate %293, %371 in 0 : vector<9x16xf32>, vector<9x16xf32> -> vector<18x16xf32>
    %373 = arith.addf %165, %372 : vector<18x16xf32>
    %374 = vector.broadcast %177 : vector<1x16xf32> to vector<18x16xf32>
    %375 = arith.addf %373, %374 : vector<18x16xf32>
    %cst_133 = arith.constant dense<0.000000e+00> : vector<18xf32>
    %376 = vector.multi_reduction <add>, %375, %cst_133 [1] : vector<18x16xf32> to vector<18xf32>
    %377 = vector.shape_cast %376 : vector<18xf32> to vector<18x1xf32>
    %cst_134 = arith.constant 1.600000e+01 : f32
    %378 = vector.broadcast %cst_134 : f32 to vector<18x1xf32>
    %379 = arith.divf %377, %378 : vector<18x1xf32>
    %380 = vector.broadcast %379 : vector<18x1xf32> to vector<18x16xf32>
    %381 = arith.subf %375, %380 : vector<18x16xf32>
    %382 = arith.mulf %381, %381 : vector<18x16xf32>
    %cst_135 = arith.constant dense<0.000000e+00> : vector<18xf32>
    %383 = vector.multi_reduction <add>, %382, %cst_135 [1] : vector<18x16xf32> to vector<18xf32>
    %384 = vector.shape_cast %383 : vector<18xf32> to vector<18x1xf32>
    %cst_136 = arith.constant 1.600000e+01 : f32
    %385 = vector.broadcast %cst_136 : f32 to vector<18x1xf32>
    %386 = arith.divf %384, %385 : vector<18x1xf32>
    %387 = vector.broadcast %379 : vector<18x1xf32> to vector<18x16xf32>
    %388 = arith.subf %375, %387 : vector<18x16xf32>
    %cst_137 = arith.constant 9.99999974E-6 : f32
    %389 = vector.broadcast %cst_137 : f32 to vector<18x1xf32>
    %390 = arith.addf %386, %389 : vector<18x1xf32>
    %391 = math.rsqrt %390 : vector<18x1xf32>
    %392 = vector.broadcast %391 : vector<18x1xf32> to vector<18x16xf32>
    %393 = arith.mulf %388, %392 : vector<18x16xf32>
    %394 = vector.broadcast %179 : vector<1x16xf32> to vector<18x16xf32>
    %395 = arith.mulf %393, %394 : vector<18x16xf32>
    %396 = vector.broadcast %181 : vector<1x16xf32> to vector<18x16xf32>
    %397 = arith.addf %395, %396 : vector<18x16xf32>
    %398 = arith.truncf %397 : vector<18x16xf32> to vector<18x16xbf16>
    %cst_138 = arith.constant dense<0.000000e+00> : vector<18x64xf32>
    %399 = tpu.matmul %398, %183, %cst_138 {dimension_numbers = #tpu.dot_dimension_numbers<[1], [0], [0], [1], [0, 0, 1, 1], [], []>} : vector<18x16xbf16>, vector<16x64xbf16>, vector<18x64xf32> -> vector<18x64xf32>
    %400 = vector.broadcast %185 : vector<1x64xf32> to vector<18x64xf32>
    %401 = arith.addf %399, %400 : vector<18x64xf32>
    %cst_139 = arith.constant 5.000000e-01 : f32
    %402 = vector.broadcast %cst_139 : f32 to vector<18x64xf32>
    %403 = arith.mulf %402, %401 : vector<18x64xf32>
    %cst_140 = arith.constant 0.707106769 : f32
    %404 = vector.broadcast %cst_140 : f32 to vector<18x64xf32>
    %405 = arith.mulf %401, %404 : vector<18x64xf32>
    %cst_141 = arith.constant 0.000000e+00 : f32
    %406 = vector.broadcast %cst_141 : f32 to vector<18x64xf32>
    %407 = arith.cmpf oge, %405, %406 : vector<18x64xf32>
    %cst_142 = arith.constant 1.000000e+00 : f32
    %cst_143 = arith.constant -1.000000e+00 : f32
    %408 = vector.broadcast %cst_142 : f32 to vector<18x64xf32>
    %409 = vector.broadcast %cst_143 : f32 to vector<18x64xf32>
    %410 = arith.select %407, %408, %409 : vector<18x64xi1>, vector<18x64xf32>
    %411 = math.absf %405 : vector<18x64xf32>
    %cst_144 = arith.constant 0.327591091 : f32
    %412 = vector.broadcast %cst_144 : f32 to vector<18x64xf32>
    %413 = arith.mulf %412, %411 : vector<18x64xf32>
    %cst_145 = arith.constant 1.000000e+00 : f32
    %414 = vector.broadcast %cst_145 : f32 to vector<18x64xf32>
    %415 = arith.addf %414, %413 : vector<18x64xf32>
    %cst_146 = arith.constant 1.000000e+00 : f32
    %416 = vector.broadcast %cst_146 : f32 to vector<18x64xf32>
    %417 = arith.divf %416, %415 : vector<18x64xf32>
    %cst_147 = arith.constant 1.06140542 : f32
    %418 = vector.broadcast %cst_147 : f32 to vector<18x64xf32>
    %419 = arith.mulf %418, %417 : vector<18x64xf32>
    %cst_148 = arith.constant -1.45315206 : f32
    %420 = vector.broadcast %cst_148 : f32 to vector<18x64xf32>
    %421 = arith.addf %419, %420 : vector<18x64xf32>
    %422 = arith.mulf %421, %417 : vector<18x64xf32>
    %cst_149 = arith.constant 1.42141378 : f32
    %423 = vector.broadcast %cst_149 : f32 to vector<18x64xf32>
    %424 = arith.addf %422, %423 : vector<18x64xf32>
    %425 = arith.mulf %424, %417 : vector<18x64xf32>
    %cst_150 = arith.constant -0.284496725 : f32
    %426 = vector.broadcast %cst_150 : f32 to vector<18x64xf32>
    %427 = arith.addf %425, %426 : vector<18x64xf32>
    %428 = arith.mulf %427, %417 : vector<18x64xf32>
    %cst_151 = arith.constant 0.254829586 : f32
    %429 = vector.broadcast %cst_151 : f32 to vector<18x64xf32>
    %430 = arith.addf %428, %429 : vector<18x64xf32>
    %431 = arith.mulf %430, %417 : vector<18x64xf32>
    %cst_152 = arith.constant 0.000000e+00 : f32
    %432 = vector.broadcast %cst_152 : f32 to vector<18x64xf32>
    %433 = arith.subf %432, %411 : vector<18x64xf32>
    %434 = arith.mulf %433, %411 : vector<18x64xf32>
    %435 = math.exp %434 : vector<18x64xf32>
    %436 = arith.mulf %431, %435 : vector<18x64xf32>
    %cst_153 = arith.constant 1.000000e+00 : f32
    %437 = vector.broadcast %cst_153 : f32 to vector<18x64xf32>
    %438 = arith.subf %437, %436 : vector<18x64xf32>
    %439 = arith.mulf %410, %438 : vector<18x64xf32>
    %cst_154 = arith.constant 1.000000e+00 : f32
    %440 = vector.broadcast %cst_154 : f32 to vector<18x64xf32>
    %441 = arith.addf %440, %439 : vector<18x64xf32>
    %442 = arith.mulf %403, %441 : vector<18x64xf32>
    %443 = arith.truncf %442 : vector<18x64xf32> to vector<18x64xbf16>
    %cst_155 = arith.constant dense<0.000000e+00> : vector<18x16xf32>
    %444 = tpu.matmul %443, %187, %cst_155 {dimension_numbers = #tpu.dot_dimension_numbers<[1], [0], [0], [1], [0, 0, 1, 1], [], []>} : vector<18x64xbf16>, vector<64x16xbf16>, vector<18x16xf32> -> vector<18x16xf32>
    %445 = arith.addf %375, %444 : vector<18x16xf32>
    %446 = vector.broadcast %189 : vector<1x16xf32> to vector<18x16xf32>
    %447 = arith.addf %445, %446 : vector<18x16xf32>
    %c0_156 = arith.constant 0 : index
    %c0_157 = arith.constant 0 : index
    %448 = vector.load %arg16[%c0_156, %c0_157] : memref<1x16xf32, #tpu.memory_space<vmem>>, vector<1x16xf32>
    %c0_158 = arith.constant 0 : index
    %c0_159 = arith.constant 0 : index
    %449 = vector.load %arg17[%c0_158, %c0_159] : memref<1x16xf32, #tpu.memory_space<vmem>>, vector<1x16xf32>
    %cst_160 = arith.constant dense<0.000000e+00> : vector<18xf32>
    %450 = vector.multi_reduction <add>, %447, %cst_160 [1] : vector<18x16xf32> to vector<18xf32>
    %451 = vector.shape_cast %450 : vector<18xf32> to vector<18x1xf32>
    %cst_161 = arith.constant 1.600000e+01 : f32
    %452 = vector.broadcast %cst_161 : f32 to vector<18x1xf32>
    %453 = arith.divf %451, %452 : vector<18x1xf32>
    %454 = vector.broadcast %453 : vector<18x1xf32> to vector<18x16xf32>
    %455 = arith.subf %447, %454 : vector<18x16xf32>
    %456 = arith.mulf %455, %455 : vector<18x16xf32>
    %cst_162 = arith.constant dense<0.000000e+00> : vector<18xf32>
    %457 = vector.multi_reduction <add>, %456, %cst_162 [1] : vector<18x16xf32> to vector<18xf32>
    %458 = vector.shape_cast %457 : vector<18xf32> to vector<18x1xf32>
    %cst_163 = arith.constant 1.600000e+01 : f32
    %459 = vector.broadcast %cst_163 : f32 to vector<18x1xf32>
    %460 = arith.divf %458, %459 : vector<18x1xf32>
    %461 = vector.broadcast %453 : vector<18x1xf32> to vector<18x16xf32>
    %462 = arith.subf %447, %461 : vector<18x16xf32>
    %cst_164 = arith.constant 9.99999974E-6 : f32
    %463 = vector.broadcast %cst_164 : f32 to vector<18x1xf32>
    %464 = arith.addf %460, %463 : vector<18x1xf32>
    %465 = math.rsqrt %464 : vector<18x1xf32>
    %466 = vector.broadcast %465 : vector<18x1xf32> to vector<18x16xf32>
    %467 = arith.mulf %462, %466 : vector<18x16xf32>
    %468 = vector.broadcast %448 : vector<1x16xf32> to vector<18x16xf32>
    %469 = arith.mulf %467, %468 : vector<18x16xf32>
    %470 = vector.broadcast %449 : vector<1x16xf32> to vector<18x16xf32>
    %471 = arith.addf %469, %470 : vector<18x16xf32>
    %c0_165 = arith.constant 0 : index
    %c0_166 = arith.constant 0 : index
    %472 = vector.load %arg18[%c0_165, %c0_166] : memref<16x16xbf16, #tpu.memory_space<vmem>>, vector<16x16xbf16>
    %473 = arith.truncf %471 : vector<18x16xf32> to vector<18x16xbf16>
    %cst_167 = arith.constant dense<0.000000e+00> : vector<18x16xf32>
    %474 = tpu.matmul %473, %472, %cst_167 {dimension_numbers = #tpu.dot_dimension_numbers<[1], [0], [0], [1], [0, 0, 1, 1], [], []>} : vector<18x16xbf16>, vector<16x16xbf16>, vector<18x16xf32> -> vector<18x16xf32>
    %c0_168 = arith.constant 0 : index
    %c0_169 = arith.constant 0 : index
    %475 = vector.load %arg19[%c0_168, %c0_169] : memref<1x16xf32, #tpu.memory_space<vmem>>, vector<1x16xf32>
    %476 = vector.broadcast %475 : vector<1x16xf32> to vector<18x16xf32>
    %477 = arith.addf %474, %476 : vector<18x16xf32>
    %478 = vector.extract_strided_slice %477 {offsets = [1, 0], sizes = [8, 16], strides = [1, 1]} : vector<18x16xf32> to vector<8x16xf32>
    %c0_170 = arith.constant 0 : index
    %c0_171 = arith.constant 0 : index
    %c0_172 = arith.constant 0 : index
    %479 = vector.load %arg22[%c0_170, %c0_171, %c0_172] : memref<2x8x16xf32, #tpu.memory_space<vmem>>, vector<1x8x16xf32>
    %480 = vector.shape_cast %479 : vector<1x8x16xf32> to vector<8x16xf32>
    %481 = vector.shape_cast %478 : vector<8x16xf32> to vector<1x8x16xf32>
    tpu.vector_store %arg22[%c0_170, %c0_171, %c0_172], %481 {strides = array<i32>} : memref<2x8x16xf32, #tpu.memory_space<vmem>>, vector<1x8x16xf32>,
    %c0_173 = arith.constant 0 : index
    %c0_174 = arith.constant 0 : index
    %c0_175 = arith.constant 0 : index
    %482 = vector.load %arg20[%c0_173, %c0_174, %c0_175] : memref<2x8x16xf32, #tpu.memory_space<vmem>>, vector<1x8x16xf32>
    %483 = vector.shape_cast %482 : vector<1x8x16xf32> to vector<8x16xf32>
    %484 = arith.subf %478, %483 : vector<8x16xf32>
    %485 = arith.mulf %484, %484 : vector<8x16xf32>
    %cst_176 = arith.constant dense<0.000000e+00> : vector<8xf32>
    %486 = vector.multi_reduction <add>, %485, %cst_176 [1] : vector<8x16xf32> to vector<8xf32>
    %487 = vector.shape_cast %486 : vector<8xf32> to vector<8x1xf32>
    %cst_177 = arith.constant 1.600000e+01 : f32
    %488 = vector.broadcast %cst_177 : f32 to vector<8x1xf32>
    %489 = arith.divf %487, %488 : vector<8x1xf32>
    %c0_178 = arith.constant 0 : index
    %c0_179 = arith.constant 0 : index
    %c0_180 = arith.constant 0 : index
    %490 = vector.load %arg21[%c0_178, %c0_179, %c0_180] : memref<2x8x1xf32, #tpu.memory_space<vmem>>, vector<1x8x1xf32>
    %491 = vector.shape_cast %490 : vector<1x8x1xf32> to vector<8x1xf32>
    %492 = arith.mulf %489, %491 : vector<8x1xf32>
    %493 = vector.shape_cast %492 : vector<8x1xf32> to vector<1x8x1xf32>
    %cst_181 = arith.constant dense<0.000000e+00> : vector<1xf32>
    %494 = vector.multi_reduction <add>, %493, %cst_181 [1, 2] : vector<1x8x1xf32> to vector<1xf32>
    %495 = vector.shape_cast %494 : vector<1xf32> to vector<1x1x1xf32>
    %496 = vector.extract %495[0, 0, 0] : f32 from vector<1x1x1xf32>
    %cst_182 = arith.constant 0.000000e+00 : f32
    %497 = arith.addf %cst_182, %496 : f32
    %498 = vector.shape_cast %491 : vector<8x1xf32> to vector<1x8x1xf32>
    %cst_183 = arith.constant dense<0.000000e+00> : vector<1xf32>
    %499 = vector.multi_reduction <add>, %498, %cst_183 [1, 2] : vector<1x8x1xf32> to vector<1xf32>
    %500 = vector.shape_cast %499 : vector<1xf32> to vector<1x1x1xf32>
    %501 = vector.extract %500[0, 0, 0] : f32 from vector<1x1x1xf32>
    %cst_184 = arith.constant 0.000000e+00 : f32
    %502 = arith.addf %cst_184, %501 : f32
    %503 = vector.extract_strided_slice %477 {offsets = [10, 0], sizes = [8, 16], strides = [1, 1]} : vector<18x16xf32> to vector<8x16xf32>
    %c1_185 = arith.constant 1 : index
    %c0_186 = arith.constant 0 : index
    %c0_187 = arith.constant 0 : index
    %504 = vector.load %arg22[%c1_185, %c0_186, %c0_187] : memref<2x8x16xf32, #tpu.memory_space<vmem>>, vector<1x8x16xf32>
    %505 = vector.shape_cast %504 : vector<1x8x16xf32> to vector<8x16xf32>
    %506 = vector.shape_cast %503 : vector<8x16xf32> to vector<1x8x16xf32>
    tpu.vector_store %arg22[%c1_185, %c0_186, %c0_187], %506 {strides = array<i32>} : memref<2x8x16xf32, #tpu.memory_space<vmem>>, vector<1x8x16xf32>,
    %c1_188 = arith.constant 1 : index
    %c0_189 = arith.constant 0 : index
    %c0_190 = arith.constant 0 : index
    %507 = vector.load %arg20[%c1_188, %c0_189, %c0_190] : memref<2x8x16xf32, #tpu.memory_space<vmem>>, vector<1x8x16xf32>
    %508 = vector.shape_cast %507 : vector<1x8x16xf32> to vector<8x16xf32>
    %509 = arith.subf %503, %508 : vector<8x16xf32>
    %510 = arith.mulf %509, %509 : vector<8x16xf32>
    %cst_191 = arith.constant dense<0.000000e+00> : vector<8xf32>
    %511 = vector.multi_reduction <add>, %510, %cst_191 [1] : vector<8x16xf32> to vector<8xf32>
    %512 = vector.shape_cast %511 : vector<8xf32> to vector<8x1xf32>
    %cst_192 = arith.constant 1.600000e+01 : f32
    %513 = vector.broadcast %cst_192 : f32 to vector<8x1xf32>
    %514 = arith.divf %512, %513 : vector<8x1xf32>
    %c1_193 = arith.constant 1 : index
    %c0_194 = arith.constant 0 : index
    %c0_195 = arith.constant 0 : index
    %515 = vector.load %arg21[%c1_193, %c0_194, %c0_195] : memref<2x8x1xf32, #tpu.memory_space<vmem>>, vector<1x8x1xf32>
    %516 = vector.shape_cast %515 : vector<1x8x1xf32> to vector<8x1xf32>
    %517 = arith.mulf %514, %516 : vector<8x1xf32>
    %518 = vector.shape_cast %517 : vector<8x1xf32> to vector<1x8x1xf32>
    %cst_196 = arith.constant dense<0.000000e+00> : vector<1xf32>
    %519 = vector.multi_reduction <add>, %518, %cst_196 [1, 2] : vector<1x8x1xf32> to vector<1xf32>
    %520 = vector.shape_cast %519 : vector<1xf32> to vector<1x1x1xf32>
    %521 = vector.extract %520[0, 0, 0] : f32 from vector<1x1x1xf32>
    %522 = arith.addf %497, %521 : f32
    %523 = vector.shape_cast %516 : vector<8x1xf32> to vector<1x8x1xf32>
    %cst_197 = arith.constant dense<0.000000e+00> : vector<1xf32>
    %524 = vector.multi_reduction <add>, %523, %cst_197 [1, 2] : vector<1x8x1xf32> to vector<1xf32>
    %525 = vector.shape_cast %524 : vector<1xf32> to vector<1x1x1xf32>
    %526 = vector.extract %525[0, 0, 0] : f32 from vector<1x1x1xf32>
    %527 = arith.addf %502, %526 : f32
    %528 = arith.divf %522, %527 : f32
    %c0_198 = arith.constant 0 : index
    %c0_199 = arith.constant 0 : index
    %529 = memref.load %arg23[%c0_198, %c0_199] : memref<1x1xf32, #tpu.memory_space<smem>>
    memref.store %528, %arg23[%c0_198, %c0_199] : memref<1x1xf32, #tpu.memory_space<smem>>
    return
  }
}

</mosaic_0001>

<llo_original>
// kernel: forward.3
$region0: #{forward.3}
  #allocation0 [shape = 'u32[]', space=smem, size = 0x4, offset = 0x4, fixed_abs, tag = 'smem constant byte address 0x4 - core index']
  #allocation1 [shape = 'u32[144,128]{1,0:T(1,128)}', space=vmem, size = 0x12000, scoped, tag = 'internal scratch']
  %s0 = inlined_call_operand.vmem [shape: s32[2,8], index: 0, kind: input, shape index: {}]
  %s1 = inlined_call_operand.vmem [shape: f32[2,3,16], index: 1, kind: input, shape index: {}]
  %s2 = inlined_call_operand.vmem [shape: f32[1,16], index: 2, kind: input, shape index: {}]
  %s3 = inlined_call_operand.vmem [shape: f32[9,16], index: 3, kind: input, shape index: {}]
  %s4 = inlined_call_operand.vmem [shape: f32[1,1,16], index: 4, kind: input, shape index: {}]
  %s5 = inlined_call_operand.vmem [shape: f32[1,1,16], index: 5, kind: input, shape index: {}]
  %s6 = inlined_call_operand.vmem [shape: bf16[1,16,48], index: 6, kind: input, shape index: {}]
  %s7 = inlined_call_operand.vmem [shape: f32[1,1,48], index: 7, kind: input, shape index: {}]
  %s8 = inlined_call_operand.vmem [shape: bf16[1,16,16], index: 8, kind: input, shape index: {}]
  %s9 = inlined_call_operand.vmem [shape: f32[1,1,16], index: 9, kind: input, shape index: {}]
  %s10 = inlined_call_operand.vmem [shape: f32[1,1,16], index: 10, kind: input, shape index: {}]
  %s11 = inlined_call_operand.vmem [shape: f32[1,1,16], index: 11, kind: input, shape index: {}]
  %s12 = inlined_call_operand.vmem [shape: bf16[1,16,64], index: 12, kind: input, shape index: {}]
  %s13 = inlined_call_operand.vmem [shape: f32[1,1,64], index: 13, kind: input, shape index: {}]
  %s14 = inlined_call_operand.vmem [shape: bf16[1,64,16], index: 14, kind: input, shape index: {}]
  %s15 = inlined_call_operand.vmem [shape: f32[1,1,16], index: 15, kind: input, shape index: {}]
  %s16 = inlined_call_operand.vmem [shape: f32[1,16], index: 16, kind: input, shape index: {}]
  %s17 = inlined_call_operand.vmem [shape: f32[1,16], index: 17, kind: input, shape index: {}]
  %s18 = inlined_call_operand.vmem [shape: bf16[16,16], index: 18, kind: input, shape index: {}]
  %s19 = inlined_call_operand.vmem [shape: f32[1,16], index: 19, kind: input, shape index: {}]
  %s20 = inlined_call_operand.vmem [shape: f32[2,8,16], index: 20, kind: input, shape index: {}]
  %s21 = inlined_call_operand.vmem [shape: f32[2,8,1], index: 21, kind: input, shape index: {}]
  %s22 = inlined_call_operand.hbm [shape: f32[2,8,16], index: 22, kind: output, shape index: {0}]
  %s23 = inlined_call_operand.hbm [shape: f32[1,1], index: 23, kind: output, shape index: {1}]
  %24 = xla_tuple %s22, %s23
  %s25 = sld [smem:[#allocation0]]
  $region110: #{forward.3} parent=0
    _
  %s27 = ssub.s32 1, %s25
  %s28 = scalar_select 0, %s27, %s25
  $region1: #{forward.3} parent=0
    #allocation2 [shape = 'u8[1024]{0}', space=smem, size = 0x400, scoped, tag = 'input window, operand 0, single buffered']
    #allocation3 [shape = 's32[1]{0}', space=sflag, size = 0x4, scoped, tag = 'scoped memory for forward.3']
    #allocation4 [shape = 's32[1]{0}', space=sflag, size = 0x4, scoped, tag = 'scoped memory for forward.3']
    #allocation5 [shape = 's32[1]{0}', space=sflag, size = 0x4, scoped, tag = 'scoped memory for forward.3']
    #allocation6 [shape = 'u8[8192]{0}', space=vmem, size = 0x2000, scoped, tag = 'output window, operand 0, single buffered']
    #allocation7 [shape = 'u8[512]{0}', space=smem, size = 0x200, scoped, tag = 'output window, operand 1, single buffered']
    %29 = vsyncpa [#allocation5], 0
    %30 = vsyncpa [#allocation3], 0
    %31 = vsyncpa [#allocation4], 0
    // Predicated region
    $region2: #{forward.3} parent=1 // pred_check
      _
    $region3: #{forward.3} parent=1 // pred_check_branch
      %33 = sbr.rel (0) target = $region5
    $region4: #{forward.3} parent=1 // pred_region
      %s35 = ssub.s32 32, 32
      %36 = vsyncadd [#allocation5], %s35
      %s38 = sshll.u32 %s0, 4
      %s39 = int_to_ptr.vmem [resolvable:$true] %s38
      %41 = dma.vmem_to_smem %s39, 32, [#allocation2], [#allocation5]
    $region5: #{forward.3} parent=1 // pred_fallthru
      _
    // Predicated region
    $region6: #{forward.3} parent=1 // pred_check
      _
    $region7: #{forward.3} parent=1 // pred_check_branch
      %43 = sbr.rel (0) target = $region9
    $region8: #{forward.3} parent=1 // pred_region
      _
    $region9: #{forward.3} parent=1 // pred_fallthru
      _
    // Predicated region
    $region10: #{forward.3} parent=1 // pred_check
      _
    $region11: #{forward.3} parent=1 // pred_check_branch
      %45 = sbr.rel (0) target = $region13
    $region12: #{forward.3} parent=1 // pred_region
      _
    $region13: #{forward.3} parent=1 // pred_fallthru
      _
    // Predicated region
    $region14: #{forward.3} parent=1 // pred_check
      _
    $region15: #{forward.3} parent=1 // pred_check_branch
      %47 = sbr.rel (0) target = $region17
    $region16: #{forward.3} parent=1 // pred_region
      _
    $region17: #{forward.3} parent=1 // pred_fallthru
      _
    // Predicated region
    $region18: #{forward.3} parent=1 // pred_check
      _
    $region19: #{forward.3} parent=1 // pred_check_branch
      %49 = sbr.rel (0) target = $region21
    $region20: #{forward.3} parent=1 // pred_region
      _
    $region21: #{forward.3} parent=1 // pred_fallthru
      _
    // Predicated region
    $region22: #{forward.3} parent=1 // pred_check
      _
    $region23: #{forward.3} parent=1 // pred_check_branch
      %51 = sbr.rel (0) target = $region25
    $region24: #{forward.3} parent=1 // pred_region
      _
    $region25: #{forward.3} parent=1 // pred_fallthru
      _
    // Predicated region
    $region26: #{forward.3} parent=1 // pred_check
      _
    $region27: #{forward.3} parent=1 // pred_check_branch
      %53 = sbr.rel (0) target = $region29
    $region28: #{forward.3} parent=1 // pred_region
      _
    $region29: #{forward.3} parent=1 // pred_fallthru
      _
    // Predicated region
    $region30: #{forward.3} parent=1 // pred_check
      _
    $region31: #{forward.3} parent=1 // pred_check_branch
      %55 = sbr.rel (0) target = $region33
    $region32: #{forward.3} parent=1 // pred_region
      _
    $region33: #{forward.3} parent=1 // pred_fallthru
      _
    // Predicated region
    $region34: #{forward.3} parent=1 // pred_check
      _
    $region35: #{forward.3} parent=1 // pred_check_branch
      %57 = sbr.rel (0) target = $region37
    $region36: #{forward.3} parent=1 // pred_region
      _
    $region37: #{forward.3} parent=1 // pred_fallthru
      _
    // Predicated region
    $region38: #{forward.3} parent=1 // pred_check
      _
    $region39: #{forward.3} parent=1 // pred_check_branch
      %59 = sbr.rel (0) target = $region41
    $region40: #{forward.3} parent=1 // pred_region
      _
    $region41: #{forward.3} parent=1 // pred_fallthru
      _
    // Predicated region
    $region42: #{forward.3} parent=1 // pred_check
      _
    $region43: #{forward.3} parent=1 // pred_check_branch
      %61 = sbr.rel (0) target = $region45
    $region44: #{forward.3} parent=1 // pred_region
      _
    $region45: #{forward.3} parent=1 // pred_fallthru
      _
    // Predicated region
    $region46: #{forward.3} parent=1 // pred_check
      _
    $region47: #{forward.3} parent=1 // pred_check_branch
      %63 = sbr.rel (0) target = $region49
    $region48: #{forward.3} parent=1 // pred_region
      _
    $region49: #{forward.3} parent=1 // pred_fallthru
      _
    // Predicated region
    $region50: #{forward.3} parent=1 // pred_check
      _
    $region51: #{forward.3} parent=1 // pred_check_branch
      %65 = sbr.rel (0) target = $region53
    $region52: #{forward.3} parent=1 // pred_region
      _
    $region53: #{forward.3} parent=1 // pred_fallthru
      _
    // Predicated region
    $region54: #{forward.3} parent=1 // pred_check
      _
    $region55: #{forward.3} parent=1 // pred_check_branch
      %67 = sbr.rel (0) target = $region57
    $region56: #{forward.3} parent=1 // pred_region
      _
    $region57: #{forward.3} parent=1 // pred_fallthru
      _
    // Predicated region
    $region58: #{forward.3} parent=1 // pred_check
      _
    $region59: #{forward.3} parent=1 // pred_check_branch
      %69 = sbr.rel (0) target = $region61
    $region60: #{forward.3} parent=1 // pred_region
      _
    $region61: #{forward.3} parent=1 // pred_fallthru
      _
    // Predicated region
    $region62: #{forward.3} parent=1 // pred_check
      _
    $region63: #{forward.3} parent=1 // pred_check_branch
      %71 = sbr.rel (0) target = $region65
    $region64: #{forward.3} parent=1 // pred_region
      _
    $region65: #{forward.3} parent=1 // pred_fallthru
      _
    // Predicated region
    $region66: #{forward.3} parent=1 // pred_check
      _
    $region67: #{forward.3} parent=1 // pred_check_branch
      %73 = sbr.rel (0) target = $region69
    $region68: #{forward.3} parent=1 // pred_region
      _
    $region69: #{forward.3} parent=1 // pred_fallthru
      _
    // Predicated region
    $region70: #{forward.3} parent=1 // pred_check
      _
    $region71: #{forward.3} parent=1 // pred_check_branch
      %75 = sbr.rel (0) target = $region73
    $region72: #{forward.3} parent=1 // pred_region
      _
    $region73: #{forward.3} parent=1 // pred_fallthru
      _
    // Predicated region
    $region74: #{forward.3} parent=1 // pred_check
      _
    $region75: #{forward.3} parent=1 // pred_check_branch
      %77 = sbr.rel (0) target = $region77
    $region76: #{forward.3} parent=1 // pred_region
      _
    $region77: #{forward.3} parent=1 // pred_fallthru
      _
    // Predicated region
    $region78: #{forward.3} parent=1 // pred_check
      _
    $region79: #{forward.3} parent=1 // pred_check_branch
      %79 = sbr.rel (0) target = $region81
    $region80: #{forward.3} parent=1 // pred_region
      _
    $region81: #{forward.3} parent=1 // pred_fallthru
      _
    // Predicated region
    $region82: #{forward.3} parent=1 // pred_check
      _
    $region83: #{forward.3} parent=1 // pred_check_branch
      %81 = sbr.rel (0) target = $region85
    $region84: #{forward.3} parent=1 // pred_region
      _
    $region85: #{forward.3} parent=1 // pred_fallthru
      _
    // Predicated region
    $region86: #{forward.3} parent=1 // pred_check
      _
    $region87: #{forward.3} parent=1 // pred_check_branch
      %83 = sbr.rel (0) target = $region89
    $region88: #{forward.3} parent=1 // pred_region
      _
    $region89: #{forward.3} parent=1 // pred_fallthru
      _
    // Predicated region
    $region90: #{forward.3} parent=1 // pred_check
      _
    $region91: #{forward.3} parent=1 // pred_check_branch
      %85 = sbr.rel (0) target = $region93
    $region92: #{forward.3} parent=1 // pred_region
      %86 = dma.done [#allocation5], 32
    $region93: #{forward.3} parent=1 // pred_fallthru
      _
    %87 = sfence
    %v89 = vld [vmem:[%s2] sm:$0x1]
    %v90 = vld [vmem:[%s3] sm:$0xff]
    %v91 = vld [vmem:[%s3 + $0x8] sm:$0x1]
    %v92 = vlaneseq
    %v93 = vshrl.u32 %v92, 7
    %v94 = vld [vmem:[%s1] sm:$0x7]
    %v96 = vlaneseq
    %v97 = vshrl.u32 %v96, 7
    %v98 = vsub.s32 0, %v97
    %v99 = vrot.slane %v89, %v98
    %v102 = vrot.slane %v94, 1
    %vm104 = vcmask 1041408
    %v105 = vsel %vm104, %v102, %v99
    %s106 = sld [smem:[#allocation2]]
    %v107 = vstv %s106
    %vm108 = vcmp.eq.s32.totalorder %v93, %v107
    %v109 = vsel %vm108, 1, 0
    %v110 = vcvt.s32.f32 %v109
    %v111 = vmul.f32 %v105, %v110
    %vm112 = vcmask 130048
    %v113 = vsel %vm112, %v111, 0.0
    %v114 = vrot.slane %v113, 4
    %v115 = vadd.f32 %v113, %v114
    %v116 = vrot.slane %v115, 2
    %v117 = vadd.f32 %v115, %v116
    %v118 = vrot.slane %v117, 1
    %v119 = vadd.f32 %v117, %v118
    %s120 = sld [smem:[#allocation2 + $0x1]]
    %v121 = vstv %s120
    %vm122 = vcmp.eq.s32.totalorder %v93, %v121
    %v123 = vsel %vm122, 1, 0
    %v124 = vcvt.s32.f32 %v123
    %v125 = vmul.f32 %v105, %v124
    %v126 = vsel %vm112, %v125, 0.0
    %v127 = vrot.slane %v126, 4
    %v128 = vadd.f32 %v126, %v127
    %v129 = vrot.slane %v128, 2
    %v130 = vadd.f32 %v128, %v129
    %v131 = vrot.slane %v130, 1
    %v132 = vadd.f32 %v130, %v131
    %s133 = sld [smem:[#allocation2 + $0x2]]
    %v134 = vstv %s133
    %vm135 = vcmp.eq.s32.totalorder %v93, %v134
    %v136 = vsel %vm135, 1, 0
    %v137 = vcvt.s32.f32 %v136
    %v138 = vmul.f32 %v105, %v137
    %v139 = vsel %vm112, %v138, 0.0
    %v140 = vrot.slane %v139, 4
    %v141 = vadd.f32 %v139, %v140
    %v142 = vrot.slane %v141, 2
    %v143 = vadd.f32 %v141, %v142
    %v144 = vrot.slane %v143, 1
    %v145 = vadd.f32 %v143, %v144
    %s146 = sld [smem:[#allocation2 + $0x3]]
    %v147 = vstv %s146
    %vm148 = vcmp.eq.s32.totalorder %v93, %v147
    %v149 = vsel %vm148, 1, 0
    %v150 = vcvt.s32.f32 %v149
    %v151 = vmul.f32 %v105, %v150
    %v152 = vsel %vm112, %v151, 0.0
    %v153 = vrot.slane %v152, 4
    %v154 = vadd.f32 %v152, %v153
    %v155 = vrot.slane %v154, 2
    %v156 = vadd.f32 %v154, %v155
    %v157 = vrot.slane %v156, 1
    %v158 = vadd.f32 %v156, %v157
    %s159 = sld [smem:[#allocation2 + $0x4]]
    %v160 = vstv %s159
    %vm161 = vcmp.eq.s32.totalorder %v93, %v160
    %v162 = vsel %vm161, 1, 0
    %v163 = vcvt.s32.f32 %v162
    %v164 = vmul.f32 %v105, %v163
    %v165 = vsel %vm112, %v164, 0.0
    %v166 = vrot.slane %v165, 4
    %v167 = vadd.f32 %v165, %v166
    %v168 = vrot.slane %v167, 2
    %v169 = vadd.f32 %v167, %v168
    %v170 = vrot.slane %v169, 1
    %v171 = vadd.f32 %v169, %v170
    %s172 = sld [smem:[#allocation2 + $0x5]]
    %v173 = vstv %s172
    %vm174 = vcmp.eq.s32.totalorder %v93, %v173
    %v175 = vsel %vm174, 1, 0
    %v176 = vcvt.s32.f32 %v175
    %v177 = vmul.f32 %v105, %v176
    %v178 = vsel %vm112, %v177, 0.0
    %v179 = vrot.slane %v178, 4
    %v180 = vadd.f32 %v178, %v179
    %v181 = vrot.slane %v180, 2
    %v182 = vadd.f32 %v180, %v181
    %v183 = vrot.slane %v182, 1
    %v184 = vadd.f32 %v182, %v183
    %s185 = sld [smem:[#allocation2 + $0x6]]
    %v186 = vstv %s185
    %vm187 = vcmp.eq.s32.totalorder %v93, %v186
    %v188 = vsel %vm187, 1, 0
    %v189 = vcvt.s32.f32 %v188
    %v190 = vmul.f32 %v105, %v189
    %v191 = vsel %vm112, %v190, 0.0
    %v192 = vrot.slane %v191, 4
    %v193 = vadd.f32 %v191, %v192
    %v194 = vrot.slane %v193, 2
    %v195 = vadd.f32 %v193, %v194
    %v196 = vrot.slane %v195, 1
    %v197 = vadd.f32 %v195, %v196
    %s198 = sld [smem:[#allocation2 + $0x7]]
    %v199 = vstv %s198
    %vm200 = vcmp.eq.s32.totalorder %v93, %v199
    %v201 = vsel %vm200, 1, 0
    %v202 = vcvt.s32.f32 %v201
    %v203 = vmul.f32 %v105, %v202
    %v204 = vsel %vm112, %v203, 0.0
    %v205 = vrot.slane %v204, 4
    %v206 = vadd.f32 %v204, %v205
    %v207 = vrot.slane %v206, 2
    %v208 = vadd.f32 %v206, %v207
    %v209 = vrot.slane %v208, 1
    %v210 = vadd.f32 %v208, %v209
    %vm211 = vcmask 1040384
    %v212 = vsel %vm211, %v94, %v119
    %v213 = vsel %vm104, %v212, %v132
    %vm214 = vcmask 1042432
    %v215 = vsel %vm214, %v213, %v145
    %vm216 = vcmask 1043456
    %v217 = vsel %vm216, %v215, %v158
    %vm218 = vcmask 1044480
    %v219 = vsel %vm218, %v217, %v171
    %vm220 = vcmask 1045504
    %v221 = vsel %vm220, %v219, %v184
    %vm222 = vcmask 1046528
    %v223 = vsel %vm222, %v221, %v197
    %v224 = vadd.f32 %v223, %v90
    %v225 = vadd.f32 %v210, %v91
    %s226 = scalar_lea.vmem %s1, 4
    %v227 = vld [vmem:[%s226] sm:$0x7]
    %v229 = vrot.slane %v227, 1
    %v231 = vsel %vm104, %v229, %v99
    %s232 = sld [smem:[#allocation2 + $0x80]]
    %v233 = vstv %s232
    %vm234 = vcmp.eq.s32.totalorder %v93, %v233
    %v235 = vsel %vm234, 1, 0
    %v236 = vcvt.s32.f32 %v235
    %v237 = vmul.f32 %v231, %v236
    %v238 = vsel %vm112, %v237, 0.0
    %v239 = vrot.slane %v238, 4
    %v240 = vadd.f32 %v238, %v239
    %v241 = vrot.slane %v240, 2
    %v242 = vadd.f32 %v240, %v241
    %v243 = vrot.slane %v242, 1
    %v244 = vadd.f32 %v242, %v243
    %s245 = sld [smem:[#allocation2 + $0x81]]
    %v246 = vstv %s245
    %vm247 = vcmp.eq.s32.totalorder %v93, %v246
    %v248 = vsel %vm247, 1, 0
    %v249 = vcvt.s32.f32 %v248
    %v250 = vmul.f32 %v231, %v249
    %v251 = vsel %vm112, %v250, 0.0
    %v252 = vrot.slane %v251, 4
    %v253 = vadd.f32 %v251, %v252
    %v254 = vrot.slane %v253, 2
    %v255 = vadd.f32 %v253, %v254
    %v256 = vrot.slane %v255, 1
    %v257 = vadd.f32 %v255, %v256
    %s258 = sld [smem:[#allocation2 + $0x82]]
    %v259 = vstv %s258
    %vm260 = vcmp.eq.s32.totalorder %v93, %v259
    %v261 = vsel %vm260, 1, 0
    %v262 = vcvt.s32.f32 %v261
    %v263 = vmul.f32 %v231, %v262
    %v264 = vsel %vm112, %v263, 0.0
    %v265 = vrot.slane %v264, 4
    %v266 = vadd.f32 %v264, %v265
    %v267 = vrot.slane %v266, 2
    %v268 = vadd.f32 %v266, %v267
    %v269 = vrot.slane %v268, 1
    %v270 = vadd.f32 %v268, %v269
    %s271 = sld [smem:[#allocation2 + $0x83]]
    %v272 = vstv %s271
    %vm273 = vcmp.eq.s32.totalorder %v93, %v272
    %v274 = vsel %vm273, 1, 0
    %v275 = vcvt.s32.f32 %v274
    %v276 = vmul.f32 %v231, %v275
    %v277 = vsel %vm112, %v276, 0.0
    %v278 = vrot.slane %v277, 4
    %v279 = vadd.f32 %v277, %v278
    %v280 = vrot.slane %v279, 2
    %v281 = vadd.f32 %v279, %v280
    %v282 = vrot.slane %v281, 1
    %v283 = vadd.f32 %v281, %v282
    %s284 = sld [smem:[#allocation2 + $0x84]]
    %v285 = vstv %s284
    %vm286 = vcmp.eq.s32.totalorder %v93, %v285
    %v287 = vsel %vm286, 1, 0
    %v288 = vcvt.s32.f32 %v287
    %v289 = vmul.f32 %v231, %v288
    %v290 = vsel %vm112, %v289, 0.0
    %v291 = vrot.slane %v290, 4
    %v292 = vadd.f32 %v290, %v291
    %v293 = vrot.slane %v292, 2
    %v294 = vadd.f32 %v292, %v293
    %v295 = vrot.slane %v294, 1
    %v296 = vadd.f32 %v294, %v295
    %s297 = sld [smem:[#allocation2 + $0x85]]
    %v298 = vstv %s297
    %vm299 = vcmp.eq.s32.totalorder %v93, %v298
    %v300 = vsel %vm299, 1, 0
    %v301 = vcvt.s32.f32 %v300
    %v302 = vmul.f32 %v231, %v301
    %v303 = vsel %vm112, %v302, 0.0
    %v304 = vrot.slane %v303, 4
    %v305 = vadd.f32 %v303, %v304
    %v306 = vrot.slane %v305, 2
    %v307 = vadd.f32 %v305, %v306
    %v308 = vrot.slane %v307, 1
    %v309 = vadd.f32 %v307, %v308
    %s310 = sld [smem:[#allocation2 + $0x86]]
    %v311 = vstv %s310
    %vm312 = vcmp.eq.s32.totalorder %v93, %v311
    %v313 = vsel %vm312, 1, 0
    %v314 = vcvt.s32.f32 %v313
    %v315 = vmul.f32 %v231, %v314
    %v316 = vsel %vm112, %v315, 0.0
    %v317 = vrot.slane %v316, 4
    %v318 = vadd.f32 %v316, %v317
    %v319 = vrot.slane %v318, 2
    %v320 = vadd.f32 %v318, %v319
    %v321 = vrot.slane %v320, 1
    %v322 = vadd.f32 %v320, %v321
    %s323 = sld [smem:[#allocation2 + $0x87]]
    %v324 = vstv %s323
    %vm325 = vcmp.eq.s32.totalorder %v93, %v324
    %v326 = vsel %vm325, 1, 0
    %v327 = vcvt.s32.f32 %v326
    %v328 = vmul.f32 %v231, %v327
    %v329 = vsel %vm112, %v328, 0.0
    %v330 = vrot.slane %v329, 4
    %v331 = vadd.f32 %v329, %v330
    %v332 = vrot.slane %v331, 2
    %v333 = vadd.f32 %v331, %v332
    %v334 = vrot.slane %v333, 1
    %v335 = vadd.f32 %v333, %v334
    %v336 = vsel %vm211, %v227, %v244
    %v337 = vsel %vm104, %v336, %v257
    %v338 = vsel %vm214, %v337, %v270
    %v339 = vsel %vm216, %v338, %v283
    %v340 = vsel %vm218, %v339, %v296
    %v341 = vsel %vm220, %v340, %v309
    %v342 = vsel %vm222, %v341, %v322
    %v343 = vadd.f32 %v342, %v90
    %v344 = vadd.f32 %v335, %v91
    %v347 = vrot.slane %v343, 7
    %v348 = vrot.slane %v344, 7
    %v349 = vsel %vm211, %v347, %v348
    %v352 = vsel %vm211, %v225, %v347
    %v353 = vld [vmem:[%s4] sm:$0x1]
    %v354 = vld [vmem:[%s5] sm:$0x1]
    %v355 = vld [vmem:[%s6] sm:$0xf]
    %v356 = vld [vmem:[%s6 + $0x4] sm:$0xf]
    %v357 = vld [vmem:[%s7] sm:$0x1]
    %v358 = vld [vmem:[%s8] sm:$0xf]
    %v359 = vld [vmem:[%s8 + $0x4] sm:$0xf]
    %v360 = vld [vmem:[%s9] sm:$0x1]
    %v361 = vld [vmem:[%s10] sm:$0x1]
    %v362 = vld [vmem:[%s11] sm:$0x1]
    %v363 = vld [vmem:[%s12] sm:$0xf]
    %v364 = vld [vmem:[%s12 + $0x4] sm:$0xf]
    %v365 = vld [vmem:[%s13] sm:$0x1]
    %v366 = vld [vmem:[%s14] sm:$0xf]
    %v367 = vld [vmem:[%s14 + $0x4] sm:$0xf]
    %v368 = vld [vmem:[%s14 + $0x8] sm:$0xf]
    %v369 = vld [vmem:[%s14 + $0xc] sm:$0xf]
    %v370 = vld [vmem:[%s14 + $0x10] sm:$0xf]
    %v371 = vld [vmem:[%s14 + $0x14] sm:$0xf]
    %v372 = vld [vmem:[%s14 + $0x18] sm:$0xf]
    %v373 = vld [vmem:[%s14 + $0x1c] sm:$0xf]
    %v374 = vld [vmem:[%s15] sm:$0x1]
    %v375 = vsel %vm112, %v224, 0.0
    %376 = vadd.xlane.f32.xlu0 %v375
    %v377 = vpop.xlane.xlu0 %376
    %v378 = vsel %vm112, %v352, 0.0
    %379 = vadd.xlane.f32.xlu0 %v378
    %v380 = vpop.xlane.xlu0 %379
    %vm381 = vcmask 123904
    %v382 = vsel %vm381, %v349, 0.0
    %383 = vadd.xlane.f32.xlu0 %v382
    %v384 = vpop.xlane.xlu0 %383
    %v385 = vrcp.pop 16.0
    %v386 = vmul.f32 %v377, %v385
    %v387 = vmul.f32 %v380, %v385
    %v388 = vmul.f32 %v384, %v385
    %v389 = vsub.f32 %v224, %v386
    %v390 = vsub.f32 %v352, %v387
    %v391 = vsub.f32 %v349, %v388
    %v392 = vmul.f32 %v389, %v389
    %v393 = vmul.f32 %v390, %v390
    %v394 = vmul.f32 %v391, %v391
    %v395 = vsel %vm112, %v392, 0.0
    %396 = vadd.xlane.f32.xlu0 %v395
    %v397 = vpop.xlane.xlu0 %396
    %v398 = vsel %vm112, %v393, 0.0
    %399 = vadd.xlane.f32.xlu0 %v398
    %v400 = vpop.xlane.xlu0 %399
    %v401 = vsel %vm381, %v394, 0.0
    %402 = vadd.xlane.f32.xlu0 %v401
    %v403 = vpop.xlane.xlu0 %402
    %v404 = vmul.f32 %v397, %v385
    %v405 = vmul.f32 %v400, %v385
    %v406 = vmul.f32 %v403, %v385
    %v407 = vadd.f32 %v404, 1e-05
    %v408 = vadd.f32 %v405, 1e-05
    %v409 = vadd.f32 %v406, 1e-05
    %v410 = vrsqrt.pop %v407
    %v411 = vrsqrt.pop %v408
    %v412 = vrsqrt.pop %v409
    %v413 = vmul.f32 %v389, %v410
    %v414 = vmul.f32 %v390, %v411
    %v415 = vmul.f32 %v391, %v412
    %v417 = vlaneseq
    %v418 = vshrl.u32 %v417, 7
    %v419 = vsub.s32 0, %v418
    %v420 = vrot.slane %v353, %v419
    %v422 = vmul.f32 %v413, %v420
    %v423 = vmul.f32 %v414, %v420
    %v424 = vmul.f32 %v415, %v420
    %v426 = vlaneseq
    %v427 = vshrl.u32 %v426, 7
    %v428 = vsub.s32 0, %v427
    %v429 = vrot.slane %v354, %v428
    %v431 = vadd.f32 %v422, %v429
    %v432 = vadd.f32 %v423, %v429
    %v433 = vadd.f32 %v424, %v429
    %v434 = vpack.c.bf16 %v432, %v431
    %v435 = vpack.c.bf16 %v433, %v433
    %v437 = vlaneseq
    %v438 = vshrl.u32 %v437, 7
    %v439 = vsub.s32 0, %v438
    %v440 = vrot.slane %v357, %v439
    %v444 = vunpack.c.l.b16 %v355
    %v445 = vunpack.c.l.b16 %v356
    %v446 = vpack.c.b16 %v445, %v444
    %v449 = vsel %vm112, %v434, 0
    %v452 = vsel %vm112, %v435, 0
    %454 = vmatprep.subr.bf16.mxu0 0
    %455 = vmatpush1.bf16.msra.mxu0 %v446
    %456 = vmatprep.subr.bf16.mxu0 0
    %457 = vmatpush1.bf16.msra.mxu0 0
    %458 = vmatprep.subr.bf16.mxu0 0
    %459 = vmatpush1.bf16.msra.mxu0 0
    %460 = vmatprep.subr.bf16.mxu0 0
    %461 = vmatpush1.bf16.msra.mxu0 0
    %462 = vmatprep.subr.bf16.mxu0 0
    %463 = vmatpush1.bf16.msra.mxu0 0
    %464 = vmatprep.subr.bf16.mxu0 0
    %465 = vmatpush1.bf16.msra.mxu0 0
    %466 = vmatprep.subr.bf16.mxu0 0
    %467 = vmatpush1.bf16.msra.mxu0 0
    %468 = vmatprep.subr.bf16.mxu0 0
    %469 = vmatpush1.bf16.msra.mxu0 0
    %470 = vmatprep.subr.bf16.mxu0 0
    %471 = vmatpush1.bf16.msra.mxu0 0
    %472 = vmatprep.subr.bf16.mxu0 0
    %473 = vmatpush1.bf16.msra.mxu0 0
    %474 = vmatprep.subr.bf16.mxu0 0
    %475 = vmatpush1.bf16.msra.mxu0 0
    %476 = vmatprep.subr.bf16.mxu0 0
    %477 = vmatpush1.bf16.msra.mxu0 0
    %478 = vmatprep.subr.bf16.mxu0 0
    %479 = vmatpush1.bf16.msra.mxu0 0
    %480 = vmatprep.subr.bf16.mxu0 0
    %481 = vmatpush1.bf16.msra.mxu0 0
    %482 = vmatprep.subr.bf16.mxu0 0
    %483 = vmatpush1.bf16.msra.mxu0 0
    %484 = vmatprep.subr.bf16.mxu0 0
    %485 = vmatpush1.bf16.msra.mxu0 0
    %486 = vmatprep.mubr.bf16.mxu0 0
    %487 = vmatmul.mubr.bf16.gmra.mrb[0].mxu0 %v449
    %v488 = vpop.f32.mrb[0].mxu0
    %v489 = vadd.f32 %v440, %v488
    %v490 = vpop.f32.mrb[0].mxu0
    %v491 = vpop.f32.mrb[0].mxu0
    %v492 = vadd.f32 %v440, %v491
    %v493 = vpop.f32.mrb[0].mxu0
    %494 = vmatprep.mubr.bf16.mxu0 0
    %495 = vmatmul.mubr.bf16.gmra.mrb[0].mxu0 %v452
    %v496 = vpop.f32.mrb[0].mxu0
    %v497 = vadd.f32 %v440, %v496
    %v498 = vpop.f32.mrb[0].mxu0
    %v499 = vpop.f32.mrb[0].mxu0
    %v500 = vpop.f32.mrb[0].mxu0
    %501 = vdwg.mxu0
    %504 = vrot.lane.b32.xlu0 %v489, 112
    %v505 = vpop.permute.xlu0 %504
    %506 = vrot.lane.b32.xlu0 %v492, 112
    %v507 = vpop.permute.xlu0 %506
    %vm508 = vcmask 31744
    %v509 = vsel %vm508, %v489, 0
    %v511 = vsel %vm508, %v492, 0
    %v513 = vsel %vm508, %v505, 0
    %v515 = vsel %vm508, %v507, 0
    %517 = vmatprep.subr.mxu0 0.0
    %518 = vmatpush1.xpose.msra.mxu0 %v513
    %519 = vmatprep.subr.mxu0 0.0
    %520 = vmatpush1.xpose.msra.mxu0 %v515
    %521 = vmatprep.subr.mxu0 0.0
    %522 = vmatpush1.xpose.msra.mxu0 0.0
    %523 = vmatprep.subr.mxu0 0.0
    %524 = vmatpush1.xpose.msra.mxu0 0.0
    %525 = vmatprep.subr.mxu0 0.0
    %526 = vmatpush1.xpose.msra.mxu0 0.0
    %527 = vmatprep.subr.mxu0 0.0
    %528 = vmatpush1.xpose.msra.mxu0 0.0
    %529 = vmatprep.subr.mxu0 0.0
    %530 = vmatpush1.xpose.msra.mxu0 0.0
    %531 = vmatprep.subr.mxu0 0.0
    %532 = vmatpush1.xpose.msra.mxu0 0.0
    %533 = vmatprep.subr.mxu0 0.0
    %534 = vmatpush1.xpose.msra.mxu0 0.0
    %535 = vmatprep.subr.mxu0 0.0
    %536 = vmatpush1.xpose.msra.mxu0 0.0
    %537 = vmatprep.subr.mxu0 0.0
    %538 = vmatpush1.xpose.msra.mxu0 0.0
    %539 = vmatprep.subr.mxu0 0.0
    %540 = vmatpush1.xpose.msra.mxu0 0.0
    %541 = vmatprep.subr.mxu0 0.0
    %542 = vmatpush1.xpose.msra.mxu0 0.0
    %543 = vmatprep.subr.mxu0 0.0
    %544 = vmatpush1.xpose.msra.mxu0 0.0
    %545 = vmatprep.subr.mxu0 0.0
    %546 = vmatpush1.xpose.msra.mxu0 0.0
    %547 = vmatprep.subr.mxu0 0.0
    %548 = vmatpush1.xpose.msra.mxu0 0.0
    %549 = vmatprep.subr.mxu0 0.0
    %550 = vmatpush1.xpose.msra.mxu0 0.0
    %551 = vmatprep.subr.mxu0 0.0
    %552 = vmatpush1.xpose.msra.mxu0 0.0
    %553 = vmatprep.subr.mxu0 0.0
    %554 = vmatpush1.xpose.msra.mxu0 0.0
    %555 = vmatprep.subr.mxu0 0.0
    %556 = vmatpush1.xpose.msra.mxu0 0.0
    %557 = vmatprep.subr.mxu0 0.0
    %558 = vmatpush1.xpose.msra.mxu0 0.0
    %559 = vmatprep.subr.mxu0 0.0
    %560 = vmatpush1.xpose.msra.mxu0 0.0
    %561 = vmatprep.subr.mxu0 0.0
    %562 = vmatpush1.xpose.msra.mxu0 0.0
    %563 = vmatprep.subr.mxu0 0.0
    %564 = vmatpush1.xpose.msra.mxu0 0.0
    %565 = vmatprep.subr.mxu0 0.0
    %566 = vmatpush1.xpose.msra.mxu0 0.0
    %567 = vmatprep.subr.mxu0 0.0
    %568 = vmatpush1.xpose.msra.mxu0 0.0
    %569 = vmatprep.subr.mxu0 0.0
    %570 = vmatpush1.xpose.msra.mxu0 0.0
    %571 = vmatprep.subr.mxu0 0.0
    %572 = vmatpush1.xpose.msra.mxu0 0.0
    %573 = vmatprep.subr.mxu0 0.0
    %574 = vmatpush1.xpose.msra.mxu0 0.0
    %575 = vmatprep.subr.mxu0 0.0
    %576 = vmatpush1.xpose.msra.mxu0 0.0
    %577 = vmatprep.subr.mxu0 0.0
    %578 = vmatpush1.xpose.msra.mxu0 0.0
    %579 = vmatprep.subr.mxu0 0.0
    %580 = vmatpush1.xpose.msra.mxu0 0.0
    %581 = vmatprep.mubr.f32.mxu0 0.0
    %582 = vmatmul.mubr.f32.gmra.mrb[0].mxu0 %v509
    %v583 = vpop.f32.mrb[0].mxu0
    %v584 = vadd.f32 0.0, %v583
    %v585 = vpop.f32.mrb[0].mxu0
    %586 = vmatprep.mubr.f32.mxu0 0.0
    %587 = vmatmul.mubr.f32.gmra.mrb[0].mxu0 %v511
    %v588 = vpop.f32.mrb[0].mxu0
    %v589 = vadd.f32 0.0, %v588
    %v590 = vpop.f32.mrb[0].mxu0
    %591 = vdwg.mxu0
    %vm592 = vcmask 72704
    %v593 = vsel %vm592, %v584, -inf
    %594 = vmax.xlane.f32.xlu0 %v593
    %v595 = vpop.xlane.xlu0 %594
    %vm596 = vcmask 65536
    %v597 = vsel %vm596, %v589, -inf
    %598 = vmax.xlane.f32.xlu0 %v597
    %v599 = vpop.xlane.xlu0 %598
    %v600 = vsub.f32 %v584, %v595
    %v601 = vsub.f32 %v589, %v599
    %v602 = vmul.f32 %v600, 1.442695
    %v603 = vpow.pop %v602
    %v604 = vmul.f32 %v601, 1.442695
    %v605 = vpow.pop %v604
    %v606 = vsel %vm592, %v603, 0.0
    %607 = vadd.xlane.f32.xlu0 %v606
    %v608 = vpop.xlane.xlu0 %607
    %v609 = vsel %vm596, %v605, 0.0
    %610 = vadd.xlane.f32.xlu0 %v609
    %v611 = vpop.xlane.xlu0 %610
    %v612 = vrcp.pop %v608
    %v613 = vrcp.pop %v611
    %v614 = vmul.f32 %v603, %v612
    %v615 = vmul.f32 %v605, %v613
    %616 = vrot.lane.b32.xlu0 %v489, 96
    %v617 = vpop.permute.xlu0 %616
    %618 = vrot.lane.b32.xlu0 %v492, 96
    %v619 = vpop.permute.xlu0 %618
    %v622 = vsel %vm592, %v614, 0
    %v625 = vsel %vm592, %v615, 0
    %v627 = vsel %vm211, %v619, 0
    %629 = vmatprep.subr.mxu0 0.0
    %630 = vmatpush1.msra.mxu0 %v617
    %631 = vmatprep.subr.mxu0 0.0
    %632 = vmatpush1.msra.mxu0 %v627
    %633 = vmatprep.subr.mxu0 0.0
    %634 = vmatpush1.msra.mxu0 0.0
    %635 = vmatprep.subr.mxu0 0.0
    %636 = vmatpush1.msra.mxu0 0.0
    %637 = vmatprep.subr.mxu0 0.0
    %638 = vmatpush1.msra.mxu0 0.0
    %639 = vmatprep.subr.mxu0 0.0
    %640 = vmatpush1.msra.mxu0 0.0
    %641 = vmatprep.subr.mxu0 0.0
    %642 = vmatpush1.msra.mxu0 0.0
    %643 = vmatprep.subr.mxu0 0.0
    %644 = vmatpush1.msra.mxu0 0.0
    %645 = vmatprep.subr.mxu0 0.0
    %646 = vmatpush1.msra.mxu0 0.0
    %647 = vmatprep.subr.mxu0 0.0
    %648 = vmatpush1.msra.mxu0 0.0
    %649 = vmatprep.subr.mxu0 0.0
    %650 = vmatpush1.msra.mxu0 0.0
    %651 = vmatprep.subr.mxu0 0.0
    %652 = vmatpush1.msra.mxu0 0.0
    %653 = vmatprep.subr.mxu0 0.0
    %654 = vmatpush1.msra.mxu0 0.0
    %655 = vmatprep.subr.mxu0 0.0
    %656 = vmatpush1.msra.mxu0 0.0
    %657 = vmatprep.subr.mxu0 0.0
    %658 = vmatpush1.msra.mxu0 0.0
    %659 = vmatprep.subr.mxu0 0.0
    %660 = vmatpush1.msra.mxu0 0.0
    %661 = vmatprep.subr.mxu0 0.0
    %662 = vmatpush1.msra.mxu0 0.0
    %663 = vmatprep.subr.mxu0 0.0
    %664 = vmatpush1.msra.mxu0 0.0
    %665 = vmatprep.subr.mxu0 0.0
    %666 = vmatpush1.msra.mxu0 0.0
    %667 = vmatprep.subr.mxu0 0.0
    %668 = vmatpush1.msra.mxu0 0.0
    %669 = vmatprep.subr.mxu0 0.0
    %670 = vmatpush1.msra.mxu0 0.0
    %671 = vmatprep.subr.mxu0 0.0
    %672 = vmatpush1.msra.mxu0 0.0
    %673 = vmatprep.subr.mxu0 0.0
    %674 = vmatpush1.msra.mxu0 0.0
    %675 = vmatprep.subr.mxu0 0.0
    %676 = vmatpush1.msra.mxu0 0.0
    %677 = vmatprep.subr.mxu0 0.0
    %678 = vmatpush1.msra.mxu0 0.0
    %679 = vmatprep.subr.mxu0 0.0
    %680 = vmatpush1.msra.mxu0 0.0
    %681 = vmatprep.subr.mxu0 0.0
    %682 = vmatpush1.msra.mxu0 0.0
    %683 = vmatprep.subr.mxu0 0.0
    %684 = vmatpush1.msra.mxu0 0.0
    %685 = vmatprep.subr.mxu0 0.0
    %686 = vmatpush1.msra.mxu0 0.0
    %687 = vmatprep.subr.mxu0 0.0
    %688 = vmatpush1.msra.mxu0 0.0
    %689 = vmatprep.subr.mxu0 0.0
    %690 = vmatpush1.msra.mxu0 0.0
    %691 = vmatprep.subr.mxu0 0.0
    %692 = vmatpush1.msra.mxu0 0.0
    %693 = vmatprep.mubr.f32.mxu0 0.0
    %694 = vmatmul.mubr.f32.gmra.mrb[0].mxu0 %v622
    %v695 = vpop.f32.mrb[0].mxu0
    %v696 = vadd.f32 0.0, %v695
    %v697 = vpop.f32.mrb[0].mxu0
    %698 = vmatprep.mubr.f32.mxu0 0.0
    %699 = vmatmul.mubr.f32.gmra.mrb[0].mxu0 %v625
    %v700 = vpop.f32.mrb[0].mxu0
    %v701 = vadd.f32 0.0, %v700
    %v702 = vpop.f32.mrb[0].mxu0
    %703 = vdwg.mxu0
    %v704 = vpack.c.bf16 %v701, %v696
    %705 = vrot.lane.b32.xlu0 %v489, 124
    %v706 = vpop.permute.xlu0 %705
    %707 = vrot.lane.b32.xlu0 %v492, 124
    %v708 = vpop.permute.xlu0 %707
    %709 = vrot.lane.b32.xlu0 %v489, 108
    %v710 = vpop.permute.xlu0 %709
    %711 = vrot.lane.b32.xlu0 %v492, 108
    %v712 = vpop.permute.xlu0 %711
    %v713 = vsel %vm508, %v706, 0
    %v715 = vsel %vm508, %v708, 0
    %v717 = vsel %vm508, %v710, 0
    %v719 = vsel %vm508, %v712, 0
    %721 = vmatprep.subr.mxu0 0.0
    %722 = vmatpush1.xpose.msra.mxu0 %v717
    %723 = vmatprep.subr.mxu0 0.0
    %724 = vmatpush1.xpose.msra.mxu0 %v719
    %725 = vmatprep.subr.mxu0 0.0
    %726 = vmatpush1.xpose.msra.mxu0 0.0
    %727 = vmatprep.subr.mxu0 0.0
    %728 = vmatpush1.xpose.msra.mxu0 0.0
    %729 = vmatprep.subr.mxu0 0.0
    %730 = vmatpush1.xpose.msra.mxu0 0.0
    %731 = vmatprep.subr.mxu0 0.0
    %732 = vmatpush1.xpose.msra.mxu0 0.0
    %733 = vmatprep.subr.mxu0 0.0
    %734 = vmatpush1.xpose.msra.mxu0 0.0
    %735 = vmatprep.subr.mxu0 0.0
    %736 = vmatpush1.xpose.msra.mxu0 0.0
    %737 = vmatprep.subr.mxu0 0.0
    %738 = vmatpush1.xpose.msra.mxu0 0.0
    %739 = vmatprep.subr.mxu0 0.0
    %740 = vmatpush1.xpose.msra.mxu0 0.0
    %741 = vmatprep.subr.mxu0 0.0
    %742 = vmatpush1.xpose.msra.mxu0 0.0
    %743 = vmatprep.subr.mxu0 0.0
    %744 = vmatpush1.xpose.msra.mxu0 0.0
    %745 = vmatprep.subr.mxu0 0.0
    %746 = vmatpush1.xpose.msra.mxu0 0.0
    %747 = vmatprep.subr.mxu0 0.0
    %748 = vmatpush1.xpose.msra.mxu0 0.0
    %749 = vmatprep.subr.mxu0 0.0
    %750 = vmatpush1.xpose.msra.mxu0 0.0
    %751 = vmatprep.subr.mxu0 0.0
    %752 = vmatpush1.xpose.msra.mxu0 0.0
    %753 = vmatprep.subr.mxu0 0.0
    %754 = vmatpush1.xpose.msra.mxu0 0.0
    %755 = vmatprep.subr.mxu0 0.0
    %756 = vmatpush1.xpose.msra.mxu0 0.0
    %757 = vmatprep.subr.mxu0 0.0
    %758 = vmatpush1.xpose.msra.mxu0 0.0
    %759 = vmatprep.subr.mxu0 0.0
    %760 = vmatpush1.xpose.msra.mxu0 0.0
    %761 = vmatprep.subr.mxu0 0.0
    %762 = vmatpush1.xpose.msra.mxu0 0.0
    %763 = vmatprep.subr.mxu0 0.0
    %764 = vmatpush1.xpose.msra.mxu0 0.0
    %765 = vmatprep.subr.mxu0 0.0
    %766 = vmatpush1.xpose.msra.mxu0 0.0
    %767 = vmatprep.subr.mxu0 0.0
    %768 = vmatpush1.xpose.msra.mxu0 0.0
    %769 = vmatprep.subr.mxu0 0.0
    %770 = vmatpush1.xpose.msra.mxu0 0.0
    %771 = vmatprep.subr.mxu0 0.0
    %772 = vmatpush1.xpose.msra.mxu0 0.0
    %773 = vmatprep.subr.mxu0 0.0
    %774 = vmatpush1.xpose.msra.mxu0 0.0
    %775 = vmatprep.subr.mxu0 0.0
    %776 = vmatpush1.xpose.msra.mxu0 0.0
    %777 = vmatprep.subr.mxu0 0.0
    %778 = vmatpush1.xpose.msra.mxu0 0.0
    %779 = vmatprep.subr.mxu0 0.0
    %780 = vmatpush1.xpose.msra.mxu0 0.0
    %781 = vmatprep.subr.mxu0 0.0
    %782 = vmatpush1.xpose.msra.mxu0 0.0
    %783 = vmatprep.subr.mxu0 0.0
    %784 = vmatpush1.xpose.msra.mxu0 0.0
    %785 = vmatprep.mubr.f32.mxu0 0.0
    %786 = vmatmul.mubr.f32.gmra.mrb[0].mxu0 %v713
    %v787 = vpop.f32.mrb[0].mxu0
    %v788 = vadd.f32 0.0, %v787
    %v789 = vpop.f32.mrb[0].mxu0
    %790 = vmatprep.mubr.f32.mxu0 0.0
    %791 = vmatmul.mubr.f32.gmra.mrb[0].mxu0 %v715
    %v792 = vpop.f32.mrb[0].mxu0
    %v793 = vadd.f32 0.0, %v792
    %v794 = vpop.f32.mrb[0].mxu0
    %795 = vdwg.mxu0
    %v796 = vsel %vm592, %v788, -inf
    %797 = vmax.xlane.f32.xlu0 %v796
    %v798 = vpop.xlane.xlu0 %797
    %v799 = vsel %vm596, %v793, -inf
    %800 = vmax.xlane.f32.xlu0 %v799
    %v801 = vpop.xlane.xlu0 %800
    %v802 = vsub.f32 %v788, %v798
    %v803 = vsub.f32 %v793, %v801
    %v804 = vmul.f32 %v802, 1.442695
    %v805 = vpow.pop %v804
    %v806 = vmul.f32 %v803, 1.442695
    %v807 = vpow.pop %v806
    %v808 = vsel %vm592, %v805, 0.0
    %809 = vadd.xlane.f32.xlu0 %v808
    %v810 = vpop.xlane.xlu0 %809
    %v811 = vsel %vm596, %v807, 0.0
    %812 = vadd.xlane.f32.xlu0 %v811
    %v813 = vpop.xlane.xlu0 %812
    %v814 = vrcp.pop %v810
    %v815 = vrcp.pop %v813
    %v816 = vmul.f32 %v805, %v814
    %v817 = vmul.f32 %v807, %v815
    %818 = vrot.lane.b32.xlu0 %v489, 92
    %v819 = vpop.permute.xlu0 %818
    %820 = vrot.lane.b32.xlu0 %v492, 92
    %v821 = vpop.permute.xlu0 %820
    %v824 = vsel %vm592, %v816, 0
    %v827 = vsel %vm592, %v817, 0
    %v829 = vsel %vm211, %v821, 0
    %831 = vmatprep.subr.mxu0 0.0
    %832 = vmatpush1.msra.mxu0 %v819
    %833 = vmatprep.subr.mxu0 0.0
    %834 = vmatpush1.msra.mxu0 %v829
    %835 = vmatprep.subr.mxu0 0.0
    %836 = vmatpush1.msra.mxu0 0.0
    %837 = vmatprep.subr.mxu0 0.0
    %838 = vmatpush1.msra.mxu0 0.0
    %839 = vmatprep.subr.mxu0 0.0
    %840 = vmatpush1.msra.mxu0 0.0
    %841 = vmatprep.subr.mxu0 0.0
    %842 = vmatpush1.msra.mxu0 0.0
    %843 = vmatprep.subr.mxu0 0.0
    %844 = vmatpush1.msra.mxu0 0.0
    %845 = vmatprep.subr.mxu0 0.0
    %846 = vmatpush1.msra.mxu0 0.0
    %847 = vmatprep.subr.mxu0 0.0
    %848 = vmatpush1.msra.mxu0 0.0
    %849 = vmatprep.subr.mxu0 0.0
    %850 = vmatpush1.msra.mxu0 0.0
    %851 = vmatprep.subr.mxu0 0.0
    %852 = vmatpush1.msra.mxu0 0.0
    %853 = vmatprep.subr.mxu0 0.0
    %854 = vmatpush1.msra.mxu0 0.0
    %855 = vmatprep.subr.mxu0 0.0
    %856 = vmatpush1.msra.mxu0 0.0
    %857 = vmatprep.subr.mxu0 0.0
    %858 = vmatpush1.msra.mxu0 0.0
    %859 = vmatprep.subr.mxu0 0.0
    %860 = vmatpush1.msra.mxu0 0.0
    %861 = vmatprep.subr.mxu0 0.0
    %862 = vmatpush1.msra.mxu0 0.0
    %863 = vmatprep.subr.mxu0 0.0
    %864 = vmatpush1.msra.mxu0 0.0
    %865 = vmatprep.subr.mxu0 0.0
    %866 = vmatpush1.msra.mxu0 0.0
    %867 = vmatprep.subr.mxu0 0.0
    %868 = vmatpush1.msra.mxu0 0.0
    %869 = vmatprep.subr.mxu0 0.0
    %870 = vmatpush1.msra.mxu0 0.0
    %871 = vmatprep.subr.mxu0 0.0
    %872 = vmatpush1.msra.mxu0 0.0
    %873 = vmatprep.subr.mxu0 0.0
    %874 = vmatpush1.msra.mxu0 0.0
    %875 = vmatprep.subr.mxu0 0.0
    %876 = vmatpush1.msra.mxu0 0.0
    %877 = vmatprep.subr.mxu0 0.0
    %878 = vmatpush1.msra.mxu0 0.0
    %879 = vmatprep.subr.mxu0 0.0
    %880 = vmatpush1.msra.mxu0 0.0
    %881 = vmatprep.subr.mxu0 0.0
    %882 = vmatpush1.msra.mxu0 0.0
    %883 = vmatprep.subr.mxu0 0.0
    %884 = vmatpush1.msra.mxu0 0.0
    %885 = vmatprep.subr.mxu0 0.0
    %886 = vmatpush1.msra.mxu0 0.0
    %887 = vmatprep.subr.mxu0 0.0
    %888 = vmatpush1.msra.mxu0 0.0
    %889 = vmatprep.subr.mxu0 0.0
    %890 = vmatpush1.msra.mxu0 0.0
    %891 = vmatprep.subr.mxu0 0.0
    %892 = vmatpush1.msra.mxu0 0.0
    %893 = vmatprep.subr.mxu0 0.0
    %894 = vmatpush1.msra.mxu0 0.0
    %895 = vmatprep.mubr.f32.mxu0 0.0
    %896 = vmatmul.mubr.f32.gmra.mrb[0].mxu0 %v824
    %v897 = vpop.f32.mrb[0].mxu0
    %v898 = vadd.f32 0.0, %v897
    %v899 = vpop.f32.mrb[0].mxu0
    %900 = vmatprep.mubr.f32.mxu0 0.0
    %901 = vmatmul.mubr.f32.gmra.mrb[0].mxu0 %v827
    %v902 = vpop.f32.mrb[0].mxu0
    %v903 = vadd.f32 0.0, %v902
    %v904 = vpop.f32.mrb[0].mxu0
    %905 = vdwg.mxu0
    %v906 = vpack.c.bf16 %v903, %v898
    %v908 = vunpack.c.l.b16 %v358
    %v909 = vpack.c.b16 %v908, %v908
    %v910 = vrot.slane %v909, 2
    %v912 = vsel %vm508, %v906, 0
    %v915 = vsel %vm104, %v910, 0
    %917 = vmatprep.subr.bf16.mxu0 0
    %918 = vmatpush1.bf16.msra.mxu0 %v915
    %919 = vmatprep.subr.bf16.mxu0 0
    %920 = vmatpush1.bf16.msra.mxu0 0
    %921 = vmatprep.subr.bf16.mxu0 0
    %922 = vmatpush1.bf16.msra.mxu0 0
    %923 = vmatprep.subr.bf16.mxu0 0
    %924 = vmatpush1.bf16.msra.mxu0 0
    %925 = vmatprep.subr.bf16.mxu0 0
    %926 = vmatpush1.bf16.msra.mxu0 0
    %927 = vmatprep.subr.bf16.mxu0 0
    %928 = vmatpush1.bf16.msra.mxu0 0
    %929 = vmatprep.subr.bf16.mxu0 0
    %930 = vmatpush1.bf16.msra.mxu0 0
    %931 = vmatprep.subr.bf16.mxu0 0
    %932 = vmatpush1.bf16.msra.mxu0 0
    %933 = vmatprep.subr.bf16.mxu0 0
    %934 = vmatpush1.bf16.msra.mxu0 0
    %935 = vmatprep.subr.bf16.mxu0 0
    %936 = vmatpush1.bf16.msra.mxu0 0
    %937 = vmatprep.subr.bf16.mxu0 0
    %938 = vmatpush1.bf16.msra.mxu0 0
    %939 = vmatprep.subr.bf16.mxu0 0
    %940 = vmatpush1.bf16.msra.mxu0 0
    %941 = vmatprep.subr.bf16.mxu0 0
    %942 = vmatpush1.bf16.msra.mxu0 0
    %943 = vmatprep.subr.bf16.mxu0 0
    %944 = vmatpush1.bf16.msra.mxu0 0
    %945 = vmatprep.subr.bf16.mxu0 0
    %946 = vmatpush1.bf16.msra.mxu0 0
    %947 = vmatprep.subr.bf16.mxu0 0
    %948 = vmatpush1.bf16.msra.mxu0 0
    %949 = vmatprep.mubr.bf16.mxu0 0
    %950 = vmatmul.mubr.bf16.gmra.mrb[0].mxu0 %v912
    %v951 = vpop.f32.mrb[0].mxu0
    %v952 = vadd.f32 0.0, %v951
    %v953 = vpop.f32.mrb[0].mxu0
    %v954 = vpop.f32.mrb[0].mxu0
    %v955 = vadd.f32 0.0, %v954
    %v956 = vpop.f32.mrb[0].mxu0
    %957 = vdwg.mxu0
    %v959 = vsel %vm508, %v704, 0
    %v962 = vsel %vm104, %v358, 0
    %964 = vmatprep.subr.bf16.mxu0 0
    %965 = vmatpush1.bf16.msra.mxu0 %v962
    %966 = vmatprep.subr.bf16.mxu0 0
    %967 = vmatpush1.bf16.msra.mxu0 0
    %968 = vmatprep.subr.bf16.mxu0 0
    %969 = vmatpush1.bf16.msra.mxu0 0
    %970 = vmatprep.subr.bf16.mxu0 0
    %971 = vmatpush1.bf16.msra.mxu0 0
    %972 = vmatprep.subr.bf16.mxu0 0
    %973 = vmatpush1.bf16.msra.mxu0 0
    %974 = vmatprep.subr.bf16.mxu0 0
    %975 = vmatpush1.bf16.msra.mxu0 0
    %976 = vmatprep.subr.bf16.mxu0 0
    %977 = vmatpush1.bf16.msra.mxu0 0
    %978 = vmatprep.subr.bf16.mxu0 0
    %979 = vmatpush1.bf16.msra.mxu0 0
    %980 = vmatprep.subr.bf16.mxu0 0
    %981 = vmatpush1.bf16.msra.mxu0 0
    %982 = vmatprep.subr.bf16.mxu0 0
    %983 = vmatpush1.bf16.msra.mxu0 0
    %984 = vmatprep.subr.bf16.mxu0 0
    %985 = vmatpush1.bf16.msra.mxu0 0
    %986 = vmatprep.subr.bf16.mxu0 0
    %987 = vmatpush1.bf16.msra.mxu0 0
    %988 = vmatprep.subr.bf16.mxu0 0
    %989 = vmatpush1.bf16.msra.mxu0 0
    %990 = vmatprep.subr.bf16.mxu0 0
    %991 = vmatpush1.bf16.msra.mxu0 0
    %992 = vmatprep.subr.bf16.mxu0 0
    %993 = vmatpush1.bf16.msra.mxu0 0
    %994 = vmatprep.subr.bf16.mxu0 0
    %995 = vmatpush1.bf16.msra.mxu0 0
    %996 = vmatprep.mubr.bf16.mxu0 0
    %997 = vmatmul.mubr.bf16.gmra.mrb[0].mxu0 %v959
    %v998 = vpop.f32.mrb[0].mxu0
    %v999 = vadd.f32 %v952, %v998
    %v1000 = vpop.f32.mrb[0].mxu0
    %v1001 = vpop.f32.mrb[0].mxu0
    %v1002 = vadd.f32 %v955, %v1001
    %v1003 = vpop.f32.mrb[0].mxu0
    %1004 = vdwg.mxu0
    %1005 = vrot.lane.b32.xlu0 %v489, 120
    %v1006 = vpop.permute.xlu0 %1005
    %1007 = vrot.lane.b32.xlu0 %v492, 120
    %v1008 = vpop.permute.xlu0 %1007
    %1009 = vrot.lane.b32.xlu0 %v489, 104
    %v1010 = vpop.permute.xlu0 %1009
    %1011 = vrot.lane.b32.xlu0 %v492, 104
    %v1012 = vpop.permute.xlu0 %1011
    %v1013 = vsel %vm508, %v1006, 0
    %v1015 = vsel %vm508, %v1008, 0
    %v1017 = vsel %vm508, %v1010, 0
    %v1019 = vsel %vm508, %v1012, 0
    %1021 = vmatprep.subr.mxu0 0.0
    %1022 = vmatpush1.xpose.msra.mxu0 %v1017
    %1023 = vmatprep.subr.mxu0 0.0
    %1024 = vmatpush1.xpose.msra.mxu0 %v1019
    %1025 = vmatprep.subr.mxu0 0.0
    %1026 = vmatpush1.xpose.msra.mxu0 0.0
    %1027 = vmatprep.subr.mxu0 0.0
    %1028 = vmatpush1.xpose.msra.mxu0 0.0
    %1029 = vmatprep.subr.mxu0 0.0
    %1030 = vmatpush1.xpose.msra.mxu0 0.0
    %1031 = vmatprep.subr.mxu0 0.0
    %1032 = vmatpush1.xpose.msra.mxu0 0.0
    %1033 = vmatprep.subr.mxu0 0.0
    %1034 = vmatpush1.xpose.msra.mxu0 0.0
    %1035 = vmatprep.subr.mxu0 0.0
    %1036 = vmatpush1.xpose.msra.mxu0 0.0
    %1037 = vmatprep.subr.mxu0 0.0
    %1038 = vmatpush1.xpose.msra.mxu0 0.0
    %1039 = vmatprep.subr.mxu0 0.0
    %1040 = vmatpush1.xpose.msra.mxu0 0.0
    %1041 = vmatprep.subr.mxu0 0.0
    %1042 = vmatpush1.xpose.msra.mxu0 0.0
    %1043 = vmatprep.subr.mxu0 0.0
    %1044 = vmatpush1.xpose.msra.mxu0 0.0
    %1045 = vmatprep.subr.mxu0 0.0
    %1046 = vmatpush1.xpose.msra.mxu0 0.0
    %1047 = vmatprep.subr.mxu0 0.0
    %1048 = vmatpush1.xpose.msra.mxu0 0.0
    %1049 = vmatprep.subr.mxu0 0.0
    %1050 = vmatpush1.xpose.msra.mxu0 0.0
    %1051 = vmatprep.subr.mxu0 0.0
    %1052 = vmatpush1.xpose.msra.mxu0 0.0
    %1053 = vmatprep.subr.mxu0 0.0
    %1054 = vmatpush1.xpose.msra.mxu0 0.0
    %1055 = vmatprep.subr.mxu0 0.0
    %1056 = vmatpush1.xpose.msra.mxu0 0.0
    %1057 = vmatprep.subr.mxu0 0.0
    %1058 = vmatpush1.xpose.msra.mxu0 0.0
    %1059 = vmatprep.subr.mxu0 0.0
    %1060 = vmatpush1.xpose.msra.mxu0 0.0
    %1061 = vmatprep.subr.mxu0 0.0
    %1062 = vmatpush1.xpose.msra.mxu0 0.0
    %1063 = vmatprep.subr.mxu0 0.0
    %1064 = vmatpush1.xpose.msra.mxu0 0.0
    %1065 = vmatprep.subr.mxu0 0.0
    %1066 = vmatpush1.xpose.msra.mxu0 0.0
    %1067 = vmatprep.subr.mxu0 0.0
    %1068 = vmatpush1.xpose.msra.mxu0 0.0
    %1069 = vmatprep.subr.mxu0 0.0
    %1070 = vmatpush1.xpose.msra.mxu0 0.0
    %1071 = vmatprep.subr.mxu0 0.0
    %1072 = vmatpush1.xpose.msra.mxu0 0.0
    %1073 = vmatprep.subr.mxu0 0.0
    %1074 = vmatpush1.xpose.msra.mxu0 0.0
    %1075 = vmatprep.subr.mxu0 0.0
    %1076 = vmatpush1.xpose.msra.mxu0 0.0
    %1077 = vmatprep.subr.mxu0 0.0
    %1078 = vmatpush1.xpose.msra.mxu0 0.0
    %1079 = vmatprep.subr.mxu0 0.0
    %1080 = vmatpush1.xpose.msra.mxu0 0.0
    %1081 = vmatprep.subr.mxu0 0.0
    %1082 = vmatpush1.xpose.msra.mxu0 0.0
    %1083 = vmatprep.subr.mxu0 0.0
    %1084 = vmatpush1.xpose.msra.mxu0 0.0
    %1085 = vmatprep.mubr.f32.mxu0 0.0
    %1086 = vmatmul.mubr.f32.gmra.mrb[0].mxu0 %v1013
    %v1087 = vpop.f32.mrb[0].mxu0
    %v1088 = vadd.f32 0.0, %v1087
    %v1089 = vpop.f32.mrb[0].mxu0
    %1090 = vmatprep.mubr.f32.mxu0 0.0
    %1091 = vmatmul.mubr.f32.gmra.mrb[0].mxu0 %v1015
    %v1092 = vpop.f32.mrb[0].mxu0
    %v1093 = vadd.f32 0.0, %v1092
    %v1094 = vpop.f32.mrb[0].mxu0
    %1095 = vdwg.mxu0
    %v1096 = vsel %vm592, %v1088, -inf
    %1097 = vmax.xlane.f32.xlu0 %v1096
    %v1098 = vpop.xlane.xlu0 %1097
    %v1099 = vsel %vm596, %v1093, -inf
    %1100 = vmax.xlane.f32.xlu0 %v1099
    %v1101 = vpop.xlane.xlu0 %1100
    %v1102 = vsub.f32 %v1088, %v1098
    %v1103 = vsub.f32 %v1093, %v1101
    %v1104 = vmul.f32 %v1102, 1.442695
    %v1105 = vpow.pop %v1104
    %v1106 = vmul.f32 %v1103, 1.442695
    %v1107 = vpow.pop %v1106
    %v1108 = vsel %vm592, %v1105, 0.0
    %1109 = vadd.xlane.f32.xlu0 %v1108
    %v1110 = vpop.xlane.xlu0 %1109
    %v1111 = vsel %vm596, %v1107, 0.0
    %1112 = vadd.xlane.f32.xlu0 %v1111
    %v1113 = vpop.xlane.xlu0 %1112
    %v1114 = vrcp.pop %v1110
    %v1115 = vrcp.pop %v1113
    %v1116 = vmul.f32 %v1105, %v1114
    %v1117 = vmul.f32 %v1107, %v1115
    %1118 = vrot.lane.b32.xlu0 %v489, 88
    %v1119 = vpop.permute.xlu0 %1118
    %1120 = vrot.lane.b32.xlu0 %v492, 88
    %v1121 = vpop.permute.xlu0 %1120
    %v1124 = vsel %vm592, %v1116, 0
    %v1127 = vsel %vm592, %v1117, 0
    %v1129 = vsel %vm211, %v1121, 0
    %1131 = vmatprep.subr.mxu0 0.0
    %1132 = vmatpush1.msra.mxu0 %v1119
    %1133 = vmatprep.subr.mxu0 0.0
    %1134 = vmatpush1.msra.mxu0 %v1129
    %1135 = vmatprep.subr.mxu0 0.0
    %1136 = vmatpush1.msra.mxu0 0.0
    %1137 = vmatprep.subr.mxu0 0.0
    %1138 = vmatpush1.msra.mxu0 0.0
    %1139 = vmatprep.subr.mxu0 0.0
    %1140 = vmatpush1.msra.mxu0 0.0
    %1141 = vmatprep.subr.mxu0 0.0
    %1142 = vmatpush1.msra.mxu0 0.0
    %1143 = vmatprep.subr.mxu0 0.0
    %1144 = vmatpush1.msra.mxu0 0.0
    %1145 = vmatprep.subr.mxu0 0.0
    %1146 = vmatpush1.msra.mxu0 0.0
    %1147 = vmatprep.subr.mxu0 0.0
    %1148 = vmatpush1.msra.mxu0 0.0
    %1149 = vmatprep.subr.mxu0 0.0
    %1150 = vmatpush1.msra.mxu0 0.0
    %1151 = vmatprep.subr.mxu0 0.0
    %1152 = vmatpush1.msra.mxu0 0.0
    %1153 = vmatprep.subr.mxu0 0.0
    %1154 = vmatpush1.msra.mxu0 0.0
    %1155 = vmatprep.subr.mxu0 0.0
    %1156 = vmatpush1.msra.mxu0 0.0
    %1157 = vmatprep.subr.mxu0 0.0
    %1158 = vmatpush1.msra.mxu0 0.0
    %1159 = vmatprep.subr.mxu0 0.0
    %1160 = vmatpush1.msra.mxu0 0.0
    %1161 = vmatprep.subr.mxu0 0.0
    %1162 = vmatpush1.msra.mxu0 0.0
    %1163 = vmatprep.subr.mxu0 0.0
    %1164 = vmatpush1.msra.mxu0 0.0
    %1165 = vmatprep.subr.mxu0 0.0
    %1166 = vmatpush1.msra.mxu0 0.0
    %1167 = vmatprep.subr.mxu0 0.0
    %1168 = vmatpush1.msra.mxu0 0.0
    %1169 = vmatprep.subr.mxu0 0.0
    %1170 = vmatpush1.msra.mxu0 0.0
    %1171 = vmatprep.subr.mxu0 0.0
    %1172 = vmatpush1.msra.mxu0 0.0
    %1173 = vmatprep.subr.mxu0 0.0
    %1174 = vmatpush1.msra.mxu0 0.0
    %1175 = vmatprep.subr.mxu0 0.0
    %1176 = vmatpush1.msra.mxu0 0.0
    %1177 = vmatprep.subr.mxu0 0.0
    %1178 = vmatpush1.msra.mxu0 0.0
    %1179 = vmatprep.subr.mxu0 0.0
    %1180 = vmatpush1.msra.mxu0 0.0
    %1181 = vmatprep.subr.mxu0 0.0
    %1182 = vmatpush1.msra.mxu0 0.0
    %1183 = vmatprep.subr.mxu0 0.0
    %1184 = vmatpush1.msra.mxu0 0.0
    %1185 = vmatprep.subr.mxu0 0.0
    %1186 = vmatpush1.msra.mxu0 0.0
    %1187 = vmatprep.subr.mxu0 0.0
    %1188 = vmatpush1.msra.mxu0 0.0
    %1189 = vmatprep.subr.mxu0 0.0
    %1190 = vmatpush1.msra.mxu0 0.0
    %1191 = vmatprep.subr.mxu0 0.0
    %1192 = vmatpush1.msra.mxu0 0.0
    %1193 = vmatprep.subr.mxu0 0.0
    %1194 = vmatpush1.msra.mxu0 0.0
    %1195 = vmatprep.mubr.f32.mxu0 0.0
    %1196 = vmatmul.mubr.f32.gmra.mrb[0].mxu0 %v1124
    %v1197 = vpop.f32.mrb[0].mxu0
    %v1198 = vadd.f32 0.0, %v1197
    %v1199 = vpop.f32.mrb[0].mxu0
    %1200 = vmatprep.mubr.f32.mxu0 0.0
    %1201 = vmatmul.mubr.f32.gmra.mrb[0].mxu0 %v1127
    %v1202 = vpop.f32.mrb[0].mxu0
    %v1203 = vadd.f32 0.0, %v1202
    %v1204 = vpop.f32.mrb[0].mxu0
    %1205 = vdwg.mxu0
    %v1206 = vpack.c.bf16 %v1203, %v1198
    %v1208 = vsel %vm508, %v1206, 0
    %v1211 = vsel %vm104, %v359, 0
    %1213 = vmatprep.subr.bf16.mxu0 0
    %1214 = vmatpush1.bf16.msra.mxu0 %v1211
    %1215 = vmatprep.subr.bf16.mxu0 0
    %1216 = vmatpush1.bf16.msra.mxu0 0
    %1217 = vmatprep.subr.bf16.mxu0 0
    %1218 = vmatpush1.bf16.msra.mxu0 0
    %1219 = vmatprep.subr.bf16.mxu0 0
    %1220 = vmatpush1.bf16.msra.mxu0 0
    %1221 = vmatprep.subr.bf16.mxu0 0
    %1222 = vmatpush1.bf16.msra.mxu0 0
    %1223 = vmatprep.subr.bf16.mxu0 0
    %1224 = vmatpush1.bf16.msra.mxu0 0
    %1225 = vmatprep.subr.bf16.mxu0 0
    %1226 = vmatpush1.bf16.msra.mxu0 0
    %1227 = vmatprep.subr.bf16.mxu0 0
    %1228 = vmatpush1.bf16.msra.mxu0 0
    %1229 = vmatprep.subr.bf16.mxu0 0
    %1230 = vmatpush1.bf16.msra.mxu0 0
    %1231 = vmatprep.subr.bf16.mxu0 0
    %1232 = vmatpush1.bf16.msra.mxu0 0
    %1233 = vmatprep.subr.bf16.mxu0 0
    %1234 = vmatpush1.bf16.msra.mxu0 0
    %1235 = vmatprep.subr.bf16.mxu0 0
    %1236 = vmatpush1.bf16.msra.mxu0 0
    %1237 = vmatprep.subr.bf16.mxu0 0
    %1238 = vmatpush1.bf16.msra.mxu0 0
    %1239 = vmatprep.subr.bf16.mxu0 0
    %1240 = vmatpush1.bf16.msra.mxu0 0
    %1241 = vmatprep.subr.bf16.mxu0 0
    %1242 = vmatpush1.bf16.msra.mxu0 0
    %1243 = vmatprep.subr.bf16.mxu0 0
    %1244 = vmatpush1.bf16.msra.mxu0 0
    %1245 = vmatprep.mubr.bf16.mxu0 0
    %1246 = vmatmul.mubr.bf16.gmra.mrb[0].mxu0 %v1208
    %v1247 = vpop.f32.mrb[0].mxu0
    %v1248 = vadd.f32 0.0, %v1247
    %v1249 = vpop.f32.mrb[0].mxu0
    %v1250 = vpop.f32.mrb[0].mxu0
    %v1251 = vadd.f32 0.0, %v1250
    %v1252 = vpop.f32.mrb[0].mxu0
    %1253 = vdwg.mxu0
    %v1254 = vadd.f32 %v999, %v1248
    %v1255 = vadd.f32 %v1002, %v1251
    %1256 = vrot.lane.b32.xlu0 %v489, 116
    %v1257 = vpop.permute.xlu0 %1256
    %1258 = vrot.lane.b32.xlu0 %v492, 116
    %v1259 = vpop.permute.xlu0 %1258
    %1260 = vrot.lane.b32.xlu0 %v489, 100
    %v1261 = vpop.permute.xlu0 %1260
    %1262 = vrot.lane.b32.xlu0 %v492, 100
    %v1263 = vpop.permute.xlu0 %1262
    %v1264 = vsel %vm508, %v1257, 0
    %v1266 = vsel %vm508, %v1259, 0
    %v1268 = vsel %vm508, %v1261, 0
    %v1270 = vsel %vm508, %v1263, 0
    %1272 = vmatprep.subr.mxu0 0.0
    %1273 = vmatpush1.xpose.msra.mxu0 %v1268
    %1274 = vmatprep.subr.mxu0 0.0
    %1275 = vmatpush1.xpose.msra.mxu0 %v1270
    %1276 = vmatprep.subr.mxu0 0.0
    %1277 = vmatpush1.xpose.msra.mxu0 0.0
    %1278 = vmatprep.subr.mxu0 0.0
    %1279 = vmatpush1.xpose.msra.mxu0 0.0
    %1280 = vmatprep.subr.mxu0 0.0
    %1281 = vmatpush1.xpose.msra.mxu0 0.0
    %1282 = vmatprep.subr.mxu0 0.0
    %1283 = vmatpush1.xpose.msra.mxu0 0.0
    %1284 = vmatprep.subr.mxu0 0.0
    %1285 = vmatpush1.xpose.msra.mxu0 0.0
    %1286 = vmatprep.subr.mxu0 0.0
    %1287 = vmatpush1.xpose.msra.mxu0 0.0
    %1288 = vmatprep.subr.mxu0 0.0
    %1289 = vmatpush1.xpose.msra.mxu0 0.0
    %1290 = vmatprep.subr.mxu0 0.0
    %1291 = vmatpush1.xpose.msra.mxu0 0.0
    %1292 = vmatprep.subr.mxu0 0.0
    %1293 = vmatpush1.xpose.msra.mxu0 0.0
    %1294 = vmatprep.subr.mxu0 0.0
    %1295 = vmatpush1.xpose.msra.mxu0 0.0
    %1296 = vmatprep.subr.mxu0 0.0
    %1297 = vmatpush1.xpose.msra.mxu0 0.0
    %1298 = vmatprep.subr.mxu0 0.0
    %1299 = vmatpush1.xpose.msra.mxu0 0.0
    %1300 = vmatprep.subr.mxu0 0.0
    %1301 = vmatpush1.xpose.msra.mxu0 0.0
    %1302 = vmatprep.subr.mxu0 0.0
    %1303 = vmatpush1.xpose.msra.mxu0 0.0
    %1304 = vmatprep.subr.mxu0 0.0
    %1305 = vmatpush1.xpose.msra.mxu0 0.0
    %1306 = vmatprep.subr.mxu0 0.0
    %1307 = vmatpush1.xpose.msra.mxu0 0.0
    %1308 = vmatprep.subr.mxu0 0.0
    %1309 = vmatpush1.xpose.msra.mxu0 0.0
    %1310 = vmatprep.subr.mxu0 0.0
    %1311 = vmatpush1.xpose.msra.mxu0 0.0
    %1312 = vmatprep.subr.mxu0 0.0
    %1313 = vmatpush1.xpose.msra.mxu0 0.0
    %1314 = vmatprep.subr.mxu0 0.0
    %1315 = vmatpush1.xpose.msra.mxu0 0.0
    %1316 = vmatprep.subr.mxu0 0.0
    %1317 = vmatpush1.xpose.msra.mxu0 0.0
    %1318 = vmatprep.subr.mxu0 0.0
    %1319 = vmatpush1.xpose.msra.mxu0 0.0
    %1320 = vmatprep.subr.mxu0 0.0
    %1321 = vmatpush1.xpose.msra.mxu0 0.0
    %1322 = vmatprep.subr.mxu0 0.0
    %1323 = vmatpush1.xpose.msra.mxu0 0.0
    %1324 = vmatprep.subr.mxu0 0.0
    %1325 = vmatpush1.xpose.msra.mxu0 0.0
    %1326 = vmatprep.subr.mxu0 0.0
    %1327 = vmatpush1.xpose.msra.mxu0 0.0
    %1328 = vmatprep.subr.mxu0 0.0
    %1329 = vmatpush1.xpose.msra.mxu0 0.0
    %1330 = vmatprep.subr.mxu0 0.0
    %1331 = vmatpush1.xpose.msra.mxu0 0.0
    %1332 = vmatprep.subr.mxu0 0.0
    %1333 = vmatpush1.xpose.msra.mxu0 0.0
    %1334 = vmatprep.subr.mxu0 0.0
    %1335 = vmatpush1.xpose.msra.mxu0 0.0
    %1336 = vmatprep.mubr.f32.mxu0 0.0
    %1337 = vmatmul.mubr.f32.gmra.mrb[0].mxu0 %v1264
    %v1338 = vpop.f32.mrb[0].mxu0
    %v1339 = vadd.f32 0.0, %v1338
    %v1340 = vpop.f32.mrb[0].mxu0
    %1341 = vmatprep.mubr.f32.mxu0 0.0
    %1342 = vmatmul.mubr.f32.gmra.mrb[0].mxu0 %v1266
    %v1343 = vpop.f32.mrb[0].mxu0
    %v1344 = vadd.f32 0.0, %v1343
    %v1345 = vpop.f32.mrb[0].mxu0
    %1346 = vdwg.mxu0
    %v1347 = vsel %vm592, %v1339, -inf
    %1348 = vmax.xlane.f32.xlu0 %v1347
    %v1349 = vpop.xlane.xlu0 %1348
    %v1350 = vsel %vm596, %v1344, -inf
    %1351 = vmax.xlane.f32.xlu0 %v1350
    %v1352 = vpop.xlane.xlu0 %1351
    %v1353 = vsub.f32 %v1339, %v1349
    %v1354 = vsub.f32 %v1344, %v1352
    %v1355 = vmul.f32 %v1353, 1.442695
    %v1356 = vpow.pop %v1355
    %v1357 = vmul.f32 %v1354, 1.442695
    %v1358 = vpow.pop %v1357
    %v1359 = vsel %vm592, %v1356, 0.0
    %1360 = vadd.xlane.f32.xlu0 %v1359
    %v1361 = vpop.xlane.xlu0 %1360
    %v1362 = vsel %vm596, %v1358, 0.0
    %1363 = vadd.xlane.f32.xlu0 %v1362
    %v1364 = vpop.xlane.xlu0 %1363
    %v1365 = vrcp.pop %v1361
    %v1366 = vrcp.pop %v1364
    %v1367 = vmul.f32 %v1356, %v1365
    %v1368 = vmul.f32 %v1358, %v1366
    %1369 = vrot.lane.b32.xlu0 %v489, 84
    %v1370 = vpop.permute.xlu0 %1369
    %1371 = vrot.lane.b32.xlu0 %v492, 84
    %v1372 = vpop.permute.xlu0 %1371
    %v1375 = vsel %vm592, %v1367, 0
    %v1378 = vsel %vm592, %v1368, 0
    %v1380 = vsel %vm211, %v1372, 0
    %1382 = vmatprep.subr.mxu0 0.0
    %1383 = vmatpush1.msra.mxu0 %v1370
    %1384 = vmatprep.subr.mxu0 0.0
    %1385 = vmatpush1.msra.mxu0 %v1380
    %1386 = vmatprep.subr.mxu0 0.0
    %1387 = vmatpush1.msra.mxu0 0.0
    %1388 = vmatprep.subr.mxu0 0.0
    %1389 = vmatpush1.msra.mxu0 0.0
    %1390 = vmatprep.subr.mxu0 0.0
    %1391 = vmatpush1.msra.mxu0 0.0
    %1392 = vmatprep.subr.mxu0 0.0
    %1393 = vmatpush1.msra.mxu0 0.0
    %1394 = vmatprep.subr.mxu0 0.0
    %1395 = vmatpush1.msra.mxu0 0.0
    %1396 = vmatprep.subr.mxu0 0.0
    %1397 = vmatpush1.msra.mxu0 0.0
    %1398 = vmatprep.subr.mxu0 0.0
    %1399 = vmatpush1.msra.mxu0 0.0
    %1400 = vmatprep.subr.mxu0 0.0
    %1401 = vmatpush1.msra.mxu0 0.0
    %1402 = vmatprep.subr.mxu0 0.0
    %1403 = vmatpush1.msra.mxu0 0.0
    %1404 = vmatprep.subr.mxu0 0.0
    %1405 = vmatpush1.msra.mxu0 0.0
    %1406 = vmatprep.subr.mxu0 0.0
    %1407 = vmatpush1.msra.mxu0 0.0
    %1408 = vmatprep.subr.mxu0 0.0
    %1409 = vmatpush1.msra.mxu0 0.0
    %1410 = vmatprep.subr.mxu0 0.0
    %1411 = vmatpush1.msra.mxu0 0.0
    %1412 = vmatprep.subr.mxu0 0.0
    %1413 = vmatpush1.msra.mxu0 0.0
    %1414 = vmatprep.subr.mxu0 0.0
    %1415 = vmatpush1.msra.mxu0 0.0
    %1416 = vmatprep.subr.mxu0 0.0
    %1417 = vmatpush1.msra.mxu0 0.0
    %1418 = vmatprep.subr.mxu0 0.0
    %1419 = vmatpush1.msra.mxu0 0.0
    %1420 = vmatprep.subr.mxu0 0.0
    %1421 = vmatpush1.msra.mxu0 0.0
    %1422 = vmatprep.subr.mxu0 0.0
    %1423 = vmatpush1.msra.mxu0 0.0
    %1424 = vmatprep.subr.mxu0 0.0
    %1425 = vmatpush1.msra.mxu0 0.0
    %1426 = vmatprep.subr.mxu0 0.0
    %1427 = vmatpush1.msra.mxu0 0.0
    %1428 = vmatprep.subr.mxu0 0.0
    %1429 = vmatpush1.msra.mxu0 0.0
    %1430 = vmatprep.subr.mxu0 0.0
    %1431 = vmatpush1.msra.mxu0 0.0
    %1432 = vmatprep.subr.mxu0 0.0
    %1433 = vmatpush1.msra.mxu0 0.0
    %1434 = vmatprep.subr.mxu0 0.0
    %1435 = vmatpush1.msra.mxu0 0.0
    %1436 = vmatprep.subr.mxu0 0.0
    %1437 = vmatpush1.msra.mxu0 0.0
    %1438 = vmatprep.subr.mxu0 0.0
    %1439 = vmatpush1.msra.mxu0 0.0
    %1440 = vmatprep.subr.mxu0 0.0
    %1441 = vmatpush1.msra.mxu0 0.0
    %1442 = vmatprep.subr.mxu0 0.0
    %1443 = vmatpush1.msra.mxu0 0.0
    %1444 = vmatprep.subr.mxu0 0.0
    %1445 = vmatpush1.msra.mxu0 0.0
    %1446 = vmatprep.mubr.f32.mxu0 0.0
    %1447 = vmatmul.mubr.f32.gmra.mrb[0].mxu0 %v1375
    %v1448 = vpop.f32.mrb[0].mxu0
    %v1449 = vadd.f32 0.0, %v1448
    %v1450 = vpop.f32.mrb[0].mxu0
    %1451 = vmatprep.mubr.f32.mxu0 0.0
    %1452 = vmatmul.mubr.f32.gmra.mrb[0].mxu0 %v1378
    %v1453 = vpop.f32.mrb[0].mxu0
    %v1454 = vadd.f32 0.0, %v1453
    %v1455 = vpop.f32.mrb[0].mxu0
    %1456 = vdwg.mxu0
    %v1457 = vpack.c.bf16 %v1454, %v1449
    %v1459 = vunpack.c.l.b16 %v359
    %v1460 = vpack.c.b16 %v1459, %v1459
    %v1461 = vrot.slane %v1460, 2
    %v1463 = vsel %vm508, %v1457, 0
    %v1466 = vsel %vm104, %v1461, 0
    %1468 = vmatprep.subr.bf16.mxu0 0
    %1469 = vmatpush1.bf16.msra.mxu0 %v1466
    %1470 = vmatprep.subr.bf16.mxu0 0
    %1471 = vmatpush1.bf16.msra.mxu0 0
    %1472 = vmatprep.subr.bf16.mxu0 0
    %1473 = vmatpush1.bf16.msra.mxu0 0
    %1474 = vmatprep.subr.bf16.mxu0 0
    %1475 = vmatpush1.bf16.msra.mxu0 0
    %1476 = vmatprep.subr.bf16.mxu0 0
    %1477 = vmatpush1.bf16.msra.mxu0 0
    %1478 = vmatprep.subr.bf16.mxu0 0
    %1479 = vmatpush1.bf16.msra.mxu0 0
    %1480 = vmatprep.subr.bf16.mxu0 0
    %1481 = vmatpush1.bf16.msra.mxu0 0
    %1482 = vmatprep.subr.bf16.mxu0 0
    %1483 = vmatpush1.bf16.msra.mxu0 0
    %1484 = vmatprep.subr.bf16.mxu0 0
    %1485 = vmatpush1.bf16.msra.mxu0 0
    %1486 = vmatprep.subr.bf16.mxu0 0
    %1487 = vmatpush1.bf16.msra.mxu0 0
    %1488 = vmatprep.subr.bf16.mxu0 0
    %1489 = vmatpush1.bf16.msra.mxu0 0
    %1490 = vmatprep.subr.bf16.mxu0 0
    %1491 = vmatpush1.bf16.msra.mxu0 0
    %1492 = vmatprep.subr.bf16.mxu0 0
    %1493 = vmatpush1.bf16.msra.mxu0 0
    %1494 = vmatprep.subr.bf16.mxu0 0
    %1495 = vmatpush1.bf16.msra.mxu0 0
    %1496 = vmatprep.subr.bf16.mxu0 0
    %1497 = vmatpush1.bf16.msra.mxu0 0
    %1498 = vmatprep.subr.bf16.mxu0 0
    %1499 = vmatpush1.bf16.msra.mxu0 0
    %1500 = vmatprep.mubr.bf16.mxu0 0
    %1501 = vmatmul.mubr.bf16.gmra.mrb[0].mxu0 %v1463
    %v1502 = vpop.f32.mrb[0].mxu0
    %v1503 = vadd.f32 0.0, %v1502
    %v1504 = vpop.f32.mrb[0].mxu0
    %v1505 = vpop.f32.mrb[0].mxu0
    %v1506 = vadd.f32 0.0, %v1505
    %v1507 = vpop.f32.mrb[0].mxu0
    %1508 = vdwg.mxu0
    %v1509 = vadd.f32 %v1254, %v1503
    %v1510 = vadd.f32 %v1255, %v1506
    %v1512 = vrot.slane %v492, 1
    %v1513 = vrot.slane %v497, 1
    %v1514 = vsel %vm222, %v1512, %v1513
    %1515 = vrot.lane.b32.xlu0 %v1514, 112
    %v1516 = vpop.permute.xlu0 %1515
    %1517 = vrot.lane.b32.xlu0 %v1513, 112
    %v1518 = vpop.permute.xlu0 %1517
    %v1519 = vsel %vm508, %v1514, 0
    %v1521 = vsel %vm508, %v1513, 0
    %v1523 = vsel %vm508, %v1516, 0
    %v1525 = vsel %vm508, %v1518, 0
    %1527 = vmatprep.subr.mxu0 0.0
    %1528 = vmatpush1.xpose.msra.mxu0 %v1523
    %1529 = vmatprep.subr.mxu0 0.0
    %1530 = vmatpush1.xpose.msra.mxu0 %v1525
    %1531 = vmatprep.subr.mxu0 0.0
    %1532 = vmatpush1.xpose.msra.mxu0 0.0
    %1533 = vmatprep.subr.mxu0 0.0
    %1534 = vmatpush1.xpose.msra.mxu0 0.0
    %1535 = vmatprep.subr.mxu0 0.0
    %1536 = vmatpush1.xpose.msra.mxu0 0.0
    %1537 = vmatprep.subr.mxu0 0.0
    %1538 = vmatpush1.xpose.msra.mxu0 0.0
    %1539 = vmatprep.subr.mxu0 0.0
    %1540 = vmatpush1.xpose.msra.mxu0 0.0
    %1541 = vmatprep.subr.mxu0 0.0
    %1542 = vmatpush1.xpose.msra.mxu0 0.0
    %1543 = vmatprep.subr.mxu0 0.0
    %1544 = vmatpush1.xpose.msra.mxu0 0.0
    %1545 = vmatprep.subr.mxu0 0.0
    %1546 = vmatpush1.xpose.msra.mxu0 0.0
    %1547 = vmatprep.subr.mxu0 0.0
    %1548 = vmatpush1.xpose.msra.mxu0 0.0
    %1549 = vmatprep.subr.mxu0 0.0
    %1550 = vmatpush1.xpose.msra.mxu0 0.0
    %1551 = vmatprep.subr.mxu0 0.0
    %1552 = vmatpush1.xpose.msra.mxu0 0.0
    %1553 = vmatprep.subr.mxu0 0.0
    %1554 = vmatpush1.xpose.msra.mxu0 0.0
    %1555 = vmatprep.subr.mxu0 0.0
    %1556 = vmatpush1.xpose.msra.mxu0 0.0
    %1557 = vmatprep.subr.mxu0 0.0
    %1558 = vmatpush1.xpose.msra.mxu0 0.0
    %1559 = vmatprep.subr.mxu0 0.0
    %1560 = vmatpush1.xpose.msra.mxu0 0.0
    %1561 = vmatprep.subr.mxu0 0.0
    %1562 = vmatpush1.xpose.msra.mxu0 0.0
    %1563 = vmatprep.subr.mxu0 0.0
    %1564 = vmatpush1.xpose.msra.mxu0 0.0
    %1565 = vmatprep.subr.mxu0 0.0
    %1566 = vmatpush1.xpose.msra.mxu0 0.0
    %1567 = vmatprep.subr.mxu0 0.0
    %1568 = vmatpush1.xpose.msra.mxu0 0.0
    %1569 = vmatprep.subr.mxu0 0.0
    %1570 = vmatpush1.xpose.msra.mxu0 0.0
    %1571 = vmatprep.subr.mxu0 0.0
    %1572 = vmatpush1.xpose.msra.mxu0 0.0
    %1573 = vmatprep.subr.mxu0 0.0
    %1574 = vmatpush1.xpose.msra.mxu0 0.0
    %1575 = vmatprep.subr.mxu0 0.0
    %1576 = vmatpush1.xpose.msra.mxu0 0.0
    %1577 = vmatprep.subr.mxu0 0.0
    %1578 = vmatpush1.xpose.msra.mxu0 0.0
    %1579 = vmatprep.subr.mxu0 0.0
    %1580 = vmatpush1.xpose.msra.mxu0 0.0
    %1581 = vmatprep.subr.mxu0 0.0
    %1582 = vmatpush1.xpose.msra.mxu0 0.0
    %1583 = vmatprep.subr.mxu0 0.0
    %1584 = vmatpush1.xpose.msra.mxu0 0.0
    %1585 = vmatprep.subr.mxu0 0.0
    %1586 = vmatpush1.xpose.msra.mxu0 0.0
    %1587 = vmatprep.subr.mxu0 0.0
    %1588 = vmatpush1.xpose.msra.mxu0 0.0
    %1589 = vmatprep.subr.mxu0 0.0
    %1590 = vmatpush1.xpose.msra.mxu0 0.0
    %1591 = vmatprep.mubr.f32.mxu0 0.0
    %1592 = vmatmul.mubr.f32.gmra.mrb[0].mxu0 %v1519
    %v1593 = vpop.f32.mrb[0].mxu0
    %v1594 = vadd.f32 0.0, %v1593
    %v1595 = vpop.f32.mrb[0].mxu0
    %1596 = vmatprep.mubr.f32.mxu0 0.0
    %1597 = vmatmul.mubr.f32.gmra.mrb[0].mxu0 %v1521
    %v1598 = vpop.f32.mrb[0].mxu0
    %v1599 = vadd.f32 0.0, %v1598
    %v1600 = vpop.f32.mrb[0].mxu0
    %1601 = vdwg.mxu0
    %v1602 = vsel %vm592, %v1594, -inf
    %1603 = vmax.xlane.f32.xlu0 %v1602
    %v1604 = vpop.xlane.xlu0 %1603
    %v1605 = vsel %vm596, %v1599, -inf
    %1606 = vmax.xlane.f32.xlu0 %v1605
    %v1607 = vpop.xlane.xlu0 %1606
    %v1608 = vsub.f32 %v1594, %v1604
    %v1609 = vsub.f32 %v1599, %v1607
    %v1610 = vmul.f32 %v1608, 1.442695
    %v1611 = vpow.pop %v1610
    %v1612 = vmul.f32 %v1609, 1.442695
    %v1613 = vpow.pop %v1612
    %v1614 = vsel %vm592, %v1611, 0.0
    %1615 = vadd.xlane.f32.xlu0 %v1614
    %v1616 = vpop.xlane.xlu0 %1615
    %v1617 = vsel %vm596, %v1613, 0.0
    %1618 = vadd.xlane.f32.xlu0 %v1617
    %v1619 = vpop.xlane.xlu0 %1618
    %v1620 = vrcp.pop %v1616
    %v1621 = vrcp.pop %v1619
    %v1622 = vmul.f32 %v1611, %v1620
    %v1623 = vmul.f32 %v1613, %v1621
    %1624 = vrot.lane.b32.xlu0 %v1514, 96
    %v1625 = vpop.permute.xlu0 %1624
    %1626 = vrot.lane.b32.xlu0 %v1513, 96
    %v1627 = vpop.permute.xlu0 %1626
    %v1630 = vsel %vm592, %v1622, 0
    %v1633 = vsel %vm592, %v1623, 0
    %v1635 = vsel %vm211, %v1627, 0
    %1637 = vmatprep.subr.mxu0 0.0
    %1638 = vmatpush1.msra.mxu0 %v1625
    %1639 = vmatprep.subr.mxu0 0.0
    %1640 = vmatpush1.msra.mxu0 %v1635
    %1641 = vmatprep.subr.mxu0 0.0
    %1642 = vmatpush1.msra.mxu0 0.0
    %1643 = vmatprep.subr.mxu0 0.0
    %1644 = vmatpush1.msra.mxu0 0.0
    %1645 = vmatprep.subr.mxu0 0.0
    %1646 = vmatpush1.msra.mxu0 0.0
    %1647 = vmatprep.subr.mxu0 0.0
    %1648 = vmatpush1.msra.mxu0 0.0
    %1649 = vmatprep.subr.mxu0 0.0
    %1650 = vmatpush1.msra.mxu0 0.0
    %1651 = vmatprep.subr.mxu0 0.0
    %1652 = vmatpush1.msra.mxu0 0.0
    %1653 = vmatprep.subr.mxu0 0.0
    %1654 = vmatpush1.msra.mxu0 0.0
    %1655 = vmatprep.subr.mxu0 0.0
    %1656 = vmatpush1.msra.mxu0 0.0
    %1657 = vmatprep.subr.mxu0 0.0
    %1658 = vmatpush1.msra.mxu0 0.0
    %1659 = vmatprep.subr.mxu0 0.0
    %1660 = vmatpush1.msra.mxu0 0.0
    %1661 = vmatprep.subr.mxu0 0.0
    %1662 = vmatpush1.msra.mxu0 0.0
    %1663 = vmatprep.subr.mxu0 0.0
    %1664 = vmatpush1.msra.mxu0 0.0
    %1665 = vmatprep.subr.mxu0 0.0
    %1666 = vmatpush1.msra.mxu0 0.0
    %1667 = vmatprep.subr.mxu0 0.0
    %1668 = vmatpush1.msra.mxu0 0.0
    %1669 = vmatprep.subr.mxu0 0.0
    %1670 = vmatpush1.msra.mxu0 0.0
    %1671 = vmatprep.subr.mxu0 0.0
    %1672 = vmatpush1.msra.mxu0 0.0
    %1673 = vmatprep.subr.mxu0 0.0
    %1674 = vmatpush1.msra.mxu0 0.0
    %1675 = vmatprep.subr.mxu0 0.0
    %1676 = vmatpush1.msra.mxu0 0.0
    %1677 = vmatprep.subr.mxu0 0.0
    %1678 = vmatpush1.msra.mxu0 0.0
    %1679 = vmatprep.subr.mxu0 0.0
    %1680 = vmatpush1.msra.mxu0 0.0
    %1681 = vmatprep.subr.mxu0 0.0
    %1682 = vmatpush1.msra.mxu0 0.0
    %1683 = vmatprep.subr.mxu0 0.0
    %1684 = vmatpush1.msra.mxu0 0.0
    %1685 = vmatprep.subr.mxu0 0.0
    %1686 = vmatpush1.msra.mxu0 0.0
    %1687 = vmatprep.subr.mxu0 0.0
    %1688 = vmatpush1.msra.mxu0 0.0
    %1689 = vmatprep.subr.mxu0 0.0
    %1690 = vmatpush1.msra.mxu0 0.0
    %1691 = vmatprep.subr.mxu0 0.0
    %1692 = vmatpush1.msra.mxu0 0.0
    %1693 = vmatprep.subr.mxu0 0.0
    %1694 = vmatpush1.msra.mxu0 0.0
    %1695 = vmatprep.subr.mxu0 0.0
    %1696 = vmatpush1.msra.mxu0 0.0
    %1697 = vmatprep.subr.mxu0 0.0
    %1698 = vmatpush1.msra.mxu0 0.0
    %1699 = vmatprep.subr.mxu0 0.0
    %1700 = vmatpush1.msra.mxu0 0.0
    %1701 = vmatprep.mubr.f32.mxu0 0.0
    %1702 = vmatmul.mubr.f32.gmra.mrb[0].mxu0 %v1630
    %v1703 = vpop.f32.mrb[0].mxu0
    %v1704 = vadd.f32 0.0, %v1703
    %v1705 = vpop.f32.mrb[0].mxu0
    %1706 = vmatprep.mubr.f32.mxu0 0.0
    %1707 = vmatmul.mubr.f32.gmra.mrb[0].mxu0 %v1633
    %v1708 = vpop.f32.mrb[0].mxu0
    %v1709 = vadd.f32 0.0, %v1708
    %v1710 = vpop.f32.mrb[0].mxu0
    %1711 = vdwg.mxu0
    %v1712 = vpack.c.bf16 %v1709, %v1704
    %1713 = vrot.lane.b32.xlu0 %v1514, 124
    %v1714 = vpop.permute.xlu0 %1713
    %1715 = vrot.lane.b32.xlu0 %v1513, 124
    %v1716 = vpop.permute.xlu0 %1715
    %1717 = vrot.lane.b32.xlu0 %v1514, 108
    %v1718 = vpop.permute.xlu0 %1717
    %1719 = vrot.lane.b32.xlu0 %v1513, 108
    %v1720 = vpop.permute.xlu0 %1719
    %v1721 = vsel %vm508, %v1714, 0
    %v1723 = vsel %vm508, %v1716, 0
    %v1725 = vsel %vm508, %v1718, 0
    %v1727 = vsel %vm508, %v1720, 0
    %1729 = vmatprep.subr.mxu0 0.0
    %1730 = vmatpush1.xpose.msra.mxu0 %v1725
    %1731 = vmatprep.subr.mxu0 0.0
    %1732 = vmatpush1.xpose.msra.mxu0 %v1727
    %1733 = vmatprep.subr.mxu0 0.0
    %1734 = vmatpush1.xpose.msra.mxu0 0.0
    %1735 = vmatprep.subr.mxu0 0.0
    %1736 = vmatpush1.xpose.msra.mxu0 0.0
    %1737 = vmatprep.subr.mxu0 0.0
    %1738 = vmatpush1.xpose.msra.mxu0 0.0
    %1739 = vmatprep.subr.mxu0 0.0
    %1740 = vmatpush1.xpose.msra.mxu0 0.0
    %1741 = vmatprep.subr.mxu0 0.0
    %1742 = vmatpush1.xpose.msra.mxu0 0.0
    %1743 = vmatprep.subr.mxu0 0.0
    %1744 = vmatpush1.xpose.msra.mxu0 0.0
    %1745 = vmatprep.subr.mxu0 0.0
    %1746 = vmatpush1.xpose.msra.mxu0 0.0
    %1747 = vmatprep.subr.mxu0 0.0
    %1748 = vmatpush1.xpose.msra.mxu0 0.0
    %1749 = vmatprep.subr.mxu0 0.0
    %1750 = vmatpush1.xpose.msra.mxu0 0.0
    %1751 = vmatprep.subr.mxu0 0.0
    %1752 = vmatpush1.xpose.msra.mxu0 0.0
    %1753 = vmatprep.subr.mxu0 0.0
    %1754 = vmatpush1.xpose.msra.mxu0 0.0
    %1755 = vmatprep.subr.mxu0 0.0
    %1756 = vmatpush1.xpose.msra.mxu0 0.0
    %1757 = vmatprep.subr.mxu0 0.0
    %1758 = vmatpush1.xpose.msra.mxu0 0.0
    %1759 = vmatprep.subr.mxu0 0.0
    %1760 = vmatpush1.xpose.msra.mxu0 0.0
    %1761 = vmatprep.subr.mxu0 0.0
    %1762 = vmatpush1.xpose.msra.mxu0 0.0
    %1763 = vmatprep.subr.mxu0 0.0
    %1764 = vmatpush1.xpose.msra.mxu0 0.0
    %1765 = vmatprep.subr.mxu0 0.0
    %1766 = vmatpush1.xpose.msra.mxu0 0.0
    %1767 = vmatprep.subr.mxu0 0.0
    %1768 = vmatpush1.xpose.msra.mxu0 0.0
    %1769 = vmatprep.subr.mxu0 0.0
    %1770 = vmatpush1.xpose.msra.mxu0 0.0
    %1771 = vmatprep.subr.mxu0 0.0
    %1772 = vmatpush1.xpose.msra.mxu0 0.0
    %1773 = vmatprep.subr.mxu0 0.0
    %1774 = vmatpush1.xpose.msra.mxu0 0.0
    %1775 = vmatprep.subr.mxu0 0.0
    %1776 = vmatpush1.xpose.msra.mxu0 0.0
    %1777 = vmatprep.subr.mxu0 0.0
    %1778 = vmatpush1.xpose.msra.mxu0 0.0
    %1779 = vmatprep.subr.mxu0 0.0
    %1780 = vmatpush1.xpose.msra.mxu0 0.0
    %1781 = vmatprep.subr.mxu0 0.0
    %1782 = vmatpush1.xpose.msra.mxu0 0.0
    %1783 = vmatprep.subr.mxu0 0.0
    %1784 = vmatpush1.xpose.msra.mxu0 0.0
    %1785 = vmatprep.subr.mxu0 0.0
    %1786 = vmatpush1.xpose.msra.mxu0 0.0
    %1787 = vmatprep.subr.mxu0 0.0
    %1788 = vmatpush1.xpose.msra.mxu0 0.0
    %1789 = vmatprep.subr.mxu0 0.0
    %1790 = vmatpush1.xpose.msra.mxu0 0.0
    %1791 = vmatprep.subr.mxu0 0.0
    %1792 = vmatpush1.xpose.msra.mxu0 0.0
    %1793 = vmatprep.mubr.f32.mxu0 0.0
    %1794 = vmatmul.mubr.f32.gmra.mrb[0].mxu0 %v1721
    %v1795 = vpop.f32.mrb[0].mxu0
    %v1796 = vadd.f32 0.0, %v1795
    %v1797 = vpop.f32.mrb[0].mxu0
    %1798 = vmatprep.mubr.f32.mxu0 0.0
    %1799 = vmatmul.mubr.f32.gmra.mrb[0].mxu0 %v1723
    %v1800 = vpop.f32.mrb[0].mxu0
    %v1801 = vadd.f32 0.0, %v1800
    %v1802 = vpop.f32.mrb[0].mxu0
    %1803 = vdwg.mxu0
    %v1804 = vsel %vm592, %v1796, -inf
    %1805 = vmax.xlane.f32.xlu0 %v1804
    %v1806 = vpop.xlane.xlu0 %1805
    %v1807 = vsel %vm596, %v1801, -inf
    %1808 = vmax.xlane.f32.xlu0 %v1807
    %v1809 = vpop.xlane.xlu0 %1808
    %v1810 = vsub.f32 %v1796, %v1806
    %v1811 = vsub.f32 %v1801, %v1809
    %v1812 = vmul.f32 %v1810, 1.442695
    %v1813 = vpow.pop %v1812
    %v1814 = vmul.f32 %v1811, 1.442695
    %v1815 = vpow.pop %v1814
    %v1816 = vsel %vm592, %v1813, 0.0
    %1817 = vadd.xlane.f32.xlu0 %v1816
    %v1818 = vpop.xlane.xlu0 %1817
    %v1819 = vsel %vm596, %v1815, 0.0
    %1820 = vadd.xlane.f32.xlu0 %v1819
    %v1821 = vpop.xlane.xlu0 %1820
    %v1822 = vrcp.pop %v1818
    %v1823 = vrcp.pop %v1821
    %v1824 = vmul.f32 %v1813, %v1822
    %v1825 = vmul.f32 %v1815, %v1823
    %1826 = vrot.lane.b32.xlu0 %v1514, 92
    %v1827 = vpop.permute.xlu0 %1826
    %1828 = vrot.lane.b32.xlu0 %v1513, 92
    %v1829 = vpop.permute.xlu0 %1828
    %v1832 = vsel %vm592, %v1824, 0
    %v1835 = vsel %vm592, %v1825, 0
    %v1837 = vsel %vm211, %v1829, 0
    %1839 = vmatprep.subr.mxu0 0.0
    %1840 = vmatpush1.msra.mxu0 %v1827
    %1841 = vmatprep.subr.mxu0 0.0
    %1842 = vmatpush1.msra.mxu0 %v1837
    %1843 = vmatprep.subr.mxu0 0.0
    %1844 = vmatpush1.msra.mxu0 0.0
    %1845 = vmatprep.subr.mxu0 0.0
    %1846 = vmatpush1.msra.mxu0 0.0
    %1847 = vmatprep.subr.mxu0 0.0
    %1848 = vmatpush1.msra.mxu0 0.0
    %1849 = vmatprep.subr.mxu0 0.0
    %1850 = vmatpush1.msra.mxu0 0.0
    %1851 = vmatprep.subr.mxu0 0.0
    %1852 = vmatpush1.msra.mxu0 0.0
    %1853 = vmatprep.subr.mxu0 0.0
    %1854 = vmatpush1.msra.mxu0 0.0
    %1855 = vmatprep.subr.mxu0 0.0
    %1856 = vmatpush1.msra.mxu0 0.0
    %1857 = vmatprep.subr.mxu0 0.0
    %1858 = vmatpush1.msra.mxu0 0.0
    %1859 = vmatprep.subr.mxu0 0.0
    %1860 = vmatpush1.msra.mxu0 0.0
    %1861 = vmatprep.subr.mxu0 0.0
    %1862 = vmatpush1.msra.mxu0 0.0
    %1863 = vmatprep.subr.mxu0 0.0
    %1864 = vmatpush1.msra.mxu0 0.0
    %1865 = vmatprep.subr.mxu0 0.0
    %1866 = vmatpush1.msra.mxu0 0.0
    %1867 = vmatprep.subr.mxu0 0.0
    %1868 = vmatpush1.msra.mxu0 0.0
    %1869 = vmatprep.subr.mxu0 0.0
    %1870 = vmatpush1.msra.mxu0 0.0
    %1871 = vmatprep.subr.mxu0 0.0
    %1872 = vmatpush1.msra.mxu0 0.0
    %1873 = vmatprep.subr.mxu0 0.0
    %1874 = vmatpush1.msra.mxu0 0.0
    %1875 = vmatprep.subr.mxu0 0.0
    %1876 = vmatpush1.msra.mxu0 0.0
    %1877 = vmatprep.subr.mxu0 0.0
    %1878 = vmatpush1.msra.mxu0 0.0
    %1879 = vmatprep.subr.mxu0 0.0
    %1880 = vmatpush1.msra.mxu0 0.0
    %1881 = vmatprep.subr.mxu0 0.0
    %1882 = vmatpush1.msra.mxu0 0.0
    %1883 = vmatprep.subr.mxu0 0.0
    %1884 = vmatpush1.msra.mxu0 0.0
    %1885 = vmatprep.subr.mxu0 0.0
    %1886 = vmatpush1.msra.mxu0 0.0
    %1887 = vmatprep.subr.mxu0 0.0
    %1888 = vmatpush1.msra.mxu0 0.0
    %1889 = vmatprep.subr.mxu0 0.0
    %1890 = vmatpush1.msra.mxu0 0.0
    %1891 = vmatprep.subr.mxu0 0.0
    %1892 = vmatpush1.msra.mxu0 0.0
    %1893 = vmatprep.subr.mxu0 0.0
    %1894 = vmatpush1.msra.mxu0 0.0
    %1895 = vmatprep.subr.mxu0 0.0
    %1896 = vmatpush1.msra.mxu0 0.0
    %1897 = vmatprep.subr.mxu0 0.0
    %1898 = vmatpush1.msra.mxu0 0.0
    %1899 = vmatprep.subr.mxu0 0.0
    %1900 = vmatpush1.msra.mxu0 0.0
    %1901 = vmatprep.subr.mxu0 0.0
    %1902 = vmatpush1.msra.mxu0 0.0
    %1903 = vmatprep.mubr.f32.mxu0 0.0
    %1904 = vmatmul.mubr.f32.gmra.mrb[0].mxu0 %v1832
    %v1905 = vpop.f32.mrb[0].mxu0
    %v1906 = vadd.f32 0.0, %v1905
    %v1907 = vpop.f32.mrb[0].mxu0
    %1908 = vmatprep.mubr.f32.mxu0 0.0
    %1909 = vmatmul.mubr.f32.gmra.mrb[0].mxu0 %v1835
    %v1910 = vpop.f32.mrb[0].mxu0
    %v1911 = vadd.f32 0.0, %v1910
    %v1912 = vpop.f32.mrb[0].mxu0
    %1913 = vdwg.mxu0
    %v1914 = vpack.c.bf16 %v1911, %v1906
    %v1916 = vsel %vm508, %v1914, 0
    %1918 = vmatprep.subr.bf16.mxu0 0
    %1919 = vmatpush1.bf16.msra.mxu0 %v915
    %1920 = vmatprep.subr.bf16.mxu0 0
    %1921 = vmatpush1.bf16.msra.mxu0 0
    %1922 = vmatprep.subr.bf16.mxu0 0
    %1923 = vmatpush1.bf16.msra.mxu0 0
    %1924 = vmatprep.subr.bf16.mxu0 0
    %1925 = vmatpush1.bf16.msra.mxu0 0
    %1926 = vmatprep.subr.bf16.mxu0 0
    %1927 = vmatpush1.bf16.msra.mxu0 0
    %1928 = vmatprep.subr.bf16.mxu0 0
    %1929 = vmatpush1.bf16.msra.mxu0 0
    %1930 = vmatprep.subr.bf16.mxu0 0
    %1931 = vmatpush1.bf16.msra.mxu0 0
    %1932 = vmatprep.subr.bf16.mxu0 0
    %1933 = vmatpush1.bf16.msra.mxu0 0
    %1934 = vmatprep.subr.bf16.mxu0 0
    %1935 = vmatpush1.bf16.msra.mxu0 0
    %1936 = vmatprep.subr.bf16.mxu0 0
    %1937 = vmatpush1.bf16.msra.mxu0 0
    %1938 = vmatprep.subr.bf16.mxu0 0
    %1939 = vmatpush1.bf16.msra.mxu0 0
    %1940 = vmatprep.subr.bf16.mxu0 0
    %1941 = vmatpush1.bf16.msra.mxu0 0
    %1942 = vmatprep.subr.bf16.mxu0 0
    %1943 = vmatpush1.bf16.msra.mxu0 0
    %1944 = vmatprep.subr.bf16.mxu0 0
    %1945 = vmatpush1.bf16.msra.mxu0 0
    %1946 = vmatprep.subr.bf16.mxu0 0
    %1947 = vmatpush1.bf16.msra.mxu0 0
    %1948 = vmatprep.subr.bf16.mxu0 0
    %1949 = vmatpush1.bf16.msra.mxu0 0
    %1950 = vmatprep.mubr.bf16.mxu0 0
    %1951 = vmatmul.mubr.bf16.gmra.mrb[0].mxu0 %v1916
    %v1952 = vpop.f32.mrb[0].mxu0
    %v1953 = vadd.f32 0.0, %v1952
    %v1954 = vpop.f32.mrb[0].mxu0
    %v1955 = vpop.f32.mrb[0].mxu0
    %v1956 = vadd.f32 0.0, %v1955
    %v1957 = vpop.f32.mrb[0].mxu0
    %1958 = vdwg.mxu0
    %v1960 = vsel %vm508, %v1712, 0
    %1962 = vmatprep.subr.bf16.mxu0 0
    %1963 = vmatpush1.bf16.msra.mxu0 %v962
    %1964 = vmatprep.subr.bf16.mxu0 0
    %1965 = vmatpush1.bf16.msra.mxu0 0
    %1966 = vmatprep.subr.bf16.mxu0 0
    %1967 = vmatpush1.bf16.msra.mxu0 0
    %1968 = vmatprep.subr.bf16.mxu0 0
    %1969 = vmatpush1.bf16.msra.mxu0 0
    %1970 = vmatprep.subr.bf16.mxu0 0
    %1971 = vmatpush1.bf16.msra.mxu0 0
    %1972 = vmatprep.subr.bf16.mxu0 0
    %1973 = vmatpush1.bf16.msra.mxu0 0
    %1974 = vmatprep.subr.bf16.mxu0 0
    %1975 = vmatpush1.bf16.msra.mxu0 0
    %1976 = vmatprep.subr.bf16.mxu0 0
    %1977 = vmatpush1.bf16.msra.mxu0 0
    %1978 = vmatprep.subr.bf16.mxu0 0
    %1979 = vmatpush1.bf16.msra.mxu0 0
    %1980 = vmatprep.subr.bf16.mxu0 0
    %1981 = vmatpush1.bf16.msra.mxu0 0
    %1982 = vmatprep.subr.bf16.mxu0 0
    %1983 = vmatpush1.bf16.msra.mxu0 0
    %1984 = vmatprep.subr.bf16.mxu0 0
    %1985 = vmatpush1.bf16.msra.mxu0 0
    %1986 = vmatprep.subr.bf16.mxu0 0
    %1987 = vmatpush1.bf16.msra.mxu0 0
    %1988 = vmatprep.subr.bf16.mxu0 0
    %1989 = vmatpush1.bf16.msra.mxu0 0
    %1990 = vmatprep.subr.bf16.mxu0 0
    %1991 = vmatpush1.bf16.msra.mxu0 0
    %1992 = vmatprep.subr.bf16.mxu0 0
    %1993 = vmatpush1.bf16.msra.mxu0 0
    %1994 = vmatprep.mubr.bf16.mxu0 0
    %1995 = vmatmul.mubr.bf16.gmra.mrb[0].mxu0 %v1960
    %v1996 = vpop.f32.mrb[0].mxu0
    %v1997 = vadd.f32 %v1953, %v1996
    %v1998 = vpop.f32.mrb[0].mxu0
    %v1999 = vpop.f32.mrb[0].mxu0
    %v2000 = vadd.f32 %v1956, %v1999
    %v2001 = vpop.f32.mrb[0].mxu0
    %2002 = vdwg.mxu0
    %2003 = vrot.lane.b32.xlu0 %v1514, 120
    %v2004 = vpop.permute.xlu0 %2003
    %2005 = vrot.lane.b32.xlu0 %v1513, 120
    %v2006 = vpop.permute.xlu0 %2005
    %2007 = vrot.lane.b32.xlu0 %v1514, 104
    %v2008 = vpop.permute.xlu0 %2007
    %2009 = vrot.lane.b32.xlu0 %v1513, 104
    %v2010 = vpop.permute.xlu0 %2009
    %v2011 = vsel %vm508, %v2004, 0
    %v2013 = vsel %vm508, %v2006, 0
    %v2015 = vsel %vm508, %v2008, 0
    %v2017 = vsel %vm508, %v2010, 0
    %2019 = vmatprep.subr.mxu0 0.0
    %2020 = vmatpush1.xpose.msra.mxu0 %v2015
    %2021 = vmatprep.subr.mxu0 0.0
    %2022 = vmatpush1.xpose.msra.mxu0 %v2017
    %2023 = vmatprep.subr.mxu0 0.0
    %2024 = vmatpush1.xpose.msra.mxu0 0.0
    %2025 = vmatprep.subr.mxu0 0.0
    %2026 = vmatpush1.xpose.msra.mxu0 0.0
    %2027 = vmatprep.subr.mxu0 0.0
    %2028 = vmatpush1.xpose.msra.mxu0 0.0
    %2029 = vmatprep.subr.mxu0 0.0
    %2030 = vmatpush1.xpose.msra.mxu0 0.0
    %2031 = vmatprep.subr.mxu0 0.0
    %2032 = vmatpush1.xpose.msra.mxu0 0.0
    %2033 = vmatprep.subr.mxu0 0.0
    %2034 = vmatpush1.xpose.msra.mxu0 0.0
    %2035 = vmatprep.subr.mxu0 0.0
    %2036 = vmatpush1.xpose.msra.mxu0 0.0
    %2037 = vmatprep.subr.mxu0 0.0
    %2038 = vmatpush1.xpose.msra.mxu0 0.0
    %2039 = vmatprep.subr.mxu0 0.0
    %2040 = vmatpush1.xpose.msra.mxu0 0.0
    %2041 = vmatprep.subr.mxu0 0.0
    %2042 = vmatpush1.xpose.msra.mxu0 0.0
    %2043 = vmatprep.subr.mxu0 0.0
    %2044 = vmatpush1.xpose.msra.mxu0 0.0
    %2045 = vmatprep.subr.mxu0 0.0
    %2046 = vmatpush1.xpose.msra.mxu0 0.0
    %2047 = vmatprep.subr.mxu0 0.0
    %2048 = vmatpush1.xpose.msra.mxu0 0.0
    %2049 = vmatprep.subr.mxu0 0.0
    %2050 = vmatpush1.xpose.msra.mxu0 0.0
    %2051 = vmatprep.subr.mxu0 0.0
    %2052 = vmatpush1.xpose.msra.mxu0 0.0
    %2053 = vmatprep.subr.mxu0 0.0
    %2054 = vmatpush1.xpose.msra.mxu0 0.0
    %2055 = vmatprep.subr.mxu0 0.0
    %2056 = vmatpush1.xpose.msra.mxu0 0.0
    %2057 = vmatprep.subr.mxu0 0.0
    %2058 = vmatpush1.xpose.msra.mxu0 0.0
    %2059 = vmatprep.subr.mxu0 0.0
    %2060 = vmatpush1.xpose.msra.mxu0 0.0
    %2061 = vmatprep.subr.mxu0 0.0
    %2062 = vmatpush1.xpose.msra.mxu0 0.0
    %2063 = vmatprep.subr.mxu0 0.0
    %2064 = vmatpush1.xpose.msra.mxu0 0.0
    %2065 = vmatprep.subr.mxu0 0.0
    %2066 = vmatpush1.xpose.msra.mxu0 0.0
    %2067 = vmatprep.subr.mxu0 0.0
    %2068 = vmatpush1.xpose.msra.mxu0 0.0
    %2069 = vmatprep.subr.mxu0 0.0
    %2070 = vmatpush1.xpose.msra.mxu0 0.0
    %2071 = vmatprep.subr.mxu0 0.0
    %2072 = vmatpush1.xpose.msra.mxu0 0.0
    %2073 = vmatprep.subr.mxu0 0.0
    %2074 = vmatpush1.xpose.msra.mxu0 0.0
    %2075 = vmatprep.subr.mxu0 0.0
    %2076 = vmatpush1.xpose.msra.mxu0 0.0
    %2077 = vmatprep.subr.mxu0 0.0
    %2078 = vmatpush1.xpose.msra.mxu0 0.0
    %2079 = vmatprep.subr.mxu0 0.0
    %2080 = vmatpush1.xpose.msra.mxu0 0.0
    %2081 = vmatprep.subr.mxu0 0.0
    %2082 = vmatpush1.xpose.msra.mxu0 0.0
    %2083 = vmatprep.mubr.f32.mxu0 0.0
    %2084 = vmatmul.mubr.f32.gmra.mrb[0].mxu0 %v2011
    %v2085 = vpop.f32.mrb[0].mxu0
    %v2086 = vadd.f32 0.0, %v2085
    %v2087 = vpop.f32.mrb[0].mxu0
    %2088 = vmatprep.mubr.f32.mxu0 0.0
    %2089 = vmatmul.mubr.f32.gmra.mrb[0].mxu0 %v2013
    %v2090 = vpop.f32.mrb[0].mxu0
    %v2091 = vadd.f32 0.0, %v2090
    %v2092 = vpop.f32.mrb[0].mxu0
    %2093 = vdwg.mxu0
    %v2094 = vsel %vm592, %v2086, -inf
    %2095 = vmax.xlane.f32.xlu0 %v2094
    %v2096 = vpop.xlane.xlu0 %2095
    %v2097 = vsel %vm596, %v2091, -inf
    %2098 = vmax.xlane.f32.xlu0 %v2097
    %v2099 = vpop.xlane.xlu0 %2098
    %v2100 = vsub.f32 %v2086, %v2096
    %v2101 = vsub.f32 %v2091, %v2099
    %v2102 = vmul.f32 %v2100, 1.442695
    %v2103 = vpow.pop %v2102
    %v2104 = vmul.f32 %v2101, 1.442695
    %v2105 = vpow.pop %v2104
    %v2106 = vsel %vm592, %v2103, 0.0
    %2107 = vadd.xlane.f32.xlu0 %v2106
    %v2108 = vpop.xlane.xlu0 %2107
    %v2109 = vsel %vm596, %v2105, 0.0
    %2110 = vadd.xlane.f32.xlu0 %v2109
    %v2111 = vpop.xlane.xlu0 %2110
    %v2112 = vrcp.pop %v2108
    %v2113 = vrcp.pop %v2111
    %v2114 = vmul.f32 %v2103, %v2112
    %v2115 = vmul.f32 %v2105, %v2113
    %2116 = vrot.lane.b32.xlu0 %v1514, 88
    %v2117 = vpop.permute.xlu0 %2116
    %2118 = vrot.lane.b32.xlu0 %v1513, 88
    %v2119 = vpop.permute.xlu0 %2118
    %v2122 = vsel %vm592, %v2114, 0
    %v2125 = vsel %vm592, %v2115, 0
    %v2127 = vsel %vm211, %v2119, 0
    %2129 = vmatprep.subr.mxu0 0.0
    %2130 = vmatpush1.msra.mxu0 %v2117
    %2131 = vmatprep.subr.mxu0 0.0
    %2132 = vmatpush1.msra.mxu0 %v2127
    %2133 = vmatprep.subr.mxu0 0.0
    %2134 = vmatpush1.msra.mxu0 0.0
    %2135 = vmatprep.subr.mxu0 0.0
    %2136 = vmatpush1.msra.mxu0 0.0
    %2137 = vmatprep.subr.mxu0 0.0
    %2138 = vmatpush1.msra.mxu0 0.0
    %2139 = vmatprep.subr.mxu0 0.0
    %2140 = vmatpush1.msra.mxu0 0.0
    %2141 = vmatprep.subr.mxu0 0.0
    %2142 = vmatpush1.msra.mxu0 0.0
    %2143 = vmatprep.subr.mxu0 0.0
    %2144 = vmatpush1.msra.mxu0 0.0
    %2145 = vmatprep.subr.mxu0 0.0
    %2146 = vmatpush1.msra.mxu0 0.0
    %2147 = vmatprep.subr.mxu0 0.0
    %2148 = vmatpush1.msra.mxu0 0.0
    %2149 = vmatprep.subr.mxu0 0.0
    %2150 = vmatpush1.msra.mxu0 0.0
    %2151 = vmatprep.subr.mxu0 0.0
    %2152 = vmatpush1.msra.mxu0 0.0
    %2153 = vmatprep.subr.mxu0 0.0
    %2154 = vmatpush1.msra.mxu0 0.0
    %2155 = vmatprep.subr.mxu0 0.0
    %2156 = vmatpush1.msra.mxu0 0.0
    %2157 = vmatprep.subr.mxu0 0.0
    %2158 = vmatpush1.msra.mxu0 0.0
    %2159 = vmatprep.subr.mxu0 0.0
    %2160 = vmatpush1.msra.mxu0 0.0
    %2161 = vmatprep.subr.mxu0 0.0
    %2162 = vmatpush1.msra.mxu0 0.0
    %2163 = vmatprep.subr.mxu0 0.0
    %2164 = vmatpush1.msra.mxu0 0.0
    %2165 = vmatprep.subr.mxu0 0.0
    %2166 = vmatpush1.msra.mxu0 0.0
    %2167 = vmatprep.subr.mxu0 0.0
    %2168 = vmatpush1.msra.mxu0 0.0
    %2169 = vmatprep.subr.mxu0 0.0
    %2170 = vmatpush1.msra.mxu0 0.0
    %2171 = vmatprep.subr.mxu0 0.0
    %2172 = vmatpush1.msra.mxu0 0.0
    %2173 = vmatprep.subr.mxu0 0.0
    %2174 = vmatpush1.msra.mxu0 0.0
    %2175 = vmatprep.subr.mxu0 0.0
    %2176 = vmatpush1.msra.mxu0 0.0
    %2177 = vmatprep.subr.mxu0 0.0
    %2178 = vmatpush1.msra.mxu0 0.0
    %2179 = vmatprep.subr.mxu0 0.0
    %2180 = vmatpush1.msra.mxu0 0.0
    %2181 = vmatprep.subr.mxu0 0.0
    %2182 = vmatpush1.msra.mxu0 0.0
    %2183 = vmatprep.subr.mxu0 0.0
    %2184 = vmatpush1.msra.mxu0 0.0
    %2185 = vmatprep.subr.mxu0 0.0
    %2186 = vmatpush1.msra.mxu0 0.0
    %2187 = vmatprep.subr.mxu0 0.0
    %2188 = vmatpush1.msra.mxu0 0.0
    %2189 = vmatprep.subr.mxu0 0.0
    %2190 = vmatpush1.msra.mxu0 0.0
    %2191 = vmatprep.subr.mxu0 0.0
    %2192 = vmatpush1.msra.mxu0 0.0
    %2193 = vmatprep.mubr.f32.mxu0 0.0
    %2194 = vmatmul.mubr.f32.gmra.mrb[0].mxu0 %v2122
    %v2195 = vpop.f32.mrb[0].mxu0
    %v2196 = vadd.f32 0.0, %v2195
    %v2197 = vpop.f32.mrb[0].mxu0
    %2198 = vmatprep.mubr.f32.mxu0 0.0
    %2199 = vmatmul.mubr.f32.gmra.mrb[0].mxu0 %v2125
    %v2200 = vpop.f32.mrb[0].mxu0
    %v2201 = vadd.f32 0.0, %v2200
    %v2202 = vpop.f32.mrb[0].mxu0
    %2203 = vdwg.mxu0
    %v2204 = vpack.c.bf16 %v2201, %v2196
    %v2206 = vsel %vm508, %v2204, 0
    %2208 = vmatprep.subr.bf16.mxu0 0
    %2209 = vmatpush1.bf16.msra.mxu0 %v1211
    %2210 = vmatprep.subr.bf16.mxu0 0
    %2211 = vmatpush1.bf16.msra.mxu0 0
    %2212 = vmatprep.subr.bf16.mxu0 0
    %2213 = vmatpush1.bf16.msra.mxu0 0
    %2214 = vmatprep.subr.bf16.mxu0 0
    %2215 = vmatpush1.bf16.msra.mxu0 0
    %2216 = vmatprep.subr.bf16.mxu0 0
    %2217 = vmatpush1.bf16.msra.mxu0 0
    %2218 = vmatprep.subr.bf16.mxu0 0
    %2219 = vmatpush1.bf16.msra.mxu0 0
    %2220 = vmatprep.subr.bf16.mxu0 0
    %2221 = vmatpush1.bf16.msra.mxu0 0
    %2222 = vmatprep.subr.bf16.mxu0 0
    %2223 = vmatpush1.bf16.msra.mxu0 0
    %2224 = vmatprep.subr.bf16.mxu0 0
    %2225 = vmatpush1.bf16.msra.mxu0 0
    %2226 = vmatprep.subr.bf16.mxu0 0
    %2227 = vmatpush1.bf16.msra.mxu0 0
    %2228 = vmatprep.subr.bf16.mxu0 0
    %2229 = vmatpush1.bf16.msra.mxu0 0
    %2230 = vmatprep.subr.bf16.mxu0 0
    %2231 = vmatpush1.bf16.msra.mxu0 0
    %2232 = vmatprep.subr.bf16.mxu0 0
    %2233 = vmatpush1.bf16.msra.mxu0 0
    %2234 = vmatprep.subr.bf16.mxu0 0
    %2235 = vmatpush1.bf16.msra.mxu0 0
    %2236 = vmatprep.subr.bf16.mxu0 0
    %2237 = vmatpush1.bf16.msra.mxu0 0
    %2238 = vmatprep.subr.bf16.mxu0 0
    %2239 = vmatpush1.bf16.msra.mxu0 0
    %2240 = vmatprep.mubr.bf16.mxu0 0
    %2241 = vmatmul.mubr.bf16.gmra.mrb[0].mxu0 %v2206
    %v2242 = vpop.f32.mrb[0].mxu0
    %v2243 = vadd.f32 0.0, %v2242
    %v2244 = vpop.f32.mrb[0].mxu0
    %v2245 = vpop.f32.mrb[0].mxu0
    %v2246 = vadd.f32 0.0, %v2245
    %v2247 = vpop.f32.mrb[0].mxu0
    %2248 = vdwg.mxu0
    %v2249 = vadd.f32 %v1997, %v2243
    %v2250 = vadd.f32 %v2000, %v2246
    %2251 = vrot.lane.b32.xlu0 %v1514, 116
    %v2252 = vpop.permute.xlu0 %2251
    %2253 = vrot.lane.b32.xlu0 %v1513, 116
    %v2254 = vpop.permute.xlu0 %2253
    %2255 = vrot.lane.b32.xlu0 %v1514, 100
    %v2256 = vpop.permute.xlu0 %2255
    %2257 = vrot.lane.b32.xlu0 %v1513, 100
    %v2258 = vpop.permute.xlu0 %2257
    %v2259 = vsel %vm508, %v2252, 0
    %v2261 = vsel %vm508, %v2254, 0
    %v2263 = vsel %vm508, %v2256, 0
    %v2265 = vsel %vm508, %v2258, 0
    %2267 = vmatprep.subr.mxu0 0.0
    %2268 = vmatpush1.xpose.msra.mxu0 %v2263
    %2269 = vmatprep.subr.mxu0 0.0
    %2270 = vmatpush1.xpose.msra.mxu0 %v2265
    %2271 = vmatprep.subr.mxu0 0.0
    %2272 = vmatpush1.xpose.msra.mxu0 0.0
    %2273 = vmatprep.subr.mxu0 0.0
    %2274 = vmatpush1.xpose.msra.mxu0 0.0
    %2275 = vmatprep.subr.mxu0 0.0
    %2276 = vmatpush1.xpose.msra.mxu0 0.0
    %2277 = vmatprep.subr.mxu0 0.0
    %2278 = vmatpush1.xpose.msra.mxu0 0.0
    %2279 = vmatprep.subr.mxu0 0.0
    %2280 = vmatpush1.xpose.msra.mxu0 0.0
    %2281 = vmatprep.subr.mxu0 0.0
    %2282 = vmatpush1.xpose.msra.mxu0 0.0
    %2283 = vmatprep.subr.mxu0 0.0
    %2284 = vmatpush1.xpose.msra.mxu0 0.0
    %2285 = vmatprep.subr.mxu0 0.0
    %2286 = vmatpush1.xpose.msra.mxu0 0.0
    %2287 = vmatprep.subr.mxu0 0.0
    %2288 = vmatpush1.xpose.msra.mxu0 0.0
    %2289 = vmatprep.subr.mxu0 0.0
    %2290 = vmatpush1.xpose.msra.mxu0 0.0
    %2291 = vmatprep.subr.mxu0 0.0
    %2292 = vmatpush1.xpose.msra.mxu0 0.0
    %2293 = vmatprep.subr.mxu0 0.0
    %2294 = vmatpush1.xpose.msra.mxu0 0.0
    %2295 = vmatprep.subr.mxu0 0.0
    %2296 = vmatpush1.xpose.msra.mxu0 0.0
    %2297 = vmatprep.subr.mxu0 0.0
    %2298 = vmatpush1.xpose.msra.mxu0 0.0
    %2299 = vmatprep.subr.mxu0 0.0
    %2300 = vmatpush1.xpose.msra.mxu0 0.0
    %2301 = vmatprep.subr.mxu0 0.0
    %2302 = vmatpush1.xpose.msra.mxu0 0.0
    %2303 = vmatprep.subr.mxu0 0.0
    %2304 = vmatpush1.xpose.msra.mxu0 0.0
    %2305 = vmatprep.subr.mxu0 0.0
    %2306 = vmatpush1.xpose.msra.mxu0 0.0
    %2307 = vmatprep.subr.mxu0 0.0
    %2308 = vmatpush1.xpose.msra.mxu0 0.0
    %2309 = vmatprep.subr.mxu0 0.0
    %2310 = vmatpush1.xpose.msra.mxu0 0.0
    %2311 = vmatprep.subr.mxu0 0.0
    %2312 = vmatpush1.xpose.msra.mxu0 0.0
    %2313 = vmatprep.subr.mxu0 0.0
    %2314 = vmatpush1.xpose.msra.mxu0 0.0
    %2315 = vmatprep.subr.mxu0 0.0
    %2316 = vmatpush1.xpose.msra.mxu0 0.0
    %2317 = vmatprep.subr.mxu0 0.0
    %2318 = vmatpush1.xpose.msra.mxu0 0.0
    %2319 = vmatprep.subr.mxu0 0.0
    %2320 = vmatpush1.xpose.msra.mxu0 0.0
    %2321 = vmatprep.subr.mxu0 0.0
    %2322 = vmatpush1.xpose.msra.mxu0 0.0
    %2323 = vmatprep.subr.mxu0 0.0
    %2324 = vmatpush1.xpose.msra.mxu0 0.0
    %2325 = vmatprep.subr.mxu0 0.0
    %2326 = vmatpush1.xpose.msra.mxu0 0.0
    %2327 = vmatprep.subr.mxu0 0.0
    %2328 = vmatpush1.xpose.msra.mxu0 0.0
    %2329 = vmatprep.subr.mxu0 0.0
    %2330 = vmatpush1.xpose.msra.mxu0 0.0
    %2331 = vmatprep.mubr.f32.mxu0 0.0
    %2332 = vmatmul.mubr.f32.gmra.mrb[0].mxu0 %v2259
    %v2333 = vpop.f32.mrb[0].mxu0
    %v2334 = vadd.f32 0.0, %v2333
    %v2335 = vpop.f32.mrb[0].mxu0
    %2336 = vmatprep.mubr.f32.mxu0 0.0
    %2337 = vmatmul.mubr.f32.gmra.mrb[0].mxu0 %v2261
    %v2338 = vpop.f32.mrb[0].mxu0
    %v2339 = vadd.f32 0.0, %v2338
    %v2340 = vpop.f32.mrb[0].mxu0
    %2341 = vdwg.mxu0
    %v2342 = vsel %vm592, %v2334, -inf
    %2343 = vmax.xlane.f32.xlu0 %v2342
    %v2344 = vpop.xlane.xlu0 %2343
    %v2345 = vsel %vm596, %v2339, -inf
    %2346 = vmax.xlane.f32.xlu0 %v2345
    %v2347 = vpop.xlane.xlu0 %2346
    %v2348 = vsub.f32 %v2334, %v2344
    %v2349 = vsub.f32 %v2339, %v2347
    %v2350 = vmul.f32 %v2348, 1.442695
    %v2351 = vpow.pop %v2350
    %v2352 = vmul.f32 %v2349, 1.442695
    %v2353 = vpow.pop %v2352
    %v2354 = vsel %vm592, %v2351, 0.0
    %2355 = vadd.xlane.f32.xlu0 %v2354
    %v2356 = vpop.xlane.xlu0 %2355
    %v2357 = vsel %vm596, %v2353, 0.0
    %2358 = vadd.xlane.f32.xlu0 %v2357
    %v2359 = vpop.xlane.xlu0 %2358
    %v2360 = vrcp.pop %v2356
    %v2361 = vrcp.pop %v2359
    %v2362 = vmul.f32 %v2351, %v2360
    %v2363 = vmul.f32 %v2353, %v2361
    %2364 = vrot.lane.b32.xlu0 %v1514, 84
    %v2365 = vpop.permute.xlu0 %2364
    %2366 = vrot.lane.b32.xlu0 %v1513, 84
    %v2367 = vpop.permute.xlu0 %2366
    %v2370 = vsel %vm592, %v2362, 0
    %v2373 = vsel %vm592, %v2363, 0
    %v2375 = vsel %vm211, %v2367, 0
    %2377 = vmatprep.subr.mxu0 0.0
    %2378 = vmatpush1.msra.mxu0 %v2365
    %2379 = vmatprep.subr.mxu0 0.0
    %2380 = vmatpush1.msra.mxu0 %v2375
    %2381 = vmatprep.subr.mxu0 0.0
    %2382 = vmatpush1.msra.mxu0 0.0
    %2383 = vmatprep.subr.mxu0 0.0
    %2384 = vmatpush1.msra.mxu0 0.0
    %2385 = vmatprep.subr.mxu0 0.0
    %2386 = vmatpush1.msra.mxu0 0.0
    %2387 = vmatprep.subr.mxu0 0.0
    %2388 = vmatpush1.msra.mxu0 0.0
    %2389 = vmatprep.subr.mxu0 0.0
    %2390 = vmatpush1.msra.mxu0 0.0
    %2391 = vmatprep.subr.mxu0 0.0
    %2392 = vmatpush1.msra.mxu0 0.0
    %2393 = vmatprep.subr.mxu0 0.0
    %2394 = vmatpush1.msra.mxu0 0.0
    %2395 = vmatprep.subr.mxu0 0.0
    %2396 = vmatpush1.msra.mxu0 0.0
    %2397 = vmatprep.subr.mxu0 0.0
    %2398 = vmatpush1.msra.mxu0 0.0
    %2399 = vmatprep.subr.mxu0 0.0
    %2400 = vmatpush1.msra.mxu0 0.0
    %2401 = vmatprep.subr.mxu0 0.0
    %2402 = vmatpush1.msra.mxu0 0.0
    %2403 = vmatprep.subr.mxu0 0.0
    %2404 = vmatpush1.msra.mxu0 0.0
    %2405 = vmatprep.subr.mxu0 0.0
    %2406 = vmatpush1.msra.mxu0 0.0
    %2407 = vmatprep.subr.mxu0 0.0
    %2408 = vmatpush1.msra.mxu0 0.0
    %2409 = vmatprep.subr.mxu0 0.0
    %2410 = vmatpush1.msra.mxu0 0.0
    %2411 = vmatprep.subr.mxu0 0.0
    %2412 = vmatpush1.msra.mxu0 0.0
    %2413 = vmatprep.subr.mxu0 0.0
    %2414 = vmatpush1.msra.mxu0 0.0
    %2415 = vmatprep.subr.mxu0 0.0
    %2416 = vmatpush1.msra.mxu0 0.0
    %2417 = vmatprep.subr.mxu0 0.0
    %2418 = vmatpush1.msra.mxu0 0.0
    %2419 = vmatprep.subr.mxu0 0.0
    %2420 = vmatpush1.msra.mxu0 0.0
    %2421 = vmatprep.subr.mxu0 0.0
    %2422 = vmatpush1.msra.mxu0 0.0
    %2423 = vmatprep.subr.mxu0 0.0
    %2424 = vmatpush1.msra.mxu0 0.0
    %2425 = vmatprep.subr.mxu0 0.0
    %2426 = vmatpush1.msra.mxu0 0.0
    %2427 = vmatprep.subr.mxu0 0.0
    %2428 = vmatpush1.msra.mxu0 0.0
    %2429 = vmatprep.subr.mxu0 0.0
    %2430 = vmatpush1.msra.mxu0 0.0
    %2431 = vmatprep.subr.mxu0 0.0
    %2432 = vmatpush1.msra.mxu0 0.0
    %2433 = vmatprep.subr.mxu0 0.0
    %2434 = vmatpush1.msra.mxu0 0.0
    %2435 = vmatprep.subr.mxu0 0.0
    %2436 = vmatpush1.msra.mxu0 0.0
    %2437 = vmatprep.subr.mxu0 0.0
    %2438 = vmatpush1.msra.mxu0 0.0
    %2439 = vmatprep.subr.mxu0 0.0
    %2440 = vmatpush1.msra.mxu0 0.0
    %2441 = vmatprep.mubr.f32.mxu0 0.0
    %2442 = vmatmul.mubr.f32.gmra.mrb[0].mxu0 %v2370
    %v2443 = vpop.f32.mrb[0].mxu0
    %v2444 = vadd.f32 0.0, %v2443
    %v2445 = vpop.f32.mrb[0].mxu0
    %2446 = vmatprep.mubr.f32.mxu0 0.0
    %2447 = vmatmul.mubr.f32.gmra.mrb[0].mxu0 %v2373
    %v2448 = vpop.f32.mrb[0].mxu0
    %v2449 = vadd.f32 0.0, %v2448
    %v2450 = vpop.f32.mrb[0].mxu0
    %2451 = vdwg.mxu0
    %v2452 = vpack.c.bf16 %v2449, %v2444
    %v2454 = vsel %vm508, %v2452, 0
    %2456 = vmatprep.subr.bf16.mxu0 0
    %2457 = vmatpush1.bf16.msra.mxu0 %v1466
    %2458 = vmatprep.subr.bf16.mxu0 0
    %2459 = vmatpush1.bf16.msra.mxu0 0
    %2460 = vmatprep.subr.bf16.mxu0 0
    %2461 = vmatpush1.bf16.msra.mxu0 0
    %2462 = vmatprep.subr.bf16.mxu0 0
    %2463 = vmatpush1.bf16.msra.mxu0 0
    %2464 = vmatprep.subr.bf16.mxu0 0
    %2465 = vmatpush1.bf16.msra.mxu0 0
    %2466 = vmatprep.subr.bf16.mxu0 0
    %2467 = vmatpush1.bf16.msra.mxu0 0
    %2468 = vmatprep.subr.bf16.mxu0 0
    %2469 = vmatpush1.bf16.msra.mxu0 0
    %2470 = vmatprep.subr.bf16.mxu0 0
    %2471 = vmatpush1.bf16.msra.mxu0 0
    %2472 = vmatprep.subr.bf16.mxu0 0
    %2473 = vmatpush1.bf16.msra.mxu0 0
    %2474 = vmatprep.subr.bf16.mxu0 0
    %2475 = vmatpush1.bf16.msra.mxu0 0
    %2476 = vmatprep.subr.bf16.mxu0 0
    %2477 = vmatpush1.bf16.msra.mxu0 0
    %2478 = vmatprep.subr.bf16.mxu0 0
    %2479 = vmatpush1.bf16.msra.mxu0 0
    %2480 = vmatprep.subr.bf16.mxu0 0
    %2481 = vmatpush1.bf16.msra.mxu0 0
    %2482 = vmatprep.subr.bf16.mxu0 0
    %2483 = vmatpush1.bf16.msra.mxu0 0
    %2484 = vmatprep.subr.bf16.mxu0 0
    %2485 = vmatpush1.bf16.msra.mxu0 0
    %2486 = vmatprep.subr.bf16.mxu0 0
    %2487 = vmatpush1.bf16.msra.mxu0 0
    %2488 = vmatprep.mubr.bf16.mxu0 0
    %2489 = vmatmul.mubr.bf16.gmra.mrb[0].mxu0 %v2454
    %v2490 = vpop.f32.mrb[0].mxu0
    %v2491 = vadd.f32 0.0, %v2490
    %v2492 = vpop.f32.mrb[0].mxu0
    %v2493 = vpop.f32.mrb[0].mxu0
    %v2494 = vadd.f32 0.0, %v2493
    %v2495 = vpop.f32.mrb[0].mxu0
    %2496 = vdwg.mxu0
    %v2497 = vadd.f32 %v2249, %v2491
    %v2498 = vadd.f32 %v2250, %v2494
    %v2501 = vrot.slane %v2497, 7
    %v2502 = vrot.slane %v2498, 7
    %v2503 = vsel %vm211, %v2501, %v2502
    %v2506 = vsel %vm211, %v1510, %v2501
    %v2507 = vadd.f32 %v224, %v1509
    %v2508 = vadd.f32 %v352, %v2506
    %v2509 = vadd.f32 %v349, %v2503
    %v2511 = vlaneseq
    %v2512 = vshrl.u32 %v2511, 7
    %v2513 = vsub.s32 0, %v2512
    %v2514 = vrot.slane %v360, %v2513
    %v2516 = vadd.f32 %v2507, %v2514
    %v2517 = vadd.f32 %v2508, %v2514
    %v2518 = vadd.f32 %v2509, %v2514
    %v2519 = vsel %vm112, %v2516, 0.0
    %2520 = vadd.xlane.f32.xlu0 %v2519
    %v2521 = vpop.xlane.xlu0 %2520
    %v2522 = vsel %vm112, %v2517, 0.0
    %2523 = vadd.xlane.f32.xlu0 %v2522
    %v2524 = vpop.xlane.xlu0 %2523
    %v2525 = vsel %vm381, %v2518, 0.0
    %2526 = vadd.xlane.f32.xlu0 %v2525
    %v2527 = vpop.xlane.xlu0 %2526
    %v2528 = vmul.f32 %v2521, %v385
    %v2529 = vmul.f32 %v2524, %v385
    %v2530 = vmul.f32 %v2527, %v385
    %v2531 = vsub.f32 %v2516, %v2528
    %v2532 = vsub.f32 %v2517, %v2529
    %v2533 = vsub.f32 %v2518, %v2530
    %v2534 = vmul.f32 %v2531, %v2531
    %v2535 = vmul.f32 %v2532, %v2532
    %v2536 = vmul.f32 %v2533, %v2533
    %v2537 = vsel %vm112, %v2534, 0.0
    %2538 = vadd.xlane.f32.xlu0 %v2537
    %v2539 = vpop.xlane.xlu0 %2538
    %v2540 = vsel %vm112, %v2535, 0.0
    %2541 = vadd.xlane.f32.xlu0 %v2540
    %v2542 = vpop.xlane.xlu0 %2541
    %v2543 = vsel %vm381, %v2536, 0.0
    %2544 = vadd.xlane.f32.xlu0 %v2543
    %v2545 = vpop.xlane.xlu0 %2544
    %v2546 = vmul.f32 %v2539, %v385
    %v2547 = vmul.f32 %v2542, %v385
    %v2548 = vmul.f32 %v2545, %v385
    %v2549 = vadd.f32 %v2546, 1e-05
    %v2550 = vadd.f32 %v2547, 1e-05
    %v2551 = vadd.f32 %v2548, 1e-05
    %v2552 = vrsqrt.pop %v2549
    %v2553 = vrsqrt.pop %v2550
    %v2554 = vrsqrt.pop %v2551
    %v2555 = vmul.f32 %v2531, %v2552
    %v2556 = vmul.f32 %v2532, %v2553
    %v2557 = vmul.f32 %v2533, %v2554
    %v2559 = vlaneseq
    %v2560 = vshrl.u32 %v2559, 7
    %v2561 = vsub.s32 0, %v2560
    %v2562 = vrot.slane %v361, %v2561
    %v2564 = vmul.f32 %v2555, %v2562
    %v2565 = vmul.f32 %v2556, %v2562
    %v2566 = vmul.f32 %v2557, %v2562
    %v2568 = vlaneseq
    %v2569 = vshrl.u32 %v2568, 7
    %v2570 = vsub.s32 0, %v2569
    %v2571 = vrot.slane %v362, %v2570
    %v2573 = vadd.f32 %v2564, %v2571
    %v2574 = vadd.f32 %v2565, %v2571
    %v2575 = vadd.f32 %v2566, %v2571
    %v2576 = vpack.c.bf16 %v2574, %v2573
    %v2577 = vpack.c.bf16 %v2575, %v2575
    %v2579 = vlaneseq
    %v2580 = vshrl.u32 %v2579, 7
    %v2581 = vsub.s32 0, %v2580
    %v2582 = vrot.slane %v365, %v2581
    %v2586 = vunpack.c.l.b16 %v363
    %v2587 = vunpack.c.l.b16 %v364
    %v2588 = vpack.c.b16 %v2587, %v2586
    %v2591 = vsel %vm112, %v2576, 0
    %v2594 = vsel %vm112, %v2577, 0
    %2596 = vmatprep.subr.bf16.mxu0 0
    %2597 = vmatpush1.bf16.msra.mxu0 %v2588
    %2598 = vmatprep.subr.bf16.mxu0 0
    %2599 = vmatpush1.bf16.msra.mxu0 0
    %2600 = vmatprep.subr.bf16.mxu0 0
    %2601 = vmatpush1.bf16.msra.mxu0 0
    %2602 = vmatprep.subr.bf16.mxu0 0
    %2603 = vmatpush1.bf16.msra.mxu0 0
    %2604 = vmatprep.subr.bf16.mxu0 0
    %2605 = vmatpush1.bf16.msra.mxu0 0
    %2606 = vmatprep.subr.bf16.mxu0 0
    %2607 = vmatpush1.bf16.msra.mxu0 0
    %2608 = vmatprep.subr.bf16.mxu0 0
    %2609 = vmatpush1.bf16.msra.mxu0 0
    %2610 = vmatprep.subr.bf16.mxu0 0
    %2611 = vmatpush1.bf16.msra.mxu0 0
    %2612 = vmatprep.subr.bf16.mxu0 0
    %2613 = vmatpush1.bf16.msra.mxu0 0
    %2614 = vmatprep.subr.bf16.mxu0 0
    %2615 = vmatpush1.bf16.msra.mxu0 0
    %2616 = vmatprep.subr.bf16.mxu0 0
    %2617 = vmatpush1.bf16.msra.mxu0 0
    %2618 = vmatprep.subr.bf16.mxu0 0
    %2619 = vmatpush1.bf16.msra.mxu0 0
    %2620 = vmatprep.subr.bf16.mxu0 0
    %2621 = vmatpush1.bf16.msra.mxu0 0
    %2622 = vmatprep.subr.bf16.mxu0 0
    %2623 = vmatpush1.bf16.msra.mxu0 0
    %2624 = vmatprep.subr.bf16.mxu0 0
    %2625 = vmatpush1.bf16.msra.mxu0 0
    %2626 = vmatprep.subr.bf16.mxu0 0
    %2627 = vmatpush1.bf16.msra.mxu0 0
    %2628 = vmatprep.mubr.bf16.mxu0 0
    %2629 = vmatmul.mubr.bf16.gmra.mrb[0].mxu0 %v2591
    %v2630 = vpop.f32.mrb[0].mxu0
    %v2631 = vadd.f32 %v2582, %v2630
    %v2632 = vpop.f32.mrb[0].mxu0
    %v2633 = vpop.f32.mrb[0].mxu0
    %v2634 = vadd.f32 %v2582, %v2633
    %v2635 = vpop.f32.mrb[0].mxu0
    %2636 = vmatprep.mubr.bf16.mxu0 0
    %2637 = vmatmul.mubr.bf16.gmra.mrb[0].mxu0 %v2594
    %v2638 = vpop.f32.mrb[0].mxu0
    %v2639 = vadd.f32 %v2582, %v2638
    %v2640 = vpop.f32.mrb[0].mxu0
    %v2641 = vpop.f32.mrb[0].mxu0
    %v2642 = vpop.f32.mrb[0].mxu0
    %2643 = vdwg.mxu0
    %v2644 = vmul.f32 %v2631, 0.5
    %v2645 = vmul.f32 %v2634, 0.5
    %v2646 = vmul.f32 %v2639, 0.5
    %v2647 = vmul.f32 %v2631, 0.70710677
    %v2648 = vmul.f32 %v2634, 0.70710677
    %v2649 = vmul.f32 %v2639, 0.70710677
    %vm2650 = vcmp.ge.f32.partialorder %v2647, 0.0
    %vm2651 = vcmp.ge.f32.partialorder %v2648, 0.0
    %vm2652 = vcmp.ge.f32.partialorder %v2649, 0.0
    %v2653 = vsel %vm2650, 1.0, -1.0
    %v2654 = vsel %vm2651, 1.0, -1.0
    %v2655 = vsel %vm2652, 1.0, -1.0
    %v2656 = vand.u32 2147483647, %v2647
    %v2657 = vand.u32 2147483647, %v2648
    %v2658 = vand.u32 2147483647, %v2649
    %v2659 = vmul.f32 %v2656, 0.3275911
    %v2660 = vmul.f32 %v2657, 0.3275911
    %v2661 = vmul.f32 %v2658, 0.3275911
    %v2662 = vadd.f32 %v2659, 1.0
    %v2663 = vadd.f32 %v2660, 1.0
    %v2664 = vadd.f32 %v2661, 1.0
    %v2665 = vrcp.pop %v2662
    %v2666 = vmul.f32 1.0, %v2665
    %v2667 = vrcp.pop %v2663
    %v2668 = vmul.f32 1.0, %v2667
    %v2669 = vrcp.pop %v2664
    %v2670 = vmul.f32 1.0, %v2669
    %v2671 = vmul.f32 %v2666, 1.0614054
    %v2672 = vmul.f32 %v2668, 1.0614054
    %v2673 = vmul.f32 %v2670, 1.0614054
    %v2674 = vadd.f32 %v2671, -1.4531521
    %v2675 = vadd.f32 %v2672, -1.4531521
    %v2676 = vadd.f32 %v2673, -1.4531521
    %v2677 = vmul.f32 %v2674, %v2666
    %v2678 = vmul.f32 %v2675, %v2668
    %v2679 = vmul.f32 %v2676, %v2670
    %v2680 = vadd.f32 %v2677, 1.4214138
    %v2681 = vadd.f32 %v2678, 1.4214138
    %v2682 = vadd.f32 %v2679, 1.4214138
    %v2683 = vmul.f32 %v2680, %v2666
    %v2684 = vmul.f32 %v2681, %v2668
    %v2685 = vmul.f32 %v2682, %v2670
    %v2686 = vadd.f32 %v2683, -0.28449672
    %v2687 = vadd.f32 %v2684, -0.28449672
    %v2688 = vadd.f32 %v2685, -0.28449672
    %v2689 = vmul.f32 %v2686, %v2666
    %v2690 = vmul.f32 %v2687, %v2668
    %v2691 = vmul.f32 %v2688, %v2670
    %v2692 = vadd.f32 %v2689, 0.2548296
    %v2693 = vadd.f32 %v2690, 0.2548296
    %v2694 = vadd.f32 %v2691, 0.2548296
    %v2695 = vmul.f32 %v2692, %v2666
    %v2696 = vmul.f32 %v2693, %v2668
    %v2697 = vmul.f32 %v2694, %v2670
    %v2698 = vsub.f32 0.0, %v2656
    %v2699 = vsub.f32 0.0, %v2657
    %v2700 = vsub.f32 0.0, %v2658
    %v2701 = vmul.f32 %v2698, %v2656
    %v2702 = vmul.f32 %v2699, %v2657
    %v2703 = vmul.f32 %v2700, %v2658
    %v2704 = vmul.f32 %v2701, 1.442695
    %v2705 = vpow.pop %v2704
    %v2706 = vmul.f32 %v2702, 1.442695
    %v2707 = vpow.pop %v2706
    %v2708 = vmul.f32 %v2703, 1.442695
    %v2709 = vpow.pop %v2708
    %v2710 = vmul.f32 %v2695, %v2705
    %v2711 = vmul.f32 %v2696, %v2707
    %v2712 = vmul.f32 %v2697, %v2709
    %v2713 = vsub.f32 1.0, %v2710
    %v2714 = vsub.f32 1.0, %v2711
    %v2715 = vsub.f32 1.0, %v2712
    %v2716 = vmul.f32 %v2653, %v2713
    %v2717 = vmul.f32 %v2654, %v2714
    %v2718 = vmul.f32 %v2655, %v2715
    %v2719 = vadd.f32 %v2716, 1.0
    %v2720 = vadd.f32 %v2717, 1.0
    %v2721 = vadd.f32 %v2718, 1.0
    %v2722 = vmul.f32 %v2644, %v2719
    %v2723 = vmul.f32 %v2645, %v2720
    %v2724 = vmul.f32 %v2646, %v2721
    %v2725 = vpack.c.bf16 %v2723, %v2722
    %v2726 = vpack.c.bf16 %v2724, %v2724
    %v2735 = vunpack.c.l.b16 %v366
    %v2736 = vunpack.c.l.b16 %v367
    %v2737 = vunpack.c.l.b16 %v368
    %v2738 = vunpack.c.l.b16 %v369
    %v2739 = vunpack.c.l.b16 %v370
    %v2740 = vunpack.c.l.b16 %v371
    %v2741 = vunpack.c.l.b16 %v372
    %v2742 = vunpack.c.l.b16 %v373
    %v2743 = vpack.c.b16 %v2736, %v2735
    %v2744 = vpack.c.b16 %v2738, %v2737
    %v2745 = vpack.c.b16 %v2740, %v2739
    %v2746 = vpack.c.b16 %v2742, %v2741
    %vm2751 = vcmask 523264
    %v2753 = vsel %vm2751, %v2725, 0
    %v2756 = vsel %vm2751, %v2726, 0
    %2758 = vmatprep.subr.bf16.mxu0 0
    %2759 = vmatpush1.bf16.msra.mxu0 %v2743
    %2760 = vmatprep.subr.bf16.mxu0 0
    %2761 = vmatpush1.bf16.msra.mxu0 %v2744
    %2762 = vmatprep.subr.bf16.mxu0 0
    %2763 = vmatpush1.bf16.msra.mxu0 %v2745
    %2764 = vmatprep.subr.bf16.mxu0 0
    %2765 = vmatpush1.bf16.msra.mxu0 %v2746
    %2766 = vmatprep.subr.bf16.mxu0 0
    %2767 = vmatpush1.bf16.msra.mxu0 0
    %2768 = vmatprep.subr.bf16.mxu0 0
    %2769 = vmatpush1.bf16.msra.mxu0 0
    %2770 = vmatprep.subr.bf16.mxu0 0
    %2771 = vmatpush1.bf16.msra.mxu0 0
    %2772 = vmatprep.subr.bf16.mxu0 0
    %2773 = vmatpush1.bf16.msra.mxu0 0
    %2774 = vmatprep.subr.bf16.mxu0 0
    %2775 = vmatpush1.bf16.msra.mxu0 0
    %2776 = vmatprep.subr.bf16.mxu0 0
    %2777 = vmatpush1.bf16.msra.mxu0 0
    %2778 = vmatprep.subr.bf16.mxu0 0
    %2779 = vmatpush1.bf16.msra.mxu0 0
    %2780 = vmatprep.subr.bf16.mxu0 0
    %2781 = vmatpush1.bf16.msra.mxu0 0
    %2782 = vmatprep.subr.bf16.mxu0 0
    %2783 = vmatpush1.bf16.msra.mxu0 0
    %2784 = vmatprep.subr.bf16.mxu0 0
    %2785 = vmatpush1.bf16.msra.mxu0 0
    %2786 = vmatprep.subr.bf16.mxu0 0
    %2787 = vmatpush1.bf16.msra.mxu0 0
    %2788 = vmatprep.subr.bf16.mxu0 0
    %2789 = vmatpush1.bf16.msra.mxu0 0
    %2790 = vmatprep.mubr.bf16.mxu0 0
    %2791 = vmatmul.mubr.bf16.gmra.mrb[0].mxu0 %v2753
    %v2792 = vpop.f32.mrb[0].mxu0
    %v2793 = vadd.f32 0.0, %v2792
    %v2794 = vpop.f32.mrb[0].mxu0
    %v2795 = vpop.f32.mrb[0].mxu0
    %v2796 = vadd.f32 0.0, %v2795
    %v2797 = vpop.f32.mrb[0].mxu0
    %2798 = vmatprep.mubr.bf16.mxu0 0
    %2799 = vmatmul.mubr.bf16.gmra.mrb[0].mxu0 %v2756
    %v2800 = vpop.f32.mrb[0].mxu0
    %v2801 = vadd.f32 0.0, %v2800
    %v2802 = vpop.f32.mrb[0].mxu0
    %v2803 = vpop.f32.mrb[0].mxu0
    %v2804 = vpop.f32.mrb[0].mxu0
    %2805 = vdwg.mxu0
    %v2806 = vadd.f32 %v2516, %v2793
    %v2807 = vadd.f32 %v2517, %v2796
    %v2808 = vadd.f32 %v2518, %v2801
    %v2810 = vlaneseq
    %v2811 = vshrl.u32 %v2810, 7
    %v2812 = vsub.s32 0, %v2811
    %v2813 = vrot.slane %v374, %v2812
    %v2815 = vadd.f32 %v2806, %v2813
    %v2816 = vadd.f32 %v2807, %v2813
    %v2817 = vadd.f32 %v2808, %v2813
    %v2818 = vld [vmem:[%s16] sm:$0x1]
    %v2819 = vld [vmem:[%s17] sm:$0x1]
    %v2820 = vsel %vm112, %v2815, 0.0
    %2821 = vadd.xlane.f32.xlu0 %v2820
    %v2822 = vpop.xlane.xlu0 %2821
    %v2823 = vsel %vm112, %v2816, 0.0
    %2824 = vadd.xlane.f32.xlu0 %v2823
    %v2825 = vpop.xlane.xlu0 %2824
    %v2826 = vsel %vm381, %v2817, 0.0
    %2827 = vadd.xlane.f32.xlu0 %v2826
    %v2828 = vpop.xlane.xlu0 %2827
    %v2829 = vmul.f32 %v2822, %v385
    %v2830 = vmul.f32 %v2825, %v385
    %v2831 = vmul.f32 %v2828, %v385
    %v2832 = vsub.f32 %v2815, %v2829
    %v2833 = vsub.f32 %v2816, %v2830
    %v2834 = vsub.f32 %v2817, %v2831
    %v2835 = vmul.f32 %v2832, %v2832
    %v2836 = vmul.f32 %v2833, %v2833
    %v2837 = vmul.f32 %v2834, %v2834
    %v2838 = vsel %vm112, %v2835, 0.0
    %2839 = vadd.xlane.f32.xlu0 %v2838
    %v2840 = vpop.xlane.xlu0 %2839
    %v2841 = vsel %vm112, %v2836, 0.0
    %2842 = vadd.xlane.f32.xlu0 %v2841
    %v2843 = vpop.xlane.xlu0 %2842
    %v2844 = vsel %vm381, %v2837, 0.0
    %2845 = vadd.xlane.f32.xlu0 %v2844
    %v2846 = vpop.xlane.xlu0 %2845
    %v2847 = vmul.f32 %v2840, %v385
    %v2848 = vmul.f32 %v2843, %v385
    %v2849 = vmul.f32 %v2846, %v385
    %v2850 = vadd.f32 %v2847, 1e-05
    %v2851 = vadd.f32 %v2848, 1e-05
    %v2852 = vadd.f32 %v2849, 1e-05
    %v2853 = vrsqrt.pop %v2850
    %v2854 = vrsqrt.pop %v2851
    %v2855 = vrsqrt.pop %v2852
    %v2856 = vmul.f32 %v2832, %v2853
    %v2857 = vmul.f32 %v2833, %v2854
    %v2858 = vmul.f32 %v2834, %v2855
    %v2860 = vlaneseq
    %v2861 = vshrl.u32 %v2860, 7
    %v2862 = vsub.s32 0, %v2861
    %v2863 = vrot.slane %v2818, %v2862
    %v2865 = vmul.f32 %v2856, %v2863
    %v2866 = vmul.f32 %v2857, %v2863
    %v2867 = vmul.f32 %v2858, %v2863
    %v2869 = vlaneseq
    %v2870 = vshrl.u32 %v2869, 7
    %v2871 = vsub.s32 0, %v2870
    %v2872 = vrot.slane %v2819, %v2871
    %v2874 = vadd.f32 %v2865, %v2872
    %v2875 = vadd.f32 %v2866, %v2872
    %v2876 = vadd.f32 %v2867, %v2872
    %v2877 = vld [vmem:[%s18] sm:$0xf]
    %v2878 = vld [vmem:[%s18 + $0x4] sm:$0xf]
    %v2879 = vpack.c.bf16 %v2875, %v2874
    %v2880 = vpack.c.bf16 %v2876, %v2876
    %v2881 = vld [vmem:[%s19] sm:$0x1]
    %v2883 = vlaneseq
    %v2884 = vshrl.u32 %v2883, 7
    %v2885 = vsub.s32 0, %v2884
    %v2886 = vrot.slane %v2881, %v2885
    %v2890 = vunpack.c.l.b16 %v2877
    %v2891 = vunpack.c.l.b16 %v2878
    %v2892 = vpack.c.b16 %v2891, %v2890
    %v2895 = vsel %vm112, %v2879, 0
    %v2898 = vsel %vm112, %v2880, 0
    %2900 = vmatprep.subr.bf16.mxu0 0
    %2901 = vmatpush1.bf16.msra.mxu0 %v2892
    %2902 = vmatprep.subr.bf16.mxu0 0
    %2903 = vmatpush1.bf16.msra.mxu0 0
    %2904 = vmatprep.subr.bf16.mxu0 0
    %2905 = vmatpush1.bf16.msra.mxu0 0
    %2906 = vmatprep.subr.bf16.mxu0 0
    %2907 = vmatpush1.bf16.msra.mxu0 0
    %2908 = vmatprep.subr.bf16.mxu0 0
    %2909 = vmatpush1.bf16.msra.mxu0 0
    %2910 = vmatprep.subr.bf16.mxu0 0
    %2911 = vmatpush1.bf16.msra.mxu0 0
    %2912 = vmatprep.subr.bf16.mxu0 0
    %2913 = vmatpush1.bf16.msra.mxu0 0
    %2914 = vmatprep.subr.bf16.mxu0 0
    %2915 = vmatpush1.bf16.msra.mxu0 0
    %2916 = vmatprep.subr.bf16.mxu0 0
    %2917 = vmatpush1.bf16.msra.mxu0 0
    %2918 = vmatprep.subr.bf16.mxu0 0
    %2919 = vmatpush1.bf16.msra.mxu0 0
    %2920 = vmatprep.subr.bf16.mxu0 0
    %2921 = vmatpush1.bf16.msra.mxu0 0
    %2922 = vmatprep.subr.bf16.mxu0 0
    %2923 = vmatpush1.bf16.msra.mxu0 0
    %2924 = vmatprep.subr.bf16.mxu0 0
    %2925 = vmatpush1.bf16.msra.mxu0 0
    %2926 = vmatprep.subr.bf16.mxu0 0
    %2927 = vmatpush1.bf16.msra.mxu0 0
    %2928 = vmatprep.subr.bf16.mxu0 0
    %2929 = vmatpush1.bf16.msra.mxu0 0
    %2930 = vmatprep.subr.bf16.mxu0 0
    %2931 = vmatpush1.bf16.msra.mxu0 0
    %2932 = vmatprep.mubr.bf16.mxu0 0
    %2933 = vmatmul.mubr.bf16.gmra.mrb[0].mxu0 %v2895
    %v2934 = vpop.f32.mrb[0].mxu0
    %v2935 = vadd.f32 %v2886, %v2934
    %v2936 = vpop.f32.mrb[0].mxu0
    %v2937 = vpop.f32.mrb[0].mxu0
    %v2938 = vadd.f32 %v2886, %v2937
    %v2939 = vpop.f32.mrb[0].mxu0
    %2940 = vmatprep.mubr.bf16.mxu0 0
    %2941 = vmatmul.mubr.bf16.gmra.mrb[0].mxu0 %v2898
    %v2942 = vpop.f32.mrb[0].mxu0
    %v2943 = vadd.f32 %v2886, %v2942
    %v2944 = vpop.f32.mrb[0].mxu0
    %v2945 = vpop.f32.mrb[0].mxu0
    %v2946 = vpop.f32.mrb[0].mxu0
    %2947 = vdwg.mxu0
    %vm2948 = vcmask 130049
    %2949 = vst.msk [vmem:[#allocation6 - $0x1] sm:$0xfe] %vm2948, %v2935
    %vm2950 = vcmask 122880
    %2951 = vst.msk [vmem:[#allocation6 + $0x7] sm:$0x1] %vm2950, %v2938
    %v2952 = vld [vmem:[%s20] sm:$0xff]
    %v2954 = vrot.slane %v2952, 7
    %v2956 = vsub.f32 %v2935, %v2954
    %v2957 = vsub.f32 %v2938, %v2954
    %v2958 = vmul.f32 %v2956, %v2956
    %v2959 = vmul.f32 %v2957, %v2957
    %v2960 = vsel %vm2948, %v2958, 0.0
    %2961 = vadd.xlane.f32.xlu0 %v2960
    %v2962 = vpop.xlane.xlu0 %2961
    %v2963 = vsel %vm2950, %v2959, 0.0
    %2964 = vadd.xlane.f32.xlu0 %v2963
    %v2965 = vpop.xlane.xlu0 %2964
    %v2966 = vmul.f32 %v2962, %v385
    %v2967 = vmul.f32 %v2965, %v385
    %v2968 = vld [vmem:[%s21] sm:$0xff]
    %v2970 = vrot.slane %v2968, 7
    %v2972 = vmul.f32 %v2966, %v2970
    %v2973 = vmul.f32 %v2967, %v2970
    %v2976 = vrot.slane %v2972, 1
    %v2977 = vrot.slane %v2973, 1
    %v2978 = vsel %vm222, %v2976, %v2977
    %vm2980 = vcmask 7168
    %v2981 = vsel %vm2980, %v2978, 0.0
    %2982 = vadd.xlane.f32.xlu0 %v2981
    %v2983 = vpop.xlane.xlu0 %2982
    %v2984 = vrot.slane %v2983, 4
    %v2985 = vadd.f32 %v2983, %v2984
    %v2986 = vrot.slane %v2985, 2
    %v2987 = vadd.f32 %v2985, %v2986
    %v2988 = vrot.slane %v2987, 1
    %v2989 = vadd.f32 %v2987, %v2988
    %s2990 = vtos %v2989
    %s2991 = sadd.f32 %s2990, 0.0
    %v2992 = vsel %vm2980, %v2968, 0.0
    %2993 = vadd.xlane.f32.xlu0 %v2992
    %v2994 = vpop.xlane.xlu0 %2993
    %v2995 = vrot.slane %v2994, 4
    %v2996 = vadd.f32 %v2994, %v2995
    %v2997 = vrot.slane %v2996, 2
    %v2998 = vadd.f32 %v2996, %v2997
    %v2999 = vrot.slane %v2998, 1
    %v3000 = vadd.f32 %v2998, %v2999
    %s3001 = vtos %v3000
    %s3002 = sadd.f32 %s3001, 0.0
    %s3003 = scalar_lea.vmem [#allocation6], 8
    %vm3004 = vcmask 130050
    %3005 = vst.msk [vmem:[%s3003 - $0x2] sm:$0xfc] %vm3004, %v2938
    %3006 = vst.msk [vmem:[%s3003 + $0x6] sm:$0x3] %vm381, %v2943
    %s3007 = scalar_lea.vmem %s20, 8
    %v3008 = vld [vmem:[%s3007] sm:$0xff]
    %v3010 = vrot.slane %v3008, 6
    %v3012 = vsub.f32 %v2938, %v3010
    %v3013 = vsub.f32 %v2943, %v3010
    %v3014 = vmul.f32 %v3012, %v3012
    %v3015 = vmul.f32 %v3013, %v3013
    %v3016 = vsel %vm3004, %v3014, 0.0
    %3017 = vadd.xlane.f32.xlu0 %v3016
    %v3018 = vpop.xlane.xlu0 %3017
    %v3019 = vsel %vm381, %v3015, 0.0
    %3020 = vadd.xlane.f32.xlu0 %v3019
    %v3021 = vpop.xlane.xlu0 %3020
    %v3022 = vmul.f32 %v3018, %v385
    %v3023 = vmul.f32 %v3021, %v385
    %s3024 = scalar_lea.vmem %s21, 8
    %v3025 = vld [vmem:[%s3024] sm:$0xff]
    %v3027 = vrot.slane %v3025, 6
    %v3029 = vmul.f32 %v3022, %v3027
    %v3030 = vmul.f32 %v3023, %v3027
    %v3033 = vrot.slane %v3029, 2
    %v3034 = vrot.slane %v3030, 2
    %v3035 = vsel %vm220, %v3033, %v3034
    %v3037 = vsel %vm2980, %v3035, 0.0
    %3038 = vadd.xlane.f32.xlu0 %v3037
    %v3039 = vpop.xlane.xlu0 %3038
    %v3040 = vrot.slane %v3039, 4
    %v3041 = vadd.f32 %v3039, %v3040
    %v3042 = vrot.slane %v3041, 2
    %v3043 = vadd.f32 %v3041, %v3042
    %v3044 = vrot.slane %v3043, 1
    %v3045 = vadd.f32 %v3043, %v3044
    %s3046 = vtos %v3045
    %s3047 = sadd.f32 %s2991, %s3046
    %v3048 = vsel %vm2980, %v3025, 0.0
    %3049 = vadd.xlane.f32.xlu0 %v3048
    %v3050 = vpop.xlane.xlu0 %3049
    %v3051 = vrot.slane %v3050, 4
    %v3052 = vadd.f32 %v3050, %v3051
    %v3053 = vrot.slane %v3052, 2
    %v3054 = vadd.f32 %v3052, %v3053
    %v3055 = vrot.slane %v3054, 1
    %v3056 = vadd.f32 %v3054, %v3055
    %s3057 = vtos %v3056
    %s3058 = sadd.f32 %s3002, %s3057
    %v3059 = vstv %s3058
    %v3060 = vrcp.pop %v3059
    %s3061 = vtos %v3060
    %s3062 = smul.f32 %s3047, %s3061
    %s3063 = scalar_lea.smem [#allocation7], 0
    %3064 = sst [smem:[%s3063]] %s3062
    // Predicated region
    $region94: #{forward.3} parent=1 // pred_check
      _
    $region95: #{forward.3} parent=1 // pred_check_branch
      %3066 = sbr.rel (0) target = $region97
    $region96: #{forward.3} parent=1 // pred_region
      %s3068 = ssub.s32 256, 256
      %3069 = vsyncadd [#allocation3], %s3068
      %s3070 = sshll.u32 [#allocation6], 4
      %s3071 = int_to_ptr.vmem [resolvable:$true] %s3070
      %3076 = dma.vmem_to_hbm [thread:$0]  %s3071, 256, %s22, [#allocation3], 128, 128, 8
    $region97: #{forward.3} parent=1 // pred_fallthru
      _
    // Predicated region
    $region98: #{forward.3} parent=1 // pred_check
      _
    $region99: #{forward.3} parent=1 // pred_check_branch
      %3078 = sbr.rel (0) target = $region101
    $region100: #{forward.3} parent=1 // pred_region
      %s3080 = ssub.s32 16, 16
      %3081 = vsyncadd [#allocation4], %s3080
      %3084 = dma.smem_to_hbm [#allocation7], 16, %s23, [#allocation4]
    $region101: #{forward.3} parent=1 // pred_fallthru
      _
    // Predicated region
    $region102: #{forward.3} parent=1 // pred_check
      _
    $region103: #{forward.3} parent=1 // pred_check_branch
      %3086 = sbr.rel (0) target = $region105
    $region104: #{forward.3} parent=1 // pred_region
      %3087 = dma.done [#allocation3], 256
    $region105: #{forward.3} parent=1 // pred_fallthru
      _
    // Predicated region
    $region106: #{forward.3} parent=1 // pred_check
      _
    $region107: #{forward.3} parent=1 // pred_check_branch
      %3089 = sbr.rel (0) target = $region109
    $region108: #{forward.3} parent=1 // pred_region
      %3090 = dma.done [#allocation4], 16
    $region109: #{forward.3} parent=1 // pred_fallthru
      _
    %3091 = sfence
    %3092 = vsyncpa [#allocation3], 1
    %3093 = vsyncpa [#allocation4], 1
    %3094 = vsyncpa [#allocation5], 1

// kernel: forward.2
$region0: #{forward.2}
  #allocation0 [shape = 'u32[]', space=smem, size = 0x4, offset = 0x4, fixed_abs, tag = 'smem constant byte address 0x4 - core index']
  #allocation1 [shape = 'u32[144,128]{1,0:T(1,128)}', space=vmem, size = 0x12000, scoped, tag = 'internal scratch']
  %s0 = inlined_call_operand.vmem [shape: s32[2,2], index: 0, kind: input, shape index: {}]
  %s1 = inlined_call_operand.vmem [shape: f32[2,8,16], index: 1, kind: input, shape index: {}]
  %s2 = inlined_call_operand.vmem [shape: bf16[16,32], index: 2, kind: input, shape index: {}]
  %s3 = inlined_call_operand.vmem [shape: f32[1,32], index: 3, kind: input, shape index: {}]
  %s4 = inlined_call_operand.vmem [shape: f32[8,32], index: 4, kind: input, shape index: {}]
  %s5 = inlined_call_operand.vmem [shape: f32[1,32], index: 5, kind: input, shape index: {}]
  %s6 = inlined_call_operand.vmem [shape: f32[2,1,32], index: 6, kind: input, shape index: {}]
  %s7 = inlined_call_operand.vmem [shape: f32[2,1,32], index: 7, kind: input, shape index: {}]
  %s8 = inlined_call_operand.vmem [shape: bf16[2,32,96], index: 8, kind: input, shape index: {}]
  %s9 = inlined_call_operand.vmem [shape: f32[2,1,96], index: 9, kind: input, shape index: {}]
  %s10 = inlined_call_operand.vmem [shape: bf16[2,32,32], index: 10, kind: input, shape index: {}]
  %s11 = inlined_call_operand.vmem [shape: f32[2,1,32], index: 11, kind: input, shape index: {}]
  %s12 = inlined_call_operand.vmem [shape: f32[2,1,32], index: 12, kind: input, shape index: {}]
  %s13 = inlined_call_operand.vmem [shape: f32[2,1,32], index: 13, kind: input, shape index: {}]
  %s14 = inlined_call_operand.vmem [shape: bf16[2,32,128], index: 14, kind: input, shape index: {}]
  %s15 = inlined_call_operand.vmem [shape: f32[2,1,128], index: 15, kind: input, shape index: {}]
  %s16 = inlined_call_operand.vmem [shape: bf16[2,128,32], index: 16, kind: input, shape index: {}]
  %s17 = inlined_call_operand.vmem [shape: f32[2,1,32], index: 17, kind: input, shape index: {}]
  %s18 = inlined_call_operand.vmem [shape: f32[1,32], index: 18, kind: input, shape index: {}]
  %s19 = inlined_call_operand.vmem [shape: f32[1,32], index: 19, kind: input, shape index: {}]
  %s20 = inlined_call_operand.vmem [shape: bf16[32,16], index: 20, kind: input, shape index: {}]
  %s21 = inlined_call_operand.vmem [shape: f32[1,16], index: 21, kind: input, shape index: {}]
  %s22 = inlined_call_operand.vmem [shape: f32[2,3,16], index: 22, kind: output, shape index: {}]
  %s23 = sld [smem:[#allocation0]]
  $region102: #{forward.2} parent=0
    _
  %s25 = ssub.s32 1, %s23
  %s26 = scalar_select 0, %s25, %s23
  $region1: #{forward.2} parent=0
    #allocation2 [shape = 'u8[1024]{0}', space=smem, size = 0x400, scoped, tag = 'input window, operand 0, single buffered']
    #allocation3 [shape = 's32[1]{0}', space=sflag, size = 0x4, scoped, tag = 'scoped memory for forward.2']
    %27 = vsyncpa [#allocation3], 0
    // Predicated region
    $region2: #{forward.2} parent=1 // pred_check
      _
    $region3: #{forward.2} parent=1 // pred_check_branch
      %29 = sbr.rel (0) target = $region5
    $region4: #{forward.2} parent=1 // pred_region
      %s31 = ssub.s32 32, 32
      %32 = vsyncadd [#allocation3], %s31
      %s34 = sshll.u32 %s0, 4
      %s35 = int_to_ptr.vmem [resolvable:$true] %s34
      %37 = dma.vmem_to_smem %s35, 32, [#allocation2], [#allocation3]
    $region5: #{forward.2} parent=1 // pred_fallthru
      _
    // Predicated region
    $region6: #{forward.2} parent=1 // pred_check
      _
    $region7: #{forward.2} parent=1 // pred_check_branch
      %39 = sbr.rel (0) target = $region9
    $region8: #{forward.2} parent=1 // pred_region
      _
    $region9: #{forward.2} parent=1 // pred_fallthru
      _
    // Predicated region
    $region10: #{forward.2} parent=1 // pred_check
      _
    $region11: #{forward.2} parent=1 // pred_check_branch
      %41 = sbr.rel (0) target = $region13
    $region12: #{forward.2} parent=1 // pred_region
      _
    $region13: #{forward.2} parent=1 // pred_fallthru
      _
    // Predicated region
    $region14: #{forward.2} parent=1 // pred_check
      _
    $region15: #{forward.2} parent=1 // pred_check_branch
      %43 = sbr.rel (0) target = $region17
    $region16: #{forward.2} parent=1 // pred_region
      _
    $region17: #{forward.2} parent=1 // pred_fallthru
      _
    // Predicated region
    $region18: #{forward.2} parent=1 // pred_check
      _
    $region19: #{forward.2} parent=1 // pred_check_branch
      %45 = sbr.rel (0) target = $region21
    $region20: #{forward.2} parent=1 // pred_region
      _
    $region21: #{forward.2} parent=1 // pred_fallthru
      _
    // Predicated region
    $region22: #{forward.2} parent=1 // pred_check
      _
    $region23: #{forward.2} parent=1 // pred_check_branch
      %47 = sbr.rel (0) target = $region25
    $region24: #{forward.2} parent=1 // pred_region
      _
    $region25: #{forward.2} parent=1 // pred_fallthru
      _
    // Predicated region
    $region26: #{forward.2} parent=1 // pred_check
      _
    $region27: #{forward.2} parent=1 // pred_check_branch
      %49 = sbr.rel (0) target = $region29
    $region28: #{forward.2} parent=1 // pred_region
      _
    $region29: #{forward.2} parent=1 // pred_fallthru
      _
    // Predicated region
    $region30: #{forward.2} parent=1 // pred_check
      _
    $region31: #{forward.2} parent=1 // pred_check_branch
      %51 = sbr.rel (0) target = $region33
    $region32: #{forward.2} parent=1 // pred_region
      _
    $region33: #{forward.2} parent=1 // pred_fallthru
      _
    // Predicated region
    $region34: #{forward.2} parent=1 // pred_check
      _
    $region35: #{forward.2} parent=1 // pred_check_branch
      %53 = sbr.rel (0) target = $region37
    $region36: #{forward.2} parent=1 // pred_region
      _
    $region37: #{forward.2} parent=1 // pred_fallthru
      _
    // Predicated region
    $region38: #{forward.2} parent=1 // pred_check
      _
    $region39: #{forward.2} parent=1 // pred_check_branch
      %55 = sbr.rel (0) target = $region41
    $region40: #{forward.2} parent=1 // pred_region
      _
    $region41: #{forward.2} parent=1 // pred_fallthru
      _
    // Predicated region
    $region42: #{forward.2} parent=1 // pred_check
      _
    $region43: #{forward.2} parent=1 // pred_check_branch
      %57 = sbr.rel (0) target = $region45
    $region44: #{forward.2} parent=1 // pred_region
      _
    $region45: #{forward.2} parent=1 // pred_fallthru
      _
    // Predicated region
    $region46: #{forward.2} parent=1 // pred_check
      _
    $region47: #{forward.2} parent=1 // pred_check_branch
      %59 = sbr.rel (0) target = $region49
    $region48: #{forward.2} parent=1 // pred_region
      _
    $region49: #{forward.2} parent=1 // pred_fallthru
      _
    // Predicated region
    $region50: #{forward.2} parent=1 // pred_check
      _
    $region51: #{forward.2} parent=1 // pred_check_branch
      %61 = sbr.rel (0) target = $region53
    $region52: #{forward.2} parent=1 // pred_region
      _
    $region53: #{forward.2} parent=1 // pred_fallthru
      _
    // Predicated region
    $region54: #{forward.2} parent=1 // pred_check
      _
    $region55: #{forward.2} parent=1 // pred_check_branch
      %63 = sbr.rel (0) target = $region57
    $region56: #{forward.2} parent=1 // pred_region
      _
    $region57: #{forward.2} parent=1 // pred_fallthru
      _
    // Predicated region
    $region58: #{forward.2} parent=1 // pred_check
      _
    $region59: #{forward.2} parent=1 // pred_check_branch
      %65 = sbr.rel (0) target = $region61
    $region60: #{forward.2} parent=1 // pred_region
      _
    $region61: #{forward.2} parent=1 // pred_fallthru
      _
    // Predicated region
    $region62: #{forward.2} parent=1 // pred_check
      _
    $region63: #{forward.2} parent=1 // pred_check_branch
      %67 = sbr.rel (0) target = $region65
    $region64: #{forward.2} parent=1 // pred_region
      _
    $region65: #{forward.2} parent=1 // pred_fallthru
      _
    // Predicated region
    $region66: #{forward.2} parent=1 // pred_check
      _
    $region67: #{forward.2} parent=1 // pred_check_branch
      %69 = sbr.rel (0) target = $region69
    $region68: #{forward.2} parent=1 // pred_region
      _
    $region69: #{forward.2} parent=1 // pred_fallthru
      _
    // Predicated region
    $region70: #{forward.2} parent=1 // pred_check
      _
    $region71: #{forward.2} parent=1 // pred_check_branch
      %71 = sbr.rel (0) target = $region73
    $region72: #{forward.2} parent=1 // pred_region
      _
    $region73: #{forward.2} parent=1 // pred_fallthru
      _
    // Predicated region
    $region74: #{forward.2} parent=1 // pred_check
      _
    $region75: #{forward.2} parent=1 // pred_check_branch
      %73 = sbr.rel (0) target = $region77
    $region76: #{forward.2} parent=1 // pred_region
      _
    $region77: #{forward.2} parent=1 // pred_fallthru
      _
    // Predicated region
    $region78: #{forward.2} parent=1 // pred_check
      _
    $region79: #{forward.2} parent=1 // pred_check_branch
      %75 = sbr.rel (0) target = $region81
    $region80: #{forward.2} parent=1 // pred_region
      _
    $region81: #{forward.2} parent=1 // pred_fallthru
      _
    // Predicated region
    $region82: #{forward.2} parent=1 // pred_check
      _
    $region83: #{forward.2} parent=1 // pred_check_branch
      %77 = sbr.rel (0) target = $region85
    $region84: #{forward.2} parent=1 // pred_region
      _
    $region85: #{forward.2} parent=1 // pred_fallthru
      _
    // Predicated region
    $region86: #{forward.2} parent=1 // pred_check
      _
    $region87: #{forward.2} parent=1 // pred_check_branch
      %79 = sbr.rel (0) target = $region89
    $region88: #{forward.2} parent=1 // pred_region
      _
    $region89: #{forward.2} parent=1 // pred_fallthru
      _
    // Predicated region
    $region90: #{forward.2} parent=1 // pred_check
      _
    $region91: #{forward.2} parent=1 // pred_check_branch
      %81 = sbr.rel (0) target = $region93
    $region92: #{forward.2} parent=1 // pred_region
      %82 = dma.done [#allocation3], 32
    $region93: #{forward.2} parent=1 // pred_fallthru
      _
    %83 = sfence
    %v85 = vld [vmem:[%s2] sm:$0xf]
    %v86 = vld [vmem:[%s2 + $0x4] sm:$0xf]
    %v87 = vld [vmem:[%s3] sm:$0x1]
    %v88 = vld [vmem:[%s4] sm:$0xff]
    %v89 = vld [vmem:[%s5] sm:$0x1]
    %v90 = vlaneseq
    %v91 = vshrl.u32 %v90, 7
    %v92 = vld [vmem:[%s1] sm:$0xff]
    %v93 = vpack.c.bf16 %v92, %v92
    %v95 = vlaneseq
    %v96 = vshrl.u32 %v95, 7
    %v97 = vsub.s32 0, %v96
    %v98 = vrot.slane %v87, %v97
    %v102 = vunpack.c.l.b16 %v85
    %v103 = vunpack.c.l.b16 %v86
    %v104 = vpack.c.b16 %v103, %v102
    %vm106 = vcmask 130048
    %v108 = vsel %vm106, %v93, 0
    %110 = vmatprep.subr.bf16.mxu0 0
    %111 = vmatpush1.bf16.msra.mxu0 %v104
    %112 = vmatprep.subr.bf16.mxu0 0
    %113 = vmatpush1.bf16.msra.mxu0 0
    %114 = vmatprep.subr.bf16.mxu0 0
    %115 = vmatpush1.bf16.msra.mxu0 0
    %116 = vmatprep.subr.bf16.mxu0 0
    %117 = vmatpush1.bf16.msra.mxu0 0
    %118 = vmatprep.subr.bf16.mxu0 0
    %119 = vmatpush1.bf16.msra.mxu0 0
    %120 = vmatprep.subr.bf16.mxu0 0
    %121 = vmatpush1.bf16.msra.mxu0 0
    %122 = vmatprep.subr.bf16.mxu0 0
    %123 = vmatpush1.bf16.msra.mxu0 0
    %124 = vmatprep.subr.bf16.mxu0 0
    %125 = vmatpush1.bf16.msra.mxu0 0
    %126 = vmatprep.subr.bf16.mxu0 0
    %127 = vmatpush1.bf16.msra.mxu0 0
    %128 = vmatprep.subr.bf16.mxu0 0
    %129 = vmatpush1.bf16.msra.mxu0 0
    %130 = vmatprep.subr.bf16.mxu0 0
    %131 = vmatpush1.bf16.msra.mxu0 0
    %132 = vmatprep.subr.bf16.mxu0 0
    %133 = vmatpush1.bf16.msra.mxu0 0
    %134 = vmatprep.subr.bf16.mxu0 0
    %135 = vmatpush1.bf16.msra.mxu0 0
    %136 = vmatprep.subr.bf16.mxu0 0
    %137 = vmatpush1.bf16.msra.mxu0 0
    %138 = vmatprep.subr.bf16.mxu0 0
    %139 = vmatpush1.bf16.msra.mxu0 0
    %140 = vmatprep.subr.bf16.mxu0 0
    %141 = vmatpush1.bf16.msra.mxu0 0
    %142 = vmatprep.mubr.bf16.mxu0 0
    %143 = vmatmul.mubr.bf16.gmra.mrb[0].mxu0 %v108
    %v144 = vpop.f32.mrb[0].mxu0
    %v145 = vadd.f32 %v98, %v144
    %v146 = vpop.f32.mrb[0].mxu0
    %v147 = vpop.f32.mrb[0].mxu0
    %v148 = vpop.f32.mrb[0].mxu0
    %149 = vdwg.mxu0
    %v150 = vadd.f32 %v145, %v88
    %s151 = sld [smem:[#allocation2]]
    %v152 = vstv %s151
    %vm153 = vcmp.eq.s32.totalorder %v91, %v152
    %v154 = vsel %vm153, 1, 0
    %v155 = vcvt.s32.f32 %v154
    %v156 = vmul.f32 %v150, %v155
    %vm157 = vcmask 261120
    %v158 = vsel %vm157, %v156, 0.0
    %v159 = vrot.slane %v158, 4
    %v160 = vadd.f32 %v158, %v159
    %v161 = vrot.slane %v160, 2
    %v162 = vadd.f32 %v160, %v161
    %v163 = vrot.slane %v162, 1
    %v164 = vadd.f32 %v162, %v163
    %s165 = sld [smem:[#allocation2 + $0x1]]
    %v166 = vstv %s165
    %vm167 = vcmp.eq.s32.totalorder %v91, %v166
    %v168 = vsel %vm167, 1, 0
    %v169 = vcvt.s32.f32 %v168
    %v170 = vmul.f32 %v150, %v169
    %v171 = vsel %vm157, %v170, 0.0
    %v172 = vrot.slane %v171, 4
    %v173 = vadd.f32 %v171, %v172
    %v174 = vrot.slane %v173, 2
    %v175 = vadd.f32 %v173, %v174
    %v176 = vrot.slane %v175, 1
    %v177 = vadd.f32 %v175, %v176
    %vm178 = vcmask 1040384
    %v179 = vsel %vm178, %v89, %v164
    %vm180 = vcmask 1041408
    %v181 = vsel %vm180, %v179, %v177
    %s182 = scalar_lea.vmem %s1, 8
    %v183 = vld [vmem:[%s182] sm:$0xff]
    %v184 = vpack.c.bf16 %v183, %v183
    %v186 = vsel %vm106, %v184, 0
    %188 = vmatprep.subr.bf16.mxu0 0
    %189 = vmatpush1.bf16.msra.mxu0 %v104
    %190 = vmatprep.subr.bf16.mxu0 0
    %191 = vmatpush1.bf16.msra.mxu0 0
    %192 = vmatprep.subr.bf16.mxu0 0
    %193 = vmatpush1.bf16.msra.mxu0 0
    %194 = vmatprep.subr.bf16.mxu0 0
    %195 = vmatpush1.bf16.msra.mxu0 0
    %196 = vmatprep.subr.bf16.mxu0 0
    %197 = vmatpush1.bf16.msra.mxu0 0
    %198 = vmatprep.subr.bf16.mxu0 0
    %199 = vmatpush1.bf16.msra.mxu0 0
    %200 = vmatprep.subr.bf16.mxu0 0
    %201 = vmatpush1.bf16.msra.mxu0 0
    %202 = vmatprep.subr.bf16.mxu0 0
    %203 = vmatpush1.bf16.msra.mxu0 0
    %204 = vmatprep.subr.bf16.mxu0 0
    %205 = vmatpush1.bf16.msra.mxu0 0
    %206 = vmatprep.subr.bf16.mxu0 0
    %207 = vmatpush1.bf16.msra.mxu0 0
    %208 = vmatprep.subr.bf16.mxu0 0
    %209 = vmatpush1.bf16.msra.mxu0 0
    %210 = vmatprep.subr.bf16.mxu0 0
    %211 = vmatpush1.bf16.msra.mxu0 0
    %212 = vmatprep.subr.bf16.mxu0 0
    %213 = vmatpush1.bf16.msra.mxu0 0
    %214 = vmatprep.subr.bf16.mxu0 0
    %215 = vmatpush1.bf16.msra.mxu0 0
    %216 = vmatprep.subr.bf16.mxu0 0
    %217 = vmatpush1.bf16.msra.mxu0 0
    %218 = vmatprep.subr.bf16.mxu0 0
    %219 = vmatpush1.bf16.msra.mxu0 0
    %220 = vmatprep.mubr.bf16.mxu0 0
    %221 = vmatmul.mubr.bf16.gmra.mrb[0].mxu0 %v186
    %v222 = vpop.f32.mrb[0].mxu0
    %v223 = vadd.f32 %v98, %v222
    %v224 = vpop.f32.mrb[0].mxu0
    %v225 = vpop.f32.mrb[0].mxu0
    %v226 = vpop.f32.mrb[0].mxu0
    %227 = vdwg.mxu0
    %v228 = vadd.f32 %v223, %v88
    %s229 = sld [smem:[#allocation2 + $0x80]]
    %v230 = vstv %s229
    %vm231 = vcmp.eq.s32.totalorder %v91, %v230
    %v232 = vsel %vm231, 1, 0
    %v233 = vcvt.s32.f32 %v232
    %v234 = vmul.f32 %v228, %v233
    %v235 = vsel %vm157, %v234, 0.0
    %v236 = vrot.slane %v235, 4
    %v237 = vadd.f32 %v235, %v236
    %v238 = vrot.slane %v237, 2
    %v239 = vadd.f32 %v237, %v238
    %v240 = vrot.slane %v239, 1
    %v241 = vadd.f32 %v239, %v240
    %s242 = sld [smem:[#allocation2 + $0x81]]
    %v243 = vstv %s242
    %vm244 = vcmp.eq.s32.totalorder %v91, %v243
    %v245 = vsel %vm244, 1, 0
    %v246 = vcvt.s32.f32 %v245
    %v247 = vmul.f32 %v228, %v246
    %v248 = vsel %vm157, %v247, 0.0
    %v249 = vrot.slane %v248, 4
    %v250 = vadd.f32 %v248, %v249
    %v251 = vrot.slane %v250, 2
    %v252 = vadd.f32 %v250, %v251
    %v253 = vrot.slane %v252, 1
    %v254 = vadd.f32 %v252, %v253
    %v255 = vsel %vm178, %v89, %v241
    %v256 = vsel %vm180, %v255, %v254
    %v258 = vrot.slane %v256, 5
    %vm260 = vcmask 1042432
    %v261 = vsel %vm260, %v181, %v258
    %v262 = vld [vmem:[%s6] sm:$0x1]
    %v263 = vld [vmem:[%s7] sm:$0x1]
    %v264 = vld [vmem:[%s8] sm:$0xf]
    %v265 = vld [vmem:[%s8 + $0x4] sm:$0xf]
    %v266 = vld [vmem:[%s8 + $0x8] sm:$0xf]
    %v267 = vld [vmem:[%s8 + $0xc] sm:$0xf]
    %v268 = vld [vmem:[%s9] sm:$0x1]
    %v269 = vld [vmem:[%s10] sm:$0xf]
    %v270 = vld [vmem:[%s10 + $0x4] sm:$0xf]
    %v271 = vld [vmem:[%s10 + $0x8] sm:$0xf]
    %v272 = vld [vmem:[%s10 + $0xc] sm:$0xf]
    %v273 = vld [vmem:[%s11] sm:$0x1]
    %v274 = vld [vmem:[%s12] sm:$0x1]
    %v275 = vld [vmem:[%s13] sm:$0x1]
    %v276 = vld [vmem:[%s14] sm:$0xf]
    %v277 = vld [vmem:[%s14 + $0x4] sm:$0xf]
    %v278 = vld [vmem:[%s14 + $0x8] sm:$0xf]
    %v279 = vld [vmem:[%s14 + $0xc] sm:$0xf]
    %v280 = vld [vmem:[%s15] sm:$0x1]
    %v281 = vld [vmem:[%s16] sm:$0xf]
    %v282 = vld [vmem:[%s16 + $0x4] sm:$0xf]
    %v283 = vld [vmem:[%s16 + $0x8] sm:$0xf]
    %v284 = vld [vmem:[%s16 + $0xc] sm:$0xf]
    %v285 = vld [vmem:[%s16 + $0x10] sm:$0xf]
    %v286 = vld [vmem:[%s16 + $0x14] sm:$0xf]
    %v287 = vld [vmem:[%s16 + $0x18] sm:$0xf]
    %v288 = vld [vmem:[%s16 + $0x1c] sm:$0xf]
    %v289 = vld [vmem:[%s16 + $0x20] sm:$0xf]
    %v290 = vld [vmem:[%s16 + $0x24] sm:$0xf]
    %v291 = vld [vmem:[%s16 + $0x28] sm:$0xf]
    %v292 = vld [vmem:[%s16 + $0x2c] sm:$0xf]
    %v293 = vld [vmem:[%s16 + $0x30] sm:$0xf]
    %v294 = vld [vmem:[%s16 + $0x34] sm:$0xf]
    %v295 = vld [vmem:[%s16 + $0x38] sm:$0xf]
    %v296 = vld [vmem:[%s16 + $0x3c] sm:$0xf]
    %v297 = vld [vmem:[%s17] sm:$0x1]
    %vm298 = vcmask 259072
    %v299 = vsel %vm298, %v261, 0.0
    %300 = vadd.xlane.f32.xlu0 %v299
    %v301 = vpop.xlane.xlu0 %300
    %v302 = vrcp.pop 32.0
    %v303 = vmul.f32 %v301, %v302
    %v304 = vsub.f32 %v261, %v303
    %v305 = vmul.f32 %v304, %v304
    %v306 = vsel %vm298, %v305, 0.0
    %307 = vadd.xlane.f32.xlu0 %v306
    %v308 = vpop.xlane.xlu0 %307
    %v309 = vmul.f32 %v308, %v302
    %v310 = vadd.f32 %v309, 1e-05
    %v311 = vrsqrt.pop %v310
    %v312 = vmul.f32 %v304, %v311
    %v314 = vlaneseq
    %v315 = vshrl.u32 %v314, 7
    %v316 = vsub.s32 0, %v315
    %v317 = vrot.slane %v262, %v316
    %v319 = vmul.f32 %v312, %v317
    %v321 = vlaneseq
    %v322 = vshrl.u32 %v321, 7
    %v323 = vsub.s32 0, %v322
    %v324 = vrot.slane %v263, %v323
    %v326 = vadd.f32 %v319, %v324
    %v327 = vpack.c.bf16 %v326, %v326
    %v329 = vlaneseq
    %v330 = vshrl.u32 %v329, 7
    %v331 = vsub.s32 0, %v330
    %v332 = vrot.slane %v268, %v331
    %v338 = vunpack.c.l.b16 %v264
    %v339 = vunpack.c.l.b16 %v265
    %v340 = vunpack.c.l.b16 %v266
    %v341 = vunpack.c.l.b16 %v267
    %v342 = vpack.c.b16 %v339, %v338
    %v343 = vpack.c.b16 %v341, %v340
    %v347 = vsel %vm157, %v327, 0
    %349 = vmatprep.subr.bf16.mxu0 0
    %350 = vmatpush1.bf16.msra.mxu0 %v342
    %351 = vmatprep.subr.bf16.mxu0 0
    %352 = vmatpush1.bf16.msra.mxu0 %v343
    %353 = vmatprep.subr.bf16.mxu0 0
    %354 = vmatpush1.bf16.msra.mxu0 0
    %355 = vmatprep.subr.bf16.mxu0 0
    %356 = vmatpush1.bf16.msra.mxu0 0
    %357 = vmatprep.subr.bf16.mxu0 0
    %358 = vmatpush1.bf16.msra.mxu0 0
    %359 = vmatprep.subr.bf16.mxu0 0
    %360 = vmatpush1.bf16.msra.mxu0 0
    %361 = vmatprep.subr.bf16.mxu0 0
    %362 = vmatpush1.bf16.msra.mxu0 0
    %363 = vmatprep.subr.bf16.mxu0 0
    %364 = vmatpush1.bf16.msra.mxu0 0
    %365 = vmatprep.subr.bf16.mxu0 0
    %366 = vmatpush1.bf16.msra.mxu0 0
    %367 = vmatprep.subr.bf16.mxu0 0
    %368 = vmatpush1.bf16.msra.mxu0 0
    %369 = vmatprep.subr.bf16.mxu0 0
    %370 = vmatpush1.bf16.msra.mxu0 0
    %371 = vmatprep.subr.bf16.mxu0 0
    %372 = vmatpush1.bf16.msra.mxu0 0
    %373 = vmatprep.subr.bf16.mxu0 0
    %374 = vmatpush1.bf16.msra.mxu0 0
    %375 = vmatprep.subr.bf16.mxu0 0
    %376 = vmatpush1.bf16.msra.mxu0 0
    %377 = vmatprep.subr.bf16.mxu0 0
    %378 = vmatpush1.bf16.msra.mxu0 0
    %379 = vmatprep.subr.bf16.mxu0 0
    %380 = vmatpush1.bf16.msra.mxu0 0
    %381 = vmatprep.mubr.bf16.mxu0 0
    %382 = vmatmul.mubr.bf16.gmra.mrb[0].mxu0 %v347
    %v383 = vpop.f32.mrb[0].mxu0
    %v384 = vadd.f32 %v332, %v383
    %v385 = vpop.f32.mrb[0].mxu0
    %v386 = vpop.f32.mrb[0].mxu0
    %v387 = vpop.f32.mrb[0].mxu0
    %388 = vdwg.mxu0
    %390 = vrot.lane.b32.xlu0 %v384, 96
    %v391 = vpop.permute.xlu0 %390
    %vm392 = vcmask 64512
    %v393 = vsel %vm392, %v384, 0
    %v395 = vsel %vm392, %v391, 0
    %397 = vmatprep.subr.mxu0 0.0
    %398 = vmatpush1.xpose.msra.mxu0 %v395
    %399 = vmatprep.subr.mxu0 0.0
    %400 = vmatpush1.xpose.msra.mxu0 0.0
    %401 = vmatprep.subr.mxu0 0.0
    %402 = vmatpush1.xpose.msra.mxu0 0.0
    %403 = vmatprep.subr.mxu0 0.0
    %404 = vmatpush1.xpose.msra.mxu0 0.0
    %405 = vmatprep.subr.mxu0 0.0
    %406 = vmatpush1.xpose.msra.mxu0 0.0
    %407 = vmatprep.subr.mxu0 0.0
    %408 = vmatpush1.xpose.msra.mxu0 0.0
    %409 = vmatprep.subr.mxu0 0.0
    %410 = vmatpush1.xpose.msra.mxu0 0.0
    %411 = vmatprep.subr.mxu0 0.0
    %412 = vmatpush1.xpose.msra.mxu0 0.0
    %413 = vmatprep.subr.mxu0 0.0
    %414 = vmatpush1.xpose.msra.mxu0 0.0
    %415 = vmatprep.subr.mxu0 0.0
    %416 = vmatpush1.xpose.msra.mxu0 0.0
    %417 = vmatprep.subr.mxu0 0.0
    %418 = vmatpush1.xpose.msra.mxu0 0.0
    %419 = vmatprep.subr.mxu0 0.0
    %420 = vmatpush1.xpose.msra.mxu0 0.0
    %421 = vmatprep.subr.mxu0 0.0
    %422 = vmatpush1.xpose.msra.mxu0 0.0
    %423 = vmatprep.subr.mxu0 0.0
    %424 = vmatpush1.xpose.msra.mxu0 0.0
    %425 = vmatprep.subr.mxu0 0.0
    %426 = vmatpush1.xpose.msra.mxu0 0.0
    %427 = vmatprep.subr.mxu0 0.0
    %428 = vmatpush1.xpose.msra.mxu0 0.0
    %429 = vmatprep.subr.mxu0 0.0
    %430 = vmatpush1.xpose.msra.mxu0 0.0
    %431 = vmatprep.subr.mxu0 0.0
    %432 = vmatpush1.xpose.msra.mxu0 0.0
    %433 = vmatprep.subr.mxu0 0.0
    %434 = vmatpush1.xpose.msra.mxu0 0.0
    %435 = vmatprep.subr.mxu0 0.0
    %436 = vmatpush1.xpose.msra.mxu0 0.0
    %437 = vmatprep.subr.mxu0 0.0
    %438 = vmatpush1.xpose.msra.mxu0 0.0
    %439 = vmatprep.subr.mxu0 0.0
    %440 = vmatpush1.xpose.msra.mxu0 0.0
    %441 = vmatprep.subr.mxu0 0.0
    %442 = vmatpush1.xpose.msra.mxu0 0.0
    %443 = vmatprep.subr.mxu0 0.0
    %444 = vmatpush1.xpose.msra.mxu0 0.0
    %445 = vmatprep.subr.mxu0 0.0
    %446 = vmatpush1.xpose.msra.mxu0 0.0
    %447 = vmatprep.subr.mxu0 0.0
    %448 = vmatpush1.xpose.msra.mxu0 0.0
    %449 = vmatprep.subr.mxu0 0.0
    %450 = vmatpush1.xpose.msra.mxu0 0.0
    %451 = vmatprep.subr.mxu0 0.0
    %452 = vmatpush1.xpose.msra.mxu0 0.0
    %453 = vmatprep.subr.mxu0 0.0
    %454 = vmatpush1.xpose.msra.mxu0 0.0
    %455 = vmatprep.subr.mxu0 0.0
    %456 = vmatpush1.xpose.msra.mxu0 0.0
    %457 = vmatprep.subr.mxu0 0.0
    %458 = vmatpush1.xpose.msra.mxu0 0.0
    %459 = vmatprep.subr.mxu0 0.0
    %460 = vmatpush1.xpose.msra.mxu0 0.0
    %461 = vmatprep.mubr.f32.mxu0 0.0
    %462 = vmatmul.mubr.f32.gmra.mrb[0].mxu0 %v393
    %v463 = vpop.f32.mrb[0].mxu0
    %v464 = vadd.f32 0.0, %v463
    %v465 = vpop.f32.mrb[0].mxu0
    %466 = vdwg.mxu0
    %vm467 = vcmask 18432
    %v468 = vsel %vm467, %v464, -inf
    %469 = vmax.xlane.f32.xlu0 %v468
    %v470 = vpop.xlane.xlu0 %469
    %v471 = vsub.f32 %v464, %v470
    %v472 = vmul.f32 %v471, 1.442695
    %v473 = vpow.pop %v472
    %v474 = vsel %vm467, %v473, 0.0
    %475 = vadd.xlane.f32.xlu0 %v474
    %v476 = vpop.xlane.xlu0 %475
    %v477 = vrcp.pop %v476
    %v478 = vmul.f32 %v473, %v477
    %479 = vrot.lane.b32.xlu0 %v384, 64
    %v480 = vpop.permute.xlu0 %479
    %vm481 = vcmask 23552
    %v483 = vsel %vm481, %v478, 0
    %v485 = vsel %vm260, %v480, 0
    %487 = vmatprep.subr.mxu0 0.0
    %488 = vmatpush1.msra.mxu0 %v485
    %489 = vmatprep.subr.mxu0 0.0
    %490 = vmatpush1.msra.mxu0 0.0
    %491 = vmatprep.subr.mxu0 0.0
    %492 = vmatpush1.msra.mxu0 0.0
    %493 = vmatprep.subr.mxu0 0.0
    %494 = vmatpush1.msra.mxu0 0.0
    %495 = vmatprep.subr.mxu0 0.0
    %496 = vmatpush1.msra.mxu0 0.0
    %497 = vmatprep.subr.mxu0 0.0
    %498 = vmatpush1.msra.mxu0 0.0
    %499 = vmatprep.subr.mxu0 0.0
    %500 = vmatpush1.msra.mxu0 0.0
    %501 = vmatprep.subr.mxu0 0.0
    %502 = vmatpush1.msra.mxu0 0.0
    %503 = vmatprep.subr.mxu0 0.0
    %504 = vmatpush1.msra.mxu0 0.0
    %505 = vmatprep.subr.mxu0 0.0
    %506 = vmatpush1.msra.mxu0 0.0
    %507 = vmatprep.subr.mxu0 0.0
    %508 = vmatpush1.msra.mxu0 0.0
    %509 = vmatprep.subr.mxu0 0.0
    %510 = vmatpush1.msra.mxu0 0.0
    %511 = vmatprep.subr.mxu0 0.0
    %512 = vmatpush1.msra.mxu0 0.0
    %513 = vmatprep.subr.mxu0 0.0
    %514 = vmatpush1.msra.mxu0 0.0
    %515 = vmatprep.subr.mxu0 0.0
    %516 = vmatpush1.msra.mxu0 0.0
    %517 = vmatprep.subr.mxu0 0.0
    %518 = vmatpush1.msra.mxu0 0.0
    %519 = vmatprep.subr.mxu0 0.0
    %520 = vmatpush1.msra.mxu0 0.0
    %521 = vmatprep.subr.mxu0 0.0
    %522 = vmatpush1.msra.mxu0 0.0
    %523 = vmatprep.subr.mxu0 0.0
    %524 = vmatpush1.msra.mxu0 0.0
    %525 = vmatprep.subr.mxu0 0.0
    %526 = vmatpush1.msra.mxu0 0.0
    %527 = vmatprep.subr.mxu0 0.0
    %528 = vmatpush1.msra.mxu0 0.0
    %529 = vmatprep.subr.mxu0 0.0
    %530 = vmatpush1.msra.mxu0 0.0
    %531 = vmatprep.subr.mxu0 0.0
    %532 = vmatpush1.msra.mxu0 0.0
    %533 = vmatprep.subr.mxu0 0.0
    %534 = vmatpush1.msra.mxu0 0.0
    %535 = vmatprep.subr.mxu0 0.0
    %536 = vmatpush1.msra.mxu0 0.0
    %537 = vmatprep.subr.mxu0 0.0
    %538 = vmatpush1.msra.mxu0 0.0
    %539 = vmatprep.subr.mxu0 0.0
    %540 = vmatpush1.msra.mxu0 0.0
    %541 = vmatprep.subr.mxu0 0.0
    %542 = vmatpush1.msra.mxu0 0.0
    %543 = vmatprep.subr.mxu0 0.0
    %544 = vmatpush1.msra.mxu0 0.0
    %545 = vmatprep.subr.mxu0 0.0
    %546 = vmatpush1.msra.mxu0 0.0
    %547 = vmatprep.subr.mxu0 0.0
    %548 = vmatpush1.msra.mxu0 0.0
    %549 = vmatprep.subr.mxu0 0.0
    %550 = vmatpush1.msra.mxu0 0.0
    %551 = vmatprep.mubr.f32.mxu0 0.0
    %552 = vmatmul.mubr.f32.gmra.mrb[0].mxu0 %v483
    %v553 = vpop.f32.mrb[0].mxu0
    %v554 = vadd.f32 0.0, %v553
    %v555 = vpop.f32.mrb[0].mxu0
    %556 = vdwg.mxu0
    %v557 = vpack.c.bf16 %v554, %v554
    %558 = vrot.lane.b32.xlu0 %v384, 120
    %v559 = vpop.permute.xlu0 %558
    %560 = vrot.lane.b32.xlu0 %v384, 88
    %v561 = vpop.permute.xlu0 %560
    %v562 = vsel %vm392, %v559, 0
    %v564 = vsel %vm392, %v561, 0
    %566 = vmatprep.subr.mxu0 0.0
    %567 = vmatpush1.xpose.msra.mxu0 %v564
    %568 = vmatprep.subr.mxu0 0.0
    %569 = vmatpush1.xpose.msra.mxu0 0.0
    %570 = vmatprep.subr.mxu0 0.0
    %571 = vmatpush1.xpose.msra.mxu0 0.0
    %572 = vmatprep.subr.mxu0 0.0
    %573 = vmatpush1.xpose.msra.mxu0 0.0
    %574 = vmatprep.subr.mxu0 0.0
    %575 = vmatpush1.xpose.msra.mxu0 0.0
    %576 = vmatprep.subr.mxu0 0.0
    %577 = vmatpush1.xpose.msra.mxu0 0.0
    %578 = vmatprep.subr.mxu0 0.0
    %579 = vmatpush1.xpose.msra.mxu0 0.0
    %580 = vmatprep.subr.mxu0 0.0
    %581 = vmatpush1.xpose.msra.mxu0 0.0
    %582 = vmatprep.subr.mxu0 0.0
    %583 = vmatpush1.xpose.msra.mxu0 0.0
    %584 = vmatprep.subr.mxu0 0.0
    %585 = vmatpush1.xpose.msra.mxu0 0.0
    %586 = vmatprep.subr.mxu0 0.0
    %587 = vmatpush1.xpose.msra.mxu0 0.0
    %588 = vmatprep.subr.mxu0 0.0
    %589 = vmatpush1.xpose.msra.mxu0 0.0
    %590 = vmatprep.subr.mxu0 0.0
    %591 = vmatpush1.xpose.msra.mxu0 0.0
    %592 = vmatprep.subr.mxu0 0.0
    %593 = vmatpush1.xpose.msra.mxu0 0.0
    %594 = vmatprep.subr.mxu0 0.0
    %595 = vmatpush1.xpose.msra.mxu0 0.0
    %596 = vmatprep.subr.mxu0 0.0
    %597 = vmatpush1.xpose.msra.mxu0 0.0
    %598 = vmatprep.subr.mxu0 0.0
    %599 = vmatpush1.xpose.msra.mxu0 0.0
    %600 = vmatprep.subr.mxu0 0.0
    %601 = vmatpush1.xpose.msra.mxu0 0.0
    %602 = vmatprep.subr.mxu0 0.0
    %603 = vmatpush1.xpose.msra.mxu0 0.0
    %604 = vmatprep.subr.mxu0 0.0
    %605 = vmatpush1.xpose.msra.mxu0 0.0
    %606 = vmatprep.subr.mxu0 0.0
    %607 = vmatpush1.xpose.msra.mxu0 0.0
    %608 = vmatprep.subr.mxu0 0.0
    %609 = vmatpush1.xpose.msra.mxu0 0.0
    %610 = vmatprep.subr.mxu0 0.0
    %611 = vmatpush1.xpose.msra.mxu0 0.0
    %612 = vmatprep.subr.mxu0 0.0
    %613 = vmatpush1.xpose.msra.mxu0 0.0
    %614 = vmatprep.subr.mxu0 0.0
    %615 = vmatpush1.xpose.msra.mxu0 0.0
    %616 = vmatprep.subr.mxu0 0.0
    %617 = vmatpush1.xpose.msra.mxu0 0.0
    %618 = vmatprep.subr.mxu0 0.0
    %619 = vmatpush1.xpose.msra.mxu0 0.0
    %620 = vmatprep.subr.mxu0 0.0
    %621 = vmatpush1.xpose.msra.mxu0 0.0
    %622 = vmatprep.subr.mxu0 0.0
    %623 = vmatpush1.xpose.msra.mxu0 0.0
    %624 = vmatprep.subr.mxu0 0.0
    %625 = vmatpush1.xpose.msra.mxu0 0.0
    %626 = vmatprep.subr.mxu0 0.0
    %627 = vmatpush1.xpose.msra.mxu0 0.0
    %628 = vmatprep.subr.mxu0 0.0
    %629 = vmatpush1.xpose.msra.mxu0 0.0
    %630 = vmatprep.mubr.f32.mxu0 0.0
    %631 = vmatmul.mubr.f32.gmra.mrb[0].mxu0 %v562
    %v632 = vpop.f32.mrb[0].mxu0
    %v633 = vadd.f32 0.0, %v632
    %v634 = vpop.f32.mrb[0].mxu0
    %635 = vdwg.mxu0
    %v636 = vsel %vm467, %v633, -inf
    %637 = vmax.xlane.f32.xlu0 %v636
    %v638 = vpop.xlane.xlu0 %637
    %v639 = vsub.f32 %v633, %v638
    %v640 = vmul.f32 %v639, 1.442695
    %v641 = vpow.pop %v640
    %v642 = vsel %vm467, %v641, 0.0
    %643 = vadd.xlane.f32.xlu0 %v642
    %v644 = vpop.xlane.xlu0 %643
    %v645 = vrcp.pop %v644
    %v646 = vmul.f32 %v641, %v645
    %647 = vrot.lane.b32.xlu0 %v384, 56
    %v648 = vpop.permute.xlu0 %647
    %v650 = vsel %vm481, %v646, 0
    %v652 = vsel %vm260, %v648, 0
    %654 = vmatprep.subr.mxu0 0.0
    %655 = vmatpush1.msra.mxu0 %v652
    %656 = vmatprep.subr.mxu0 0.0
    %657 = vmatpush1.msra.mxu0 0.0
    %658 = vmatprep.subr.mxu0 0.0
    %659 = vmatpush1.msra.mxu0 0.0
    %660 = vmatprep.subr.mxu0 0.0
    %661 = vmatpush1.msra.mxu0 0.0
    %662 = vmatprep.subr.mxu0 0.0
    %663 = vmatpush1.msra.mxu0 0.0
    %664 = vmatprep.subr.mxu0 0.0
    %665 = vmatpush1.msra.mxu0 0.0
    %666 = vmatprep.subr.mxu0 0.0
    %667 = vmatpush1.msra.mxu0 0.0
    %668 = vmatprep.subr.mxu0 0.0
    %669 = vmatpush1.msra.mxu0 0.0
    %670 = vmatprep.subr.mxu0 0.0
    %671 = vmatpush1.msra.mxu0 0.0
    %672 = vmatprep.subr.mxu0 0.0
    %673 = vmatpush1.msra.mxu0 0.0
    %674 = vmatprep.subr.mxu0 0.0
    %675 = vmatpush1.msra.mxu0 0.0
    %676 = vmatprep.subr.mxu0 0.0
    %677 = vmatpush1.msra.mxu0 0.0
    %678 = vmatprep.subr.mxu0 0.0
    %679 = vmatpush1.msra.mxu0 0.0
    %680 = vmatprep.subr.mxu0 0.0
    %681 = vmatpush1.msra.mxu0 0.0
    %682 = vmatprep.subr.mxu0 0.0
    %683 = vmatpush1.msra.mxu0 0.0
    %684 = vmatprep.subr.mxu0 0.0
    %685 = vmatpush1.msra.mxu0 0.0
    %686 = vmatprep.subr.mxu0 0.0
    %687 = vmatpush1.msra.mxu0 0.0
    %688 = vmatprep.subr.mxu0 0.0
    %689 = vmatpush1.msra.mxu0 0.0
    %690 = vmatprep.subr.mxu0 0.0
    %691 = vmatpush1.msra.mxu0 0.0
    %692 = vmatprep.subr.mxu0 0.0
    %693 = vmatpush1.msra.mxu0 0.0
    %694 = vmatprep.subr.mxu0 0.0
    %695 = vmatpush1.msra.mxu0 0.0
    %696 = vmatprep.subr.mxu0 0.0
    %697 = vmatpush1.msra.mxu0 0.0
    %698 = vmatprep.subr.mxu0 0.0
    %699 = vmatpush1.msra.mxu0 0.0
    %700 = vmatprep.subr.mxu0 0.0
    %701 = vmatpush1.msra.mxu0 0.0
    %702 = vmatprep.subr.mxu0 0.0
    %703 = vmatpush1.msra.mxu0 0.0
    %704 = vmatprep.subr.mxu0 0.0
    %705 = vmatpush1.msra.mxu0 0.0
    %706 = vmatprep.subr.mxu0 0.0
    %707 = vmatpush1.msra.mxu0 0.0
    %708 = vmatprep.subr.mxu0 0.0
    %709 = vmatpush1.msra.mxu0 0.0
    %710 = vmatprep.subr.mxu0 0.0
    %711 = vmatpush1.msra.mxu0 0.0
    %712 = vmatprep.subr.mxu0 0.0
    %713 = vmatpush1.msra.mxu0 0.0
    %714 = vmatprep.subr.mxu0 0.0
    %715 = vmatpush1.msra.mxu0 0.0
    %716 = vmatprep.subr.mxu0 0.0
    %717 = vmatpush1.msra.mxu0 0.0
    %718 = vmatprep.mubr.f32.mxu0 0.0
    %719 = vmatmul.mubr.f32.gmra.mrb[0].mxu0 %v650
    %v720 = vpop.f32.mrb[0].mxu0
    %v721 = vadd.f32 0.0, %v720
    %v722 = vpop.f32.mrb[0].mxu0
    %723 = vdwg.mxu0
    %v724 = vpack.c.bf16 %v721, %v721
    %v726 = vsel %vm392, %v724, 0
    %vm728 = vcmask 1043456
    %v730 = vsel %vm728, %v270, 0
    %732 = vmatprep.subr.bf16.mxu0 0
    %733 = vmatpush1.bf16.msra.mxu0 %v730
    %734 = vmatprep.subr.bf16.mxu0 0
    %735 = vmatpush1.bf16.msra.mxu0 0
    %736 = vmatprep.subr.bf16.mxu0 0
    %737 = vmatpush1.bf16.msra.mxu0 0
    %738 = vmatprep.subr.bf16.mxu0 0
    %739 = vmatpush1.bf16.msra.mxu0 0
    %740 = vmatprep.subr.bf16.mxu0 0
    %741 = vmatpush1.bf16.msra.mxu0 0
    %742 = vmatprep.subr.bf16.mxu0 0
    %743 = vmatpush1.bf16.msra.mxu0 0
    %744 = vmatprep.subr.bf16.mxu0 0
    %745 = vmatpush1.bf16.msra.mxu0 0
    %746 = vmatprep.subr.bf16.mxu0 0
    %747 = vmatpush1.bf16.msra.mxu0 0
    %748 = vmatprep.subr.bf16.mxu0 0
    %749 = vmatpush1.bf16.msra.mxu0 0
    %750 = vmatprep.subr.bf16.mxu0 0
    %751 = vmatpush1.bf16.msra.mxu0 0
    %752 = vmatprep.subr.bf16.mxu0 0
    %753 = vmatpush1.bf16.msra.mxu0 0
    %754 = vmatprep.subr.bf16.mxu0 0
    %755 = vmatpush1.bf16.msra.mxu0 0
    %756 = vmatprep.subr.bf16.mxu0 0
    %757 = vmatpush1.bf16.msra.mxu0 0
    %758 = vmatprep.subr.bf16.mxu0 0
    %759 = vmatpush1.bf16.msra.mxu0 0
    %760 = vmatprep.subr.bf16.mxu0 0
    %761 = vmatpush1.bf16.msra.mxu0 0
    %762 = vmatprep.subr.bf16.mxu0 0
    %763 = vmatpush1.bf16.msra.mxu0 0
    %764 = vmatprep.mubr.bf16.mxu0 0
    %765 = vmatmul.mubr.bf16.gmra.mrb[0].mxu0 %v726
    %v766 = vpop.f32.mrb[0].mxu0
    %v767 = vadd.f32 0.0, %v766
    %v768 = vpop.f32.mrb[0].mxu0
    %v769 = vpop.f32.mrb[0].mxu0
    %v770 = vpop.f32.mrb[0].mxu0
    %771 = vdwg.mxu0
    %v773 = vsel %vm392, %v557, 0
    %v776 = vsel %vm728, %v269, 0
    %778 = vmatprep.subr.bf16.mxu0 0
    %779 = vmatpush1.bf16.msra.mxu0 %v776
    %780 = vmatprep.subr.bf16.mxu0 0
    %781 = vmatpush1.bf16.msra.mxu0 0
    %782 = vmatprep.subr.bf16.mxu0 0
    %783 = vmatpush1.bf16.msra.mxu0 0
    %784 = vmatprep.subr.bf16.mxu0 0
    %785 = vmatpush1.bf16.msra.mxu0 0
    %786 = vmatprep.subr.bf16.mxu0 0
    %787 = vmatpush1.bf16.msra.mxu0 0
    %788 = vmatprep.subr.bf16.mxu0 0
    %789 = vmatpush1.bf16.msra.mxu0 0
    %790 = vmatprep.subr.bf16.mxu0 0
    %791 = vmatpush1.bf16.msra.mxu0 0
    %792 = vmatprep.subr.bf16.mxu0 0
    %793 = vmatpush1.bf16.msra.mxu0 0
    %794 = vmatprep.subr.bf16.mxu0 0
    %795 = vmatpush1.bf16.msra.mxu0 0
    %796 = vmatprep.subr.bf16.mxu0 0
    %797 = vmatpush1.bf16.msra.mxu0 0
    %798 = vmatprep.subr.bf16.mxu0 0
    %799 = vmatpush1.bf16.msra.mxu0 0
    %800 = vmatprep.subr.bf16.mxu0 0
    %801 = vmatpush1.bf16.msra.mxu0 0
    %802 = vmatprep.subr.bf16.mxu0 0
    %803 = vmatpush1.bf16.msra.mxu0 0
    %804 = vmatprep.subr.bf16.mxu0 0
    %805 = vmatpush1.bf16.msra.mxu0 0
    %806 = vmatprep.subr.bf16.mxu0 0
    %807 = vmatpush1.bf16.msra.mxu0 0
    %808 = vmatprep.subr.bf16.mxu0 0
    %809 = vmatpush1.bf16.msra.mxu0 0
    %810 = vmatprep.mubr.bf16.mxu0 0
    %811 = vmatmul.mubr.bf16.gmra.mrb[0].mxu0 %v773
    %v812 = vpop.f32.mrb[0].mxu0
    %v813 = vadd.f32 %v767, %v812
    %v814 = vpop.f32.mrb[0].mxu0
    %v815 = vpop.f32.mrb[0].mxu0
    %v816 = vpop.f32.mrb[0].mxu0
    %817 = vdwg.mxu0
    %818 = vrot.lane.b32.xlu0 %v384, 112
    %v819 = vpop.permute.xlu0 %818
    %820 = vrot.lane.b32.xlu0 %v384, 80
    %v821 = vpop.permute.xlu0 %820
    %v822 = vsel %vm392, %v819, 0
    %v824 = vsel %vm392, %v821, 0
    %826 = vmatprep.subr.mxu0 0.0
    %827 = vmatpush1.xpose.msra.mxu0 %v824
    %828 = vmatprep.subr.mxu0 0.0
    %829 = vmatpush1.xpose.msra.mxu0 0.0
    %830 = vmatprep.subr.mxu0 0.0
    %831 = vmatpush1.xpose.msra.mxu0 0.0
    %832 = vmatprep.subr.mxu0 0.0
    %833 = vmatpush1.xpose.msra.mxu0 0.0
    %834 = vmatprep.subr.mxu0 0.0
    %835 = vmatpush1.xpose.msra.mxu0 0.0
    %836 = vmatprep.subr.mxu0 0.0
    %837 = vmatpush1.xpose.msra.mxu0 0.0
    %838 = vmatprep.subr.mxu0 0.0
    %839 = vmatpush1.xpose.msra.mxu0 0.0
    %840 = vmatprep.subr.mxu0 0.0
    %841 = vmatpush1.xpose.msra.mxu0 0.0
    %842 = vmatprep.subr.mxu0 0.0
    %843 = vmatpush1.xpose.msra.mxu0 0.0
    %844 = vmatprep.subr.mxu0 0.0
    %845 = vmatpush1.xpose.msra.mxu0 0.0
    %846 = vmatprep.subr.mxu0 0.0
    %847 = vmatpush1.xpose.msra.mxu0 0.0
    %848 = vmatprep.subr.mxu0 0.0
    %849 = vmatpush1.xpose.msra.mxu0 0.0
    %850 = vmatprep.subr.mxu0 0.0
    %851 = vmatpush1.xpose.msra.mxu0 0.0
    %852 = vmatprep.subr.mxu0 0.0
    %853 = vmatpush1.xpose.msra.mxu0 0.0
    %854 = vmatprep.subr.mxu0 0.0
    %855 = vmatpush1.xpose.msra.mxu0 0.0
    %856 = vmatprep.subr.mxu0 0.0
    %857 = vmatpush1.xpose.msra.mxu0 0.0
    %858 = vmatprep.subr.mxu0 0.0
    %859 = vmatpush1.xpose.msra.mxu0 0.0
    %860 = vmatprep.subr.mxu0 0.0
    %861 = vmatpush1.xpose.msra.mxu0 0.0
    %862 = vmatprep.subr.mxu0 0.0
    %863 = vmatpush1.xpose.msra.mxu0 0.0
    %864 = vmatprep.subr.mxu0 0.0
    %865 = vmatpush1.xpose.msra.mxu0 0.0
    %866 = vmatprep.subr.mxu0 0.0
    %867 = vmatpush1.xpose.msra.mxu0 0.0
    %868 = vmatprep.subr.mxu0 0.0
    %869 = vmatpush1.xpose.msra.mxu0 0.0
    %870 = vmatprep.subr.mxu0 0.0
    %871 = vmatpush1.xpose.msra.mxu0 0.0
    %872 = vmatprep.subr.mxu0 0.0
    %873 = vmatpush1.xpose.msra.mxu0 0.0
    %874 = vmatprep.subr.mxu0 0.0
    %875 = vmatpush1.xpose.msra.mxu0 0.0
    %876 = vmatprep.subr.mxu0 0.0
    %877 = vmatpush1.xpose.msra.mxu0 0.0
    %878 = vmatprep.subr.mxu0 0.0
    %879 = vmatpush1.xpose.msra.mxu0 0.0
    %880 = vmatprep.subr.mxu0 0.0
    %881 = vmatpush1.xpose.msra.mxu0 0.0
    %882 = vmatprep.subr.mxu0 0.0
    %883 = vmatpush1.xpose.msra.mxu0 0.0
    %884 = vmatprep.subr.mxu0 0.0
    %885 = vmatpush1.xpose.msra.mxu0 0.0
    %886 = vmatprep.subr.mxu0 0.0
    %887 = vmatpush1.xpose.msra.mxu0 0.0
    %888 = vmatprep.subr.mxu0 0.0
    %889 = vmatpush1.xpose.msra.mxu0 0.0
    %890 = vmatprep.mubr.f32.mxu0 0.0
    %891 = vmatmul.mubr.f32.gmra.mrb[0].mxu0 %v822
    %v892 = vpop.f32.mrb[0].mxu0
    %v893 = vadd.f32 0.0, %v892
    %v894 = vpop.f32.mrb[0].mxu0
    %895 = vdwg.mxu0
    %v896 = vsel %vm467, %v893, -inf
    %897 = vmax.xlane.f32.xlu0 %v896
    %v898 = vpop.xlane.xlu0 %897
    %v899 = vsub.f32 %v893, %v898
    %v900 = vmul.f32 %v899, 1.442695
    %v901 = vpow.pop %v900
    %v902 = vsel %vm467, %v901, 0.0
    %903 = vadd.xlane.f32.xlu0 %v902
    %v904 = vpop.xlane.xlu0 %903
    %v905 = vrcp.pop %v904
    %v906 = vmul.f32 %v901, %v905
    %907 = vrot.lane.b32.xlu0 %v384, 48
    %v908 = vpop.permute.xlu0 %907
    %v910 = vsel %vm481, %v906, 0
    %v912 = vsel %vm260, %v908, 0
    %914 = vmatprep.subr.mxu0 0.0
    %915 = vmatpush1.msra.mxu0 %v912
    %916 = vmatprep.subr.mxu0 0.0
    %917 = vmatpush1.msra.mxu0 0.0
    %918 = vmatprep.subr.mxu0 0.0
    %919 = vmatpush1.msra.mxu0 0.0
    %920 = vmatprep.subr.mxu0 0.0
    %921 = vmatpush1.msra.mxu0 0.0
    %922 = vmatprep.subr.mxu0 0.0
    %923 = vmatpush1.msra.mxu0 0.0
    %924 = vmatprep.subr.mxu0 0.0
    %925 = vmatpush1.msra.mxu0 0.0
    %926 = vmatprep.subr.mxu0 0.0
    %927 = vmatpush1.msra.mxu0 0.0
    %928 = vmatprep.subr.mxu0 0.0
    %929 = vmatpush1.msra.mxu0 0.0
    %930 = vmatprep.subr.mxu0 0.0
    %931 = vmatpush1.msra.mxu0 0.0
    %932 = vmatprep.subr.mxu0 0.0
    %933 = vmatpush1.msra.mxu0 0.0
    %934 = vmatprep.subr.mxu0 0.0
    %935 = vmatpush1.msra.mxu0 0.0
    %936 = vmatprep.subr.mxu0 0.0
    %937 = vmatpush1.msra.mxu0 0.0
    %938 = vmatprep.subr.mxu0 0.0
    %939 = vmatpush1.msra.mxu0 0.0
    %940 = vmatprep.subr.mxu0 0.0
    %941 = vmatpush1.msra.mxu0 0.0
    %942 = vmatprep.subr.mxu0 0.0
    %943 = vmatpush1.msra.mxu0 0.0
    %944 = vmatprep.subr.mxu0 0.0
    %945 = vmatpush1.msra.mxu0 0.0
    %946 = vmatprep.subr.mxu0 0.0
    %947 = vmatpush1.msra.mxu0 0.0
    %948 = vmatprep.subr.mxu0 0.0
    %949 = vmatpush1.msra.mxu0 0.0
    %950 = vmatprep.subr.mxu0 0.0
    %951 = vmatpush1.msra.mxu0 0.0
    %952 = vmatprep.subr.mxu0 0.0
    %953 = vmatpush1.msra.mxu0 0.0
    %954 = vmatprep.subr.mxu0 0.0
    %955 = vmatpush1.msra.mxu0 0.0
    %956 = vmatprep.subr.mxu0 0.0
    %957 = vmatpush1.msra.mxu0 0.0
    %958 = vmatprep.subr.mxu0 0.0
    %959 = vmatpush1.msra.mxu0 0.0
    %960 = vmatprep.subr.mxu0 0.0
    %961 = vmatpush1.msra.mxu0 0.0
    %962 = vmatprep.subr.mxu0 0.0
    %963 = vmatpush1.msra.mxu0 0.0
    %964 = vmatprep.subr.mxu0 0.0
    %965 = vmatpush1.msra.mxu0 0.0
    %966 = vmatprep.subr.mxu0 0.0
    %967 = vmatpush1.msra.mxu0 0.0
    %968 = vmatprep.subr.mxu0 0.0
    %969 = vmatpush1.msra.mxu0 0.0
    %970 = vmatprep.subr.mxu0 0.0
    %971 = vmatpush1.msra.mxu0 0.0
    %972 = vmatprep.subr.mxu0 0.0
    %973 = vmatpush1.msra.mxu0 0.0
    %974 = vmatprep.subr.mxu0 0.0
    %975 = vmatpush1.msra.mxu0 0.0
    %976 = vmatprep.subr.mxu0 0.0
    %977 = vmatpush1.msra.mxu0 0.0
    %978 = vmatprep.mubr.f32.mxu0 0.0
    %979 = vmatmul.mubr.f32.gmra.mrb[0].mxu0 %v910
    %v980 = vpop.f32.mrb[0].mxu0
    %v981 = vadd.f32 0.0, %v980
    %v982 = vpop.f32.mrb[0].mxu0
    %983 = vdwg.mxu0
    %v984 = vpack.c.bf16 %v981, %v981
    %v986 = vsel %vm392, %v984, 0
    %v989 = vsel %vm728, %v271, 0
    %991 = vmatprep.subr.bf16.mxu0 0
    %992 = vmatpush1.bf16.msra.mxu0 %v989
    %993 = vmatprep.subr.bf16.mxu0 0
    %994 = vmatpush1.bf16.msra.mxu0 0
    %995 = vmatprep.subr.bf16.mxu0 0
    %996 = vmatpush1.bf16.msra.mxu0 0
    %997 = vmatprep.subr.bf16.mxu0 0
    %998 = vmatpush1.bf16.msra.mxu0 0
    %999 = vmatprep.subr.bf16.mxu0 0
    %1000 = vmatpush1.bf16.msra.mxu0 0
    %1001 = vmatprep.subr.bf16.mxu0 0
    %1002 = vmatpush1.bf16.msra.mxu0 0
    %1003 = vmatprep.subr.bf16.mxu0 0
    %1004 = vmatpush1.bf16.msra.mxu0 0
    %1005 = vmatprep.subr.bf16.mxu0 0
    %1006 = vmatpush1.bf16.msra.mxu0 0
    %1007 = vmatprep.subr.bf16.mxu0 0
    %1008 = vmatpush1.bf16.msra.mxu0 0
    %1009 = vmatprep.subr.bf16.mxu0 0
    %1010 = vmatpush1.bf16.msra.mxu0 0
    %1011 = vmatprep.subr.bf16.mxu0 0
    %1012 = vmatpush1.bf16.msra.mxu0 0
    %1013 = vmatprep.subr.bf16.mxu0 0
    %1014 = vmatpush1.bf16.msra.mxu0 0
    %1015 = vmatprep.subr.bf16.mxu0 0
    %1016 = vmatpush1.bf16.msra.mxu0 0
    %1017 = vmatprep.subr.bf16.mxu0 0
    %1018 = vmatpush1.bf16.msra.mxu0 0
    %1019 = vmatprep.subr.bf16.mxu0 0
    %1020 = vmatpush1.bf16.msra.mxu0 0
    %1021 = vmatprep.subr.bf16.mxu0 0
    %1022 = vmatpush1.bf16.msra.mxu0 0
    %1023 = vmatprep.mubr.bf16.mxu0 0
    %1024 = vmatmul.mubr.bf16.gmra.mrb[0].mxu0 %v986
    %v1025 = vpop.f32.mrb[0].mxu0
    %v1026 = vadd.f32 0.0, %v1025
    %v1027 = vpop.f32.mrb[0].mxu0
    %v1028 = vpop.f32.mrb[0].mxu0
    %v1029 = vpop.f32.mrb[0].mxu0
    %1030 = vdwg.mxu0
    %v1031 = vadd.f32 %v813, %v1026
    %1032 = vrot.lane.b32.xlu0 %v384, 104
    %v1033 = vpop.permute.xlu0 %1032
    %1034 = vrot.lane.b32.xlu0 %v384, 72
    %v1035 = vpop.permute.xlu0 %1034
    %v1036 = vsel %vm392, %v1033, 0
    %v1038 = vsel %vm392, %v1035, 0
    %1040 = vmatprep.subr.mxu0 0.0
    %1041 = vmatpush1.xpose.msra.mxu0 %v1038
    %1042 = vmatprep.subr.mxu0 0.0
    %1043 = vmatpush1.xpose.msra.mxu0 0.0
    %1044 = vmatprep.subr.mxu0 0.0
    %1045 = vmatpush1.xpose.msra.mxu0 0.0
    %1046 = vmatprep.subr.mxu0 0.0
    %1047 = vmatpush1.xpose.msra.mxu0 0.0
    %1048 = vmatprep.subr.mxu0 0.0
    %1049 = vmatpush1.xpose.msra.mxu0 0.0
    %1050 = vmatprep.subr.mxu0 0.0
    %1051 = vmatpush1.xpose.msra.mxu0 0.0
    %1052 = vmatprep.subr.mxu0 0.0
    %1053 = vmatpush1.xpose.msra.mxu0 0.0
    %1054 = vmatprep.subr.mxu0 0.0
    %1055 = vmatpush1.xpose.msra.mxu0 0.0
    %1056 = vmatprep.subr.mxu0 0.0
    %1057 = vmatpush1.xpose.msra.mxu0 0.0
    %1058 = vmatprep.subr.mxu0 0.0
    %1059 = vmatpush1.xpose.msra.mxu0 0.0
    %1060 = vmatprep.subr.mxu0 0.0
    %1061 = vmatpush1.xpose.msra.mxu0 0.0
    %1062 = vmatprep.subr.mxu0 0.0
    %1063 = vmatpush1.xpose.msra.mxu0 0.0
    %1064 = vmatprep.subr.mxu0 0.0
    %1065 = vmatpush1.xpose.msra.mxu0 0.0
    %1066 = vmatprep.subr.mxu0 0.0
    %1067 = vmatpush1.xpose.msra.mxu0 0.0
    %1068 = vmatprep.subr.mxu0 0.0
    %1069 = vmatpush1.xpose.msra.mxu0 0.0
    %1070 = vmatprep.subr.mxu0 0.0
    %1071 = vmatpush1.xpose.msra.mxu0 0.0
    %1072 = vmatprep.subr.mxu0 0.0
    %1073 = vmatpush1.xpose.msra.mxu0 0.0
    %1074 = vmatprep.subr.mxu0 0.0
    %1075 = vmatpush1.xpose.msra.mxu0 0.0
    %1076 = vmatprep.subr.mxu0 0.0
    %1077 = vmatpush1.xpose.msra.mxu0 0.0
    %1078 = vmatprep.subr.mxu0 0.0
    %1079 = vmatpush1.xpose.msra.mxu0 0.0
    %1080 = vmatprep.subr.mxu0 0.0
    %1081 = vmatpush1.xpose.msra.mxu0 0.0
    %1082 = vmatprep.subr.mxu0 0.0
    %1083 = vmatpush1.xpose.msra.mxu0 0.0
    %1084 = vmatprep.subr.mxu0 0.0
    %1085 = vmatpush1.xpose.msra.mxu0 0.0
    %1086 = vmatprep.subr.mxu0 0.0
    %1087 = vmatpush1.xpose.msra.mxu0 0.0
    %1088 = vmatprep.subr.mxu0 0.0
    %1089 = vmatpush1.xpose.msra.mxu0 0.0
    %1090 = vmatprep.subr.mxu0 0.0
    %1091 = vmatpush1.xpose.msra.mxu0 0.0
    %1092 = vmatprep.subr.mxu0 0.0
    %1093 = vmatpush1.xpose.msra.mxu0 0.0
    %1094 = vmatprep.subr.mxu0 0.0
    %1095 = vmatpush1.xpose.msra.mxu0 0.0
    %1096 = vmatprep.subr.mxu0 0.0
    %1097 = vmatpush1.xpose.msra.mxu0 0.0
    %1098 = vmatprep.subr.mxu0 0.0
    %1099 = vmatpush1.xpose.msra.mxu0 0.0
    %1100 = vmatprep.subr.mxu0 0.0
    %1101 = vmatpush1.xpose.msra.mxu0 0.0
    %1102 = vmatprep.subr.mxu0 0.0
    %1103 = vmatpush1.xpose.msra.mxu0 0.0
    %1104 = vmatprep.mubr.f32.mxu0 0.0
    %1105 = vmatmul.mubr.f32.gmra.mrb[0].mxu0 %v1036
    %v1106 = vpop.f32.mrb[0].mxu0
    %v1107 = vadd.f32 0.0, %v1106
    %v1108 = vpop.f32.mrb[0].mxu0
    %1109 = vdwg.mxu0
    %v1110 = vsel %vm467, %v1107, -inf
    %1111 = vmax.xlane.f32.xlu0 %v1110
    %v1112 = vpop.xlane.xlu0 %1111
    %v1113 = vsub.f32 %v1107, %v1112
    %v1114 = vmul.f32 %v1113, 1.442695
    %v1115 = vpow.pop %v1114
    %v1116 = vsel %vm467, %v1115, 0.0
    %1117 = vadd.xlane.f32.xlu0 %v1116
    %v1118 = vpop.xlane.xlu0 %1117
    %v1119 = vrcp.pop %v1118
    %v1120 = vmul.f32 %v1115, %v1119
    %1121 = vrot.lane.b32.xlu0 %v384, 40
    %v1122 = vpop.permute.xlu0 %1121
    %v1124 = vsel %vm481, %v1120, 0
    %v1126 = vsel %vm260, %v1122, 0
    %1128 = vmatprep.subr.mxu0 0.0
    %1129 = vmatpush1.msra.mxu0 %v1126
    %1130 = vmatprep.subr.mxu0 0.0
    %1131 = vmatpush1.msra.mxu0 0.0
    %1132 = vmatprep.subr.mxu0 0.0
    %1133 = vmatpush1.msra.mxu0 0.0
    %1134 = vmatprep.subr.mxu0 0.0
    %1135 = vmatpush1.msra.mxu0 0.0
    %1136 = vmatprep.subr.mxu0 0.0
    %1137 = vmatpush1.msra.mxu0 0.0
    %1138 = vmatprep.subr.mxu0 0.0
    %1139 = vmatpush1.msra.mxu0 0.0
    %1140 = vmatprep.subr.mxu0 0.0
    %1141 = vmatpush1.msra.mxu0 0.0
    %1142 = vmatprep.subr.mxu0 0.0
    %1143 = vmatpush1.msra.mxu0 0.0
    %1144 = vmatprep.subr.mxu0 0.0
    %1145 = vmatpush1.msra.mxu0 0.0
    %1146 = vmatprep.subr.mxu0 0.0
    %1147 = vmatpush1.msra.mxu0 0.0
    %1148 = vmatprep.subr.mxu0 0.0
    %1149 = vmatpush1.msra.mxu0 0.0
    %1150 = vmatprep.subr.mxu0 0.0
    %1151 = vmatpush1.msra.mxu0 0.0
    %1152 = vmatprep.subr.mxu0 0.0
    %1153 = vmatpush1.msra.mxu0 0.0
    %1154 = vmatprep.subr.mxu0 0.0
    %1155 = vmatpush1.msra.mxu0 0.0
    %1156 = vmatprep.subr.mxu0 0.0
    %1157 = vmatpush1.msra.mxu0 0.0
    %1158 = vmatprep.subr.mxu0 0.0
    %1159 = vmatpush1.msra.mxu0 0.0
    %1160 = vmatprep.subr.mxu0 0.0
    %1161 = vmatpush1.msra.mxu0 0.0
    %1162 = vmatprep.subr.mxu0 0.0
    %1163 = vmatpush1.msra.mxu0 0.0
    %1164 = vmatprep.subr.mxu0 0.0
    %1165 = vmatpush1.msra.mxu0 0.0
    %1166 = vmatprep.subr.mxu0 0.0
    %1167 = vmatpush1.msra.mxu0 0.0
    %1168 = vmatprep.subr.mxu0 0.0
    %1169 = vmatpush1.msra.mxu0 0.0
    %1170 = vmatprep.subr.mxu0 0.0
    %1171 = vmatpush1.msra.mxu0 0.0
    %1172 = vmatprep.subr.mxu0 0.0
    %1173 = vmatpush1.msra.mxu0 0.0
    %1174 = vmatprep.subr.mxu0 0.0
    %1175 = vmatpush1.msra.mxu0 0.0
    %1176 = vmatprep.subr.mxu0 0.0
    %1177 = vmatpush1.msra.mxu0 0.0
    %1178 = vmatprep.subr.mxu0 0.0
    %1179 = vmatpush1.msra.mxu0 0.0
    %1180 = vmatprep.subr.mxu0 0.0
    %1181 = vmatpush1.msra.mxu0 0.0
    %1182 = vmatprep.subr.mxu0 0.0
    %1183 = vmatpush1.msra.mxu0 0.0
    %1184 = vmatprep.subr.mxu0 0.0
    %1185 = vmatpush1.msra.mxu0 0.0
    %1186 = vmatprep.subr.mxu0 0.0
    %1187 = vmatpush1.msra.mxu0 0.0
    %1188 = vmatprep.subr.mxu0 0.0
    %1189 = vmatpush1.msra.mxu0 0.0
    %1190 = vmatprep.subr.mxu0 0.0
    %1191 = vmatpush1.msra.mxu0 0.0
    %1192 = vmatprep.mubr.f32.mxu0 0.0
    %1193 = vmatmul.mubr.f32.gmra.mrb[0].mxu0 %v1124
    %v1194 = vpop.f32.mrb[0].mxu0
    %v1195 = vadd.f32 0.0, %v1194
    %v1196 = vpop.f32.mrb[0].mxu0
    %1197 = vdwg.mxu0
    %v1198 = vpack.c.bf16 %v1195, %v1195
    %v1200 = vsel %vm392, %v1198, 0
    %v1203 = vsel %vm728, %v272, 0
    %1205 = vmatprep.subr.bf16.mxu0 0
    %1206 = vmatpush1.bf16.msra.mxu0 %v1203
    %1207 = vmatprep.subr.bf16.mxu0 0
    %1208 = vmatpush1.bf16.msra.mxu0 0
    %1209 = vmatprep.subr.bf16.mxu0 0
    %1210 = vmatpush1.bf16.msra.mxu0 0
    %1211 = vmatprep.subr.bf16.mxu0 0
    %1212 = vmatpush1.bf16.msra.mxu0 0
    %1213 = vmatprep.subr.bf16.mxu0 0
    %1214 = vmatpush1.bf16.msra.mxu0 0
    %1215 = vmatprep.subr.bf16.mxu0 0
    %1216 = vmatpush1.bf16.msra.mxu0 0
    %1217 = vmatprep.subr.bf16.mxu0 0
    %1218 = vmatpush1.bf16.msra.mxu0 0
    %1219 = vmatprep.subr.bf16.mxu0 0
    %1220 = vmatpush1.bf16.msra.mxu0 0
    %1221 = vmatprep.subr.bf16.mxu0 0
    %1222 = vmatpush1.bf16.msra.mxu0 0
    %1223 = vmatprep.subr.bf16.mxu0 0
    %1224 = vmatpush1.bf16.msra.mxu0 0
    %1225 = vmatprep.subr.bf16.mxu0 0
    %1226 = vmatpush1.bf16.msra.mxu0 0
    %1227 = vmatprep.subr.bf16.mxu0 0
    %1228 = vmatpush1.bf16.msra.mxu0 0
    %1229 = vmatprep.subr.bf16.mxu0 0
    %1230 = vmatpush1.bf16.msra.mxu0 0
    %1231 = vmatprep.subr.bf16.mxu0 0
    %1232 = vmatpush1.bf16.msra.mxu0 0
    %1233 = vmatprep.subr.bf16.mxu0 0
    %1234 = vmatpush1.bf16.msra.mxu0 0
    %1235 = vmatprep.subr.bf16.mxu0 0
    %1236 = vmatpush1.bf16.msra.mxu0 0
    %1237 = vmatprep.mubr.bf16.mxu0 0
    %1238 = vmatmul.mubr.bf16.gmra.mrb[0].mxu0 %v1200
    %v1239 = vpop.f32.mrb[0].mxu0
    %v1240 = vadd.f32 0.0, %v1239
    %v1241 = vpop.f32.mrb[0].mxu0
    %v1242 = vpop.f32.mrb[0].mxu0
    %v1243 = vpop.f32.mrb[0].mxu0
    %1244 = vdwg.mxu0
    %v1245 = vadd.f32 %v1031, %v1240
    %v1246 = vrot.slane %v384, 3
    %1247 = vrot.lane.b32.xlu0 %v1246, 96
    %v1248 = vpop.permute.xlu0 %1247
    %v1249 = vsel %vm392, %v1246, 0
    %v1251 = vsel %vm392, %v1248, 0
    %1253 = vmatprep.subr.mxu0 0.0
    %1254 = vmatpush1.xpose.msra.mxu0 %v1251
    %1255 = vmatprep.subr.mxu0 0.0
    %1256 = vmatpush1.xpose.msra.mxu0 0.0
    %1257 = vmatprep.subr.mxu0 0.0
    %1258 = vmatpush1.xpose.msra.mxu0 0.0
    %1259 = vmatprep.subr.mxu0 0.0
    %1260 = vmatpush1.xpose.msra.mxu0 0.0
    %1261 = vmatprep.subr.mxu0 0.0
    %1262 = vmatpush1.xpose.msra.mxu0 0.0
    %1263 = vmatprep.subr.mxu0 0.0
    %1264 = vmatpush1.xpose.msra.mxu0 0.0
    %1265 = vmatprep.subr.mxu0 0.0
    %1266 = vmatpush1.xpose.msra.mxu0 0.0
    %1267 = vmatprep.subr.mxu0 0.0
    %1268 = vmatpush1.xpose.msra.mxu0 0.0
    %1269 = vmatprep.subr.mxu0 0.0
    %1270 = vmatpush1.xpose.msra.mxu0 0.0
    %1271 = vmatprep.subr.mxu0 0.0
    %1272 = vmatpush1.xpose.msra.mxu0 0.0
    %1273 = vmatprep.subr.mxu0 0.0
    %1274 = vmatpush1.xpose.msra.mxu0 0.0
    %1275 = vmatprep.subr.mxu0 0.0
    %1276 = vmatpush1.xpose.msra.mxu0 0.0
    %1277 = vmatprep.subr.mxu0 0.0
    %1278 = vmatpush1.xpose.msra.mxu0 0.0
    %1279 = vmatprep.subr.mxu0 0.0
    %1280 = vmatpush1.xpose.msra.mxu0 0.0
    %1281 = vmatprep.subr.mxu0 0.0
    %1282 = vmatpush1.xpose.msra.mxu0 0.0
    %1283 = vmatprep.subr.mxu0 0.0
    %1284 = vmatpush1.xpose.msra.mxu0 0.0
    %1285 = vmatprep.subr.mxu0 0.0
    %1286 = vmatpush1.xpose.msra.mxu0 0.0
    %1287 = vmatprep.subr.mxu0 0.0
    %1288 = vmatpush1.xpose.msra.mxu0 0.0
    %1289 = vmatprep.subr.mxu0 0.0
    %1290 = vmatpush1.xpose.msra.mxu0 0.0
    %1291 = vmatprep.subr.mxu0 0.0
    %1292 = vmatpush1.xpose.msra.mxu0 0.0
    %1293 = vmatprep.subr.mxu0 0.0
    %1294 = vmatpush1.xpose.msra.mxu0 0.0
    %1295 = vmatprep.subr.mxu0 0.0
    %1296 = vmatpush1.xpose.msra.mxu0 0.0
    %1297 = vmatprep.subr.mxu0 0.0
    %1298 = vmatpush1.xpose.msra.mxu0 0.0
    %1299 = vmatprep.subr.mxu0 0.0
    %1300 = vmatpush1.xpose.msra.mxu0 0.0
    %1301 = vmatprep.subr.mxu0 0.0
    %1302 = vmatpush1.xpose.msra.mxu0 0.0
    %1303 = vmatprep.subr.mxu0 0.0
    %1304 = vmatpush1.xpose.msra.mxu0 0.0
    %1305 = vmatprep.subr.mxu0 0.0
    %1306 = vmatpush1.xpose.msra.mxu0 0.0
    %1307 = vmatprep.subr.mxu0 0.0
    %1308 = vmatpush1.xpose.msra.mxu0 0.0
    %1309 = vmatprep.subr.mxu0 0.0
    %1310 = vmatpush1.xpose.msra.mxu0 0.0
    %1311 = vmatprep.subr.mxu0 0.0
    %1312 = vmatpush1.xpose.msra.mxu0 0.0
    %1313 = vmatprep.subr.mxu0 0.0
    %1314 = vmatpush1.xpose.msra.mxu0 0.0
    %1315 = vmatprep.subr.mxu0 0.0
    %1316 = vmatpush1.xpose.msra.mxu0 0.0
    %1317 = vmatprep.mubr.f32.mxu0 0.0
    %1318 = vmatmul.mubr.f32.gmra.mrb[0].mxu0 %v1249
    %v1319 = vpop.f32.mrb[0].mxu0
    %v1320 = vadd.f32 0.0, %v1319
    %v1321 = vpop.f32.mrb[0].mxu0
    %1322 = vdwg.mxu0
    %v1323 = vsel %vm467, %v1320, -inf
    %1324 = vmax.xlane.f32.xlu0 %v1323
    %v1325 = vpop.xlane.xlu0 %1324
    %v1326 = vsub.f32 %v1320, %v1325
    %v1327 = vmul.f32 %v1326, 1.442695
    %v1328 = vpow.pop %v1327
    %v1329 = vsel %vm467, %v1328, 0.0
    %1330 = vadd.xlane.f32.xlu0 %v1329
    %v1331 = vpop.xlane.xlu0 %1330
    %v1332 = vrcp.pop %v1331
    %v1333 = vmul.f32 %v1328, %v1332
    %1334 = vrot.lane.b32.xlu0 %v1246, 64
    %v1335 = vpop.permute.xlu0 %1334
    %v1337 = vsel %vm481, %v1333, 0
    %v1339 = vsel %vm260, %v1335, 0
    %1341 = vmatprep.subr.mxu0 0.0
    %1342 = vmatpush1.msra.mxu0 %v1339
    %1343 = vmatprep.subr.mxu0 0.0
    %1344 = vmatpush1.msra.mxu0 0.0
    %1345 = vmatprep.subr.mxu0 0.0
    %1346 = vmatpush1.msra.mxu0 0.0
    %1347 = vmatprep.subr.mxu0 0.0
    %1348 = vmatpush1.msra.mxu0 0.0
    %1349 = vmatprep.subr.mxu0 0.0
    %1350 = vmatpush1.msra.mxu0 0.0
    %1351 = vmatprep.subr.mxu0 0.0
    %1352 = vmatpush1.msra.mxu0 0.0
    %1353 = vmatprep.subr.mxu0 0.0
    %1354 = vmatpush1.msra.mxu0 0.0
    %1355 = vmatprep.subr.mxu0 0.0
    %1356 = vmatpush1.msra.mxu0 0.0
    %1357 = vmatprep.subr.mxu0 0.0
    %1358 = vmatpush1.msra.mxu0 0.0
    %1359 = vmatprep.subr.mxu0 0.0
    %1360 = vmatpush1.msra.mxu0 0.0
    %1361 = vmatprep.subr.mxu0 0.0
    %1362 = vmatpush1.msra.mxu0 0.0
    %1363 = vmatprep.subr.mxu0 0.0
    %1364 = vmatpush1.msra.mxu0 0.0
    %1365 = vmatprep.subr.mxu0 0.0
    %1366 = vmatpush1.msra.mxu0 0.0
    %1367 = vmatprep.subr.mxu0 0.0
    %1368 = vmatpush1.msra.mxu0 0.0
    %1369 = vmatprep.subr.mxu0 0.0
    %1370 = vmatpush1.msra.mxu0 0.0
    %1371 = vmatprep.subr.mxu0 0.0
    %1372 = vmatpush1.msra.mxu0 0.0
    %1373 = vmatprep.subr.mxu0 0.0
    %1374 = vmatpush1.msra.mxu0 0.0
    %1375 = vmatprep.subr.mxu0 0.0
    %1376 = vmatpush1.msra.mxu0 0.0
    %1377 = vmatprep.subr.mxu0 0.0
    %1378 = vmatpush1.msra.mxu0 0.0
    %1379 = vmatprep.subr.mxu0 0.0
    %1380 = vmatpush1.msra.mxu0 0.0
    %1381 = vmatprep.subr.mxu0 0.0
    %1382 = vmatpush1.msra.mxu0 0.0
    %1383 = vmatprep.subr.mxu0 0.0
    %1384 = vmatpush1.msra.mxu0 0.0
    %1385 = vmatprep.subr.mxu0 0.0
    %1386 = vmatpush1.msra.mxu0 0.0
    %1387 = vmatprep.subr.mxu0 0.0
    %1388 = vmatpush1.msra.mxu0 0.0
    %1389 = vmatprep.subr.mxu0 0.0
    %1390 = vmatpush1.msra.mxu0 0.0
    %1391 = vmatprep.subr.mxu0 0.0
    %1392 = vmatpush1.msra.mxu0 0.0
    %1393 = vmatprep.subr.mxu0 0.0
    %1394 = vmatpush1.msra.mxu0 0.0
    %1395 = vmatprep.subr.mxu0 0.0
    %1396 = vmatpush1.msra.mxu0 0.0
    %1397 = vmatprep.subr.mxu0 0.0
    %1398 = vmatpush1.msra.mxu0 0.0
    %1399 = vmatprep.subr.mxu0 0.0
    %1400 = vmatpush1.msra.mxu0 0.0
    %1401 = vmatprep.subr.mxu0 0.0
    %1402 = vmatpush1.msra.mxu0 0.0
    %1403 = vmatprep.subr.mxu0 0.0
    %1404 = vmatpush1.msra.mxu0 0.0
    %1405 = vmatprep.mubr.f32.mxu0 0.0
    %1406 = vmatmul.mubr.f32.gmra.mrb[0].mxu0 %v1337
    %v1407 = vpop.f32.mrb[0].mxu0
    %v1408 = vadd.f32 0.0, %v1407
    %v1409 = vpop.f32.mrb[0].mxu0
    %1410 = vdwg.mxu0
    %v1411 = vpack.c.bf16 %v1408, %v1408
    %1412 = vrot.lane.b32.xlu0 %v1246, 120
    %v1413 = vpop.permute.xlu0 %1412
    %1414 = vrot.lane.b32.xlu0 %v1246, 88
    %v1415 = vpop.permute.xlu0 %1414
    %v1416 = vsel %vm392, %v1413, 0
    %v1418 = vsel %vm392, %v1415, 0
    %1420 = vmatprep.subr.mxu0 0.0
    %1421 = vmatpush1.xpose.msra.mxu0 %v1418
    %1422 = vmatprep.subr.mxu0 0.0
    %1423 = vmatpush1.xpose.msra.mxu0 0.0
    %1424 = vmatprep.subr.mxu0 0.0
    %1425 = vmatpush1.xpose.msra.mxu0 0.0
    %1426 = vmatprep.subr.mxu0 0.0
    %1427 = vmatpush1.xpose.msra.mxu0 0.0
    %1428 = vmatprep.subr.mxu0 0.0
    %1429 = vmatpush1.xpose.msra.mxu0 0.0
    %1430 = vmatprep.subr.mxu0 0.0
    %1431 = vmatpush1.xpose.msra.mxu0 0.0
    %1432 = vmatprep.subr.mxu0 0.0
    %1433 = vmatpush1.xpose.msra.mxu0 0.0
    %1434 = vmatprep.subr.mxu0 0.0
    %1435 = vmatpush1.xpose.msra.mxu0 0.0
    %1436 = vmatprep.subr.mxu0 0.0
    %1437 = vmatpush1.xpose.msra.mxu0 0.0
    %1438 = vmatprep.subr.mxu0 0.0
    %1439 = vmatpush1.xpose.msra.mxu0 0.0
    %1440 = vmatprep.subr.mxu0 0.0
    %1441 = vmatpush1.xpose.msra.mxu0 0.0
    %1442 = vmatprep.subr.mxu0 0.0
    %1443 = vmatpush1.xpose.msra.mxu0 0.0
    %1444 = vmatprep.subr.mxu0 0.0
    %1445 = vmatpush1.xpose.msra.mxu0 0.0
    %1446 = vmatprep.subr.mxu0 0.0
    %1447 = vmatpush1.xpose.msra.mxu0 0.0
    %1448 = vmatprep.subr.mxu0 0.0
    %1449 = vmatpush1.xpose.msra.mxu0 0.0
    %1450 = vmatprep.subr.mxu0 0.0
    %1451 = vmatpush1.xpose.msra.mxu0 0.0
    %1452 = vmatprep.subr.mxu0 0.0
    %1453 = vmatpush1.xpose.msra.mxu0 0.0
    %1454 = vmatprep.subr.mxu0 0.0
    %1455 = vmatpush1.xpose.msra.mxu0 0.0
    %1456 = vmatprep.subr.mxu0 0.0
    %1457 = vmatpush1.xpose.msra.mxu0 0.0
    %1458 = vmatprep.subr.mxu0 0.0
    %1459 = vmatpush1.xpose.msra.mxu0 0.0
    %1460 = vmatprep.subr.mxu0 0.0
    %1461 = vmatpush1.xpose.msra.mxu0 0.0
    %1462 = vmatprep.subr.mxu0 0.0
    %1463 = vmatpush1.xpose.msra.mxu0 0.0
    %1464 = vmatprep.subr.mxu0 0.0
    %1465 = vmatpush1.xpose.msra.mxu0 0.0
    %1466 = vmatprep.subr.mxu0 0.0
    %1467 = vmatpush1.xpose.msra.mxu0 0.0
    %1468 = vmatprep.subr.mxu0 0.0
    %1469 = vmatpush1.xpose.msra.mxu0 0.0
    %1470 = vmatprep.subr.mxu0 0.0
    %1471 = vmatpush1.xpose.msra.mxu0 0.0
    %1472 = vmatprep.subr.mxu0 0.0
    %1473 = vmatpush1.xpose.msra.mxu0 0.0
    %1474 = vmatprep.subr.mxu0 0.0
    %1475 = vmatpush1.xpose.msra.mxu0 0.0
    %1476 = vmatprep.subr.mxu0 0.0
    %1477 = vmatpush1.xpose.msra.mxu0 0.0
    %1478 = vmatprep.subr.mxu0 0.0
    %1479 = vmatpush1.xpose.msra.mxu0 0.0
    %1480 = vmatprep.subr.mxu0 0.0
    %1481 = vmatpush1.xpose.msra.mxu0 0.0
    %1482 = vmatprep.subr.mxu0 0.0
    %1483 = vmatpush1.xpose.msra.mxu0 0.0
    %1484 = vmatprep.mubr.f32.mxu0 0.0
    %1485 = vmatmul.mubr.f32.gmra.mrb[0].mxu0 %v1416
    %v1486 = vpop.f32.mrb[0].mxu0
    %v1487 = vadd.f32 0.0, %v1486
    %v1488 = vpop.f32.mrb[0].mxu0
    %1489 = vdwg.mxu0
    %v1490 = vsel %vm467, %v1487, -inf
    %1491 = vmax.xlane.f32.xlu0 %v1490
    %v1492 = vpop.xlane.xlu0 %1491
    %v1493 = vsub.f32 %v1487, %v1492
    %v1494 = vmul.f32 %v1493, 1.442695
    %v1495 = vpow.pop %v1494
    %v1496 = vsel %vm467, %v1495, 0.0
    %1497 = vadd.xlane.f32.xlu0 %v1496
    %v1498 = vpop.xlane.xlu0 %1497
    %v1499 = vrcp.pop %v1498
    %v1500 = vmul.f32 %v1495, %v1499
    %1501 = vrot.lane.b32.xlu0 %v1246, 56
    %v1502 = vpop.permute.xlu0 %1501
    %v1504 = vsel %vm481, %v1500, 0
    %v1506 = vsel %vm260, %v1502, 0
    %1508 = vmatprep.subr.mxu0 0.0
    %1509 = vmatpush1.msra.mxu0 %v1506
    %1510 = vmatprep.subr.mxu0 0.0
    %1511 = vmatpush1.msra.mxu0 0.0
    %1512 = vmatprep.subr.mxu0 0.0
    %1513 = vmatpush1.msra.mxu0 0.0
    %1514 = vmatprep.subr.mxu0 0.0
    %1515 = vmatpush1.msra.mxu0 0.0
    %1516 = vmatprep.subr.mxu0 0.0
    %1517 = vmatpush1.msra.mxu0 0.0
    %1518 = vmatprep.subr.mxu0 0.0
    %1519 = vmatpush1.msra.mxu0 0.0
    %1520 = vmatprep.subr.mxu0 0.0
    %1521 = vmatpush1.msra.mxu0 0.0
    %1522 = vmatprep.subr.mxu0 0.0
    %1523 = vmatpush1.msra.mxu0 0.0
    %1524 = vmatprep.subr.mxu0 0.0
    %1525 = vmatpush1.msra.mxu0 0.0
    %1526 = vmatprep.subr.mxu0 0.0
    %1527 = vmatpush1.msra.mxu0 0.0
    %1528 = vmatprep.subr.mxu0 0.0
    %1529 = vmatpush1.msra.mxu0 0.0
    %1530 = vmatprep.subr.mxu0 0.0
    %1531 = vmatpush1.msra.mxu0 0.0
    %1532 = vmatprep.subr.mxu0 0.0
    %1533 = vmatpush1.msra.mxu0 0.0
    %1534 = vmatprep.subr.mxu0 0.0
    %1535 = vmatpush1.msra.mxu0 0.0
    %1536 = vmatprep.subr.mxu0 0.0
    %1537 = vmatpush1.msra.mxu0 0.0
    %1538 = vmatprep.subr.mxu0 0.0
    %1539 = vmatpush1.msra.mxu0 0.0
    %1540 = vmatprep.subr.mxu0 0.0
    %1541 = vmatpush1.msra.mxu0 0.0
    %1542 = vmatprep.subr.mxu0 0.0
    %1543 = vmatpush1.msra.mxu0 0.0
    %1544 = vmatprep.subr.mxu0 0.0
    %1545 = vmatpush1.msra.mxu0 0.0
    %1546 = vmatprep.subr.mxu0 0.0
    %1547 = vmatpush1.msra.mxu0 0.0
    %1548 = vmatprep.subr.mxu0 0.0
    %1549 = vmatpush1.msra.mxu0 0.0
    %1550 = vmatprep.subr.mxu0 0.0
    %1551 = vmatpush1.msra.mxu0 0.0
    %1552 = vmatprep.subr.mxu0 0.0
    %1553 = vmatpush1.msra.mxu0 0.0
    %1554 = vmatprep.subr.mxu0 0.0
    %1555 = vmatpush1.msra.mxu0 0.0
    %1556 = vmatprep.subr.mxu0 0.0
    %1557 = vmatpush1.msra.mxu0 0.0
    %1558 = vmatprep.subr.mxu0 0.0
    %1559 = vmatpush1.msra.mxu0 0.0
    %1560 = vmatprep.subr.mxu0 0.0
    %1561 = vmatpush1.msra.mxu0 0.0
    %1562 = vmatprep.subr.mxu0 0.0
    %1563 = vmatpush1.msra.mxu0 0.0
    %1564 = vmatprep.subr.mxu0 0.0
    %1565 = vmatpush1.msra.mxu0 0.0
    %1566 = vmatprep.subr.mxu0 0.0
    %1567 = vmatpush1.msra.mxu0 0.0
    %1568 = vmatprep.subr.mxu0 0.0
    %1569 = vmatpush1.msra.mxu0 0.0
    %1570 = vmatprep.subr.mxu0 0.0
    %1571 = vmatpush1.msra.mxu0 0.0
    %1572 = vmatprep.mubr.f32.mxu0 0.0
    %1573 = vmatmul.mubr.f32.gmra.mrb[0].mxu0 %v1504
    %v1574 = vpop.f32.mrb[0].mxu0
    %v1575 = vadd.f32 0.0, %v1574
    %v1576 = vpop.f32.mrb[0].mxu0
    %1577 = vdwg.mxu0
    %v1578 = vpack.c.bf16 %v1575, %v1575
    %v1580 = vsel %vm392, %v1578, 0
    %1582 = vmatprep.subr.bf16.mxu0 0
    %1583 = vmatpush1.bf16.msra.mxu0 %v730
    %1584 = vmatprep.subr.bf16.mxu0 0
    %1585 = vmatpush1.bf16.msra.mxu0 0
    %1586 = vmatprep.subr.bf16.mxu0 0
    %1587 = vmatpush1.bf16.msra.mxu0 0
    %1588 = vmatprep.subr.bf16.mxu0 0
    %1589 = vmatpush1.bf16.msra.mxu0 0
    %1590 = vmatprep.subr.bf16.mxu0 0
    %1591 = vmatpush1.bf16.msra.mxu0 0
    %1592 = vmatprep.subr.bf16.mxu0 0
    %1593 = vmatpush1.bf16.msra.mxu0 0
    %1594 = vmatprep.subr.bf16.mxu0 0
    %1595 = vmatpush1.bf16.msra.mxu0 0
    %1596 = vmatprep.subr.bf16.mxu0 0
    %1597 = vmatpush1.bf16.msra.mxu0 0
    %1598 = vmatprep.subr.bf16.mxu0 0
    %1599 = vmatpush1.bf16.msra.mxu0 0
    %1600 = vmatprep.subr.bf16.mxu0 0
    %1601 = vmatpush1.bf16.msra.mxu0 0
    %1602 = vmatprep.subr.bf16.mxu0 0
    %1603 = vmatpush1.bf16.msra.mxu0 0
    %1604 = vmatprep.subr.bf16.mxu0 0
    %1605 = vmatpush1.bf16.msra.mxu0 0
    %1606 = vmatprep.subr.bf16.mxu0 0
    %1607 = vmatpush1.bf16.msra.mxu0 0
    %1608 = vmatprep.subr.bf16.mxu0 0
    %1609 = vmatpush1.bf16.msra.mxu0 0
    %1610 = vmatprep.subr.bf16.mxu0 0
    %1611 = vmatpush1.bf16.msra.mxu0 0
    %1612 = vmatprep.subr.bf16.mxu0 0
    %1613 = vmatpush1.bf16.msra.mxu0 0
    %1614 = vmatprep.mubr.bf16.mxu0 0
    %1615 = vmatmul.mubr.bf16.gmra.mrb[0].mxu0 %v1580
    %v1616 = vpop.f32.mrb[0].mxu0
    %v1617 = vadd.f32 0.0, %v1616
    %v1618 = vpop.f32.mrb[0].mxu0
    %v1619 = vpop.f32.mrb[0].mxu0
    %v1620 = vpop.f32.mrb[0].mxu0
    %1621 = vdwg.mxu0
    %v1623 = vsel %vm392, %v1411, 0
    %1625 = vmatprep.subr.bf16.mxu0 0
    %1626 = vmatpush1.bf16.msra.mxu0 %v776
    %1627 = vmatprep.subr.bf16.mxu0 0
    %1628 = vmatpush1.bf16.msra.mxu0 0
    %1629 = vmatprep.subr.bf16.mxu0 0
    %1630 = vmatpush1.bf16.msra.mxu0 0
    %1631 = vmatprep.subr.bf16.mxu0 0
    %1632 = vmatpush1.bf16.msra.mxu0 0
    %1633 = vmatprep.subr.bf16.mxu0 0
    %1634 = vmatpush1.bf16.msra.mxu0 0
    %1635 = vmatprep.subr.bf16.mxu0 0
    %1636 = vmatpush1.bf16.msra.mxu0 0
    %1637 = vmatprep.subr.bf16.mxu0 0
    %1638 = vmatpush1.bf16.msra.mxu0 0
    %1639 = vmatprep.subr.bf16.mxu0 0
    %1640 = vmatpush1.bf16.msra.mxu0 0
    %1641 = vmatprep.subr.bf16.mxu0 0
    %1642 = vmatpush1.bf16.msra.mxu0 0
    %1643 = vmatprep.subr.bf16.mxu0 0
    %1644 = vmatpush1.bf16.msra.mxu0 0
    %1645 = vmatprep.subr.bf16.mxu0 0
    %1646 = vmatpush1.bf16.msra.mxu0 0
    %1647 = vmatprep.subr.bf16.mxu0 0
    %1648 = vmatpush1.bf16.msra.mxu0 0
    %1649 = vmatprep.subr.bf16.mxu0 0
    %1650 = vmatpush1.bf16.msra.mxu0 0
    %1651 = vmatprep.subr.bf16.mxu0 0
    %1652 = vmatpush1.bf16.msra.mxu0 0
    %1653 = vmatprep.subr.bf16.mxu0 0
    %1654 = vmatpush1.bf16.msra.mxu0 0
    %1655 = vmatprep.subr.bf16.mxu0 0
    %1656 = vmatpush1.bf16.msra.mxu0 0
    %1657 = vmatprep.mubr.bf16.mxu0 0
    %1658 = vmatmul.mubr.bf16.gmra.mrb[0].mxu0 %v1623
    %v1659 = vpop.f32.mrb[0].mxu0
    %v1660 = vadd.f32 %v1617, %v1659
    %v1661 = vpop.f32.mrb[0].mxu0
    %v1662 = vpop.f32.mrb[0].mxu0
    %v1663 = vpop.f32.mrb[0].mxu0
    %1664 = vdwg.mxu0
    %1665 = vrot.lane.b32.xlu0 %v1246, 112
    %v1666 = vpop.permute.xlu0 %1665
    %1667 = vrot.lane.b32.xlu0 %v1246, 80
    %v1668 = vpop.permute.xlu0 %1667
    %v1669 = vsel %vm392, %v1666, 0
    %v1671 = vsel %vm392, %v1668, 0
    %1673 = vmatprep.subr.mxu0 0.0
    %1674 = vmatpush1.xpose.msra.mxu0 %v1671
    %1675 = vmatprep.subr.mxu0 0.0
    %1676 = vmatpush1.xpose.msra.mxu0 0.0
    %1677 = vmatprep.subr.mxu0 0.0
    %1678 = vmatpush1.xpose.msra.mxu0 0.0
    %1679 = vmatprep.subr.mxu0 0.0
    %1680 = vmatpush1.xpose.msra.mxu0 0.0
    %1681 = vmatprep.subr.mxu0 0.0
    %1682 = vmatpush1.xpose.msra.mxu0 0.0
    %1683 = vmatprep.subr.mxu0 0.0
    %1684 = vmatpush1.xpose.msra.mxu0 0.0
    %1685 = vmatprep.subr.mxu0 0.0
    %1686 = vmatpush1.xpose.msra.mxu0 0.0
    %1687 = vmatprep.subr.mxu0 0.0
    %1688 = vmatpush1.xpose.msra.mxu0 0.0
    %1689 = vmatprep.subr.mxu0 0.0
    %1690 = vmatpush1.xpose.msra.mxu0 0.0
    %1691 = vmatprep.subr.mxu0 0.0
    %1692 = vmatpush1.xpose.msra.mxu0 0.0
    %1693 = vmatprep.subr.mxu0 0.0
    %1694 = vmatpush1.xpose.msra.mxu0 0.0
    %1695 = vmatprep.subr.mxu0 0.0
    %1696 = vmatpush1.xpose.msra.mxu0 0.0
    %1697 = vmatprep.subr.mxu0 0.0
    %1698 = vmatpush1.xpose.msra.mxu0 0.0
    %1699 = vmatprep.subr.mxu0 0.0
    %1700 = vmatpush1.xpose.msra.mxu0 0.0
    %1701 = vmatprep.subr.mxu0 0.0
    %1702 = vmatpush1.xpose.msra.mxu0 0.0
    %1703 = vmatprep.subr.mxu0 0.0
    %1704 = vmatpush1.xpose.msra.mxu0 0.0
    %1705 = vmatprep.subr.mxu0 0.0
    %1706 = vmatpush1.xpose.msra.mxu0 0.0
    %1707 = vmatprep.subr.mxu0 0.0
    %1708 = vmatpush1.xpose.msra.mxu0 0.0
    %1709 = vmatprep.subr.mxu0 0.0
    %1710 = vmatpush1.xpose.msra.mxu0 0.0
    %1711 = vmatprep.subr.mxu0 0.0
    %1712 = vmatpush1.xpose.msra.mxu0 0.0
    %1713 = vmatprep.subr.mxu0 0.0
    %1714 = vmatpush1.xpose.msra.mxu0 0.0
    %1715 = vmatprep.subr.mxu0 0.0
    %1716 = vmatpush1.xpose.msra.mxu0 0.0
    %1717 = vmatprep.subr.mxu0 0.0
    %1718 = vmatpush1.xpose.msra.mxu0 0.0
    %1719 = vmatprep.subr.mxu0 0.0
    %1720 = vmatpush1.xpose.msra.mxu0 0.0
    %1721 = vmatprep.subr.mxu0 0.0
    %1722 = vmatpush1.xpose.msra.mxu0 0.0
    %1723 = vmatprep.subr.mxu0 0.0
    %1724 = vmatpush1.xpose.msra.mxu0 0.0
    %1725 = vmatprep.subr.mxu0 0.0
    %1726 = vmatpush1.xpose.msra.mxu0 0.0
    %1727 = vmatprep.subr.mxu0 0.0
    %1728 = vmatpush1.xpose.msra.mxu0 0.0
    %1729 = vmatprep.subr.mxu0 0.0
    %1730 = vmatpush1.xpose.msra.mxu0 0.0
    %1731 = vmatprep.subr.mxu0 0.0
    %1732 = vmatpush1.xpose.msra.mxu0 0.0
    %1733 = vmatprep.subr.mxu0 0.0
    %1734 = vmatpush1.xpose.msra.mxu0 0.0
    %1735 = vmatprep.subr.mxu0 0.0
    %1736 = vmatpush1.xpose.msra.mxu0 0.0
    %1737 = vmatprep.mubr.f32.mxu0 0.0
    %1738 = vmatmul.mubr.f32.gmra.mrb[0].mxu0 %v1669
    %v1739 = vpop.f32.mrb[0].mxu0
    %v1740 = vadd.f32 0.0, %v1739
    %v1741 = vpop.f32.mrb[0].mxu0
    %1742 = vdwg.mxu0
    %v1743 = vsel %vm467, %v1740, -inf
    %1744 = vmax.xlane.f32.xlu0 %v1743
    %v1745 = vpop.xlane.xlu0 %1744
    %v1746 = vsub.f32 %v1740, %v1745
    %v1747 = vmul.f32 %v1746, 1.442695
    %v1748 = vpow.pop %v1747
    %v1749 = vsel %vm467, %v1748, 0.0
    %1750 = vadd.xlane.f32.xlu0 %v1749
    %v1751 = vpop.xlane.xlu0 %1750
    %v1752 = vrcp.pop %v1751
    %v1753 = vmul.f32 %v1748, %v1752
    %1754 = vrot.lane.b32.xlu0 %v1246, 48
    %v1755 = vpop.permute.xlu0 %1754
    %v1757 = vsel %vm481, %v1753, 0
    %v1759 = vsel %vm260, %v1755, 0
    %1761 = vmatprep.subr.mxu0 0.0
    %1762 = vmatpush1.msra.mxu0 %v1759
    %1763 = vmatprep.subr.mxu0 0.0
    %1764 = vmatpush1.msra.mxu0 0.0
    %1765 = vmatprep.subr.mxu0 0.0
    %1766 = vmatpush1.msra.mxu0 0.0
    %1767 = vmatprep.subr.mxu0 0.0
    %1768 = vmatpush1.msra.mxu0 0.0
    %1769 = vmatprep.subr.mxu0 0.0
    %1770 = vmatpush1.msra.mxu0 0.0
    %1771 = vmatprep.subr.mxu0 0.0
    %1772 = vmatpush1.msra.mxu0 0.0
    %1773 = vmatprep.subr.mxu0 0.0
    %1774 = vmatpush1.msra.mxu0 0.0
    %1775 = vmatprep.subr.mxu0 0.0
    %1776 = vmatpush1.msra.mxu0 0.0
    %1777 = vmatprep.subr.mxu0 0.0
    %1778 = vmatpush1.msra.mxu0 0.0
    %1779 = vmatprep.subr.mxu0 0.0
    %1780 = vmatpush1.msra.mxu0 0.0
    %1781 = vmatprep.subr.mxu0 0.0
    %1782 = vmatpush1.msra.mxu0 0.0
    %1783 = vmatprep.subr.mxu0 0.0
    %1784 = vmatpush1.msra.mxu0 0.0
    %1785 = vmatprep.subr.mxu0 0.0
    %1786 = vmatpush1.msra.mxu0 0.0
    %1787 = vmatprep.subr.mxu0 0.0
    %1788 = vmatpush1.msra.mxu0 0.0
    %1789 = vmatprep.subr.mxu0 0.0
    %1790 = vmatpush1.msra.mxu0 0.0
    %1791 = vmatprep.subr.mxu0 0.0
    %1792 = vmatpush1.msra.mxu0 0.0
    %1793 = vmatprep.subr.mxu0 0.0
    %1794 = vmatpush1.msra.mxu0 0.0
    %1795 = vmatprep.subr.mxu0 0.0
    %1796 = vmatpush1.msra.mxu0 0.0
    %1797 = vmatprep.subr.mxu0 0.0
    %1798 = vmatpush1.msra.mxu0 0.0
    %1799 = vmatprep.subr.mxu0 0.0
    %1800 = vmatpush1.msra.mxu0 0.0
    %1801 = vmatprep.subr.mxu0 0.0
    %1802 = vmatpush1.msra.mxu0 0.0
    %1803 = vmatprep.subr.mxu0 0.0
    %1804 = vmatpush1.msra.mxu0 0.0
    %1805 = vmatprep.subr.mxu0 0.0
    %1806 = vmatpush1.msra.mxu0 0.0
    %1807 = vmatprep.subr.mxu0 0.0
    %1808 = vmatpush1.msra.mxu0 0.0
    %1809 = vmatprep.subr.mxu0 0.0
    %1810 = vmatpush1.msra.mxu0 0.0
    %1811 = vmatprep.subr.mxu0 0.0
    %1812 = vmatpush1.msra.mxu0 0.0
    %1813 = vmatprep.subr.mxu0 0.0
    %1814 = vmatpush1.msra.mxu0 0.0
    %1815 = vmatprep.subr.mxu0 0.0
    %1816 = vmatpush1.msra.mxu0 0.0
    %1817 = vmatprep.subr.mxu0 0.0
    %1818 = vmatpush1.msra.mxu0 0.0
    %1819 = vmatprep.subr.mxu0 0.0
    %1820 = vmatpush1.msra.mxu0 0.0
    %1821 = vmatprep.subr.mxu0 0.0
    %1822 = vmatpush1.msra.mxu0 0.0
    %1823 = vmatprep.subr.mxu0 0.0
    %1824 = vmatpush1.msra.mxu0 0.0
    %1825 = vmatprep.mubr.f32.mxu0 0.0
    %1826 = vmatmul.mubr.f32.gmra.mrb[0].mxu0 %v1757
    %v1827 = vpop.f32.mrb[0].mxu0
    %v1828 = vadd.f32 0.0, %v1827
    %v1829 = vpop.f32.mrb[0].mxu0
    %1830 = vdwg.mxu0
    %v1831 = vpack.c.bf16 %v1828, %v1828
    %v1833 = vsel %vm392, %v1831, 0
    %1835 = vmatprep.subr.bf16.mxu0 0
    %1836 = vmatpush1.bf16.msra.mxu0 %v989
    %1837 = vmatprep.subr.bf16.mxu0 0
    %1838 = vmatpush1.bf16.msra.mxu0 0
    %1839 = vmatprep.subr.bf16.mxu0 0
    %1840 = vmatpush1.bf16.msra.mxu0 0
    %1841 = vmatprep.subr.bf16.mxu0 0
    %1842 = vmatpush1.bf16.msra.mxu0 0
    %1843 = vmatprep.subr.bf16.mxu0 0
    %1844 = vmatpush1.bf16.msra.mxu0 0
    %1845 = vmatprep.subr.bf16.mxu0 0
    %1846 = vmatpush1.bf16.msra.mxu0 0
    %1847 = vmatprep.subr.bf16.mxu0 0
    %1848 = vmatpush1.bf16.msra.mxu0 0
    %1849 = vmatprep.subr.bf16.mxu0 0
    %1850 = vmatpush1.bf16.msra.mxu0 0
    %1851 = vmatprep.subr.bf16.mxu0 0
    %1852 = vmatpush1.bf16.msra.mxu0 0
    %1853 = vmatprep.subr.bf16.mxu0 0
    %1854 = vmatpush1.bf16.msra.mxu0 0
    %1855 = vmatprep.subr.bf16.mxu0 0
    %1856 = vmatpush1.bf16.msra.mxu0 0
    %1857 = vmatprep.subr.bf16.mxu0 0
    %1858 = vmatpush1.bf16.msra.mxu0 0
    %1859 = vmatprep.subr.bf16.mxu0 0
    %1860 = vmatpush1.bf16.msra.mxu0 0
    %1861 = vmatprep.subr.bf16.mxu0 0
    %1862 = vmatpush1.bf16.msra.mxu0 0
    %1863 = vmatprep.subr.bf16.mxu0 0
    %1864 = vmatpush1.bf16.msra.mxu0 0
    %1865 = vmatprep.subr.bf16.mxu0 0
    %1866 = vmatpush1.bf16.msra.mxu0 0
    %1867 = vmatprep.mubr.bf16.mxu0 0
    %1868 = vmatmul.mubr.bf16.gmra.mrb[0].mxu0 %v1833
    %v1869 = vpop.f32.mrb[0].mxu0
    %v1870 = vadd.f32 0.0, %v1869
    %v1871 = vpop.f32.mrb[0].mxu0
    %v1872 = vpop.f32.mrb[0].mxu0
    %v1873 = vpop.f32.mrb[0].mxu0
    %1874 = vdwg.mxu0
    %v1875 = vadd.f32 %v1660, %v1870
    %1876 = vrot.lane.b32.xlu0 %v1246, 104
    %v1877 = vpop.permute.xlu0 %1876
    %1878 = vrot.lane.b32.xlu0 %v1246, 72
    %v1879 = vpop.permute.xlu0 %1878
    %v1880 = vsel %vm392, %v1877, 0
    %v1882 = vsel %vm392, %v1879, 0
    %1884 = vmatprep.subr.mxu0 0.0
    %1885 = vmatpush1.xpose.msra.mxu0 %v1882
    %1886 = vmatprep.subr.mxu0 0.0
    %1887 = vmatpush1.xpose.msra.mxu0 0.0
    %1888 = vmatprep.subr.mxu0 0.0
    %1889 = vmatpush1.xpose.msra.mxu0 0.0
    %1890 = vmatprep.subr.mxu0 0.0
    %1891 = vmatpush1.xpose.msra.mxu0 0.0
    %1892 = vmatprep.subr.mxu0 0.0
    %1893 = vmatpush1.xpose.msra.mxu0 0.0
    %1894 = vmatprep.subr.mxu0 0.0
    %1895 = vmatpush1.xpose.msra.mxu0 0.0
    %1896 = vmatprep.subr.mxu0 0.0
    %1897 = vmatpush1.xpose.msra.mxu0 0.0
    %1898 = vmatprep.subr.mxu0 0.0
    %1899 = vmatpush1.xpose.msra.mxu0 0.0
    %1900 = vmatprep.subr.mxu0 0.0
    %1901 = vmatpush1.xpose.msra.mxu0 0.0
    %1902 = vmatprep.subr.mxu0 0.0
    %1903 = vmatpush1.xpose.msra.mxu0 0.0
    %1904 = vmatprep.subr.mxu0 0.0
    %1905 = vmatpush1.xpose.msra.mxu0 0.0
    %1906 = vmatprep.subr.mxu0 0.0
    %1907 = vmatpush1.xpose.msra.mxu0 0.0
    %1908 = vmatprep.subr.mxu0 0.0
    %1909 = vmatpush1.xpose.msra.mxu0 0.0
    %1910 = vmatprep.subr.mxu0 0.0
    %1911 = vmatpush1.xpose.msra.mxu0 0.0
    %1912 = vmatprep.subr.mxu0 0.0
    %1913 = vmatpush1.xpose.msra.mxu0 0.0
    %1914 = vmatprep.subr.mxu0 0.0
    %1915 = vmatpush1.xpose.msra.mxu0 0.0
    %1916 = vmatprep.subr.mxu0 0.0
    %1917 = vmatpush1.xpose.msra.mxu0 0.0
    %1918 = vmatprep.subr.mxu0 0.0
    %1919 = vmatpush1.xpose.msra.mxu0 0.0
    %1920 = vmatprep.subr.mxu0 0.0
    %1921 = vmatpush1.xpose.msra.mxu0 0.0
    %1922 = vmatprep.subr.mxu0 0.0
    %1923 = vmatpush1.xpose.msra.mxu0 0.0
    %1924 = vmatprep.subr.mxu0 0.0
    %1925 = vmatpush1.xpose.msra.mxu0 0.0
    %1926 = vmatprep.subr.mxu0 0.0
    %1927 = vmatpush1.xpose.msra.mxu0 0.0
    %1928 = vmatprep.subr.mxu0 0.0
    %1929 = vmatpush1.xpose.msra.mxu0 0.0
    %1930 = vmatprep.subr.mxu0 0.0
    %1931 = vmatpush1.xpose.msra.mxu0 0.0
    %1932 = vmatprep.subr.mxu0 0.0
    %1933 = vmatpush1.xpose.msra.mxu0 0.0
    %1934 = vmatprep.subr.mxu0 0.0
    %1935 = vmatpush1.xpose.msra.mxu0 0.0
    %1936 = vmatprep.subr.mxu0 0.0
    %1937 = vmatpush1.xpose.msra.mxu0 0.0
    %1938 = vmatprep.subr.mxu0 0.0
    %1939 = vmatpush1.xpose.msra.mxu0 0.0
    %1940 = vmatprep.subr.mxu0 0.0
    %1941 = vmatpush1.xpose.msra.mxu0 0.0
    %1942 = vmatprep.subr.mxu0 0.0
    %1943 = vmatpush1.xpose.msra.mxu0 0.0
    %1944 = vmatprep.subr.mxu0 0.0
    %1945 = vmatpush1.xpose.msra.mxu0 0.0
    %1946 = vmatprep.subr.mxu0 0.0
    %1947 = vmatpush1.xpose.msra.mxu0 0.0
    %1948 = vmatprep.mubr.f32.mxu0 0.0
    %1949 = vmatmul.mubr.f32.gmra.mrb[0].mxu0 %v1880
    %v1950 = vpop.f32.mrb[0].mxu0
    %v1951 = vadd.f32 0.0, %v1950
    %v1952 = vpop.f32.mrb[0].mxu0
    %1953 = vdwg.mxu0
    %v1954 = vsel %vm467, %v1951, -inf
    %1955 = vmax.xlane.f32.xlu0 %v1954
    %v1956 = vpop.xlane.xlu0 %1955
    %v1957 = vsub.f32 %v1951, %v1956
    %v1958 = vmul.f32 %v1957, 1.442695
    %v1959 = vpow.pop %v1958
    %v1960 = vsel %vm467, %v1959, 0.0
    %1961 = vadd.xlane.f32.xlu0 %v1960
    %v1962 = vpop.xlane.xlu0 %1961
    %v1963 = vrcp.pop %v1962
    %v1964 = vmul.f32 %v1959, %v1963
    %1965 = vrot.lane.b32.xlu0 %v1246, 40
    %v1966 = vpop.permute.xlu0 %1965
    %v1968 = vsel %vm481, %v1964, 0
    %v1970 = vsel %vm260, %v1966, 0
    %1972 = vmatprep.subr.mxu0 0.0
    %1973 = vmatpush1.msra.mxu0 %v1970
    %1974 = vmatprep.subr.mxu0 0.0
    %1975 = vmatpush1.msra.mxu0 0.0
    %1976 = vmatprep.subr.mxu0 0.0
    %1977 = vmatpush1.msra.mxu0 0.0
    %1978 = vmatprep.subr.mxu0 0.0
    %1979 = vmatpush1.msra.mxu0 0.0
    %1980 = vmatprep.subr.mxu0 0.0
    %1981 = vmatpush1.msra.mxu0 0.0
    %1982 = vmatprep.subr.mxu0 0.0
    %1983 = vmatpush1.msra.mxu0 0.0
    %1984 = vmatprep.subr.mxu0 0.0
    %1985 = vmatpush1.msra.mxu0 0.0
    %1986 = vmatprep.subr.mxu0 0.0
    %1987 = vmatpush1.msra.mxu0 0.0
    %1988 = vmatprep.subr.mxu0 0.0
    %1989 = vmatpush1.msra.mxu0 0.0
    %1990 = vmatprep.subr.mxu0 0.0
    %1991 = vmatpush1.msra.mxu0 0.0
    %1992 = vmatprep.subr.mxu0 0.0
    %1993 = vmatpush1.msra.mxu0 0.0
    %1994 = vmatprep.subr.mxu0 0.0
    %1995 = vmatpush1.msra.mxu0 0.0
    %1996 = vmatprep.subr.mxu0 0.0
    %1997 = vmatpush1.msra.mxu0 0.0
    %1998 = vmatprep.subr.mxu0 0.0
    %1999 = vmatpush1.msra.mxu0 0.0
    %2000 = vmatprep.subr.mxu0 0.0
    %2001 = vmatpush1.msra.mxu0 0.0
    %2002 = vmatprep.subr.mxu0 0.0
    %2003 = vmatpush1.msra.mxu0 0.0
    %2004 = vmatprep.subr.mxu0 0.0
    %2005 = vmatpush1.msra.mxu0 0.0
    %2006 = vmatprep.subr.mxu0 0.0
    %2007 = vmatpush1.msra.mxu0 0.0
    %2008 = vmatprep.subr.mxu0 0.0
    %2009 = vmatpush1.msra.mxu0 0.0
    %2010 = vmatprep.subr.mxu0 0.0
    %2011 = vmatpush1.msra.mxu0 0.0
    %2012 = vmatprep.subr.mxu0 0.0
    %2013 = vmatpush1.msra.mxu0 0.0
    %2014 = vmatprep.subr.mxu0 0.0
    %2015 = vmatpush1.msra.mxu0 0.0
    %2016 = vmatprep.subr.mxu0 0.0
    %2017 = vmatpush1.msra.mxu0 0.0
    %2018 = vmatprep.subr.mxu0 0.0
    %2019 = vmatpush1.msra.mxu0 0.0
    %2020 = vmatprep.subr.mxu0 0.0
    %2021 = vmatpush1.msra.mxu0 0.0
    %2022 = vmatprep.subr.mxu0 0.0
    %2023 = vmatpush1.msra.mxu0 0.0
    %2024 = vmatprep.subr.mxu0 0.0
    %2025 = vmatpush1.msra.mxu0 0.0
    %2026 = vmatprep.subr.mxu0 0.0
    %2027 = vmatpush1.msra.mxu0 0.0
    %2028 = vmatprep.subr.mxu0 0.0
    %2029 = vmatpush1.msra.mxu0 0.0
    %2030 = vmatprep.subr.mxu0 0.0
    %2031 = vmatpush1.msra.mxu0 0.0
    %2032 = vmatprep.subr.mxu0 0.0
    %2033 = vmatpush1.msra.mxu0 0.0
    %2034 = vmatprep.subr.mxu0 0.0
    %2035 = vmatpush1.msra.mxu0 0.0
    %2036 = vmatprep.mubr.f32.mxu0 0.0
    %2037 = vmatmul.mubr.f32.gmra.mrb[0].mxu0 %v1968
    %v2038 = vpop.f32.mrb[0].mxu0
    %v2039 = vadd.f32 0.0, %v2038
    %v2040 = vpop.f32.mrb[0].mxu0
    %2041 = vdwg.mxu0
    %v2042 = vpack.c.bf16 %v2039, %v2039
    %v2044 = vsel %vm392, %v2042, 0
    %2046 = vmatprep.subr.bf16.mxu0 0
    %2047 = vmatpush1.bf16.msra.mxu0 %v1203
    %2048 = vmatprep.subr.bf16.mxu0 0
    %2049 = vmatpush1.bf16.msra.mxu0 0
    %2050 = vmatprep.subr.bf16.mxu0 0
    %2051 = vmatpush1.bf16.msra.mxu0 0
    %2052 = vmatprep.subr.bf16.mxu0 0
    %2053 = vmatpush1.bf16.msra.mxu0 0
    %2054 = vmatprep.subr.bf16.mxu0 0
    %2055 = vmatpush1.bf16.msra.mxu0 0
    %2056 = vmatprep.subr.bf16.mxu0 0
    %2057 = vmatpush1.bf16.msra.mxu0 0
    %2058 = vmatprep.subr.bf16.mxu0 0
    %2059 = vmatpush1.bf16.msra.mxu0 0
    %2060 = vmatprep.subr.bf16.mxu0 0
    %2061 = vmatpush1.bf16.msra.mxu0 0
    %2062 = vmatprep.subr.bf16.mxu0 0
    %2063 = vmatpush1.bf16.msra.mxu0 0
    %2064 = vmatprep.subr.bf16.mxu0 0
    %2065 = vmatpush1.bf16.msra.mxu0 0
    %2066 = vmatprep.subr.bf16.mxu0 0
    %2067 = vmatpush1.bf16.msra.mxu0 0
    %2068 = vmatprep.subr.bf16.mxu0 0
    %2069 = vmatpush1.bf16.msra.mxu0 0
    %2070 = vmatprep.subr.bf16.mxu0 0
    %2071 = vmatpush1.bf16.msra.mxu0 0
    %2072 = vmatprep.subr.bf16.mxu0 0
    %2073 = vmatpush1.bf16.msra.mxu0 0
    %2074 = vmatprep.subr.bf16.mxu0 0
    %2075 = vmatpush1.bf16.msra.mxu0 0
    %2076 = vmatprep.subr.bf16.mxu0 0
    %2077 = vmatpush1.bf16.msra.mxu0 0
    %2078 = vmatprep.mubr.bf16.mxu0 0
    %2079 = vmatmul.mubr.bf16.gmra.mrb[0].mxu0 %v2044
    %v2080 = vpop.f32.mrb[0].mxu0
    %v2081 = vadd.f32 0.0, %v2080
    %v2082 = vpop.f32.mrb[0].mxu0
    %v2083 = vpop.f32.mrb[0].mxu0
    %v2084 = vpop.f32.mrb[0].mxu0
    %2085 = vdwg.mxu0
    %v2086 = vadd.f32 %v1875, %v2081
    %v2088 = vrot.slane %v2086, 5
    %v2090 = vsel %vm260, %v1245, %v2088
    %v2091 = vadd.f32 %v261, %v2090
    %v2093 = vlaneseq
    %v2094 = vshrl.u32 %v2093, 7
    %v2095 = vsub.s32 0, %v2094
    %v2096 = vrot.slane %v273, %v2095
    %v2098 = vadd.f32 %v2091, %v2096
    %v2099 = vsel %vm298, %v2098, 0.0
    %2100 = vadd.xlane.f32.xlu0 %v2099
    %v2101 = vpop.xlane.xlu0 %2100
    %v2102 = vmul.f32 %v2101, %v302
    %v2103 = vsub.f32 %v2098, %v2102
    %v2104 = vmul.f32 %v2103, %v2103
    %v2105 = vsel %vm298, %v2104, 0.0
    %2106 = vadd.xlane.f32.xlu0 %v2105
    %v2107 = vpop.xlane.xlu0 %2106
    %v2108 = vmul.f32 %v2107, %v302
    %v2109 = vadd.f32 %v2108, 1e-05
    %v2110 = vrsqrt.pop %v2109
    %v2111 = vmul.f32 %v2103, %v2110
    %v2113 = vlaneseq
    %v2114 = vshrl.u32 %v2113, 7
    %v2115 = vsub.s32 0, %v2114
    %v2116 = vrot.slane %v274, %v2115
    %v2118 = vmul.f32 %v2111, %v2116
    %v2120 = vlaneseq
    %v2121 = vshrl.u32 %v2120, 7
    %v2122 = vsub.s32 0, %v2121
    %v2123 = vrot.slane %v275, %v2122
    %v2125 = vadd.f32 %v2118, %v2123
    %v2126 = vpack.c.bf16 %v2125, %v2125
    %v2128 = vlaneseq
    %v2129 = vshrl.u32 %v2128, 7
    %v2130 = vsub.s32 0, %v2129
    %v2131 = vrot.slane %v280, %v2130
    %v2137 = vunpack.c.l.b16 %v276
    %v2138 = vunpack.c.l.b16 %v277
    %v2139 = vunpack.c.l.b16 %v278
    %v2140 = vunpack.c.l.b16 %v279
    %v2141 = vpack.c.b16 %v2138, %v2137
    %v2142 = vpack.c.b16 %v2140, %v2139
    %v2146 = vsel %vm157, %v2126, 0
    %2148 = vmatprep.subr.bf16.mxu0 0
    %2149 = vmatpush1.bf16.msra.mxu0 %v2141
    %2150 = vmatprep.subr.bf16.mxu0 0
    %2151 = vmatpush1.bf16.msra.mxu0 %v2142
    %2152 = vmatprep.subr.bf16.mxu0 0
    %2153 = vmatpush1.bf16.msra.mxu0 0
    %2154 = vmatprep.subr.bf16.mxu0 0
    %2155 = vmatpush1.bf16.msra.mxu0 0
    %2156 = vmatprep.subr.bf16.mxu0 0
    %2157 = vmatpush1.bf16.msra.mxu0 0
    %2158 = vmatprep.subr.bf16.mxu0 0
    %2159 = vmatpush1.bf16.msra.mxu0 0
    %2160 = vmatprep.subr.bf16.mxu0 0
    %2161 = vmatpush1.bf16.msra.mxu0 0
    %2162 = vmatprep.subr.bf16.mxu0 0
    %2163 = vmatpush1.bf16.msra.mxu0 0
    %2164 = vmatprep.subr.bf16.mxu0 0
    %2165 = vmatpush1.bf16.msra.mxu0 0
    %2166 = vmatprep.subr.bf16.mxu0 0
    %2167 = vmatpush1.bf16.msra.mxu0 0
    %2168 = vmatprep.subr.bf16.mxu0 0
    %2169 = vmatpush1.bf16.msra.mxu0 0
    %2170 = vmatprep.subr.bf16.mxu0 0
    %2171 = vmatpush1.bf16.msra.mxu0 0
    %2172 = vmatprep.subr.bf16.mxu0 0
    %2173 = vmatpush1.bf16.msra.mxu0 0
    %2174 = vmatprep.subr.bf16.mxu0 0
    %2175 = vmatpush1.bf16.msra.mxu0 0
    %2176 = vmatprep.subr.bf16.mxu0 0
    %2177 = vmatpush1.bf16.msra.mxu0 0
    %2178 = vmatprep.subr.bf16.mxu0 0
    %2179 = vmatpush1.bf16.msra.mxu0 0
    %2180 = vmatprep.mubr.bf16.mxu0 0
    %2181 = vmatmul.mubr.bf16.gmra.mrb[0].mxu0 %v2146
    %v2182 = vpop.f32.mrb[0].mxu0
    %v2183 = vadd.f32 %v2131, %v2182
    %v2184 = vpop.f32.mrb[0].mxu0
    %v2185 = vpop.f32.mrb[0].mxu0
    %v2186 = vpop.f32.mrb[0].mxu0
    %2187 = vdwg.mxu0
    %v2188 = vmul.f32 %v2183, 0.5
    %v2189 = vmul.f32 %v2183, 0.70710677
    %vm2190 = vcmp.ge.f32.partialorder %v2189, 0.0
    %v2191 = vsel %vm2190, 1.0, -1.0
    %v2192 = vand.u32 2147483647, %v2189
    %v2193 = vmul.f32 %v2192, 0.3275911
    %v2194 = vadd.f32 %v2193, 1.0
    %v2195 = vrcp.pop %v2194
    %v2196 = vmul.f32 1.0, %v2195
    %v2197 = vmul.f32 %v2196, 1.0614054
    %v2198 = vadd.f32 %v2197, -1.4531521
    %v2199 = vmul.f32 %v2198, %v2196
    %v2200 = vadd.f32 %v2199, 1.4214138
    %v2201 = vmul.f32 %v2200, %v2196
    %v2202 = vadd.f32 %v2201, -0.28449672
    %v2203 = vmul.f32 %v2202, %v2196
    %v2204 = vadd.f32 %v2203, 0.2548296
    %v2205 = vmul.f32 %v2204, %v2196
    %v2206 = vsub.f32 0.0, %v2192
    %v2207 = vmul.f32 %v2206, %v2192
    %v2208 = vmul.f32 %v2207, 1.442695
    %v2209 = vpow.pop %v2208
    %v2210 = vmul.f32 %v2205, %v2209
    %v2211 = vsub.f32 1.0, %v2210
    %v2212 = vmul.f32 %v2191, %v2211
    %v2213 = vadd.f32 %v2212, 1.0
    %v2214 = vmul.f32 %v2188, %v2213
    %v2215 = vpack.c.bf16 %v2214, %v2214
    %v2232 = vunpack.c.l.b16 %v281
    %v2233 = vunpack.c.l.b16 %v282
    %v2234 = vunpack.c.l.b16 %v283
    %v2235 = vunpack.c.l.b16 %v284
    %v2236 = vunpack.c.l.b16 %v285
    %v2237 = vunpack.c.l.b16 %v286
    %v2238 = vunpack.c.l.b16 %v287
    %v2239 = vunpack.c.l.b16 %v288
    %v2240 = vunpack.c.l.b16 %v289
    %v2241 = vunpack.c.l.b16 %v290
    %v2242 = vunpack.c.l.b16 %v291
    %v2243 = vunpack.c.l.b16 %v292
    %v2244 = vunpack.c.l.b16 %v293
    %v2245 = vunpack.c.l.b16 %v294
    %v2246 = vunpack.c.l.b16 %v295
    %v2247 = vunpack.c.l.b16 %v296
    %v2248 = vpack.c.b16 %v2233, %v2232
    %v2249 = vpack.c.b16 %v2235, %v2234
    %v2250 = vpack.c.b16 %v2237, %v2236
    %v2251 = vpack.c.b16 %v2239, %v2238
    %v2252 = vpack.c.b16 %v2241, %v2240
    %v2253 = vpack.c.b16 %v2243, %v2242
    %v2254 = vpack.c.b16 %v2245, %v2244
    %v2255 = vpack.c.b16 %v2247, %v2246
    %2264 = vmatprep.subr.bf16.mxu0 0
    %2265 = vmatpush1.bf16.msra.mxu0 %v2248
    %2266 = vmatprep.subr.bf16.mxu0 0
    %2267 = vmatpush1.bf16.msra.mxu0 %v2249
    %2268 = vmatprep.subr.bf16.mxu0 0
    %2269 = vmatpush1.bf16.msra.mxu0 %v2250
    %2270 = vmatprep.subr.bf16.mxu0 0
    %2271 = vmatpush1.bf16.msra.mxu0 %v2251
    %2272 = vmatprep.subr.bf16.mxu0 0
    %2273 = vmatpush1.bf16.msra.mxu0 %v2252
    %2274 = vmatprep.subr.bf16.mxu0 0
    %2275 = vmatpush1.bf16.msra.mxu0 %v2253
    %2276 = vmatprep.subr.bf16.mxu0 0
    %2277 = vmatpush1.bf16.msra.mxu0 %v2254
    %2278 = vmatprep.subr.bf16.mxu0 0
    %2279 = vmatpush1.bf16.msra.mxu0 %v2255
    %2280 = vmatprep.subr.bf16.mxu0 0
    %2281 = vmatpush1.bf16.msra.mxu0 0
    %2282 = vmatprep.subr.bf16.mxu0 0
    %2283 = vmatpush1.bf16.msra.mxu0 0
    %2284 = vmatprep.subr.bf16.mxu0 0
    %2285 = vmatpush1.bf16.msra.mxu0 0
    %2286 = vmatprep.subr.bf16.mxu0 0
    %2287 = vmatpush1.bf16.msra.mxu0 0
    %2288 = vmatprep.subr.bf16.mxu0 0
    %2289 = vmatpush1.bf16.msra.mxu0 0
    %2290 = vmatprep.subr.bf16.mxu0 0
    %2291 = vmatpush1.bf16.msra.mxu0 0
    %2292 = vmatprep.subr.bf16.mxu0 0
    %2293 = vmatpush1.bf16.msra.mxu0 0
    %2294 = vmatprep.subr.bf16.mxu0 0
    %2295 = vmatpush1.bf16.msra.mxu0 0
    %2296 = vmatprep.mubr.bf16.mxu0 0
    %2297 = vmatmul.mubr.bf16.gmra.mrb[0].mxu0 %v2215
    %v2298 = vpop.f32.mrb[0].mxu0
    %v2299 = vadd.f32 0.0, %v2298
    %v2300 = vpop.f32.mrb[0].mxu0
    %v2301 = vpop.f32.mrb[0].mxu0
    %v2302 = vpop.f32.mrb[0].mxu0
    %2303 = vdwg.mxu0
    %v2304 = vadd.f32 %v2098, %v2299
    %v2306 = vlaneseq
    %v2307 = vshrl.u32 %v2306, 7
    %v2308 = vsub.s32 0, %v2307
    %v2309 = vrot.slane %v297, %v2308
    %v2311 = vadd.f32 %v2304, %v2309
    %s2312 = scalar_lea.vmem %s6, 1
    %v2313 = vld [vmem:[%s2312] sm:$0x1]
    %s2314 = scalar_lea.vmem %s7, 1
    %v2315 = vld [vmem:[%s2314] sm:$0x1]
    %s2316 = scalar_lea.vmem %s8, 16
    %v2317 = vld [vmem:[%s2316] sm:$0xf]
    %v2318 = vld [vmem:[%s2316 + $0x4] sm:$0xf]
    %v2319 = vld [vmem:[%s2316 + $0x8] sm:$0xf]
    %v2320 = vld [vmem:[%s2316 + $0xc] sm:$0xf]
    %s2321 = scalar_lea.vmem %s9, 1
    %v2322 = vld [vmem:[%s2321] sm:$0x1]
    %s2323 = scalar_lea.vmem %s10, 16
    %v2324 = vld [vmem:[%s2323] sm:$0xf]
    %v2325 = vld [vmem:[%s2323 + $0x4] sm:$0xf]
    %v2326 = vld [vmem:[%s2323 + $0x8] sm:$0xf]
    %v2327 = vld [vmem:[%s2323 + $0xc] sm:$0xf]
    %s2328 = scalar_lea.vmem %s11, 1
    %v2329 = vld [vmem:[%s2328] sm:$0x1]
    %s2330 = scalar_lea.vmem %s12, 1
    %v2331 = vld [vmem:[%s2330] sm:$0x1]
    %s2332 = scalar_lea.vmem %s13, 1
    %v2333 = vld [vmem:[%s2332] sm:$0x1]
    %s2334 = scalar_lea.vmem %s14, 16
    %v2335 = vld [vmem:[%s2334] sm:$0xf]
    %v2336 = vld [vmem:[%s2334 + $0x4] sm:$0xf]
    %v2337 = vld [vmem:[%s2334 + $0x8] sm:$0xf]
    %v2338 = vld [vmem:[%s2334 + $0xc] sm:$0xf]
    %s2339 = scalar_lea.vmem %s15, 1
    %v2340 = vld [vmem:[%s2339] sm:$0x1]
    %s2341 = scalar_lea.vmem %s16, 64
    %v2342 = vld [vmem:[%s2341] sm:$0xf]
    %v2343 = vld [vmem:[%s2341 + $0x4] sm:$0xf]
    %v2344 = vld [vmem:[%s2341 + $0x8] sm:$0xf]
    %v2345 = vld [vmem:[%s2341 + $0xc] sm:$0xf]
    %v2346 = vld [vmem:[%s2341 + $0x10] sm:$0xf]
    %v2347 = vld [vmem:[%s2341 + $0x14] sm:$0xf]
    %v2348 = vld [vmem:[%s2341 + $0x18] sm:$0xf]
    %v2349 = vld [vmem:[%s2341 + $0x1c] sm:$0xf]
    %v2350 = vld [vmem:[%s2341 + $0x20] sm:$0xf]
    %v2351 = vld [vmem:[%s2341 + $0x24] sm:$0xf]
    %v2352 = vld [vmem:[%s2341 + $0x28] sm:$0xf]
    %v2353 = vld [vmem:[%s2341 + $0x2c] sm:$0xf]
    %v2354 = vld [vmem:[%s2341 + $0x30] sm:$0xf]
    %v2355 = vld [vmem:[%s2341 + $0x34] sm:$0xf]
    %v2356 = vld [vmem:[%s2341 + $0x38] sm:$0xf]
    %v2357 = vld [vmem:[%s2341 + $0x3c] sm:$0xf]
    %s2358 = scalar_lea.vmem %s17, 1
    %v2359 = vld [vmem:[%s2358] sm:$0x1]
    %v2360 = vsel %vm298, %v2311, 0.0
    %2361 = vadd.xlane.f32.xlu0 %v2360
    %v2362 = vpop.xlane.xlu0 %2361
    %v2363 = vmul.f32 %v2362, %v302
    %v2364 = vsub.f32 %v2311, %v2363
    %v2365 = vmul.f32 %v2364, %v2364
    %v2366 = vsel %vm298, %v2365, 0.0
    %2367 = vadd.xlane.f32.xlu0 %v2366
    %v2368 = vpop.xlane.xlu0 %2367
    %v2369 = vmul.f32 %v2368, %v302
    %v2370 = vadd.f32 %v2369, 1e-05
    %v2371 = vrsqrt.pop %v2370
    %v2372 = vmul.f32 %v2364, %v2371
    %v2374 = vlaneseq
    %v2375 = vshrl.u32 %v2374, 7
    %v2376 = vsub.s32 0, %v2375
    %v2377 = vrot.slane %v2313, %v2376
    %v2379 = vmul.f32 %v2372, %v2377
    %v2381 = vlaneseq
    %v2382 = vshrl.u32 %v2381, 7
    %v2383 = vsub.s32 0, %v2382
    %v2384 = vrot.slane %v2315, %v2383
    %v2386 = vadd.f32 %v2379, %v2384
    %v2387 = vpack.c.bf16 %v2386, %v2386
    %v2389 = vlaneseq
    %v2390 = vshrl.u32 %v2389, 7
    %v2391 = vsub.s32 0, %v2390
    %v2392 = vrot.slane %v2322, %v2391
    %v2398 = vunpack.c.l.b16 %v2317
    %v2399 = vunpack.c.l.b16 %v2318
    %v2400 = vunpack.c.l.b16 %v2319
    %v2401 = vunpack.c.l.b16 %v2320
    %v2402 = vpack.c.b16 %v2399, %v2398
    %v2403 = vpack.c.b16 %v2401, %v2400
    %v2407 = vsel %vm157, %v2387, 0
    %2409 = vmatprep.subr.bf16.mxu0 0
    %2410 = vmatpush1.bf16.msra.mxu0 %v2402
    %2411 = vmatprep.subr.bf16.mxu0 0
    %2412 = vmatpush1.bf16.msra.mxu0 %v2403
    %2413 = vmatprep.subr.bf16.mxu0 0
    %2414 = vmatpush1.bf16.msra.mxu0 0
    %2415 = vmatprep.subr.bf16.mxu0 0
    %2416 = vmatpush1.bf16.msra.mxu0 0
    %2417 = vmatprep.subr.bf16.mxu0 0
    %2418 = vmatpush1.bf16.msra.mxu0 0
    %2419 = vmatprep.subr.bf16.mxu0 0
    %2420 = vmatpush1.bf16.msra.mxu0 0
    %2421 = vmatprep.subr.bf16.mxu0 0
    %2422 = vmatpush1.bf16.msra.mxu0 0
    %2423 = vmatprep.subr.bf16.mxu0 0
    %2424 = vmatpush1.bf16.msra.mxu0 0
    %2425 = vmatprep.subr.bf16.mxu0 0
    %2426 = vmatpush1.bf16.msra.mxu0 0
    %2427 = vmatprep.subr.bf16.mxu0 0
    %2428 = vmatpush1.bf16.msra.mxu0 0
    %2429 = vmatprep.subr.bf16.mxu0 0
    %2430 = vmatpush1.bf16.msra.mxu0 0
    %2431 = vmatprep.subr.bf16.mxu0 0
    %2432 = vmatpush1.bf16.msra.mxu0 0
    %2433 = vmatprep.subr.bf16.mxu0 0
    %2434 = vmatpush1.bf16.msra.mxu0 0
    %2435 = vmatprep.subr.bf16.mxu0 0
    %2436 = vmatpush1.bf16.msra.mxu0 0
    %2437 = vmatprep.subr.bf16.mxu0 0
    %2438 = vmatpush1.bf16.msra.mxu0 0
    %2439 = vmatprep.subr.bf16.mxu0 0
    %2440 = vmatpush1.bf16.msra.mxu0 0
    %2441 = vmatprep.mubr.bf16.mxu0 0
    %2442 = vmatmul.mubr.bf16.gmra.mrb[0].mxu0 %v2407
    %v2443 = vpop.f32.mrb[0].mxu0
    %v2444 = vadd.f32 %v2392, %v2443
    %v2445 = vpop.f32.mrb[0].mxu0
    %v2446 = vpop.f32.mrb[0].mxu0
    %v2447 = vpop.f32.mrb[0].mxu0
    %2448 = vdwg.mxu0
    %2450 = vrot.lane.b32.xlu0 %v2444, 96
    %v2451 = vpop.permute.xlu0 %2450
    %v2452 = vsel %vm392, %v2444, 0
    %v2454 = vsel %vm392, %v2451, 0
    %2456 = vmatprep.subr.mxu0 0.0
    %2457 = vmatpush1.xpose.msra.mxu0 %v2454
    %2458 = vmatprep.subr.mxu0 0.0
    %2459 = vmatpush1.xpose.msra.mxu0 0.0
    %2460 = vmatprep.subr.mxu0 0.0
    %2461 = vmatpush1.xpose.msra.mxu0 0.0
    %2462 = vmatprep.subr.mxu0 0.0
    %2463 = vmatpush1.xpose.msra.mxu0 0.0
    %2464 = vmatprep.subr.mxu0 0.0
    %2465 = vmatpush1.xpose.msra.mxu0 0.0
    %2466 = vmatprep.subr.mxu0 0.0
    %2467 = vmatpush1.xpose.msra.mxu0 0.0
    %2468 = vmatprep.subr.mxu0 0.0
    %2469 = vmatpush1.xpose.msra.mxu0 0.0
    %2470 = vmatprep.subr.mxu0 0.0
    %2471 = vmatpush1.xpose.msra.mxu0 0.0
    %2472 = vmatprep.subr.mxu0 0.0
    %2473 = vmatpush1.xpose.msra.mxu0 0.0
    %2474 = vmatprep.subr.mxu0 0.0
    %2475 = vmatpush1.xpose.msra.mxu0 0.0
    %2476 = vmatprep.subr.mxu0 0.0
    %2477 = vmatpush1.xpose.msra.mxu0 0.0
    %2478 = vmatprep.subr.mxu0 0.0
    %2479 = vmatpush1.xpose.msra.mxu0 0.0
    %2480 = vmatprep.subr.mxu0 0.0
    %2481 = vmatpush1.xpose.msra.mxu0 0.0
    %2482 = vmatprep.subr.mxu0 0.0
    %2483 = vmatpush1.xpose.msra.mxu0 0.0
    %2484 = vmatprep.subr.mxu0 0.0
    %2485 = vmatpush1.xpose.msra.mxu0 0.0
    %2486 = vmatprep.subr.mxu0 0.0
    %2487 = vmatpush1.xpose.msra.mxu0 0.0
    %2488 = vmatprep.subr.mxu0 0.0
    %2489 = vmatpush1.xpose.msra.mxu0 0.0
    %2490 = vmatprep.subr.mxu0 0.0
    %2491 = vmatpush1.xpose.msra.mxu0 0.0
    %2492 = vmatprep.subr.mxu0 0.0
    %2493 = vmatpush1.xpose.msra.mxu0 0.0
    %2494 = vmatprep.subr.mxu0 0.0
    %2495 = vmatpush1.xpose.msra.mxu0 0.0
    %2496 = vmatprep.subr.mxu0 0.0
    %2497 = vmatpush1.xpose.msra.mxu0 0.0
    %2498 = vmatprep.subr.mxu0 0.0
    %2499 = vmatpush1.xpose.msra.mxu0 0.0
    %2500 = vmatprep.subr.mxu0 0.0
    %2501 = vmatpush1.xpose.msra.mxu0 0.0
    %2502 = vmatprep.subr.mxu0 0.0
    %2503 = vmatpush1.xpose.msra.mxu0 0.0
    %2504 = vmatprep.subr.mxu0 0.0
    %2505 = vmatpush1.xpose.msra.mxu0 0.0
    %2506 = vmatprep.subr.mxu0 0.0
    %2507 = vmatpush1.xpose.msra.mxu0 0.0
    %2508 = vmatprep.subr.mxu0 0.0
    %2509 = vmatpush1.xpose.msra.mxu0 0.0
    %2510 = vmatprep.subr.mxu0 0.0
    %2511 = vmatpush1.xpose.msra.mxu0 0.0
    %2512 = vmatprep.subr.mxu0 0.0
    %2513 = vmatpush1.xpose.msra.mxu0 0.0
    %2514 = vmatprep.subr.mxu0 0.0
    %2515 = vmatpush1.xpose.msra.mxu0 0.0
    %2516 = vmatprep.subr.mxu0 0.0
    %2517 = vmatpush1.xpose.msra.mxu0 0.0
    %2518 = vmatprep.subr.mxu0 0.0
    %2519 = vmatpush1.xpose.msra.mxu0 0.0
    %2520 = vmatprep.mubr.f32.mxu0 0.0
    %2521 = vmatmul.mubr.f32.gmra.mrb[0].mxu0 %v2452
    %v2522 = vpop.f32.mrb[0].mxu0
    %v2523 = vadd.f32 0.0, %v2522
    %v2524 = vpop.f32.mrb[0].mxu0
    %2525 = vdwg.mxu0
    %v2526 = vsel %vm467, %v2523, -inf
    %2527 = vmax.xlane.f32.xlu0 %v2526
    %v2528 = vpop.xlane.xlu0 %2527
    %v2529 = vsub.f32 %v2523, %v2528
    %v2530 = vmul.f32 %v2529, 1.442695
    %v2531 = vpow.pop %v2530
    %v2532 = vsel %vm467, %v2531, 0.0
    %2533 = vadd.xlane.f32.xlu0 %v2532
    %v2534 = vpop.xlane.xlu0 %2533
    %v2535 = vrcp.pop %v2534
    %v2536 = vmul.f32 %v2531, %v2535
    %2537 = vrot.lane.b32.xlu0 %v2444, 64
    %v2538 = vpop.permute.xlu0 %2537
    %v2540 = vsel %vm481, %v2536, 0
    %v2542 = vsel %vm260, %v2538, 0
    %2544 = vmatprep.subr.mxu0 0.0
    %2545 = vmatpush1.msra.mxu0 %v2542
    %2546 = vmatprep.subr.mxu0 0.0
    %2547 = vmatpush1.msra.mxu0 0.0
    %2548 = vmatprep.subr.mxu0 0.0
    %2549 = vmatpush1.msra.mxu0 0.0
    %2550 = vmatprep.subr.mxu0 0.0
    %2551 = vmatpush1.msra.mxu0 0.0
    %2552 = vmatprep.subr.mxu0 0.0
    %2553 = vmatpush1.msra.mxu0 0.0
    %2554 = vmatprep.subr.mxu0 0.0
    %2555 = vmatpush1.msra.mxu0 0.0
    %2556 = vmatprep.subr.mxu0 0.0
    %2557 = vmatpush1.msra.mxu0 0.0
    %2558 = vmatprep.subr.mxu0 0.0
    %2559 = vmatpush1.msra.mxu0 0.0
    %2560 = vmatprep.subr.mxu0 0.0
    %2561 = vmatpush1.msra.mxu0 0.0
    %2562 = vmatprep.subr.mxu0 0.0
    %2563 = vmatpush1.msra.mxu0 0.0
    %2564 = vmatprep.subr.mxu0 0.0
    %2565 = vmatpush1.msra.mxu0 0.0
    %2566 = vmatprep.subr.mxu0 0.0
    %2567 = vmatpush1.msra.mxu0 0.0
    %2568 = vmatprep.subr.mxu0 0.0
    %2569 = vmatpush1.msra.mxu0 0.0
    %2570 = vmatprep.subr.mxu0 0.0
    %2571 = vmatpush1.msra.mxu0 0.0
    %2572 = vmatprep.subr.mxu0 0.0
    %2573 = vmatpush1.msra.mxu0 0.0
    %2574 = vmatprep.subr.mxu0 0.0
    %2575 = vmatpush1.msra.mxu0 0.0
    %2576 = vmatprep.subr.mxu0 0.0
    %2577 = vmatpush1.msra.mxu0 0.0
    %2578 = vmatprep.subr.mxu0 0.0
    %2579 = vmatpush1.msra.mxu0 0.0
    %2580 = vmatprep.subr.mxu0 0.0
    %2581 = vmatpush1.msra.mxu0 0.0
    %2582 = vmatprep.subr.mxu0 0.0
    %2583 = vmatpush1.msra.mxu0 0.0
    %2584 = vmatprep.subr.mxu0 0.0
    %2585 = vmatpush1.msra.mxu0 0.0
    %2586 = vmatprep.subr.mxu0 0.0
    %2587 = vmatpush1.msra.mxu0 0.0
    %2588 = vmatprep.subr.mxu0 0.0
    %2589 = vmatpush1.msra.mxu0 0.0
    %2590 = vmatprep.subr.mxu0 0.0
    %2591 = vmatpush1.msra.mxu0 0.0
    %2592 = vmatprep.subr.mxu0 0.0
    %2593 = vmatpush1.msra.mxu0 0.0
    %2594 = vmatprep.subr.mxu0 0.0
    %2595 = vmatpush1.msra.mxu0 0.0
    %2596 = vmatprep.subr.mxu0 0.0
    %2597 = vmatpush1.msra.mxu0 0.0
    %2598 = vmatprep.subr.mxu0 0.0
    %2599 = vmatpush1.msra.mxu0 0.0
    %2600 = vmatprep.subr.mxu0 0.0
    %2601 = vmatpush1.msra.mxu0 0.0
    %2602 = vmatprep.subr.mxu0 0.0
    %2603 = vmatpush1.msra.mxu0 0.0
    %2604 = vmatprep.subr.mxu0 0.0
    %2605 = vmatpush1.msra.mxu0 0.0
    %2606 = vmatprep.subr.mxu0 0.0
    %2607 = vmatpush1.msra.mxu0 0.0
    %2608 = vmatprep.mubr.f32.mxu0 0.0
    %2609 = vmatmul.mubr.f32.gmra.mrb[0].mxu0 %v2540
    %v2610 = vpop.f32.mrb[0].mxu0
    %v2611 = vadd.f32 0.0, %v2610
    %v2612 = vpop.f32.mrb[0].mxu0
    %2613 = vdwg.mxu0
    %v2614 = vpack.c.bf16 %v2611, %v2611
    %2615 = vrot.lane.b32.xlu0 %v2444, 120
    %v2616 = vpop.permute.xlu0 %2615
    %2617 = vrot.lane.b32.xlu0 %v2444, 88
    %v2618 = vpop.permute.xlu0 %2617
    %v2619 = vsel %vm392, %v2616, 0
    %v2621 = vsel %vm392, %v2618, 0
    %2623 = vmatprep.subr.mxu0 0.0
    %2624 = vmatpush1.xpose.msra.mxu0 %v2621
    %2625 = vmatprep.subr.mxu0 0.0
    %2626 = vmatpush1.xpose.msra.mxu0 0.0
    %2627 = vmatprep.subr.mxu0 0.0
    %2628 = vmatpush1.xpose.msra.mxu0 0.0
    %2629 = vmatprep.subr.mxu0 0.0
    %2630 = vmatpush1.xpose.msra.mxu0 0.0
    %2631 = vmatprep.subr.mxu0 0.0
    %2632 = vmatpush1.xpose.msra.mxu0 0.0
    %2633 = vmatprep.subr.mxu0 0.0
    %2634 = vmatpush1.xpose.msra.mxu0 0.0
    %2635 = vmatprep.subr.mxu0 0.0
    %2636 = vmatpush1.xpose.msra.mxu0 0.0
    %2637 = vmatprep.subr.mxu0 0.0
    %2638 = vmatpush1.xpose.msra.mxu0 0.0
    %2639 = vmatprep.subr.mxu0 0.0
    %2640 = vmatpush1.xpose.msra.mxu0 0.0
    %2641 = vmatprep.subr.mxu0 0.0
    %2642 = vmatpush1.xpose.msra.mxu0 0.0
    %2643 = vmatprep.subr.mxu0 0.0
    %2644 = vmatpush1.xpose.msra.mxu0 0.0
    %2645 = vmatprep.subr.mxu0 0.0
    %2646 = vmatpush1.xpose.msra.mxu0 0.0
    %2647 = vmatprep.subr.mxu0 0.0
    %2648 = vmatpush1.xpose.msra.mxu0 0.0
    %2649 = vmatprep.subr.mxu0 0.0
    %2650 = vmatpush1.xpose.msra.mxu0 0.0
    %2651 = vmatprep.subr.mxu0 0.0
    %2652 = vmatpush1.xpose.msra.mxu0 0.0
    %2653 = vmatprep.subr.mxu0 0.0
    %2654 = vmatpush1.xpose.msra.mxu0 0.0
    %2655 = vmatprep.subr.mxu0 0.0
    %2656 = vmatpush1.xpose.msra.mxu0 0.0
    %2657 = vmatprep.subr.mxu0 0.0
    %2658 = vmatpush1.xpose.msra.mxu0 0.0
    %2659 = vmatprep.subr.mxu0 0.0
    %2660 = vmatpush1.xpose.msra.mxu0 0.0
    %2661 = vmatprep.subr.mxu0 0.0
    %2662 = vmatpush1.xpose.msra.mxu0 0.0
    %2663 = vmatprep.subr.mxu0 0.0
    %2664 = vmatpush1.xpose.msra.mxu0 0.0
    %2665 = vmatprep.subr.mxu0 0.0
    %2666 = vmatpush1.xpose.msra.mxu0 0.0
    %2667 = vmatprep.subr.mxu0 0.0
    %2668 = vmatpush1.xpose.msra.mxu0 0.0
    %2669 = vmatprep.subr.mxu0 0.0
    %2670 = vmatpush1.xpose.msra.mxu0 0.0
    %2671 = vmatprep.subr.mxu0 0.0
    %2672 = vmatpush1.xpose.msra.mxu0 0.0
    %2673 = vmatprep.subr.mxu0 0.0
    %2674 = vmatpush1.xpose.msra.mxu0 0.0
    %2675 = vmatprep.subr.mxu0 0.0
    %2676 = vmatpush1.xpose.msra.mxu0 0.0
    %2677 = vmatprep.subr.mxu0 0.0
    %2678 = vmatpush1.xpose.msra.mxu0 0.0
    %2679 = vmatprep.subr.mxu0 0.0
    %2680 = vmatpush1.xpose.msra.mxu0 0.0
    %2681 = vmatprep.subr.mxu0 0.0
    %2682 = vmatpush1.xpose.msra.mxu0 0.0
    %2683 = vmatprep.subr.mxu0 0.0
    %2684 = vmatpush1.xpose.msra.mxu0 0.0
    %2685 = vmatprep.subr.mxu0 0.0
    %2686 = vmatpush1.xpose.msra.mxu0 0.0
    %2687 = vmatprep.mubr.f32.mxu0 0.0
    %2688 = vmatmul.mubr.f32.gmra.mrb[0].mxu0 %v2619
    %v2689 = vpop.f32.mrb[0].mxu0
    %v2690 = vadd.f32 0.0, %v2689
    %v2691 = vpop.f32.mrb[0].mxu0
    %2692 = vdwg.mxu0
    %v2693 = vsel %vm467, %v2690, -inf
    %2694 = vmax.xlane.f32.xlu0 %v2693
    %v2695 = vpop.xlane.xlu0 %2694
    %v2696 = vsub.f32 %v2690, %v2695
    %v2697 = vmul.f32 %v2696, 1.442695
    %v2698 = vpow.pop %v2697
    %v2699 = vsel %vm467, %v2698, 0.0
    %2700 = vadd.xlane.f32.xlu0 %v2699
    %v2701 = vpop.xlane.xlu0 %2700
    %v2702 = vrcp.pop %v2701
    %v2703 = vmul.f32 %v2698, %v2702
    %2704 = vrot.lane.b32.xlu0 %v2444, 56
    %v2705 = vpop.permute.xlu0 %2704
    %v2707 = vsel %vm481, %v2703, 0
    %v2709 = vsel %vm260, %v2705, 0
    %2711 = vmatprep.subr.mxu0 0.0
    %2712 = vmatpush1.msra.mxu0 %v2709
    %2713 = vmatprep.subr.mxu0 0.0
    %2714 = vmatpush1.msra.mxu0 0.0
    %2715 = vmatprep.subr.mxu0 0.0
    %2716 = vmatpush1.msra.mxu0 0.0
    %2717 = vmatprep.subr.mxu0 0.0
    %2718 = vmatpush1.msra.mxu0 0.0
    %2719 = vmatprep.subr.mxu0 0.0
    %2720 = vmatpush1.msra.mxu0 0.0
    %2721 = vmatprep.subr.mxu0 0.0
    %2722 = vmatpush1.msra.mxu0 0.0
    %2723 = vmatprep.subr.mxu0 0.0
    %2724 = vmatpush1.msra.mxu0 0.0
    %2725 = vmatprep.subr.mxu0 0.0
    %2726 = vmatpush1.msra.mxu0 0.0
    %2727 = vmatprep.subr.mxu0 0.0
    %2728 = vmatpush1.msra.mxu0 0.0
    %2729 = vmatprep.subr.mxu0 0.0
    %2730 = vmatpush1.msra.mxu0 0.0
    %2731 = vmatprep.subr.mxu0 0.0
    %2732 = vmatpush1.msra.mxu0 0.0
    %2733 = vmatprep.subr.mxu0 0.0
    %2734 = vmatpush1.msra.mxu0 0.0
    %2735 = vmatprep.subr.mxu0 0.0
    %2736 = vmatpush1.msra.mxu0 0.0
    %2737 = vmatprep.subr.mxu0 0.0
    %2738 = vmatpush1.msra.mxu0 0.0
    %2739 = vmatprep.subr.mxu0 0.0
    %2740 = vmatpush1.msra.mxu0 0.0
    %2741 = vmatprep.subr.mxu0 0.0
    %2742 = vmatpush1.msra.mxu0 0.0
    %2743 = vmatprep.subr.mxu0 0.0
    %2744 = vmatpush1.msra.mxu0 0.0
    %2745 = vmatprep.subr.mxu0 0.0
    %2746 = vmatpush1.msra.mxu0 0.0
    %2747 = vmatprep.subr.mxu0 0.0
    %2748 = vmatpush1.msra.mxu0 0.0
    %2749 = vmatprep.subr.mxu0 0.0
    %2750 = vmatpush1.msra.mxu0 0.0
    %2751 = vmatprep.subr.mxu0 0.0
    %2752 = vmatpush1.msra.mxu0 0.0
    %2753 = vmatprep.subr.mxu0 0.0
    %2754 = vmatpush1.msra.mxu0 0.0
    %2755 = vmatprep.subr.mxu0 0.0
    %2756 = vmatpush1.msra.mxu0 0.0
    %2757 = vmatprep.subr.mxu0 0.0
    %2758 = vmatpush1.msra.mxu0 0.0
    %2759 = vmatprep.subr.mxu0 0.0
    %2760 = vmatpush1.msra.mxu0 0.0
    %2761 = vmatprep.subr.mxu0 0.0
    %2762 = vmatpush1.msra.mxu0 0.0
    %2763 = vmatprep.subr.mxu0 0.0
    %2764 = vmatpush1.msra.mxu0 0.0
    %2765 = vmatprep.subr.mxu0 0.0
    %2766 = vmatpush1.msra.mxu0 0.0
    %2767 = vmatprep.subr.mxu0 0.0
    %2768 = vmatpush1.msra.mxu0 0.0
    %2769 = vmatprep.subr.mxu0 0.0
    %2770 = vmatpush1.msra.mxu0 0.0
    %2771 = vmatprep.subr.mxu0 0.0
    %2772 = vmatpush1.msra.mxu0 0.0
    %2773 = vmatprep.subr.mxu0 0.0
    %2774 = vmatpush1.msra.mxu0 0.0
    %2775 = vmatprep.mubr.f32.mxu0 0.0
    %2776 = vmatmul.mubr.f32.gmra.mrb[0].mxu0 %v2707
    %v2777 = vpop.f32.mrb[0].mxu0
    %v2778 = vadd.f32 0.0, %v2777
    %v2779 = vpop.f32.mrb[0].mxu0
    %2780 = vdwg.mxu0
    %v2781 = vpack.c.bf16 %v2778, %v2778
    %v2783 = vsel %vm392, %v2781, 0
    %v2786 = vsel %vm728, %v2325, 0
    %2788 = vmatprep.subr.bf16.mxu0 0
    %2789 = vmatpush1.bf16.msra.mxu0 %v2786
    %2790 = vmatprep.subr.bf16.mxu0 0
    %2791 = vmatpush1.bf16.msra.mxu0 0
    %2792 = vmatprep.subr.bf16.mxu0 0
    %2793 = vmatpush1.bf16.msra.mxu0 0
    %2794 = vmatprep.subr.bf16.mxu0 0
    %2795 = vmatpush1.bf16.msra.mxu0 0
    %2796 = vmatprep.subr.bf16.mxu0 0
    %2797 = vmatpush1.bf16.msra.mxu0 0
    %2798 = vmatprep.subr.bf16.mxu0 0
    %2799 = vmatpush1.bf16.msra.mxu0 0
    %2800 = vmatprep.subr.bf16.mxu0 0
    %2801 = vmatpush1.bf16.msra.mxu0 0
    %2802 = vmatprep.subr.bf16.mxu0 0
    %2803 = vmatpush1.bf16.msra.mxu0 0
    %2804 = vmatprep.subr.bf16.mxu0 0
    %2805 = vmatpush1.bf16.msra.mxu0 0
    %2806 = vmatprep.subr.bf16.mxu0 0
    %2807 = vmatpush1.bf16.msra.mxu0 0
    %2808 = vmatprep.subr.bf16.mxu0 0
    %2809 = vmatpush1.bf16.msra.mxu0 0
    %2810 = vmatprep.subr.bf16.mxu0 0
    %2811 = vmatpush1.bf16.msra.mxu0 0
    %2812 = vmatprep.subr.bf16.mxu0 0
    %2813 = vmatpush1.bf16.msra.mxu0 0
    %2814 = vmatprep.subr.bf16.mxu0 0
    %2815 = vmatpush1.bf16.msra.mxu0 0
    %2816 = vmatprep.subr.bf16.mxu0 0
    %2817 = vmatpush1.bf16.msra.mxu0 0
    %2818 = vmatprep.subr.bf16.mxu0 0
    %2819 = vmatpush1.bf16.msra.mxu0 0
    %2820 = vmatprep.mubr.bf16.mxu0 0
    %2821 = vmatmul.mubr.bf16.gmra.mrb[0].mxu0 %v2783
    %v2822 = vpop.f32.mrb[0].mxu0
    %v2823 = vadd.f32 0.0, %v2822
    %v2824 = vpop.f32.mrb[0].mxu0
    %v2825 = vpop.f32.mrb[0].mxu0
    %v2826 = vpop.f32.mrb[0].mxu0
    %2827 = vdwg.mxu0
    %v2829 = vsel %vm392, %v2614, 0
    %v2832 = vsel %vm728, %v2324, 0
    %2834 = vmatprep.subr.bf16.mxu0 0
    %2835 = vmatpush1.bf16.msra.mxu0 %v2832
    %2836 = vmatprep.subr.bf16.mxu0 0
    %2837 = vmatpush1.bf16.msra.mxu0 0
    %2838 = vmatprep.subr.bf16.mxu0 0
    %2839 = vmatpush1.bf16.msra.mxu0 0
    %2840 = vmatprep.subr.bf16.mxu0 0
    %2841 = vmatpush1.bf16.msra.mxu0 0
    %2842 = vmatprep.subr.bf16.mxu0 0
    %2843 = vmatpush1.bf16.msra.mxu0 0
    %2844 = vmatprep.subr.bf16.mxu0 0
    %2845 = vmatpush1.bf16.msra.mxu0 0
    %2846 = vmatprep.subr.bf16.mxu0 0
    %2847 = vmatpush1.bf16.msra.mxu0 0
    %2848 = vmatprep.subr.bf16.mxu0 0
    %2849 = vmatpush1.bf16.msra.mxu0 0
    %2850 = vmatprep.subr.bf16.mxu0 0
    %2851 = vmatpush1.bf16.msra.mxu0 0
    %2852 = vmatprep.subr.bf16.mxu0 0
    %2853 = vmatpush1.bf16.msra.mxu0 0
    %2854 = vmatprep.subr.bf16.mxu0 0
    %2855 = vmatpush1.bf16.msra.mxu0 0
    %2856 = vmatprep.subr.bf16.mxu0 0
    %2857 = vmatpush1.bf16.msra.mxu0 0
    %2858 = vmatprep.subr.bf16.mxu0 0
    %2859 = vmatpush1.bf16.msra.mxu0 0
    %2860 = vmatprep.subr.bf16.mxu0 0
    %2861 = vmatpush1.bf16.msra.mxu0 0
    %2862 = vmatprep.subr.bf16.mxu0 0
    %2863 = vmatpush1.bf16.msra.mxu0 0
    %2864 = vmatprep.subr.bf16.mxu0 0
    %2865 = vmatpush1.bf16.msra.mxu0 0
    %2866 = vmatprep.mubr.bf16.mxu0 0
    %2867 = vmatmul.mubr.bf16.gmra.mrb[0].mxu0 %v2829
    %v2868 = vpop.f32.mrb[0].mxu0
    %v2869 = vadd.f32 %v2823, %v2868
    %v2870 = vpop.f32.mrb[0].mxu0
    %v2871 = vpop.f32.mrb[0].mxu0
    %v2872 = vpop.f32.mrb[0].mxu0
    %2873 = vdwg.mxu0
    %2874 = vrot.lane.b32.xlu0 %v2444, 112
    %v2875 = vpop.permute.xlu0 %2874
    %2876 = vrot.lane.b32.xlu0 %v2444, 80
    %v2877 = vpop.permute.xlu0 %2876
    %v2878 = vsel %vm392, %v2875, 0
    %v2880 = vsel %vm392, %v2877, 0
    %2882 = vmatprep.subr.mxu0 0.0
    %2883 = vmatpush1.xpose.msra.mxu0 %v2880
    %2884 = vmatprep.subr.mxu0 0.0
    %2885 = vmatpush1.xpose.msra.mxu0 0.0
    %2886 = vmatprep.subr.mxu0 0.0
    %2887 = vmatpush1.xpose.msra.mxu0 0.0
    %2888 = vmatprep.subr.mxu0 0.0
    %2889 = vmatpush1.xpose.msra.mxu0 0.0
    %2890 = vmatprep.subr.mxu0 0.0
    %2891 = vmatpush1.xpose.msra.mxu0 0.0
    %2892 = vmatprep.subr.mxu0 0.0
    %2893 = vmatpush1.xpose.msra.mxu0 0.0
    %2894 = vmatprep.subr.mxu0 0.0
    %2895 = vmatpush1.xpose.msra.mxu0 0.0
    %2896 = vmatprep.subr.mxu0 0.0
    %2897 = vmatpush1.xpose.msra.mxu0 0.0
    %2898 = vmatprep.subr.mxu0 0.0
    %2899 = vmatpush1.xpose.msra.mxu0 0.0
    %2900 = vmatprep.subr.mxu0 0.0
    %2901 = vmatpush1.xpose.msra.mxu0 0.0
    %2902 = vmatprep.subr.mxu0 0.0
    %2903 = vmatpush1.xpose.msra.mxu0 0.0
    %2904 = vmatprep.subr.mxu0 0.0
    %2905 = vmatpush1.xpose.msra.mxu0 0.0
    %2906 = vmatprep.subr.mxu0 0.0
    %2907 = vmatpush1.xpose.msra.mxu0 0.0
    %2908 = vmatprep.subr.mxu0 0.0
    %2909 = vmatpush1.xpose.msra.mxu0 0.0
    %2910 = vmatprep.subr.mxu0 0.0
    %2911 = vmatpush1.xpose.msra.mxu0 0.0
    %2912 = vmatprep.subr.mxu0 0.0
    %2913 = vmatpush1.xpose.msra.mxu0 0.0
    %2914 = vmatprep.subr.mxu0 0.0
    %2915 = vmatpush1.xpose.msra.mxu0 0.0
    %2916 = vmatprep.subr.mxu0 0.0
    %2917 = vmatpush1.xpose.msra.mxu0 0.0
    %2918 = vmatprep.subr.mxu0 0.0
    %2919 = vmatpush1.xpose.msra.mxu0 0.0
    %2920 = vmatprep.subr.mxu0 0.0
    %2921 = vmatpush1.xpose.msra.mxu0 0.0
    %2922 = vmatprep.subr.mxu0 0.0
    %2923 = vmatpush1.xpose.msra.mxu0 0.0
    %2924 = vmatprep.subr.mxu0 0.0
    %2925 = vmatpush1.xpose.msra.mxu0 0.0
    %2926 = vmatprep.subr.mxu0 0.0
    %2927 = vmatpush1.xpose.msra.mxu0 0.0
    %2928 = vmatprep.subr.mxu0 0.0
    %2929 = vmatpush1.xpose.msra.mxu0 0.0
    %2930 = vmatprep.subr.mxu0 0.0
    %2931 = vmatpush1.xpose.msra.mxu0 0.0
    %2932 = vmatprep.subr.mxu0 0.0
    %2933 = vmatpush1.xpose.msra.mxu0 0.0
    %2934 = vmatprep.subr.mxu0 0.0
    %2935 = vmatpush1.xpose.msra.mxu0 0.0
    %2936 = vmatprep.subr.mxu0 0.0
    %2937 = vmatpush1.xpose.msra.mxu0 0.0
    %2938 = vmatprep.subr.mxu0 0.0
    %2939 = vmatpush1.xpose.msra.mxu0 0.0
    %2940 = vmatprep.subr.mxu0 0.0
    %2941 = vmatpush1.xpose.msra.mxu0 0.0
    %2942 = vmatprep.subr.mxu0 0.0
    %2943 = vmatpush1.xpose.msra.mxu0 0.0
    %2944 = vmatprep.subr.mxu0 0.0
    %2945 = vmatpush1.xpose.msra.mxu0 0.0
    %2946 = vmatprep.mubr.f32.mxu0 0.0
    %2947 = vmatmul.mubr.f32.gmra.mrb[0].mxu0 %v2878
    %v2948 = vpop.f32.mrb[0].mxu0
    %v2949 = vadd.f32 0.0, %v2948
    %v2950 = vpop.f32.mrb[0].mxu0
    %2951 = vdwg.mxu0
    %v2952 = vsel %vm467, %v2949, -inf
    %2953 = vmax.xlane.f32.xlu0 %v2952
    %v2954 = vpop.xlane.xlu0 %2953
    %v2955 = vsub.f32 %v2949, %v2954
    %v2956 = vmul.f32 %v2955, 1.442695
    %v2957 = vpow.pop %v2956
    %v2958 = vsel %vm467, %v2957, 0.0
    %2959 = vadd.xlane.f32.xlu0 %v2958
    %v2960 = vpop.xlane.xlu0 %2959
    %v2961 = vrcp.pop %v2960
    %v2962 = vmul.f32 %v2957, %v2961
    %2963 = vrot.lane.b32.xlu0 %v2444, 48
    %v2964 = vpop.permute.xlu0 %2963
    %v2966 = vsel %vm481, %v2962, 0
    %v2968 = vsel %vm260, %v2964, 0
    %2970 = vmatprep.subr.mxu0 0.0
    %2971 = vmatpush1.msra.mxu0 %v2968
    %2972 = vmatprep.subr.mxu0 0.0
    %2973 = vmatpush1.msra.mxu0 0.0
    %2974 = vmatprep.subr.mxu0 0.0
    %2975 = vmatpush1.msra.mxu0 0.0
    %2976 = vmatprep.subr.mxu0 0.0
    %2977 = vmatpush1.msra.mxu0 0.0
    %2978 = vmatprep.subr.mxu0 0.0
    %2979 = vmatpush1.msra.mxu0 0.0
    %2980 = vmatprep.subr.mxu0 0.0
    %2981 = vmatpush1.msra.mxu0 0.0
    %2982 = vmatprep.subr.mxu0 0.0
    %2983 = vmatpush1.msra.mxu0 0.0
    %2984 = vmatprep.subr.mxu0 0.0
    %2985 = vmatpush1.msra.mxu0 0.0
    %2986 = vmatprep.subr.mxu0 0.0
    %2987 = vmatpush1.msra.mxu0 0.0
    %2988 = vmatprep.subr.mxu0 0.0
    %2989 = vmatpush1.msra.mxu0 0.0
    %2990 = vmatprep.subr.mxu0 0.0
    %2991 = vmatpush1.msra.mxu0 0.0
    %2992 = vmatprep.subr.mxu0 0.0
    %2993 = vmatpush1.msra.mxu0 0.0
    %2994 = vmatprep.subr.mxu0 0.0
    %2995 = vmatpush1.msra.mxu0 0.0
    %2996 = vmatprep.subr.mxu0 0.0
    %2997 = vmatpush1.msra.mxu0 0.0
    %2998 = vmatprep.subr.mxu0 0.0
    %2999 = vmatpush1.msra.mxu0 0.0
    %3000 = vmatprep.subr.mxu0 0.0
    %3001 = vmatpush1.msra.mxu0 0.0
    %3002 = vmatprep.subr.mxu0 0.0
    %3003 = vmatpush1.msra.mxu0 0.0
    %3004 = vmatprep.subr.mxu0 0.0
    %3005 = vmatpush1.msra.mxu0 0.0
    %3006 = vmatprep.subr.mxu0 0.0
    %3007 = vmatpush1.msra.mxu0 0.0
    %3008 = vmatprep.subr.mxu0 0.0
    %3009 = vmatpush1.msra.mxu0 0.0
    %3010 = vmatprep.subr.mxu0 0.0
    %3011 = vmatpush1.msra.mxu0 0.0
    %3012 = vmatprep.subr.mxu0 0.0
    %3013 = vmatpush1.msra.mxu0 0.0
    %3014 = vmatprep.subr.mxu0 0.0
    %3015 = vmatpush1.msra.mxu0 0.0
    %3016 = vmatprep.subr.mxu0 0.0
    %3017 = vmatpush1.msra.mxu0 0.0
    %3018 = vmatprep.subr.mxu0 0.0
    %3019 = vmatpush1.msra.mxu0 0.0
    %3020 = vmatprep.subr.mxu0 0.0
    %3021 = vmatpush1.msra.mxu0 0.0
    %3022 = vmatprep.subr.mxu0 0.0
    %3023 = vmatpush1.msra.mxu0 0.0
    %3024 = vmatprep.subr.mxu0 0.0
    %3025 = vmatpush1.msra.mxu0 0.0
    %3026 = vmatprep.subr.mxu0 0.0
    %3027 = vmatpush1.msra.mxu0 0.0
    %3028 = vmatprep.subr.mxu0 0.0
    %3029 = vmatpush1.msra.mxu0 0.0
    %3030 = vmatprep.subr.mxu0 0.0
    %3031 = vmatpush1.msra.mxu0 0.0
    %3032 = vmatprep.subr.mxu0 0.0
    %3033 = vmatpush1.msra.mxu0 0.0
    %3034 = vmatprep.mubr.f32.mxu0 0.0
    %3035 = vmatmul.mubr.f32.gmra.mrb[0].mxu0 %v2966
    %v3036 = vpop.f32.mrb[0].mxu0
    %v3037 = vadd.f32 0.0, %v3036
    %v3038 = vpop.f32.mrb[0].mxu0
    %3039 = vdwg.mxu0
    %v3040 = vpack.c.bf16 %v3037, %v3037
    %v3042 = vsel %vm392, %v3040, 0
    %v3045 = vsel %vm728, %v2326, 0
    %3047 = vmatprep.subr.bf16.mxu0 0
    %3048 = vmatpush1.bf16.msra.mxu0 %v3045
    %3049 = vmatprep.subr.bf16.mxu0 0
    %3050 = vmatpush1.bf16.msra.mxu0 0
    %3051 = vmatprep.subr.bf16.mxu0 0
    %3052 = vmatpush1.bf16.msra.mxu0 0
    %3053 = vmatprep.subr.bf16.mxu0 0
    %3054 = vmatpush1.bf16.msra.mxu0 0
    %3055 = vmatprep.subr.bf16.mxu0 0
    %3056 = vmatpush1.bf16.msra.mxu0 0
    %3057 = vmatprep.subr.bf16.mxu0 0
    %3058 = vmatpush1.bf16.msra.mxu0 0
    %3059 = vmatprep.subr.bf16.mxu0 0
    %3060 = vmatpush1.bf16.msra.mxu0 0
    %3061 = vmatprep.subr.bf16.mxu0 0
    %3062 = vmatpush1.bf16.msra.mxu0 0
    %3063 = vmatprep.subr.bf16.mxu0 0
    %3064 = vmatpush1.bf16.msra.mxu0 0
    %3065 = vmatprep.subr.bf16.mxu0 0
    %3066 = vmatpush1.bf16.msra.mxu0 0
    %3067 = vmatprep.subr.bf16.mxu0 0
    %3068 = vmatpush1.bf16.msra.mxu0 0
    %3069 = vmatprep.subr.bf16.mxu0 0
    %3070 = vmatpush1.bf16.msra.mxu0 0
    %3071 = vmatprep.subr.bf16.mxu0 0
    %3072 = vmatpush1.bf16.msra.mxu0 0
    %3073 = vmatprep.subr.bf16.mxu0 0
    %3074 = vmatpush1.bf16.msra.mxu0 0
    %3075 = vmatprep.subr.bf16.mxu0 0
    %3076 = vmatpush1.bf16.msra.mxu0 0
    %3077 = vmatprep.subr.bf16.mxu0 0
    %3078 = vmatpush1.bf16.msra.mxu0 0
    %3079 = vmatprep.mubr.bf16.mxu0 0
    %3080 = vmatmul.mubr.bf16.gmra.mrb[0].mxu0 %v3042
    %v3081 = vpop.f32.mrb[0].mxu0
    %v3082 = vadd.f32 0.0, %v3081
    %v3083 = vpop.f32.mrb[0].mxu0
    %v3084 = vpop.f32.mrb[0].mxu0
    %v3085 = vpop.f32.mrb[0].mxu0
    %3086 = vdwg.mxu0
    %v3087 = vadd.f32 %v2869, %v3082
    %3088 = vrot.lane.b32.xlu0 %v2444, 104
    %v3089 = vpop.permute.xlu0 %3088
    %3090 = vrot.lane.b32.xlu0 %v2444, 72
    %v3091 = vpop.permute.xlu0 %3090
    %v3092 = vsel %vm392, %v3089, 0
    %v3094 = vsel %vm392, %v3091, 0
    %3096 = vmatprep.subr.mxu0 0.0
    %3097 = vmatpush1.xpose.msra.mxu0 %v3094
    %3098 = vmatprep.subr.mxu0 0.0
    %3099 = vmatpush1.xpose.msra.mxu0 0.0
    %3100 = vmatprep.subr.mxu0 0.0
    %3101 = vmatpush1.xpose.msra.mxu0 0.0
    %3102 = vmatprep.subr.mxu0 0.0
    %3103 = vmatpush1.xpose.msra.mxu0 0.0
    %3104 = vmatprep.subr.mxu0 0.0
    %3105 = vmatpush1.xpose.msra.mxu0 0.0
    %3106 = vmatprep.subr.mxu0 0.0
    %3107 = vmatpush1.xpose.msra.mxu0 0.0
    %3108 = vmatprep.subr.mxu0 0.0
    %3109 = vmatpush1.xpose.msra.mxu0 0.0
    %3110 = vmatprep.subr.mxu0 0.0
    %3111 = vmatpush1.xpose.msra.mxu0 0.0
    %3112 = vmatprep.subr.mxu0 0.0
    %3113 = vmatpush1.xpose.msra.mxu0 0.0
    %3114 = vmatprep.subr.mxu0 0.0
    %3115 = vmatpush1.xpose.msra.mxu0 0.0
    %3116 = vmatprep.subr.mxu0 0.0
    %3117 = vmatpush1.xpose.msra.mxu0 0.0
    %3118 = vmatprep.subr.mxu0 0.0
    %3119 = vmatpush1.xpose.msra.mxu0 0.0
    %3120 = vmatprep.subr.mxu0 0.0
    %3121 = vmatpush1.xpose.msra.mxu0 0.0
    %3122 = vmatprep.subr.mxu0 0.0
    %3123 = vmatpush1.xpose.msra.mxu0 0.0
    %3124 = vmatprep.subr.mxu0 0.0
    %3125 = vmatpush1.xpose.msra.mxu0 0.0
    %3126 = vmatprep.subr.mxu0 0.0
    %3127 = vmatpush1.xpose.msra.mxu0 0.0
    %3128 = vmatprep.subr.mxu0 0.0
    %3129 = vmatpush1.xpose.msra.mxu0 0.0
    %3130 = vmatprep.subr.mxu0 0.0
    %3131 = vmatpush1.xpose.msra.mxu0 0.0
    %3132 = vmatprep.subr.mxu0 0.0
    %3133 = vmatpush1.xpose.msra.mxu0 0.0
    %3134 = vmatprep.subr.mxu0 0.0
    %3135 = vmatpush1.xpose.msra.mxu0 0.0
    %3136 = vmatprep.subr.mxu0 0.0
    %3137 = vmatpush1.xpose.msra.mxu0 0.0
    %3138 = vmatprep.subr.mxu0 0.0
    %3139 = vmatpush1.xpose.msra.mxu0 0.0
    %3140 = vmatprep.subr.mxu0 0.0
    %3141 = vmatpush1.xpose.msra.mxu0 0.0
    %3142 = vmatprep.subr.mxu0 0.0
    %3143 = vmatpush1.xpose.msra.mxu0 0.0
    %3144 = vmatprep.subr.mxu0 0.0
    %3145 = vmatpush1.xpose.msra.mxu0 0.0
    %3146 = vmatprep.subr.mxu0 0.0
    %3147 = vmatpush1.xpose.msra.mxu0 0.0
    %3148 = vmatprep.subr.mxu0 0.0
    %3149 = vmatpush1.xpose.msra.mxu0 0.0
    %3150 = vmatprep.subr.mxu0 0.0
    %3151 = vmatpush1.xpose.msra.mxu0 0.0
    %3152 = vmatprep.subr.mxu0 0.0
    %3153 = vmatpush1.xpose.msra.mxu0 0.0
    %3154 = vmatprep.subr.mxu0 0.0
    %3155 = vmatpush1.xpose.msra.mxu0 0.0
    %3156 = vmatprep.subr.mxu0 0.0
    %3157 = vmatpush1.xpose.msra.mxu0 0.0
    %3158 = vmatprep.subr.mxu0 0.0
    %3159 = vmatpush1.xpose.msra.mxu0 0.0
    %3160 = vmatprep.mubr.f32.mxu0 0.0
    %3161 = vmatmul.mubr.f32.gmra.mrb[0].mxu0 %v3092
    %v3162 = vpop.f32.mrb[0].mxu0
    %v3163 = vadd.f32 0.0, %v3162
    %v3164 = vpop.f32.mrb[0].mxu0
    %3165 = vdwg.mxu0
    %v3166 = vsel %vm467, %v3163, -inf
    %3167 = vmax.xlane.f32.xlu0 %v3166
    %v3168 = vpop.xlane.xlu0 %3167
    %v3169 = vsub.f32 %v3163, %v3168
    %v3170 = vmul.f32 %v3169, 1.442695
    %v3171 = vpow.pop %v3170
    %v3172 = vsel %vm467, %v3171, 0.0
    %3173 = vadd.xlane.f32.xlu0 %v3172
    %v3174 = vpop.xlane.xlu0 %3173
    %v3175 = vrcp.pop %v3174
    %v3176 = vmul.f32 %v3171, %v3175
    %3177 = vrot.lane.b32.xlu0 %v2444, 40
    %v3178 = vpop.permute.xlu0 %3177
    %v3180 = vsel %vm481, %v3176, 0
    %v3182 = vsel %vm260, %v3178, 0
    %3184 = vmatprep.subr.mxu0 0.0
    %3185 = vmatpush1.msra.mxu0 %v3182
    %3186 = vmatprep.subr.mxu0 0.0
    %3187 = vmatpush1.msra.mxu0 0.0
    %3188 = vmatprep.subr.mxu0 0.0
    %3189 = vmatpush1.msra.mxu0 0.0
    %3190 = vmatprep.subr.mxu0 0.0
    %3191 = vmatpush1.msra.mxu0 0.0
    %3192 = vmatprep.subr.mxu0 0.0
    %3193 = vmatpush1.msra.mxu0 0.0
    %3194 = vmatprep.subr.mxu0 0.0
    %3195 = vmatpush1.msra.mxu0 0.0
    %3196 = vmatprep.subr.mxu0 0.0
    %3197 = vmatpush1.msra.mxu0 0.0
    %3198 = vmatprep.subr.mxu0 0.0
    %3199 = vmatpush1.msra.mxu0 0.0
    %3200 = vmatprep.subr.mxu0 0.0
    %3201 = vmatpush1.msra.mxu0 0.0
    %3202 = vmatprep.subr.mxu0 0.0
    %3203 = vmatpush1.msra.mxu0 0.0
    %3204 = vmatprep.subr.mxu0 0.0
    %3205 = vmatpush1.msra.mxu0 0.0
    %3206 = vmatprep.subr.mxu0 0.0
    %3207 = vmatpush1.msra.mxu0 0.0
    %3208 = vmatprep.subr.mxu0 0.0
    %3209 = vmatpush1.msra.mxu0 0.0
    %3210 = vmatprep.subr.mxu0 0.0
    %3211 = vmatpush1.msra.mxu0 0.0
    %3212 = vmatprep.subr.mxu0 0.0
    %3213 = vmatpush1.msra.mxu0 0.0
    %3214 = vmatprep.subr.mxu0 0.0
    %3215 = vmatpush1.msra.mxu0 0.0
    %3216 = vmatprep.subr.mxu0 0.0
    %3217 = vmatpush1.msra.mxu0 0.0
    %3218 = vmatprep.subr.mxu0 0.0
    %3219 = vmatpush1.msra.mxu0 0.0
    %3220 = vmatprep.subr.mxu0 0.0
    %3221 = vmatpush1.msra.mxu0 0.0
    %3222 = vmatprep.subr.mxu0 0.0
    %3223 = vmatpush1.msra.mxu0 0.0
    %3224 = vmatprep.subr.mxu0 0.0
    %3225 = vmatpush1.msra.mxu0 0.0
    %3226 = vmatprep.subr.mxu0 0.0
    %3227 = vmatpush1.msra.mxu0 0.0
    %3228 = vmatprep.subr.mxu0 0.0
    %3229 = vmatpush1.msra.mxu0 0.0
    %3230 = vmatprep.subr.mxu0 0.0
    %3231 = vmatpush1.msra.mxu0 0.0
    %3232 = vmatprep.subr.mxu0 0.0
    %3233 = vmatpush1.msra.mxu0 0.0
    %3234 = vmatprep.subr.mxu0 0.0
    %3235 = vmatpush1.msra.mxu0 0.0
    %3236 = vmatprep.subr.mxu0 0.0
    %3237 = vmatpush1.msra.mxu0 0.0
    %3238 = vmatprep.subr.mxu0 0.0
    %3239 = vmatpush1.msra.mxu0 0.0
    %3240 = vmatprep.subr.mxu0 0.0
    %3241 = vmatpush1.msra.mxu0 0.0
    %3242 = vmatprep.subr.mxu0 0.0
    %3243 = vmatpush1.msra.mxu0 0.0
    %3244 = vmatprep.subr.mxu0 0.0
    %3245 = vmatpush1.msra.mxu0 0.0
    %3246 = vmatprep.subr.mxu0 0.0
    %3247 = vmatpush1.msra.mxu0 0.0
    %3248 = vmatprep.mubr.f32.mxu0 0.0
    %3249 = vmatmul.mubr.f32.gmra.mrb[0].mxu0 %v3180
    %v3250 = vpop.f32.mrb[0].mxu0
    %v3251 = vadd.f32 0.0, %v3250
    %v3252 = vpop.f32.mrb[0].mxu0
    %3253 = vdwg.mxu0
    %v3254 = vpack.c.bf16 %v3251, %v3251
    %v3256 = vsel %vm392, %v3254, 0
    %v3259 = vsel %vm728, %v2327, 0
    %3261 = vmatprep.subr.bf16.mxu0 0
    %3262 = vmatpush1.bf16.msra.mxu0 %v3259
    %3263 = vmatprep.subr.bf16.mxu0 0
    %3264 = vmatpush1.bf16.msra.mxu0 0
    %3265 = vmatprep.subr.bf16.mxu0 0
    %3266 = vmatpush1.bf16.msra.mxu0 0
    %3267 = vmatprep.subr.bf16.mxu0 0
    %3268 = vmatpush1.bf16.msra.mxu0 0
    %3269 = vmatprep.subr.bf16.mxu0 0
    %3270 = vmatpush1.bf16.msra.mxu0 0
    %3271 = vmatprep.subr.bf16.mxu0 0
    %3272 = vmatpush1.bf16.msra.mxu0 0
    %3273 = vmatprep.subr.bf16.mxu0 0
    %3274 = vmatpush1.bf16.msra.mxu0 0
    %3275 = vmatprep.subr.bf16.mxu0 0
    %3276 = vmatpush1.bf16.msra.mxu0 0
    %3277 = vmatprep.subr.bf16.mxu0 0
    %3278 = vmatpush1.bf16.msra.mxu0 0
    %3279 = vmatprep.subr.bf16.mxu0 0
    %3280 = vmatpush1.bf16.msra.mxu0 0
    %3281 = vmatprep.subr.bf16.mxu0 0
    %3282 = vmatpush1.bf16.msra.mxu0 0
    %3283 = vmatprep.subr.bf16.mxu0 0
    %3284 = vmatpush1.bf16.msra.mxu0 0
    %3285 = vmatprep.subr.bf16.mxu0 0
    %3286 = vmatpush1.bf16.msra.mxu0 0
    %3287 = vmatprep.subr.bf16.mxu0 0
    %3288 = vmatpush1.bf16.msra.mxu0 0
    %3289 = vmatprep.subr.bf16.mxu0 0
    %3290 = vmatpush1.bf16.msra.mxu0 0
    %3291 = vmatprep.subr.bf16.mxu0 0
    %3292 = vmatpush1.bf16.msra.mxu0 0
    %3293 = vmatprep.mubr.bf16.mxu0 0
    %3294 = vmatmul.mubr.bf16.gmra.mrb[0].mxu0 %v3256
    %v3295 = vpop.f32.mrb[0].mxu0
    %v3296 = vadd.f32 0.0, %v3295
    %v3297 = vpop.f32.mrb[0].mxu0
    %v3298 = vpop.f32.mrb[0].mxu0
    %v3299 = vpop.f32.mrb[0].mxu0
    %3300 = vdwg.mxu0
    %v3301 = vadd.f32 %v3087, %v3296
    %v3302 = vrot.slane %v2444, 3
    %3303 = vrot.lane.b32.xlu0 %v3302, 96
    %v3304 = vpop.permute.xlu0 %3303
    %v3305 = vsel %vm392, %v3302, 0
    %v3307 = vsel %vm392, %v3304, 0
    %3309 = vmatprep.subr.mxu0 0.0
    %3310 = vmatpush1.xpose.msra.mxu0 %v3307
    %3311 = vmatprep.subr.mxu0 0.0
    %3312 = vmatpush1.xpose.msra.mxu0 0.0
    %3313 = vmatprep.subr.mxu0 0.0
    %3314 = vmatpush1.xpose.msra.mxu0 0.0
    %3315 = vmatprep.subr.mxu0 0.0
    %3316 = vmatpush1.xpose.msra.mxu0 0.0
    %3317 = vmatprep.subr.mxu0 0.0
    %3318 = vmatpush1.xpose.msra.mxu0 0.0
    %3319 = vmatprep.subr.mxu0 0.0
    %3320 = vmatpush1.xpose.msra.mxu0 0.0
    %3321 = vmatprep.subr.mxu0 0.0
    %3322 = vmatpush1.xpose.msra.mxu0 0.0
    %3323 = vmatprep.subr.mxu0 0.0
    %3324 = vmatpush1.xpose.msra.mxu0 0.0
    %3325 = vmatprep.subr.mxu0 0.0
    %3326 = vmatpush1.xpose.msra.mxu0 0.0
    %3327 = vmatprep.subr.mxu0 0.0
    %3328 = vmatpush1.xpose.msra.mxu0 0.0
    %3329 = vmatprep.subr.mxu0 0.0
    %3330 = vmatpush1.xpose.msra.mxu0 0.0
    %3331 = vmatprep.subr.mxu0 0.0
    %3332 = vmatpush1.xpose.msra.mxu0 0.0
    %3333 = vmatprep.subr.mxu0 0.0
    %3334 = vmatpush1.xpose.msra.mxu0 0.0
    %3335 = vmatprep.subr.mxu0 0.0
    %3336 = vmatpush1.xpose.msra.mxu0 0.0
    %3337 = vmatprep.subr.mxu0 0.0
    %3338 = vmatpush1.xpose.msra.mxu0 0.0
    %3339 = vmatprep.subr.mxu0 0.0
    %3340 = vmatpush1.xpose.msra.mxu0 0.0
    %3341 = vmatprep.subr.mxu0 0.0
    %3342 = vmatpush1.xpose.msra.mxu0 0.0
    %3343 = vmatprep.subr.mxu0 0.0
    %3344 = vmatpush1.xpose.msra.mxu0 0.0
    %3345 = vmatprep.subr.mxu0 0.0
    %3346 = vmatpush1.xpose.msra.mxu0 0.0
    %3347 = vmatprep.subr.mxu0 0.0
    %3348 = vmatpush1.xpose.msra.mxu0 0.0
    %3349 = vmatprep.subr.mxu0 0.0
    %3350 = vmatpush1.xpose.msra.mxu0 0.0
    %3351 = vmatprep.subr.mxu0 0.0
    %3352 = vmatpush1.xpose.msra.mxu0 0.0
    %3353 = vmatprep.subr.mxu0 0.0
    %3354 = vmatpush1.xpose.msra.mxu0 0.0
    %3355 = vmatprep.subr.mxu0 0.0
    %3356 = vmatpush1.xpose.msra.mxu0 0.0
    %3357 = vmatprep.subr.mxu0 0.0
    %3358 = vmatpush1.xpose.msra.mxu0 0.0
    %3359 = vmatprep.subr.mxu0 0.0
    %3360 = vmatpush1.xpose.msra.mxu0 0.0
    %3361 = vmatprep.subr.mxu0 0.0
    %3362 = vmatpush1.xpose.msra.mxu0 0.0
    %3363 = vmatprep.subr.mxu0 0.0
    %3364 = vmatpush1.xpose.msra.mxu0 0.0
    %3365 = vmatprep.subr.mxu0 0.0
    %3366 = vmatpush1.xpose.msra.mxu0 0.0
    %3367 = vmatprep.subr.mxu0 0.0
    %3368 = vmatpush1.xpose.msra.mxu0 0.0
    %3369 = vmatprep.subr.mxu0 0.0
    %3370 = vmatpush1.xpose.msra.mxu0 0.0
    %3371 = vmatprep.subr.mxu0 0.0
    %3372 = vmatpush1.xpose.msra.mxu0 0.0
    %3373 = vmatprep.mubr.f32.mxu0 0.0
    %3374 = vmatmul.mubr.f32.gmra.mrb[0].mxu0 %v3305
    %v3375 = vpop.f32.mrb[0].mxu0
    %v3376 = vadd.f32 0.0, %v3375
    %v3377 = vpop.f32.mrb[0].mxu0
    %3378 = vdwg.mxu0
    %v3379 = vsel %vm467, %v3376, -inf
    %3380 = vmax.xlane.f32.xlu0 %v3379
    %v3381 = vpop.xlane.xlu0 %3380
    %v3382 = vsub.f32 %v3376, %v3381
    %v3383 = vmul.f32 %v3382, 1.442695
    %v3384 = vpow.pop %v3383
    %v3385 = vsel %vm467, %v3384, 0.0
    %3386 = vadd.xlane.f32.xlu0 %v3385
    %v3387 = vpop.xlane.xlu0 %3386
    %v3388 = vrcp.pop %v3387
    %v3389 = vmul.f32 %v3384, %v3388
    %3390 = vrot.lane.b32.xlu0 %v3302, 64
    %v3391 = vpop.permute.xlu0 %3390
    %v3393 = vsel %vm481, %v3389, 0
    %v3395 = vsel %vm260, %v3391, 0
    %3397 = vmatprep.subr.mxu0 0.0
    %3398 = vmatpush1.msra.mxu0 %v3395
    %3399 = vmatprep.subr.mxu0 0.0
    %3400 = vmatpush1.msra.mxu0 0.0
    %3401 = vmatprep.subr.mxu0 0.0
    %3402 = vmatpush1.msra.mxu0 0.0
    %3403 = vmatprep.subr.mxu0 0.0
    %3404 = vmatpush1.msra.mxu0 0.0
    %3405 = vmatprep.subr.mxu0 0.0
    %3406 = vmatpush1.msra.mxu0 0.0
    %3407 = vmatprep.subr.mxu0 0.0
    %3408 = vmatpush1.msra.mxu0 0.0
    %3409 = vmatprep.subr.mxu0 0.0
    %3410 = vmatpush1.msra.mxu0 0.0
    %3411 = vmatprep.subr.mxu0 0.0
    %3412 = vmatpush1.msra.mxu0 0.0
    %3413 = vmatprep.subr.mxu0 0.0
    %3414 = vmatpush1.msra.mxu0 0.0
    %3415 = vmatprep.subr.mxu0 0.0
    %3416 = vmatpush1.msra.mxu0 0.0
    %3417 = vmatprep.subr.mxu0 0.0
    %3418 = vmatpush1.msra.mxu0 0.0
    %3419 = vmatprep.subr.mxu0 0.0
    %3420 = vmatpush1.msra.mxu0 0.0
    %3421 = vmatprep.subr.mxu0 0.0
    %3422 = vmatpush1.msra.mxu0 0.0
    %3423 = vmatprep.subr.mxu0 0.0
    %3424 = vmatpush1.msra.mxu0 0.0
    %3425 = vmatprep.subr.mxu0 0.0
    %3426 = vmatpush1.msra.mxu0 0.0
    %3427 = vmatprep.subr.mxu0 0.0
    %3428 = vmatpush1.msra.mxu0 0.0
    %3429 = vmatprep.subr.mxu0 0.0
    %3430 = vmatpush1.msra.mxu0 0.0
    %3431 = vmatprep.subr.mxu0 0.0
    %3432 = vmatpush1.msra.mxu0 0.0
    %3433 = vmatprep.subr.mxu0 0.0
    %3434 = vmatpush1.msra.mxu0 0.0
    %3435 = vmatprep.subr.mxu0 0.0
    %3436 = vmatpush1.msra.mxu0 0.0
    %3437 = vmatprep.subr.mxu0 0.0
    %3438 = vmatpush1.msra.mxu0 0.0
    %3439 = vmatprep.subr.mxu0 0.0
    %3440 = vmatpush1.msra.mxu0 0.0
    %3441 = vmatprep.subr.mxu0 0.0
    %3442 = vmatpush1.msra.mxu0 0.0
    %3443 = vmatprep.subr.mxu0 0.0
    %3444 = vmatpush1.msra.mxu0 0.0
    %3445 = vmatprep.subr.mxu0 0.0
    %3446 = vmatpush1.msra.mxu0 0.0
    %3447 = vmatprep.subr.mxu0 0.0
    %3448 = vmatpush1.msra.mxu0 0.0
    %3449 = vmatprep.subr.mxu0 0.0
    %3450 = vmatpush1.msra.mxu0 0.0
    %3451 = vmatprep.subr.mxu0 0.0
    %3452 = vmatpush1.msra.mxu0 0.0
    %3453 = vmatprep.subr.mxu0 0.0
    %3454 = vmatpush1.msra.mxu0 0.0
    %3455 = vmatprep.subr.mxu0 0.0
    %3456 = vmatpush1.msra.mxu0 0.0
    %3457 = vmatprep.subr.mxu0 0.0
    %3458 = vmatpush1.msra.mxu0 0.0
    %3459 = vmatprep.subr.mxu0 0.0
    %3460 = vmatpush1.msra.mxu0 0.0
    %3461 = vmatprep.mubr.f32.mxu0 0.0
    %3462 = vmatmul.mubr.f32.gmra.mrb[0].mxu0 %v3393
    %v3463 = vpop.f32.mrb[0].mxu0
    %v3464 = vadd.f32 0.0, %v3463
    %v3465 = vpop.f32.mrb[0].mxu0
    %3466 = vdwg.mxu0
    %v3467 = vpack.c.bf16 %v3464, %v3464
    %3468 = vrot.lane.b32.xlu0 %v3302, 120
    %v3469 = vpop.permute.xlu0 %3468
    %3470 = vrot.lane.b32.xlu0 %v3302, 88
    %v3471 = vpop.permute.xlu0 %3470
    %v3472 = vsel %vm392, %v3469, 0
    %v3474 = vsel %vm392, %v3471, 0
    %3476 = vmatprep.subr.mxu0 0.0
    %3477 = vmatpush1.xpose.msra.mxu0 %v3474
    %3478 = vmatprep.subr.mxu0 0.0
    %3479 = vmatpush1.xpose.msra.mxu0 0.0
    %3480 = vmatprep.subr.mxu0 0.0
    %3481 = vmatpush1.xpose.msra.mxu0 0.0
    %3482 = vmatprep.subr.mxu0 0.0
    %3483 = vmatpush1.xpose.msra.mxu0 0.0
    %3484 = vmatprep.subr.mxu0 0.0
    %3485 = vmatpush1.xpose.msra.mxu0 0.0
    %3486 = vmatprep.subr.mxu0 0.0
    %3487 = vmatpush1.xpose.msra.mxu0 0.0
    %3488 = vmatprep.subr.mxu0 0.0
    %3489 = vmatpush1.xpose.msra.mxu0 0.0
    %3490 = vmatprep.subr.mxu0 0.0
    %3491 = vmatpush1.xpose.msra.mxu0 0.0
    %3492 = vmatprep.subr.mxu0 0.0
    %3493 = vmatpush1.xpose.msra.mxu0 0.0
    %3494 = vmatprep.subr.mxu0 0.0
    %3495 = vmatpush1.xpose.msra.mxu0 0.0
    %3496 = vmatprep.subr.mxu0 0.0
    %3497 = vmatpush1.xpose.msra.mxu0 0.0
    %3498 = vmatprep.subr.mxu0 0.0
    %3499 = vmatpush1.xpose.msra.mxu0 0.0
    %3500 = vmatprep.subr.mxu0 0.0
    %3501 = vmatpush1.xpose.msra.mxu0 0.0
    %3502 = vmatprep.subr.mxu0 0.0
    %3503 = vmatpush1.xpose.msra.mxu0 0.0
    %3504 = vmatprep.subr.mxu0 0.0
    %3505 = vmatpush1.xpose.msra.mxu0 0.0
    %3506 = vmatprep.subr.mxu0 0.0
    %3507 = vmatpush1.xpose.msra.mxu0 0.0
    %3508 = vmatprep.subr.mxu0 0.0
    %3509 = vmatpush1.xpose.msra.mxu0 0.0
    %3510 = vmatprep.subr.mxu0 0.0
    %3511 = vmatpush1.xpose.msra.mxu0 0.0
    %3512 = vmatprep.subr.mxu0 0.0
    %3513 = vmatpush1.xpose.msra.mxu0 0.0
    %3514 = vmatprep.subr.mxu0 0.0
    %3515 = vmatpush1.xpose.msra.mxu0 0.0
    %3516 = vmatprep.subr.mxu0 0.0
    %3517 = vmatpush1.xpose.msra.mxu0 0.0
    %3518 = vmatprep.subr.mxu0 0.0
    %3519 = vmatpush1.xpose.msra.mxu0 0.0
    %3520 = vmatprep.subr.mxu0 0.0
    %3521 = vmatpush1.xpose.msra.mxu0 0.0
    %3522 = vmatprep.subr.mxu0 0.0
    %3523 = vmatpush1.xpose.msra.mxu0 0.0
    %3524 = vmatprep.subr.mxu0 0.0
    %3525 = vmatpush1.xpose.msra.mxu0 0.0
    %3526 = vmatprep.subr.mxu0 0.0
    %3527 = vmatpush1.xpose.msra.mxu0 0.0
    %3528 = vmatprep.subr.mxu0 0.0
    %3529 = vmatpush1.xpose.msra.mxu0 0.0
    %3530 = vmatprep.subr.mxu0 0.0
    %3531 = vmatpush1.xpose.msra.mxu0 0.0
    %3532 = vmatprep.subr.mxu0 0.0
    %3533 = vmatpush1.xpose.msra.mxu0 0.0
    %3534 = vmatprep.subr.mxu0 0.0
    %3535 = vmatpush1.xpose.msra.mxu0 0.0
    %3536 = vmatprep.subr.mxu0 0.0
    %3537 = vmatpush1.xpose.msra.mxu0 0.0
    %3538 = vmatprep.subr.mxu0 0.0
    %3539 = vmatpush1.xpose.msra.mxu0 0.0
    %3540 = vmatprep.mubr.f32.mxu0 0.0
    %3541 = vmatmul.mubr.f32.gmra.mrb[0].mxu0 %v3472
    %v3542 = vpop.f32.mrb[0].mxu0
    %v3543 = vadd.f32 0.0, %v3542
    %v3544 = vpop.f32.mrb[0].mxu0
    %3545 = vdwg.mxu0
    %v3546 = vsel %vm467, %v3543, -inf
    %3547 = vmax.xlane.f32.xlu0 %v3546
    %v3548 = vpop.xlane.xlu0 %3547
    %v3549 = vsub.f32 %v3543, %v3548
    %v3550 = vmul.f32 %v3549, 1.442695
    %v3551 = vpow.pop %v3550
    %v3552 = vsel %vm467, %v3551, 0.0
    %3553 = vadd.xlane.f32.xlu0 %v3552
    %v3554 = vpop.xlane.xlu0 %3553
    %v3555 = vrcp.pop %v3554
    %v3556 = vmul.f32 %v3551, %v3555
    %3557 = vrot.lane.b32.xlu0 %v3302, 56
    %v3558 = vpop.permute.xlu0 %3557
    %v3560 = vsel %vm481, %v3556, 0
    %v3562 = vsel %vm260, %v3558, 0
    %3564 = vmatprep.subr.mxu0 0.0
    %3565 = vmatpush1.msra.mxu0 %v3562
    %3566 = vmatprep.subr.mxu0 0.0
    %3567 = vmatpush1.msra.mxu0 0.0
    %3568 = vmatprep.subr.mxu0 0.0
    %3569 = vmatpush1.msra.mxu0 0.0
    %3570 = vmatprep.subr.mxu0 0.0
    %3571 = vmatpush1.msra.mxu0 0.0
    %3572 = vmatprep.subr.mxu0 0.0
    %3573 = vmatpush1.msra.mxu0 0.0
    %3574 = vmatprep.subr.mxu0 0.0
    %3575 = vmatpush1.msra.mxu0 0.0
    %3576 = vmatprep.subr.mxu0 0.0
    %3577 = vmatpush1.msra.mxu0 0.0
    %3578 = vmatprep.subr.mxu0 0.0
    %3579 = vmatpush1.msra.mxu0 0.0
    %3580 = vmatprep.subr.mxu0 0.0
    %3581 = vmatpush1.msra.mxu0 0.0
    %3582 = vmatprep.subr.mxu0 0.0
    %3583 = vmatpush1.msra.mxu0 0.0
    %3584 = vmatprep.subr.mxu0 0.0
    %3585 = vmatpush1.msra.mxu0 0.0
    %3586 = vmatprep.subr.mxu0 0.0
    %3587 = vmatpush1.msra.mxu0 0.0
    %3588 = vmatprep.subr.mxu0 0.0
    %3589 = vmatpush1.msra.mxu0 0.0
    %3590 = vmatprep.subr.mxu0 0.0
    %3591 = vmatpush1.msra.mxu0 0.0
    %3592 = vmatprep.subr.mxu0 0.0
    %3593 = vmatpush1.msra.mxu0 0.0
    %3594 = vmatprep.subr.mxu0 0.0
    %3595 = vmatpush1.msra.mxu0 0.0
    %3596 = vmatprep.subr.mxu0 0.0
    %3597 = vmatpush1.msra.mxu0 0.0
    %3598 = vmatprep.subr.mxu0 0.0
    %3599 = vmatpush1.msra.mxu0 0.0
    %3600 = vmatprep.subr.mxu0 0.0
    %3601 = vmatpush1.msra.mxu0 0.0
    %3602 = vmatprep.subr.mxu0 0.0
    %3603 = vmatpush1.msra.mxu0 0.0
    %3604 = vmatprep.subr.mxu0 0.0
    %3605 = vmatpush1.msra.mxu0 0.0
    %3606 = vmatprep.subr.mxu0 0.0
    %3607 = vmatpush1.msra.mxu0 0.0
    %3608 = vmatprep.subr.mxu0 0.0
    %3609 = vmatpush1.msra.mxu0 0.0
    %3610 = vmatprep.subr.mxu0 0.0
    %3611 = vmatpush1.msra.mxu0 0.0
    %3612 = vmatprep.subr.mxu0 0.0
    %3613 = vmatpush1.msra.mxu0 0.0
    %3614 = vmatprep.subr.mxu0 0.0
    %3615 = vmatpush1.msra.mxu0 0.0
    %3616 = vmatprep.subr.mxu0 0.0
    %3617 = vmatpush1.msra.mxu0 0.0
    %3618 = vmatprep.subr.mxu0 0.0
    %3619 = vmatpush1.msra.mxu0 0.0
    %3620 = vmatprep.subr.mxu0 0.0
    %3621 = vmatpush1.msra.mxu0 0.0
    %3622 = vmatprep.subr.mxu0 0.0
    %3623 = vmatpush1.msra.mxu0 0.0
    %3624 = vmatprep.subr.mxu0 0.0
    %3625 = vmatpush1.msra.mxu0 0.0
    %3626 = vmatprep.subr.mxu0 0.0
    %3627 = vmatpush1.msra.mxu0 0.0
    %3628 = vmatprep.mubr.f32.mxu0 0.0
    %3629 = vmatmul.mubr.f32.gmra.mrb[0].mxu0 %v3560
    %v3630 = vpop.f32.mrb[0].mxu0
    %v3631 = vadd.f32 0.0, %v3630
    %v3632 = vpop.f32.mrb[0].mxu0
    %3633 = vdwg.mxu0
    %v3634 = vpack.c.bf16 %v3631, %v3631
    %v3636 = vsel %vm392, %v3634, 0
    %3638 = vmatprep.subr.bf16.mxu0 0
    %3639 = vmatpush1.bf16.msra.mxu0 %v2786
    %3640 = vmatprep.subr.bf16.mxu0 0
    %3641 = vmatpush1.bf16.msra.mxu0 0
    %3642 = vmatprep.subr.bf16.mxu0 0
    %3643 = vmatpush1.bf16.msra.mxu0 0
    %3644 = vmatprep.subr.bf16.mxu0 0
    %3645 = vmatpush1.bf16.msra.mxu0 0
    %3646 = vmatprep.subr.bf16.mxu0 0
    %3647 = vmatpush1.bf16.msra.mxu0 0
    %3648 = vmatprep.subr.bf16.mxu0 0
    %3649 = vmatpush1.bf16.msra.mxu0 0
    %3650 = vmatprep.subr.bf16.mxu0 0
    %3651 = vmatpush1.bf16.msra.mxu0 0
    %3652 = vmatprep.subr.bf16.mxu0 0
    %3653 = vmatpush1.bf16.msra.mxu0 0
    %3654 = vmatprep.subr.bf16.mxu0 0
    %3655 = vmatpush1.bf16.msra.mxu0 0
    %3656 = vmatprep.subr.bf16.mxu0 0
    %3657 = vmatpush1.bf16.msra.mxu0 0
    %3658 = vmatprep.subr.bf16.mxu0 0
    %3659 = vmatpush1.bf16.msra.mxu0 0
    %3660 = vmatprep.subr.bf16.mxu0 0
    %3661 = vmatpush1.bf16.msra.mxu0 0
    %3662 = vmatprep.subr.bf16.mxu0 0
    %3663 = vmatpush1.bf16.msra.mxu0 0
    %3664 = vmatprep.subr.bf16.mxu0 0
    %3665 = vmatpush1.bf16.msra.mxu0 0
    %3666 = vmatprep.subr.bf16.mxu0 0
    %3667 = vmatpush1.bf16.msra.mxu0 0
    %3668 = vmatprep.subr.bf16.mxu0 0
    %3669 = vmatpush1.bf16.msra.mxu0 0
    %3670 = vmatprep.mubr.bf16.mxu0 0
    %3671 = vmatmul.mubr.bf16.gmra.mrb[0].mxu0 %v3636
    %v3672 = vpop.f32.mrb[0].mxu0
    %v3673 = vadd.f32 0.0, %v3672
    %v3674 = vpop.f32.mrb[0].mxu0
    %v3675 = vpop.f32.mrb[0].mxu0
    %v3676 = vpop.f32.mrb[0].mxu0
    %3677 = vdwg.mxu0
    %v3679 = vsel %vm392, %v3467, 0
    %3681 = vmatprep.subr.bf16.mxu0 0
    %3682 = vmatpush1.bf16.msra.mxu0 %v2832
    %3683 = vmatprep.subr.bf16.mxu0 0
    %3684 = vmatpush1.bf16.msra.mxu0 0
    %3685 = vmatprep.subr.bf16.mxu0 0
    %3686 = vmatpush1.bf16.msra.mxu0 0
    %3687 = vmatprep.subr.bf16.mxu0 0
    %3688 = vmatpush1.bf16.msra.mxu0 0
    %3689 = vmatprep.subr.bf16.mxu0 0
    %3690 = vmatpush1.bf16.msra.mxu0 0
    %3691 = vmatprep.subr.bf16.mxu0 0
    %3692 = vmatpush1.bf16.msra.mxu0 0
    %3693 = vmatprep.subr.bf16.mxu0 0
    %3694 = vmatpush1.bf16.msra.mxu0 0
    %3695 = vmatprep.subr.bf16.mxu0 0
    %3696 = vmatpush1.bf16.msra.mxu0 0
    %3697 = vmatprep.subr.bf16.mxu0 0
    %3698 = vmatpush1.bf16.msra.mxu0 0
    %3699 = vmatprep.subr.bf16.mxu0 0
    %3700 = vmatpush1.bf16.msra.mxu0 0
    %3701 = vmatprep.subr.bf16.mxu0 0
    %3702 = vmatpush1.bf16.msra.mxu0 0
    %3703 = vmatprep.subr.bf16.mxu0 0
    %3704 = vmatpush1.bf16.msra.mxu0 0
    %3705 = vmatprep.subr.bf16.mxu0 0
    %3706 = vmatpush1.bf16.msra.mxu0 0
    %3707 = vmatprep.subr.bf16.mxu0 0
    %3708 = vmatpush1.bf16.msra.mxu0 0
    %3709 = vmatprep.subr.bf16.mxu0 0
    %3710 = vmatpush1.bf16.msra.mxu0 0
    %3711 = vmatprep.subr.bf16.mxu0 0
    %3712 = vmatpush1.bf16.msra.mxu0 0
    %3713 = vmatprep.mubr.bf16.mxu0 0
    %3714 = vmatmul.mubr.bf16.gmra.mrb[0].mxu0 %v3679
    %v3715 = vpop.f32.mrb[0].mxu0
    %v3716 = vadd.f32 %v3673, %v3715
    %v3717 = vpop.f32.mrb[0].mxu0
    %v3718 = vpop.f32.mrb[0].mxu0
    %v3719 = vpop.f32.mrb[0].mxu0
    %3720 = vdwg.mxu0
    %3721 = vrot.lane.b32.xlu0 %v3302, 112
    %v3722 = vpop.permute.xlu0 %3721
    %3723 = vrot.lane.b32.xlu0 %v3302, 80
    %v3724 = vpop.permute.xlu0 %3723
    %v3725 = vsel %vm392, %v3722, 0
    %v3727 = vsel %vm392, %v3724, 0
    %3729 = vmatprep.subr.mxu0 0.0
    %3730 = vmatpush1.xpose.msra.mxu0 %v3727
    %3731 = vmatprep.subr.mxu0 0.0
    %3732 = vmatpush1.xpose.msra.mxu0 0.0
    %3733 = vmatprep.subr.mxu0 0.0
    %3734 = vmatpush1.xpose.msra.mxu0 0.0
    %3735 = vmatprep.subr.mxu0 0.0
    %3736 = vmatpush1.xpose.msra.mxu0 0.0
    %3737 = vmatprep.subr.mxu0 0.0
    %3738 = vmatpush1.xpose.msra.mxu0 0.0
    %3739 = vmatprep.subr.mxu0 0.0
    %3740 = vmatpush1.xpose.msra.mxu0 0.0
    %3741 = vmatprep.subr.mxu0 0.0
    %3742 = vmatpush1.xpose.msra.mxu0 0.0
    %3743 = vmatprep.subr.mxu0 0.0
    %3744 = vmatpush1.xpose.msra.mxu0 0.0
    %3745 = vmatprep.subr.mxu0 0.0
    %3746 = vmatpush1.xpose.msra.mxu0 0.0
    %3747 = vmatprep.subr.mxu0 0.0
    %3748 = vmatpush1.xpose.msra.mxu0 0.0
    %3749 = vmatprep.subr.mxu0 0.0
    %3750 = vmatpush1.xpose.msra.mxu0 0.0
    %3751 = vmatprep.subr.mxu0 0.0
    %3752 = vmatpush1.xpose.msra.mxu0 0.0
    %3753 = vmatprep.subr.mxu0 0.0
    %3754 = vmatpush1.xpose.msra.mxu0 0.0
    %3755 = vmatprep.subr.mxu0 0.0
    %3756 = vmatpush1.xpose.msra.mxu0 0.0
    %3757 = vmatprep.subr.mxu0 0.0
    %3758 = vmatpush1.xpose.msra.mxu0 0.0
    %3759 = vmatprep.subr.mxu0 0.0
    %3760 = vmatpush1.xpose.msra.mxu0 0.0
    %3761 = vmatprep.subr.mxu0 0.0
    %3762 = vmatpush1.xpose.msra.mxu0 0.0
    %3763 = vmatprep.subr.mxu0 0.0
    %3764 = vmatpush1.xpose.msra.mxu0 0.0
    %3765 = vmatprep.subr.mxu0 0.0
    %3766 = vmatpush1.xpose.msra.mxu0 0.0
    %3767 = vmatprep.subr.mxu0 0.0
    %3768 = vmatpush1.xpose.msra.mxu0 0.0
    %3769 = vmatprep.subr.mxu0 0.0
    %3770 = vmatpush1.xpose.msra.mxu0 0.0
    %3771 = vmatprep.subr.mxu0 0.0
    %3772 = vmatpush1.xpose.msra.mxu0 0.0
    %3773 = vmatprep.subr.mxu0 0.0
    %3774 = vmatpush1.xpose.msra.mxu0 0.0
    %3775 = vmatprep.subr.mxu0 0.0
    %3776 = vmatpush1.xpose.msra.mxu0 0.0
    %3777 = vmatprep.subr.mxu0 0.0
    %3778 = vmatpush1.xpose.msra.mxu0 0.0
    %3779 = vmatprep.subr.mxu0 0.0
    %3780 = vmatpush1.xpose.msra.mxu0 0.0
    %3781 = vmatprep.subr.mxu0 0.0
    %3782 = vmatpush1.xpose.msra.mxu0 0.0
    %3783 = vmatprep.subr.mxu0 0.0
    %3784 = vmatpush1.xpose.msra.mxu0 0.0
    %3785 = vmatprep.subr.mxu0 0.0
    %3786 = vmatpush1.xpose.msra.mxu0 0.0
    %3787 = vmatprep.subr.mxu0 0.0
    %3788 = vmatpush1.xpose.msra.mxu0 0.0
    %3789 = vmatprep.subr.mxu0 0.0
    %3790 = vmatpush1.xpose.msra.mxu0 0.0
    %3791 = vmatprep.subr.mxu0 0.0
    %3792 = vmatpush1.xpose.msra.mxu0 0.0
    %3793 = vmatprep.mubr.f32.mxu0 0.0
    %3794 = vmatmul.mubr.f32.gmra.mrb[0].mxu0 %v3725
    %v3795 = vpop.f32.mrb[0].mxu0
    %v3796 = vadd.f32 0.0, %v3795
    %v3797 = vpop.f32.mrb[0].mxu0
    %3798 = vdwg.mxu0
    %v3799 = vsel %vm467, %v3796, -inf
    %3800 = vmax.xlane.f32.xlu0 %v3799
    %v3801 = vpop.xlane.xlu0 %3800
    %v3802 = vsub.f32 %v3796, %v3801
    %v3803 = vmul.f32 %v3802, 1.442695
    %v3804 = vpow.pop %v3803
    %v3805 = vsel %vm467, %v3804, 0.0
    %3806 = vadd.xlane.f32.xlu0 %v3805
    %v3807 = vpop.xlane.xlu0 %3806
    %v3808 = vrcp.pop %v3807
    %v3809 = vmul.f32 %v3804, %v3808
    %3810 = vrot.lane.b32.xlu0 %v3302, 48
    %v3811 = vpop.permute.xlu0 %3810
    %v3813 = vsel %vm481, %v3809, 0
    %v3815 = vsel %vm260, %v3811, 0
    %3817 = vmatprep.subr.mxu0 0.0
    %3818 = vmatpush1.msra.mxu0 %v3815
    %3819 = vmatprep.subr.mxu0 0.0
    %3820 = vmatpush1.msra.mxu0 0.0
    %3821 = vmatprep.subr.mxu0 0.0
    %3822 = vmatpush1.msra.mxu0 0.0
    %3823 = vmatprep.subr.mxu0 0.0
    %3824 = vmatpush1.msra.mxu0 0.0
    %3825 = vmatprep.subr.mxu0 0.0
    %3826 = vmatpush1.msra.mxu0 0.0
    %3827 = vmatprep.subr.mxu0 0.0
    %3828 = vmatpush1.msra.mxu0 0.0
    %3829 = vmatprep.subr.mxu0 0.0
    %3830 = vmatpush1.msra.mxu0 0.0
    %3831 = vmatprep.subr.mxu0 0.0
    %3832 = vmatpush1.msra.mxu0 0.0
    %3833 = vmatprep.subr.mxu0 0.0
    %3834 = vmatpush1.msra.mxu0 0.0
    %3835 = vmatprep.subr.mxu0 0.0
    %3836 = vmatpush1.msra.mxu0 0.0
    %3837 = vmatprep.subr.mxu0 0.0
    %3838 = vmatpush1.msra.mxu0 0.0
    %3839 = vmatprep.subr.mxu0 0.0
    %3840 = vmatpush1.msra.mxu0 0.0
    %3841 = vmatprep.subr.mxu0 0.0
    %3842 = vmatpush1.msra.mxu0 0.0
    %3843 = vmatprep.subr.mxu0 0.0
    %3844 = vmatpush1.msra.mxu0 0.0
    %3845 = vmatprep.subr.mxu0 0.0
    %3846 = vmatpush1.msra.mxu0 0.0
    %3847 = vmatprep.subr.mxu0 0.0
    %3848 = vmatpush1.msra.mxu0 0.0
    %3849 = vmatprep.subr.mxu0 0.0
    %3850 = vmatpush1.msra.mxu0 0.0
    %3851 = vmatprep.subr.mxu0 0.0
    %3852 = vmatpush1.msra.mxu0 0.0
    %3853 = vmatprep.subr.mxu0 0.0
    %3854 = vmatpush1.msra.mxu0 0.0
    %3855 = vmatprep.subr.mxu0 0.0
    %3856 = vmatpush1.msra.mxu0 0.0
    %3857 = vmatprep.subr.mxu0 0.0
    %3858 = vmatpush1.msra.mxu0 0.0
    %3859 = vmatprep.subr.mxu0 0.0
    %3860 = vmatpush1.msra.mxu0 0.0
    %3861 = vmatprep.subr.mxu0 0.0
    %3862 = vmatpush1.msra.mxu0 0.0
    %3863 = vmatprep.subr.mxu0 0.0
    %3864 = vmatpush1.msra.mxu0 0.0
    %3865 = vmatprep.subr.mxu0 0.0
    %3866 = vmatpush1.msra.mxu0 0.0
    %3867 = vmatprep.subr.mxu0 0.0
    %3868 = vmatpush1.msra.mxu0 0.0
    %3869 = vmatprep.subr.mxu0 0.0
    %3870 = vmatpush1.msra.mxu0 0.0
    %3871 = vmatprep.subr.mxu0 0.0
    %3872 = vmatpush1.msra.mxu0 0.0
    %3873 = vmatprep.subr.mxu0 0.0
    %3874 = vmatpush1.msra.mxu0 0.0
    %3875 = vmatprep.subr.mxu0 0.0
    %3876 = vmatpush1.msra.mxu0 0.0
    %3877 = vmatprep.subr.mxu0 0.0
    %3878 = vmatpush1.msra.mxu0 0.0
    %3879 = vmatprep.subr.mxu0 0.0
    %3880 = vmatpush1.msra.mxu0 0.0
    %3881 = vmatprep.mubr.f32.mxu0 0.0
    %3882 = vmatmul.mubr.f32.gmra.mrb[0].mxu0 %v3813
    %v3883 = vpop.f32.mrb[0].mxu0
    %v3884 = vadd.f32 0.0, %v3883
    %v3885 = vpop.f32.mrb[0].mxu0
    %3886 = vdwg.mxu0
    %v3887 = vpack.c.bf16 %v3884, %v3884
    %v3889 = vsel %vm392, %v3887, 0
    %3891 = vmatprep.subr.bf16.mxu0 0
    %3892 = vmatpush1.bf16.msra.mxu0 %v3045
    %3893 = vmatprep.subr.bf16.mxu0 0
    %3894 = vmatpush1.bf16.msra.mxu0 0
    %3895 = vmatprep.subr.bf16.mxu0 0
    %3896 = vmatpush1.bf16.msra.mxu0 0
    %3897 = vmatprep.subr.bf16.mxu0 0
    %3898 = vmatpush1.bf16.msra.mxu0 0
    %3899 = vmatprep.subr.bf16.mxu0 0
    %3900 = vmatpush1.bf16.msra.mxu0 0
    %3901 = vmatprep.subr.bf16.mxu0 0
    %3902 = vmatpush1.bf16.msra.mxu0 0
    %3903 = vmatprep.subr.bf16.mxu0 0
    %3904 = vmatpush1.bf16.msra.mxu0 0
    %3905 = vmatprep.subr.bf16.mxu0 0
    %3906 = vmatpush1.bf16.msra.mxu0 0
    %3907 = vmatprep.subr.bf16.mxu0 0
    %3908 = vmatpush1.bf16.msra.mxu0 0
    %3909 = vmatprep.subr.bf16.mxu0 0
    %3910 = vmatpush1.bf16.msra.mxu0 0
    %3911 = vmatprep.subr.bf16.mxu0 0
    %3912 = vmatpush1.bf16.msra.mxu0 0
    %3913 = vmatprep.subr.bf16.mxu0 0
    %3914 = vmatpush1.bf16.msra.mxu0 0
    %3915 = vmatprep.subr.bf16.mxu0 0
    %3916 = vmatpush1.bf16.msra.mxu0 0
    %3917 = vmatprep.subr.bf16.mxu0 0
    %3918 = vmatpush1.bf16.msra.mxu0 0
    %3919 = vmatprep.subr.bf16.mxu0 0
    %3920 = vmatpush1.bf16.msra.mxu0 0
    %3921 = vmatprep.subr.bf16.mxu0 0
    %3922 = vmatpush1.bf16.msra.mxu0 0
    %3923 = vmatprep.mubr.bf16.mxu0 0
    %3924 = vmatmul.mubr.bf16.gmra.mrb[0].mxu0 %v3889
    %v3925 = vpop.f32.mrb[0].mxu0
    %v3926 = vadd.f32 0.0, %v3925
    %v3927 = vpop.f32.mrb[0].mxu0
    %v3928 = vpop.f32.mrb[0].mxu0
    %v3929 = vpop.f32.mrb[0].mxu0
    %3930 = vdwg.mxu0
    %v3931 = vadd.f32 %v3716, %v3926
    %3932 = vrot.lane.b32.xlu0 %v3302, 104
    %v3933 = vpop.permute.xlu0 %3932
    %3934 = vrot.lane.b32.xlu0 %v3302, 72
    %v3935 = vpop.permute.xlu0 %3934
    %v3936 = vsel %vm392, %v3933, 0
    %v3938 = vsel %vm392, %v3935, 0
    %3940 = vmatprep.subr.mxu0 0.0
    %3941 = vmatpush1.xpose.msra.mxu0 %v3938
    %3942 = vmatprep.subr.mxu0 0.0
    %3943 = vmatpush1.xpose.msra.mxu0 0.0
    %3944 = vmatprep.subr.mxu0 0.0
    %3945 = vmatpush1.xpose.msra.mxu0 0.0
    %3946 = vmatprep.subr.mxu0 0.0
    %3947 = vmatpush1.xpose.msra.mxu0 0.0
    %3948 = vmatprep.subr.mxu0 0.0
    %3949 = vmatpush1.xpose.msra.mxu0 0.0
    %3950 = vmatprep.subr.mxu0 0.0
    %3951 = vmatpush1.xpose.msra.mxu0 0.0
    %3952 = vmatprep.subr.mxu0 0.0
    %3953 = vmatpush1.xpose.msra.mxu0 0.0
    %3954 = vmatprep.subr.mxu0 0.0
    %3955 = vmatpush1.xpose.msra.mxu0 0.0
    %3956 = vmatprep.subr.mxu0 0.0
    %3957 = vmatpush1.xpose.msra.mxu0 0.0
    %3958 = vmatprep.subr.mxu0 0.0
    %3959 = vmatpush1.xpose.msra.mxu0 0.0
    %3960 = vmatprep.subr.mxu0 0.0
    %3961 = vmatpush1.xpose.msra.mxu0 0.0
    %3962 = vmatprep.subr.mxu0 0.0
    %3963 = vmatpush1.xpose.msra.mxu0 0.0
    %3964 = vmatprep.subr.mxu0 0.0
    %3965 = vmatpush1.xpose.msra.mxu0 0.0
    %3966 = vmatprep.subr.mxu0 0.0
    %3967 = vmatpush1.xpose.msra.mxu0 0.0
    %3968 = vmatprep.subr.mxu0 0.0
    %3969 = vmatpush1.xpose.msra.mxu0 0.0
    %3970 = vmatprep.subr.mxu0 0.0
    %3971 = vmatpush1.xpose.msra.mxu0 0.0
    %3972 = vmatprep.subr.mxu0 0.0
    %3973 = vmatpush1.xpose.msra.mxu0 0.0
    %3974 = vmatprep.subr.mxu0 0.0
    %3975 = vmatpush1.xpose.msra.mxu0 0.0
    %3976 = vmatprep.subr.mxu0 0.0
    %3977 = vmatpush1.xpose.msra.mxu0 0.0
    %3978 = vmatprep.subr.mxu0 0.0
    %3979 = vmatpush1.xpose.msra.mxu0 0.0
    %3980 = vmatprep.subr.mxu0 0.0
    %3981 = vmatpush1.xpose.msra.mxu0 0.0
    %3982 = vmatprep.subr.mxu0 0.0
    %3983 = vmatpush1.xpose.msra.mxu0 0.0
    %3984 = vmatprep.subr.mxu0 0.0
    %3985 = vmatpush1.xpose.msra.mxu0 0.0
    %3986 = vmatprep.subr.mxu0 0.0
    %3987 = vmatpush1.xpose.msra.mxu0 0.0
    %3988 = vmatprep.subr.mxu0 0.0
    %3989 = vmatpush1.xpose.msra.mxu0 0.0
    %3990 = vmatprep.subr.mxu0 0.0
    %3991 = vmatpush1.xpose.msra.mxu0 0.0
    %3992 = vmatprep.subr.mxu0 0.0
    %3993 = vmatpush1.xpose.msra.mxu0 0.0
    %3994 = vmatprep.subr.mxu0 0.0
    %3995 = vmatpush1.xpose.msra.mxu0 0.0
    %3996 = vmatprep.subr.mxu0 0.0
    %3997 = vmatpush1.xpose.msra.mxu0 0.0
    %3998 = vmatprep.subr.mxu0 0.0
    %3999 = vmatpush1.xpose.msra.mxu0 0.0
    %4000 = vmatprep.subr.mxu0 0.0
    %4001 = vmatpush1.xpose.msra.mxu0 0.0
    %4002 = vmatprep.subr.mxu0 0.0
    %4003 = vmatpush1.xpose.msra.mxu0 0.0
    %4004 = vmatprep.mubr.f32.mxu0 0.0
    %4005 = vmatmul.mubr.f32.gmra.mrb[0].mxu0 %v3936
    %v4006 = vpop.f32.mrb[0].mxu0
    %v4007 = vadd.f32 0.0, %v4006
    %v4008 = vpop.f32.mrb[0].mxu0
    %4009 = vdwg.mxu0
    %v4010 = vsel %vm467, %v4007, -inf
    %4011 = vmax.xlane.f32.xlu0 %v4010
    %v4012 = vpop.xlane.xlu0 %4011
    %v4013 = vsub.f32 %v4007, %v4012
    %v4014 = vmul.f32 %v4013, 1.442695
    %v4015 = vpow.pop %v4014
    %v4016 = vsel %vm467, %v4015, 0.0
    %4017 = vadd.xlane.f32.xlu0 %v4016
    %v4018 = vpop.xlane.xlu0 %4017
    %v4019 = vrcp.pop %v4018
    %v4020 = vmul.f32 %v4015, %v4019
    %4021 = vrot.lane.b32.xlu0 %v3302, 40
    %v4022 = vpop.permute.xlu0 %4021
    %v4024 = vsel %vm481, %v4020, 0
    %v4026 = vsel %vm260, %v4022, 0
    %4028 = vmatprep.subr.mxu0 0.0
    %4029 = vmatpush1.msra.mxu0 %v4026
    %4030 = vmatprep.subr.mxu0 0.0
    %4031 = vmatpush1.msra.mxu0 0.0
    %4032 = vmatprep.subr.mxu0 0.0
    %4033 = vmatpush1.msra.mxu0 0.0
    %4034 = vmatprep.subr.mxu0 0.0
    %4035 = vmatpush1.msra.mxu0 0.0
    %4036 = vmatprep.subr.mxu0 0.0
    %4037 = vmatpush1.msra.mxu0 0.0
    %4038 = vmatprep.subr.mxu0 0.0
    %4039 = vmatpush1.msra.mxu0 0.0
    %4040 = vmatprep.subr.mxu0 0.0
    %4041 = vmatpush1.msra.mxu0 0.0
    %4042 = vmatprep.subr.mxu0 0.0
    %4043 = vmatpush1.msra.mxu0 0.0
    %4044 = vmatprep.subr.mxu0 0.0
    %4045 = vmatpush1.msra.mxu0 0.0
    %4046 = vmatprep.subr.mxu0 0.0
    %4047 = vmatpush1.msra.mxu0 0.0
    %4048 = vmatprep.subr.mxu0 0.0
    %4049 = vmatpush1.msra.mxu0 0.0
    %4050 = vmatprep.subr.mxu0 0.0
    %4051 = vmatpush1.msra.mxu0 0.0
    %4052 = vmatprep.subr.mxu0 0.0
    %4053 = vmatpush1.msra.mxu0 0.0
    %4054 = vmatprep.subr.mxu0 0.0
    %4055 = vmatpush1.msra.mxu0 0.0
    %4056 = vmatprep.subr.mxu0 0.0
    %4057 = vmatpush1.msra.mxu0 0.0
    %4058 = vmatprep.subr.mxu0 0.0
    %4059 = vmatpush1.msra.mxu0 0.0
    %4060 = vmatprep.subr.mxu0 0.0
    %4061 = vmatpush1.msra.mxu0 0.0
    %4062 = vmatprep.subr.mxu0 0.0
    %4063 = vmatpush1.msra.mxu0 0.0
    %4064 = vmatprep.subr.mxu0 0.0
    %4065 = vmatpush1.msra.mxu0 0.0
    %4066 = vmatprep.subr.mxu0 0.0
    %4067 = vmatpush1.msra.mxu0 0.0
    %4068 = vmatprep.subr.mxu0 0.0
    %4069 = vmatpush1.msra.mxu0 0.0
    %4070 = vmatprep.subr.mxu0 0.0
    %4071 = vmatpush1.msra.mxu0 0.0
    %4072 = vmatprep.subr.mxu0 0.0
    %4073 = vmatpush1.msra.mxu0 0.0
    %4074 = vmatprep.subr.mxu0 0.0
    %4075 = vmatpush1.msra.mxu0 0.0
    %4076 = vmatprep.subr.mxu0 0.0
    %4077 = vmatpush1.msra.mxu0 0.0
    %4078 = vmatprep.subr.mxu0 0.0
    %4079 = vmatpush1.msra.mxu0 0.0
    %4080 = vmatprep.subr.mxu0 0.0
    %4081 = vmatpush1.msra.mxu0 0.0
    %4082 = vmatprep.subr.mxu0 0.0
    %4083 = vmatpush1.msra.mxu0 0.0
    %4084 = vmatprep.subr.mxu0 0.0
    %4085 = vmatpush1.msra.mxu0 0.0
    %4086 = vmatprep.subr.mxu0 0.0
    %4087 = vmatpush1.msra.mxu0 0.0
    %4088 = vmatprep.subr.mxu0 0.0
    %4089 = vmatpush1.msra.mxu0 0.0
    %4090 = vmatprep.subr.mxu0 0.0
    %4091 = vmatpush1.msra.mxu0 0.0
    %4092 = vmatprep.mubr.f32.mxu0 0.0
    %4093 = vmatmul.mubr.f32.gmra.mrb[0].mxu0 %v4024
    %v4094 = vpop.f32.mrb[0].mxu0
    %v4095 = vadd.f32 0.0, %v4094
    %v4096 = vpop.f32.mrb[0].mxu0
    %4097 = vdwg.mxu0
    %v4098 = vpack.c.bf16 %v4095, %v4095
    %v4100 = vsel %vm392, %v4098, 0
    %4102 = vmatprep.subr.bf16.mxu0 0
    %4103 = vmatpush1.bf16.msra.mxu0 %v3259
    %4104 = vmatprep.subr.bf16.mxu0 0
    %4105 = vmatpush1.bf16.msra.mxu0 0
    %4106 = vmatprep.subr.bf16.mxu0 0
    %4107 = vmatpush1.bf16.msra.mxu0 0
    %4108 = vmatprep.subr.bf16.mxu0 0
    %4109 = vmatpush1.bf16.msra.mxu0 0
    %4110 = vmatprep.subr.bf16.mxu0 0
    %4111 = vmatpush1.bf16.msra.mxu0 0
    %4112 = vmatprep.subr.bf16.mxu0 0
    %4113 = vmatpush1.bf16.msra.mxu0 0
    %4114 = vmatprep.subr.bf16.mxu0 0
    %4115 = vmatpush1.bf16.msra.mxu0 0
    %4116 = vmatprep.subr.bf16.mxu0 0
    %4117 = vmatpush1.bf16.msra.mxu0 0
    %4118 = vmatprep.subr.bf16.mxu0 0
    %4119 = vmatpush1.bf16.msra.mxu0 0
    %4120 = vmatprep.subr.bf16.mxu0 0
    %4121 = vmatpush1.bf16.msra.mxu0 0
    %4122 = vmatprep.subr.bf16.mxu0 0
    %4123 = vmatpush1.bf16.msra.mxu0 0
    %4124 = vmatprep.subr.bf16.mxu0 0
    %4125 = vmatpush1.bf16.msra.mxu0 0
    %4126 = vmatprep.subr.bf16.mxu0 0
    %4127 = vmatpush1.bf16.msra.mxu0 0
    %4128 = vmatprep.subr.bf16.mxu0 0
    %4129 = vmatpush1.bf16.msra.mxu0 0
    %4130 = vmatprep.subr.bf16.mxu0 0
    %4131 = vmatpush1.bf16.msra.mxu0 0
    %4132 = vmatprep.subr.bf16.mxu0 0
    %4133 = vmatpush1.bf16.msra.mxu0 0
    %4134 = vmatprep.mubr.bf16.mxu0 0
    %4135 = vmatmul.mubr.bf16.gmra.mrb[0].mxu0 %v4100
    %v4136 = vpop.f32.mrb[0].mxu0
    %v4137 = vadd.f32 0.0, %v4136
    %v4138 = vpop.f32.mrb[0].mxu0
    %v4139 = vpop.f32.mrb[0].mxu0
    %v4140 = vpop.f32.mrb[0].mxu0
    %4141 = vdwg.mxu0
    %v4142 = vadd.f32 %v3931, %v4137
    %v4144 = vrot.slane %v4142, 5
    %v4146 = vsel %vm260, %v3301, %v4144
    %v4147 = vadd.f32 %v2311, %v4146
    %v4149 = vlaneseq
    %v4150 = vshrl.u32 %v4149, 7
    %v4151 = vsub.s32 0, %v4150
    %v4152 = vrot.slane %v2329, %v4151
    %v4154 = vadd.f32 %v4147, %v4152
    %v4155 = vsel %vm298, %v4154, 0.0
    %4156 = vadd.xlane.f32.xlu0 %v4155
    %v4157 = vpop.xlane.xlu0 %4156
    %v4158 = vmul.f32 %v4157, %v302
    %v4159 = vsub.f32 %v4154, %v4158
    %v4160 = vmul.f32 %v4159, %v4159
    %v4161 = vsel %vm298, %v4160, 0.0
    %4162 = vadd.xlane.f32.xlu0 %v4161
    %v4163 = vpop.xlane.xlu0 %4162
    %v4164 = vmul.f32 %v4163, %v302
    %v4165 = vadd.f32 %v4164, 1e-05
    %v4166 = vrsqrt.pop %v4165
    %v4167 = vmul.f32 %v4159, %v4166
    %v4169 = vlaneseq
    %v4170 = vshrl.u32 %v4169, 7
    %v4171 = vsub.s32 0, %v4170
    %v4172 = vrot.slane %v2331, %v4171
    %v4174 = vmul.f32 %v4167, %v4172
    %v4176 = vlaneseq
    %v4177 = vshrl.u32 %v4176, 7
    %v4178 = vsub.s32 0, %v4177
    %v4179 = vrot.slane %v2333, %v4178
    %v4181 = vadd.f32 %v4174, %v4179
    %v4182 = vpack.c.bf16 %v4181, %v4181
    %v4184 = vlaneseq
    %v4185 = vshrl.u32 %v4184, 7
    %v4186 = vsub.s32 0, %v4185
    %v4187 = vrot.slane %v2340, %v4186
    %v4193 = vunpack.c.l.b16 %v2335
    %v4194 = vunpack.c.l.b16 %v2336
    %v4195 = vunpack.c.l.b16 %v2337
    %v4196 = vunpack.c.l.b16 %v2338
    %v4197 = vpack.c.b16 %v4194, %v4193
    %v4198 = vpack.c.b16 %v4196, %v4195
    %v4202 = vsel %vm157, %v4182, 0
    %4204 = vmatprep.subr.bf16.mxu0 0
    %4205 = vmatpush1.bf16.msra.mxu0 %v4197
    %4206 = vmatprep.subr.bf16.mxu0 0
    %4207 = vmatpush1.bf16.msra.mxu0 %v4198
    %4208 = vmatprep.subr.bf16.mxu0 0
    %4209 = vmatpush1.bf16.msra.mxu0 0
    %4210 = vmatprep.subr.bf16.mxu0 0
    %4211 = vmatpush1.bf16.msra.mxu0 0
    %4212 = vmatprep.subr.bf16.mxu0 0
    %4213 = vmatpush1.bf16.msra.mxu0 0
    %4214 = vmatprep.subr.bf16.mxu0 0
    %4215 = vmatpush1.bf16.msra.mxu0 0
    %4216 = vmatprep.subr.bf16.mxu0 0
    %4217 = vmatpush1.bf16.msra.mxu0 0
    %4218 = vmatprep.subr.bf16.mxu0 0
    %4219 = vmatpush1.bf16.msra.mxu0 0
    %4220 = vmatprep.subr.bf16.mxu0 0
    %4221 = vmatpush1.bf16.msra.mxu0 0
    %4222 = vmatprep.subr.bf16.mxu0 0
    %4223 = vmatpush1.bf16.msra.mxu0 0
    %4224 = vmatprep.subr.bf16.mxu0 0
    %4225 = vmatpush1.bf16.msra.mxu0 0
    %4226 = vmatprep.subr.bf16.mxu0 0
    %4227 = vmatpush1.bf16.msra.mxu0 0
    %4228 = vmatprep.subr.bf16.mxu0 0
    %4229 = vmatpush1.bf16.msra.mxu0 0
    %4230 = vmatprep.subr.bf16.mxu0 0
    %4231 = vmatpush1.bf16.msra.mxu0 0
    %4232 = vmatprep.subr.bf16.mxu0 0
    %4233 = vmatpush1.bf16.msra.mxu0 0
    %4234 = vmatprep.subr.bf16.mxu0 0
    %4235 = vmatpush1.bf16.msra.mxu0 0
    %4236 = vmatprep.mubr.bf16.mxu0 0
    %4237 = vmatmul.mubr.bf16.gmra.mrb[0].mxu0 %v4202
    %v4238 = vpop.f32.mrb[0].mxu0
    %v4239 = vadd.f32 %v4187, %v4238
    %v4240 = vpop.f32.mrb[0].mxu0
    %v4241 = vpop.f32.mrb[0].mxu0
    %v4242 = vpop.f32.mrb[0].mxu0
    %4243 = vdwg.mxu0
    %v4244 = vmul.f32 %v4239, 0.5
    %v4245 = vmul.f32 %v4239, 0.70710677
    %vm4246 = vcmp.ge.f32.partialorder %v4245, 0.0
    %v4247 = vsel %vm4246, 1.0, -1.0
    %v4248 = vand.u32 2147483647, %v4245
    %v4249 = vmul.f32 %v4248, 0.3275911
    %v4250 = vadd.f32 %v4249, 1.0
    %v4251 = vrcp.pop %v4250
    %v4252 = vmul.f32 1.0, %v4251
    %v4253 = vmul.f32 %v4252, 1.0614054
    %v4254 = vadd.f32 %v4253, -1.4531521
    %v4255 = vmul.f32 %v4254, %v4252
    %v4256 = vadd.f32 %v4255, 1.4214138
    %v4257 = vmul.f32 %v4256, %v4252
    %v4258 = vadd.f32 %v4257, -0.28449672
    %v4259 = vmul.f32 %v4258, %v4252
    %v4260 = vadd.f32 %v4259, 0.2548296
    %v4261 = vmul.f32 %v4260, %v4252
    %v4262 = vsub.f32 0.0, %v4248
    %v4263 = vmul.f32 %v4262, %v4248
    %v4264 = vmul.f32 %v4263, 1.442695
    %v4265 = vpow.pop %v4264
    %v4266 = vmul.f32 %v4261, %v4265
    %v4267 = vsub.f32 1.0, %v4266
    %v4268 = vmul.f32 %v4247, %v4267
    %v4269 = vadd.f32 %v4268, 1.0
    %v4270 = vmul.f32 %v4244, %v4269
    %v4271 = vpack.c.bf16 %v4270, %v4270
    %v4288 = vunpack.c.l.b16 %v2342
    %v4289 = vunpack.c.l.b16 %v2343
    %v4290 = vunpack.c.l.b16 %v2344
    %v4291 = vunpack.c.l.b16 %v2345
    %v4292 = vunpack.c.l.b16 %v2346
    %v4293 = vunpack.c.l.b16 %v2347
    %v4294 = vunpack.c.l.b16 %v2348
    %v4295 = vunpack.c.l.b16 %v2349
    %v4296 = vunpack.c.l.b16 %v2350
    %v4297 = vunpack.c.l.b16 %v2351
    %v4298 = vunpack.c.l.b16 %v2352
    %v4299 = vunpack.c.l.b16 %v2353
    %v4300 = vunpack.c.l.b16 %v2354
    %v4301 = vunpack.c.l.b16 %v2355
    %v4302 = vunpack.c.l.b16 %v2356
    %v4303 = vunpack.c.l.b16 %v2357
    %v4304 = vpack.c.b16 %v4289, %v4288
    %v4305 = vpack.c.b16 %v4291, %v4290
    %v4306 = vpack.c.b16 %v4293, %v4292
    %v4307 = vpack.c.b16 %v4295, %v4294
    %v4308 = vpack.c.b16 %v4297, %v4296
    %v4309 = vpack.c.b16 %v4299, %v4298
    %v4310 = vpack.c.b16 %v4301, %v4300
    %v4311 = vpack.c.b16 %v4303, %v4302
    %4320 = vmatprep.subr.bf16.mxu0 0
    %4321 = vmatpush1.bf16.msra.mxu0 %v4304
    %4322 = vmatprep.subr.bf16.mxu0 0
    %4323 = vmatpush1.bf16.msra.mxu0 %v4305
    %4324 = vmatprep.subr.bf16.mxu0 0
    %4325 = vmatpush1.bf16.msra.mxu0 %v4306
    %4326 = vmatprep.subr.bf16.mxu0 0
    %4327 = vmatpush1.bf16.msra.mxu0 %v4307
    %4328 = vmatprep.subr.bf16.mxu0 0
    %4329 = vmatpush1.bf16.msra.mxu0 %v4308
    %4330 = vmatprep.subr.bf16.mxu0 0
    %4331 = vmatpush1.bf16.msra.mxu0 %v4309
    %4332 = vmatprep.subr.bf16.mxu0 0
    %4333 = vmatpush1.bf16.msra.mxu0 %v4310
    %4334 = vmatprep.subr.bf16.mxu0 0
    %4335 = vmatpush1.bf16.msra.mxu0 %v4311
    %4336 = vmatprep.subr.bf16.mxu0 0
    %4337 = vmatpush1.bf16.msra.mxu0 0
    %4338 = vmatprep.subr.bf16.mxu0 0
    %4339 = vmatpush1.bf16.msra.mxu0 0
    %4340 = vmatprep.subr.bf16.mxu0 0
    %4341 = vmatpush1.bf16.msra.mxu0 0
    %4342 = vmatprep.subr.bf16.mxu0 0
    %4343 = vmatpush1.bf16.msra.mxu0 0
    %4344 = vmatprep.subr.bf16.mxu0 0
    %4345 = vmatpush1.bf16.msra.mxu0 0
    %4346 = vmatprep.subr.bf16.mxu0 0
    %4347 = vmatpush1.bf16.msra.mxu0 0
    %4348 = vmatprep.subr.bf16.mxu0 0
    %4349 = vmatpush1.bf16.msra.mxu0 0
    %4350 = vmatprep.subr.bf16.mxu0 0
    %4351 = vmatpush1.bf16.msra.mxu0 0
    %4352 = vmatprep.mubr.bf16.mxu0 0
    %4353 = vmatmul.mubr.bf16.gmra.mrb[0].mxu0 %v4271
    %v4354 = vpop.f32.mrb[0].mxu0
    %v4355 = vadd.f32 0.0, %v4354
    %v4356 = vpop.f32.mrb[0].mxu0
    %v4357 = vpop.f32.mrb[0].mxu0
    %v4358 = vpop.f32.mrb[0].mxu0
    %4359 = vdwg.mxu0
    %v4360 = vadd.f32 %v4154, %v4355
    %v4362 = vlaneseq
    %v4363 = vshrl.u32 %v4362, 7
    %v4364 = vsub.s32 0, %v4363
    %v4365 = vrot.slane %v2359, %v4364
    %v4367 = vadd.f32 %v4360, %v4365
    %v4368 = vld [vmem:[%s18] sm:$0x1]
    %v4369 = vld [vmem:[%s19] sm:$0x1]
    %v4370 = vsel %vm298, %v4367, 0.0
    %4371 = vadd.xlane.f32.xlu0 %v4370
    %v4372 = vpop.xlane.xlu0 %4371
    %v4373 = vmul.f32 %v4372, %v302
    %v4374 = vsub.f32 %v4367, %v4373
    %v4375 = vmul.f32 %v4374, %v4374
    %v4376 = vsel %vm298, %v4375, 0.0
    %4377 = vadd.xlane.f32.xlu0 %v4376
    %v4378 = vpop.xlane.xlu0 %4377
    %v4379 = vmul.f32 %v4378, %v302
    %v4380 = vadd.f32 %v4379, 1e-05
    %v4381 = vrsqrt.pop %v4380
    %v4382 = vmul.f32 %v4374, %v4381
    %v4384 = vlaneseq
    %v4385 = vshrl.u32 %v4384, 7
    %v4386 = vsub.s32 0, %v4385
    %v4387 = vrot.slane %v4368, %v4386
    %v4389 = vmul.f32 %v4382, %v4387
    %v4391 = vlaneseq
    %v4392 = vshrl.u32 %v4391, 7
    %v4393 = vsub.s32 0, %v4392
    %v4394 = vrot.slane %v4369, %v4393
    %v4396 = vadd.f32 %v4389, %v4394
    %v4397 = vld [vmem:[%s20] sm:$0xf]
    %v4398 = vld [vmem:[%s20 + $0x4] sm:$0xf]
    %v4399 = vld [vmem:[%s20 + $0x8] sm:$0xf]
    %v4400 = vld [vmem:[%s20 + $0xc] sm:$0xf]
    %v4401 = vpack.c.bf16 %v4396, %v4396
    %v4402 = vld [vmem:[%s21] sm:$0x1]
    %v4404 = vlaneseq
    %v4405 = vshrl.u32 %v4404, 7
    %v4406 = vsub.s32 0, %v4405
    %v4407 = vrot.slane %v4402, %v4406
    %v4413 = vunpack.c.l.b16 %v4397
    %v4414 = vunpack.c.l.b16 %v4398
    %v4415 = vunpack.c.l.b16 %v4399
    %v4416 = vunpack.c.l.b16 %v4400
    %v4417 = vpack.c.b16 %v4414, %v4413
    %v4418 = vpack.c.b16 %v4416, %v4415
    %v4422 = vsel %vm157, %v4401, 0
    %4424 = vmatprep.subr.bf16.mxu0 0
    %4425 = vmatpush1.bf16.msra.mxu0 %v4417
    %4426 = vmatprep.subr.bf16.mxu0 0
    %4427 = vmatpush1.bf16.msra.mxu0 %v4418
    %4428 = vmatprep.subr.bf16.mxu0 0
    %4429 = vmatpush1.bf16.msra.mxu0 0
    %4430 = vmatprep.subr.bf16.mxu0 0
    %4431 = vmatpush1.bf16.msra.mxu0 0
    %4432 = vmatprep.subr.bf16.mxu0 0
    %4433 = vmatpush1.bf16.msra.mxu0 0
    %4434 = vmatprep.subr.bf16.mxu0 0
    %4435 = vmatpush1.bf16.msra.mxu0 0
    %4436 = vmatprep.subr.bf16.mxu0 0
    %4437 = vmatpush1.bf16.msra.mxu0 0
    %4438 = vmatprep.subr.bf16.mxu0 0
    %4439 = vmatpush1.bf16.msra.mxu0 0
    %4440 = vmatprep.subr.bf16.mxu0 0
    %4441 = vmatpush1.bf16.msra.mxu0 0
    %4442 = vmatprep.subr.bf16.mxu0 0
    %4443 = vmatpush1.bf16.msra.mxu0 0
    %4444 = vmatprep.subr.bf16.mxu0 0
    %4445 = vmatpush1.bf16.msra.mxu0 0
    %4446 = vmatprep.subr.bf16.mxu0 0
    %4447 = vmatpush1.bf16.msra.mxu0 0
    %4448 = vmatprep.subr.bf16.mxu0 0
    %4449 = vmatpush1.bf16.msra.mxu0 0
    %4450 = vmatprep.subr.bf16.mxu0 0
    %4451 = vmatpush1.bf16.msra.mxu0 0
    %4452 = vmatprep.subr.bf16.mxu0 0
    %4453 = vmatpush1.bf16.msra.mxu0 0
    %4454 = vmatprep.subr.bf16.mxu0 0
    %4455 = vmatpush1.bf16.msra.mxu0 0
    %4456 = vmatprep.mubr.bf16.mxu0 0
    %4457 = vmatmul.mubr.bf16.gmra.mrb[0].mxu0 %v4422
    %v4458 = vpop.f32.mrb[0].mxu0
    %v4459 = vadd.f32 %v4407, %v4458
    %v4460 = vpop.f32.mrb[0].mxu0
    %v4461 = vpop.f32.mrb[0].mxu0
    %v4462 = vpop.f32.mrb[0].mxu0
    %4463 = vdwg.mxu0
    %vm4464 = vcmask 124928
    %4465 = vst.msk [vmem:[%s22] sm:$0x7] %vm4464, %v4459
    %s4466 = scalar_lea.vmem %s22, 4
    %vm4467 = vcmask 128003
    %4468 = vst.msk [vmem:[%s4466 - $0x3] sm:$0x38] %vm4467, %v4459
    // Predicated region
    $region94: #{forward.2} parent=1 // pred_check
      _
    $region95: #{forward.2} parent=1 // pred_check_branch
      %4470 = sbr.rel (0) target = $region97
    $region96: #{forward.2} parent=1 // pred_region
      _
    $region97: #{forward.2} parent=1 // pred_fallthru
      _
    // Predicated region
    $region98: #{forward.2} parent=1 // pred_check
      _
    $region99: #{forward.2} parent=1 // pred_check_branch
      %4472 = sbr.rel (0) target = $region101
    $region100: #{forward.2} parent=1 // pred_region
      _
    $region101: #{forward.2} parent=1 // pred_fallthru
      _
    %4473 = vsyncpa [#allocation3], 1

</llo_original>
